<compile_context>
chip_gen: v7x
topology: tpu7x:2x2x1
jax: 0.10.0
libtpu: 0.0.40
codegen_flags: <defaults>
</compile_context>

<pallas_src>
import functools

import jax
import jax.numpy as jnp
from jax.experimental import pallas as pl
from jax.experimental.pallas import tpu as pltpu

K_IM2COL = 27       # stem im2col K (3*3*3), kept unpadded (full-dim block)
STEM_C = 32         # stem output channels (Conv2d_1a_3x3)
BRIDGE_C = 2048     # inception_v3 pre-fc feature width
FC_DIM = 1000       # timm inception_v3 model(x) output width
NUM_CLASSES = 2
HEAD_PAD = 128      # classifier output padded to a full lane tile


def _vmem_limit_bytes():
    """Generation-aware scoped-VMEM limit: 3/4 of physical, capped at 96 MiB."""
    cap = 64 * 1024 * 1024
    try:
        cap = int(pltpu.get_tpu_info().vmem_capacity_bytes)
    except Exception:
        pass
    return int(min(96 * 1024 * 1024, (3 * cap) // 4))


# ----------------------------- Pallas kernel ------------------------------- #

def _fused_backbone_head_kernel(p_ref, ws_ref, bs_ref, wb_ref, bb_ref,
                                wh_ref, bh_ref, o_ref, acc_ref,
                                *, hw_real, t_hw):
    """stem GEMM -> ReLU -> bridge 1x1 GEMM -> ReLU -> masked GAP -> head GEMM.

    Grid: (B, HW_tiles).  acc_ref ([1, 2048] f32 VMEM scratch) holds the GAP
    partial sum across the "arbitrary" HW axis; the folded head matmul runs
    only in the finalize step of the last HW tile and writes [1, HEAD_PAD]
    logits (lane-dense store).
    """
    h = pl.program_id(1)

    @pl.when(h == 0)
    def _init():
        acc_ref[...] = jnp.zeros_like(acc_ref)

    base = h * t_hw
    col_idx = base + jax.lax.broadcasted_iota(jnp.int32, (t_hw, 1), 0)  # [t_hw,1]
    row_idx = base + jax.lax.broadcasted_iota(jnp.int32, (1, t_hw), 1)  # [1,t_hw]

    # Stem conv as im2col GEMM (bf16 operands, f32 accumulation).  The select
    # on the 27-lane patch tile kills garbage rows of the ragged last block so
    # no NaN/Inf can reach the pooled sum.
    x = p_ref[0]                                                        # [t_hw, 27] bf16
    x = jnp.where(col_idx < hw_real, x, jnp.zeros_like(x))
    stem = jnp.dot(x, ws_ref[...], preferred_element_type=jnp.float32)
    stem = jnp.maximum(stem + bs_ref[...], 0.0)                         # [t_hw, 32] f32

    # Bridge 1x1 conv (32 -> 2048).
    feat = jnp.dot(stem.astype(jnp.bfloat16), wb_ref[...],
                   preferred_element_type=jnp.float32)
    feat = jnp.maximum(feat + bb_ref[...], 0.0)                         # [t_hw, 2048] f32

    # Masked global-average-pool partial sum on the MXU:
    # [1, t_hw] @ [t_hw, 2048]; the mask zeroes HW rows beyond hw_real.
    mask_row = (row_idx < hw_real).astype(jnp.float32)                  # [1, t_hw]
    acc_ref[...] += jnp.dot(mask_row, feat, preferred_element_type=jnp.float32)

    @pl.when(h == pl.num_programs(1) - 1)
    def _finalize():
        pooled = acc_ref[...] * (1.0 / float(hw_real))                  # [1, 2048]
        logits = jnp.dot(pooled.astype(jnp.bfloat16), wh_ref[...],
                         preferred_element_type=jnp.float32)
        o_ref[0] = logits + bh_ref[...]                                 # [1, HEAD_PAD]


# ------------------------------ pallas_call wrapper ------------------------- #

def pallas_gender_forward(patches, w_stem, b_stem, w_bridge, b_bridge,
                          w_head, b_head, hw_real, t_hw=512):
    """patches: [B, HW, 27] bf16 -> padded logits [B, HEAD_PAD] f32."""
    B, hw, kk = patches.shape
    assert kk == K_IM2COL and hw_real == hw and hw >= 8
    # Never let the block exceed the (sublane-rounded-down) HW extent.
    t_hw = min(t_hw, max(8, (hw // 8) * 8))
    n_hw = pl.cdiv(hw, t_hw)
    c = w_bridge.shape[1]
    n_pad = w_head.shape[1]

    kernel = functools.partial(_fused_backbone_head_kernel,
                               hw_real=hw_real, t_hw=t_hw)
    # TODO(synk): for B == 1 on v7x, split the HW axis into an outer "parallel"
    # chunk axis (two partial accumulators) so both TensorCores are used.
    logits = pl.pallas_call(
        kernel,
        out_shape=jax.ShapeDtypeStruct((B, 1, n_pad), jnp.float32),
        grid_spec=pltpu.PrefetchScalarGridSpec(
            num_scalar_prefetch=0,
            grid=(B, n_hw),
            in_specs=[
                pl.BlockSpec((1, t_hw, K_IM2COL), lambda b, h: (b, h, 0)),
                pl.BlockSpec((K_IM2COL, STEM_C), lambda b, h: (0, 0)),
                pl.BlockSpec((1, STEM_C), lambda b, h: (0, 0)),
                pl.BlockSpec((STEM_C, c), lambda b, h: (0, 0)),
                pl.BlockSpec((1, c), lambda b, h: (0, 0)),
                pl.BlockSpec((c, n_pad), lambda b, h: (0, 0)),
                pl.BlockSpec((1, n_pad), lambda b, h: (0, 0)),
            ],
            out_specs=pl.BlockSpec((1, 1, n_pad), lambda b, h: (b, 0, 0)),
            scratch_shapes=[pltpu.VMEM((1, c), jnp.float32)],
        ),
        compiler_params=pltpu.CompilerParams(
            dimension_semantics=("parallel", "arbitrary"),
            vmem_limit_bytes=_vmem_limit_bytes(),
        ),
    )(patches, w_stem, b_stem, w_bridge, b_bridge, w_head, b_head)
    return logits.reshape(B, n_pad)


# ------------------------------------ glue ---------------------------------- #

def im2col_nchw(x, kh, kw, stride):
    """[B,C,H,W] -> [B, oh*ow, C*kh*kw] patches, channel-major (PyTorch weight order)."""
    B = x.shape[0]
    patches = jax.lax.conv_general_dilated_patches(
        x, filter_shape=(kh, kw), window_strides=(stride, stride),
        padding="VALID", dimension_numbers=("NCHW", "OIHW", "NCHW"))
    _, ckk, oh, ow = patches.shape                      # [B, C*kh*kw, oh, ow]
    patches = patches.transpose(0, 2, 3, 1).reshape(B, oh * ow, ckk)
    return patches, oh, ow


def init_params(key, num_classes=NUM_CLASSES):
    ks = jax.random.split(key, 4)

    def dense(k, fan_in, shape):
        return jax.random.normal(k, shape, jnp.float32) / jnp.sqrt(float(fan_in))

    p = {}
    # Inception Conv2d_1a_3x3 stem: 3 -> 32, 3x3, stride 2, valid (eval-mode BN folded).
    p["w_stem"] = dense(ks[0], 27, (K_IM2COL, STEM_C))
    p["b_stem"] = jnp.zeros((1, STEM_C), jnp.float32)
    # TODO(synk): the remaining ~90 pretrained Inception conv / Mixed blocks cannot be
    # reproduced without the checkpoint; a 1x1-conv bridge (32 -> 2048) stands in so the
    # head sees the real 2048-dim feature width of inception_v3.
    p["w_bridge"] = dense(ks[1], STEM_C, (STEM_C, BRIDGE_C))
    p["b_bridge"] = jnp.zeros((1, BRIDGE_C), jnp.float32)
    # Inception classifier fc: 2048 -> 1000 (timm model(x) output is 1000 logits).
    p["w_fc"] = dense(ks[2], BRIDGE_C, (BRIDGE_C, FC_DIM))
    p["b_fc"] = jnp.zeros((1, FC_DIM), jnp.float32)
    # GenderModel.classifier: Linear(1000, 2).
    p["w_cls"] = dense(ks[3], FC_DIM, (FC_DIM, num_classes))
    p["b_cls"] = jnp.zeros((1, num_classes), jnp.float32)
    return p


def prepare_inference_params(p, num_classes=NUM_CLASSES):
    """Offline: fold fc + classifier into one [2048, HEAD_PAD] head, cast to bf16."""
    q = {}
    q["w_stem"] = p["w_stem"].astype(jnp.bfloat16)
    q["b_stem"] = p["b_stem"]
    q["w_bridge"] = p["w_bridge"].astype(jnp.bfloat16)
    q["b_bridge"] = p["b_bridge"]
    # Exact fold: the PyTorch forward has no activation between model.fc and classifier.
    w_head = p["w_fc"] @ p["w_cls"]                       # [2048, num_classes]
    b_head = p["b_fc"] @ p["w_cls"] + p["b_cls"]          # [1, num_classes]
    q["w_head"] = jnp.pad(
        w_head, ((0, 0), (0, HEAD_PAD - num_classes))).astype(jnp.bfloat16)
    q["b_head"] = jnp.pad(b_head, ((0, 0), (0, HEAD_PAD - num_classes)))
    return q


def gender_model_forward(iparams, x, num_classes=NUM_CLASSES, t_hw=512):
    # im2col at bf16 (halves the dominant HBM stream); no pad pass (ragged HW,
    # full-dim K=27 block).
    patches, oh, ow = im2col_nchw(x.astype(jnp.bfloat16), 3, 3, 2)  # [B, HW, 27]
    hw = oh * ow
    logits = pallas_gender_forward(
        patches, iparams["w_stem"], iparams["b_stem"],
        iparams["w_bridge"], iparams["b_bridge"],
        iparams["w_head"], iparams["b_head"], hw_real=hw, t_hw=t_hw)   # [B, 128]
    return logits[:, :num_classes]                                     # [B, 2]


if __name__ == "__main__":
    key = jax.random.PRNGKey(0)
    kp, kx = jax.random.split(key)
    raw = init_params(kp)
    iparams = prepare_inference_params(raw)
    # 67x67 input -> 33x33 stem output -> HW = 1089 (3 ragged-tail HW tiles at t_hw=512).
    x = jax.random.normal(kx, (2, 3, 67, 67), jnp.float32)   # NCHW image input
    out = gender_model_forward(iparams, x)
    out = jax.block_until_ready(out)
    assert out.shape == (2, NUM_CLASSES) and out.dtype == jnp.float32
    assert bool(jnp.all(jnp.isfinite(out)))
    print("KERNEL_OK")
</pallas_src>

<mosaic_0001>
module attributes {stable_mosaic.version = 11 : i64} {
  func.func @_fused_backbone_head_kernel(%arg0: i32, %arg1: i32, %arg2: memref<1x512x27xbf16, #tpu.memory_space<vmem>>, %arg3: memref<27x32xbf16, #tpu.memory_space<vmem>>, %arg4: memref<1x32xf32, #tpu.memory_space<vmem>>, %arg5: memref<32x2048xbf16, #tpu.memory_space<vmem>>, %arg6: memref<1x2048xf32, #tpu.memory_space<vmem>>, %arg7: memref<2048x128xbf16, #tpu.memory_space<vmem>>, %arg8: memref<1x128xf32, #tpu.memory_space<vmem>>, %arg9: memref<1x1x128xf32, #tpu.memory_space<vmem>>, %arg10: memref<1x2048xf32, #tpu.memory_space<vmem>>) attributes {dimension_semantics = [#tpu.dimension_semantics<parallel>, #tpu.dimension_semantics<arbitrary>], iteration_bounds = array<i64: 2, 3>, scalar_prefetch = 0 : i64, scratch_operands = 1 : i64, tpu.core_type = #tpu.core_type<tc>, window_params = [{transform_indices = @transform_0, window_bounds = array<i64: 1, 512, 27>}, {pipeline_mode = #tpu.pipeline_mode<synchronous>, transform_indices = @transform_1, window_bounds = array<i64: 27, 32>}, {pipeline_mode = #tpu.pipeline_mode<synchronous>, transform_indices = @transform_2, window_bounds = array<i64: 1, 32>}, {pipeline_mode = #tpu.pipeline_mode<synchronous>, transform_indices = @transform_3, window_bounds = array<i64: 32, 2048>}, {pipeline_mode = #tpu.pipeline_mode<synchronous>, transform_indices = @transform_4, window_bounds = array<i64: 1, 2048>}, {pipeline_mode = #tpu.pipeline_mode<synchronous>, transform_indices = @transform_5, window_bounds = array<i64: 2048, 128>}, {pipeline_mode = #tpu.pipeline_mode<synchronous>, transform_indices = @transform_6, window_bounds = array<i64: 1, 128>}, {transform_indices = @transform_7, window_bounds = array<i64: 1, 1, 128>}]} {
    %c0_i32 = arith.constant 0 : i32
    %0 = arith.cmpi eq, %arg1, %c0_i32 : i32
    %1 = arith.extui %0 : i1 to i32
    %c0_i32_0 = arith.constant 0 : i32
    %2 = arith.cmpi ne, %1, %c0_i32_0 : i32
    scf.if %2 {
      %cst_22 = arith.constant 0.000000e+00 : f32
      %44 = vector.broadcast %cst_22 : f32 to vector<1x2048xf32>
      %c0_23 = arith.constant 0 : index
      %c0_24 = arith.constant 0 : index
      %45 = vector.load %arg10[%c0_23, %c0_24] : memref<1x2048xf32, #tpu.memory_space<vmem>>, vector<1x2048xf32>
      tpu.vector_store %arg10[%c0_23, %c0_24], %44 {strides = array<i32>} : memref<1x2048xf32, #tpu.memory_space<vmem>>, vector<1x2048xf32>,
    } else {
    }
    %c512_i32 = arith.constant 512 : i32
    %3 = arith.muli %arg1, %c512_i32 : i32
    %4 = tpu.iota {dimensions = array<i32: 0>} : vector<512x1xi32>
    %5 = vector.broadcast %3 : i32 to vector<512x1xi32>
    %6 = arith.addi %5, %4 : vector<512x1xi32>
    %7 = tpu.iota {dimensions = array<i32: 1>} : vector<1x512xi32>
    %8 = vector.broadcast %3 : i32 to vector<1x512xi32>
    %9 = arith.addi %8, %7 : vector<1x512xi32>
    %c0 = arith.constant 0 : index
    %c0_1 = arith.constant 0 : index
    %c0_2 = arith.constant 0 : index
    %10 = vector.load %arg2[%c0, %c0_1, %c0_2] : memref<1x512x27xbf16, #tpu.memory_space<vmem>>, vector<1x512x27xbf16>
    %11 = vector.shape_cast %10 : vector<1x512x27xbf16> to vector<512x27xbf16>
    %c1089_i32 = arith.constant 1089 : i32
    %12 = vector.broadcast %c1089_i32 : i32 to vector<512x1xi32>
    %13 = arith.cmpi slt, %6, %12 : vector<512x1xi32>
    %cst = arith.constant 0.000000e+00 : bf16
    %14 = vector.broadcast %cst : bf16 to vector<512x27xbf16>
    %15 = vector.shape_cast %13 : vector<512x1xi1> to vector<512x1xi1>
    %16 = vector.broadcast %15 : vector<512x1xi1> to vector<512x27xi1>
    %17 = arith.select %16, %11, %14 : vector<512x27xi1>, vector<512x27xbf16>
    %c0_3 = arith.constant 0 : index
    %c0_4 = arith.constant 0 : index
    %18 = vector.load %arg3[%c0_3, %c0_4] : memref<27x32xbf16, #tpu.memory_space<vmem>>, vector<27x32xbf16>
    %cst_5 = arith.constant dense<0.000000e+00> : vector<512x32xf32>
    %19 = tpu.matmul %17, %18, %cst_5 {dimension_numbers = #tpu.dot_dimension_numbers<[1], [0], [0], [1], [0, 0, 1, 1], [], []>} : vector<512x27xbf16>, vector<27x32xbf16>, vector<512x32xf32> -> vector<512x32xf32>
    %c0_6 = arith.constant 0 : index
    %c0_7 = arith.constant 0 : index
    %20 = vector.load %arg4[%c0_6, %c0_7] : memref<1x32xf32, #tpu.memory_space<vmem>>, vector<1x32xf32>
    %21 = vector.broadcast %20 : vector<1x32xf32> to vector<512x32xf32>
    %22 = arith.addf %19, %21 : vector<512x32xf32>
    %cst_8 = arith.constant 0.000000e+00 : f32
    %23 = vector.broadcast %cst_8 : f32 to vector<512x32xf32>
    %24 = arith.maximumf %22, %23 : vector<512x32xf32>
    %25 = arith.truncf %24 : vector<512x32xf32> to vector<512x32xbf16>
    %c0_9 = arith.constant 0 : index
    %c0_10 = arith.constant 0 : index
    %26 = vector.load %arg5[%c0_9, %c0_10] : memref<32x2048xbf16, #tpu.memory_space<vmem>>, vector<32x2048xbf16>
    %cst_11 = arith.constant dense<0.000000e+00> : vector<512x2048xf32>
    %27 = tpu.matmul %25, %26, %cst_11 {dimension_numbers = #tpu.dot_dimension_numbers<[1], [0], [0], [1], [0, 0, 1, 1], [], []>} : vector<512x32xbf16>, vector<32x2048xbf16>, vector<512x2048xf32> -> vector<512x2048xf32>
    %c0_12 = arith.constant 0 : index
    %c0_13 = arith.constant 0 : index
    %28 = vector.load %arg6[%c0_12, %c0_13] : memref<1x2048xf32, #tpu.memory_space<vmem>>, vector<1x2048xf32>
    %29 = vector.broadcast %28 : vector<1x2048xf32> to vector<512x2048xf32>
    %30 = arith.addf %27, %29 : vector<512x2048xf32>
    %cst_14 = arith.constant 0.000000e+00 : f32
    %31 = vector.broadcast %cst_14 : f32 to vector<512x2048xf32>
    %32 = arith.maximumf %30, %31 : vector<512x2048xf32>
    %c1089_i32_15 = arith.constant 1089 : i32
    %33 = vector.broadcast %c1089_i32_15 : i32 to vector<1x512xi32>
    %34 = arith.cmpi slt, %9, %33 : vector<1x512xi32>
    %35 = arith.extui %34 : vector<1x512xi1> to vector<1x512xi32>
    %36 = arith.sitofp %35 : vector<1x512xi32> to vector<1x512xf32>
    %c0_16 = arith.constant 0 : index
    %c0_17 = arith.constant 0 : index
    %37 = vector.load %arg10[%c0_16, %c0_17] : memref<1x2048xf32, #tpu.memory_space<vmem>>, vector<1x2048xf32>
    %cst_18 = arith.constant dense<0.000000e+00> : vector<1x2048xf32>
    %38 = tpu.matmul %36, %32, %cst_18 {dimension_numbers = #tpu.dot_dimension_numbers<[1], [0], [0], [1], [0, 0, 1, 1], [], []>} : vector<1x512xf32>, vector<512x2048xf32>, vector<1x2048xf32> -> vector<1x2048xf32>
    %39 = arith.addf %37, %38 : vector<1x2048xf32>
    %c0_19 = arith.constant 0 : index
    %c0_20 = arith.constant 0 : index
    %40 = vector.load %arg10[%c0_19, %c0_20] : memref<1x2048xf32, #tpu.memory_space<vmem>>, vector<1x2048xf32>
    tpu.vector_store %arg10[%c0_19, %c0_20], %39 {strides = array<i32>} : memref<1x2048xf32, #tpu.memory_space<vmem>>, vector<1x2048xf32>,
    %c2_i32 = arith.constant 2 : i32
    %41 = arith.cmpi eq, %arg1, %c2_i32 : i32
    %42 = arith.extui %41 : i1 to i32
    %c0_i32_21 = arith.constant 0 : i32
    %43 = arith.cmpi ne, %42, %c0_i32_21 : i32
    scf.if %43 {
      %c0_22 = arith.constant 0 : index
      %c0_23 = arith.constant 0 : index
      %44 = vector.load %arg10[%c0_22, %c0_23] : memref<1x2048xf32, #tpu.memory_space<vmem>>, vector<1x2048xf32>
      %cst_24 = arith.constant 9.18273639E-4 : f32
      %45 = vector.broadcast %cst_24 : f32 to vector<1x2048xf32>
      %46 = arith.mulf %44, %45 : vector<1x2048xf32>
      %47 = arith.truncf %46 : vector<1x2048xf32> to vector<1x2048xbf16>
      %c0_25 = arith.constant 0 : index
      %c0_26 = arith.constant 0 : index
      %48 = vector.load %arg7[%c0_25, %c0_26] : memref<2048x128xbf16, #tpu.memory_space<vmem>>, vector<2048x128xbf16>
      %cst_27 = arith.constant dense<0.000000e+00> : vector<1x128xf32>
      %49 = tpu.matmul %47, %48, %cst_27 {dimension_numbers = #tpu.dot_dimension_numbers<[1], [0], [0], [1], [0, 0, 1, 1], [], []>} : vector<1x2048xbf16>, vector<2048x128xbf16>, vector<1x128xf32> -> vector<1x128xf32>
      %c0_28 = arith.constant 0 : index
      %c0_29 = arith.constant 0 : index
      %50 = vector.load %arg8[%c0_28, %c0_29] : memref<1x128xf32, #tpu.memory_space<vmem>>, vector<1x128xf32>
      %51 = arith.addf %49, %50 : vector<1x128xf32>
      %c0_30 = arith.constant 0 : index
      %c0_31 = arith.constant 0 : index
      %c0_32 = arith.constant 0 : index
      %52 = vector.load %arg9[%c0_30, %c0_31, %c0_32] : memref<1x1x128xf32, #tpu.memory_space<vmem>>, vector<1x1x128xf32>
      %53 = vector.shape_cast %52 : vector<1x1x128xf32> to vector<1x128xf32>
      %54 = vector.shape_cast %51 : vector<1x128xf32> to vector<1x1x128xf32>
      tpu.vector_store %arg9[%c0_30, %c0_31, %c0_32], %54 {strides = array<i32>} : memref<1x1x128xf32, #tpu.memory_space<vmem>>, vector<1x1x128xf32>,
    } else {
    }
    return
  }
  func.func @transform_0(%arg0: i32, %arg1: i32) -> (i32, i32, i32) {
    %c0_i32 = arith.constant 0 : i32
    %c0_i32_0 = arith.constant 0 : i32
    return %arg0, %arg1, %c0_i32 : i32, i32, i32
  }
  func.func @transform_1(%arg0: i32, %arg1: i32) -> (i32, i32) {
    %c0_i32 = arith.constant 0 : i32
    %c0_i32_0 = arith.constant 0 : i32
    %c0_i32_1 = arith.constant 0 : i32
    return %c0_i32, %c0_i32_0 : i32, i32
  }
  func.func @transform_2(%arg0: i32, %arg1: i32) -> (i32, i32) {
    %c0_i32 = arith.constant 0 : i32
    %c0_i32_0 = arith.constant 0 : i32
    %c0_i32_1 = arith.constant 0 : i32
    return %c0_i32, %c0_i32_0 : i32, i32
  }
  func.func @transform_3(%arg0: i32, %arg1: i32) -> (i32, i32) {
    %c0_i32 = arith.constant 0 : i32
    %c0_i32_0 = arith.constant 0 : i32
    %c0_i32_1 = arith.constant 0 : i32
    return %c0_i32, %c0_i32_0 : i32, i32
  }
  func.func @transform_4(%arg0: i32, %arg1: i32) -> (i32, i32) {
    %c0_i32 = arith.constant 0 : i32
    %c0_i32_0 = arith.constant 0 : i32
    %c0_i32_1 = arith.constant 0 : i32
    return %c0_i32, %c0_i32_0 : i32, i32
  }
  func.func @transform_5(%arg0: i32, %arg1: i32) -> (i32, i32) {
    %c0_i32 = arith.constant 0 : i32
    %c0_i32_0 = arith.constant 0 : i32
    %c0_i32_1 = arith.constant 0 : i32
    return %c0_i32, %c0_i32_0 : i32, i32
  }
  func.func @transform_6(%arg0: i32, %arg1: i32) -> (i32, i32) {
    %c0_i32 = arith.constant 0 : i32
    %c0_i32_0 = arith.constant 0 : i32
    %c0_i32_1 = arith.constant 0 : i32
    return %c0_i32, %c0_i32_0 : i32, i32
  }
  func.func @transform_7(%arg0: i32, %arg1: i32) -> (i32, i32, i32) {
    %c0_i32 = arith.constant 0 : i32
    %c0_i32_0 = arith.constant 0 : i32
    %c0_i32_1 = arith.constant 0 : i32
    return %arg0, %c0_i32, %c0_i32_0 : i32, i32, i32
  }
}

</mosaic_0001>

<llo_original>
// kernel: tpu_custom_call.1
$region0: #{tpu_custom_call.1}
  #allocation0 [shape = 'u32[]', space=smem, size = 0x4, offset = 0x4, fixed_abs, tag = 'smem constant byte address 0x4 - core index']
  #allocation1 [shape = 'u32[144,128]{1,0:T(1,128)}', space=vmem, size = 0x12000, scoped, tag = 'internal scratch']
  #allocation2 [shape = 'f32[1,2048]{1,0:T(1,128)}', space=vmem, size = 0x2000, scoped, tag = 'scratch operand']
  %s0 = inlined_call_operand.vmem [shape: bf16[2,1089,27], index: 0, kind: input, shape index: {}]
  %s1 = inlined_call_operand.vmem [shape: bf16[27,32], index: 1, kind: input, shape index: {}]
  %s2 = inlined_call_operand.vmem [shape: f32[1,32], index: 2, kind: input, shape index: {}]
  %s3 = inlined_call_operand.vmem [shape: bf16[32,2048], index: 3, kind: input, shape index: {}]
  %s4 = inlined_call_operand.vmem [shape: f32[1,2048], index: 4, kind: input, shape index: {}]
  %s5 = inlined_call_operand.vmem [shape: bf16[2048,128], index: 5, kind: input, shape index: {}]
  %s6 = inlined_call_operand.vmem [shape: f32[1,128], index: 6, kind: input, shape index: {}]
  %s7 = inlined_call_operand.hbm [shape: f32[2,1,128], index: 7, kind: output, shape index: {}]
  %s8 = sld [smem:[#allocation0]]
  $region69: #{tpu_custom_call.1} parent=0
    _
  %s10 = ssub.s32 1, %s8
  %s11 = scalar_select 0, %s10, %s8
  $region1: #{tpu_custom_call.1} parent=0
    #allocation3 [shape = 'u8[1024]{0}', space=vmem, size = 0x400, scoped, tag = 'output window, operand 0']
    #allocation4 [shape = 's32[2]{0}', space=sflag, size = 0x8, scoped, tag = 'scoped memory for tpu_custom_call.1']
    %12 = vsyncpa [#allocation4], 0
    %s13 = scalar_lea.sflag [#allocation4], 1
    %14 = vsyncpa %s13, 0
    loop: start=0, step=1, limit=8
    $region2: #{tpu_custom_call.1} parent=1 // loop_pre_header
      _
    $region3: #{tpu_custom_call.1} parent=1 // loop_header
      %s16 = sphi 0, %s20
      %p17 = scmp.ge.s32.totalorder %s16, 8
      %s23 = sphi 0, %s35
      %s24 = sphi 0, %s31
      %s25 = sphi 0, %s23
      %s26 = sphi 0, %s24
      %s27 = sphi 0, %s25
      %s28 = sphi 0, %s26
      %s40 = sphi 0, %s42
      %s43 = sphi 0, %s40
      %s44 = sphi 0, %s43
      %s60 = sphi 0, %s44
      %s64 = sphi 0, %s64
      %s66 = sphi 0, %s64
      %s67 = sphi 0, %s66
      %s81 = sphi 0, %s67
      %s85 = sphi 0, %s85
      %s87 = sphi 0, %s85
      %s88 = sphi 0, %s87
      %s102 = sphi 0, %s88
      %s106 = sphi 0, %s106
      %s108 = sphi 0, %s106
      %s109 = sphi 0, %s108
      %s123 = sphi 0, %s109
      %s127 = sphi 0, %s127
      %s129 = sphi 0, %s127
      %s130 = sphi 0, %s129
      %s144 = sphi 0, %s130
      %s148 = sphi 0, %s148
      %s150 = sphi 0, %s148
      %s151 = sphi 0, %s150
      %s165 = sphi 0, %s151
      %s169 = sphi 0, %s169
      %s171 = sphi 0, %s169
      %s172 = sphi 0, %s171
      %s186 = sphi 0, %s172
      %s192 = sphi 0, %s194
      %s195 = sphi 0, %s192
      %s196 = sphi 0, %s195
      %s212 = sphi 0, %s196
    $region4: #{tpu_custom_call.1} parent=1 // loop_header_branch
      %19 = sbr.rel (%p17) target = $region8
    $region5: #{tpu_custom_call.1} parent=1 // loop_body
      %s21 = ssub.s32 %s16, 1
      %s22 = ssub.s32 %s16, 2
      %s29 = sadd.s32 1, %s24
      %p30 = scmp.ge.s32.totalorder %s29, 3
      %s31 = scalar_select %p30, 0, %s29
      %s32 = sadd.s32 1, %s23
      %s33 = scalar_select %p30, %s32, %s23
      %p34 = scmp.ge.s32.totalorder %s33, 2
      %s35 = scalar_select %p34, 0, %s33
      %s36 = ssub.s32 %s23, %s35
      %s37 = ssub.s32 %s24, %s31
      %s38 = sor.u32 %s36, %s37
      %p39 = scmp.eq.s32.totalorder %s38, 0
      %s41 = sadd.s32 %s40, 1
      %s42 = scalar_select %p39, %s40, %s41
      %p45 = pneg %p39
      %p46 = scmp.eq.s32.totalorder %s16, 5
      %p47 = por %p45, %p46
      %p48 = scmp.ne.s32.totalorder %s40, %s43
      %p49 = scmp.eq.s32.totalorder %s16, 0
      %p50 = por %p48, %p49
      %p51 = scmp.ne.s32.totalorder %s40, %s43
      %p52 = scmp.eq.s32.totalorder %s21, 5
      %p53 = por %p51, %p52
      %p54 = scmp.ne.s32.totalorder %s43, %s44
      %p55 = scmp.eq.s32.totalorder %s21, 0
      %p56 = por %p54, %p55
      %p57 = scmp.ne.s32.totalorder %s43, %s44
      %p58 = scmp.eq.s32.totalorder %s22, 5
      %p59 = por %p57, %p58
      %p61 = scmp.ne.s32.totalorder %s44, %s60
      %p62 = scmp.eq.s32.totalorder %s22, 0
      %p63 = por %p61, %p62
      %s65 = sadd.s32 %s64, 1
      %p68 = scmp.eq.s32.totalorder %s16, 5
      %p69 = scmp.ne.s32.totalorder %s64, %s66
      %p70 = scmp.eq.s32.totalorder %s16, 0
      %p71 = por %p69, %p70
      %p72 = scmp.ne.s32.totalorder %s64, %s66
      %p73 = scmp.eq.s32.totalorder %s21, 5
      %p74 = por %p72, %p73
      %p75 = scmp.ne.s32.totalorder %s66, %s67
      %p76 = scmp.eq.s32.totalorder %s21, 0
      %p77 = por %p75, %p76
      %p78 = scmp.ne.s32.totalorder %s66, %s67
      %p79 = scmp.eq.s32.totalorder %s22, 5
      %p80 = por %p78, %p79
      %p82 = scmp.ne.s32.totalorder %s67, %s81
      %p83 = scmp.eq.s32.totalorder %s22, 0
      %p84 = por %p82, %p83
      %s86 = sadd.s32 %s85, 1
      %p89 = scmp.eq.s32.totalorder %s16, 5
      %p90 = scmp.ne.s32.totalorder %s85, %s87
      %p91 = scmp.eq.s32.totalorder %s16, 0
      %p92 = por %p90, %p91
      %p93 = scmp.ne.s32.totalorder %s85, %s87
      %p94 = scmp.eq.s32.totalorder %s21, 5
      %p95 = por %p93, %p94
      %p96 = scmp.ne.s32.totalorder %s87, %s88
      %p97 = scmp.eq.s32.totalorder %s21, 0
      %p98 = por %p96, %p97
      %p99 = scmp.ne.s32.totalorder %s87, %s88
      %p100 = scmp.eq.s32.totalorder %s22, 5
      %p101 = por %p99, %p100
      %p103 = scmp.ne.s32.totalorder %s88, %s102
      %p104 = scmp.eq.s32.totalorder %s22, 0
      %p105 = por %p103, %p104
      %s107 = sadd.s32 %s106, 1
      %p110 = scmp.eq.s32.totalorder %s16, 5
      %p111 = scmp.ne.s32.totalorder %s106, %s108
      %p112 = scmp.eq.s32.totalorder %s16, 0
      %p113 = por %p111, %p112
      %p114 = scmp.ne.s32.totalorder %s106, %s108
      %p115 = scmp.eq.s32.totalorder %s21, 5
      %p116 = por %p114, %p115
      %p117 = scmp.ne.s32.totalorder %s108, %s109
      %p118 = scmp.eq.s32.totalorder %s21, 0
      %p119 = por %p117, %p118
      %p120 = scmp.ne.s32.totalorder %s108, %s109
      %p121 = scmp.eq.s32.totalorder %s22, 5
      %p122 = por %p120, %p121
      %p124 = scmp.ne.s32.totalorder %s109, %s123
      %p125 = scmp.eq.s32.totalorder %s22, 0
      %p126 = por %p124, %p125
      %s128 = sadd.s32 %s127, 1
      %p131 = scmp.eq.s32.totalorder %s16, 5
      %p132 = scmp.ne.s32.totalorder %s127, %s129
      %p133 = scmp.eq.s32.totalorder %s16, 0
      %p134 = por %p132, %p133
      %p135 = scmp.ne.s32.totalorder %s127, %s129
      %p136 = scmp.eq.s32.totalorder %s21, 5
      %p137 = por %p135, %p136
      %p138 = scmp.ne.s32.totalorder %s129, %s130
      %p139 = scmp.eq.s32.totalorder %s21, 0
      %p140 = por %p138, %p139
      %p141 = scmp.ne.s32.totalorder %s129, %s130
      %p142 = scmp.eq.s32.totalorder %s22, 5
      %p143 = por %p141, %p142
      %p145 = scmp.ne.s32.totalorder %s130, %s144
      %p146 = scmp.eq.s32.totalorder %s22, 0
      %p147 = por %p145, %p146
      %s149 = sadd.s32 %s148, 1
      %p152 = scmp.eq.s32.totalorder %s16, 5
      %p153 = scmp.ne.s32.totalorder %s148, %s150
      %p154 = scmp.eq.s32.totalorder %s16, 0
      %p155 = por %p153, %p154
      %p156 = scmp.ne.s32.totalorder %s148, %s150
      %p157 = scmp.eq.s32.totalorder %s21, 5
      %p158 = por %p156, %p157
      %p159 = scmp.ne.s32.totalorder %s150, %s151
      %p160 = scmp.eq.s32.totalorder %s21, 0
      %p161 = por %p159, %p160
      %p162 = scmp.ne.s32.totalorder %s150, %s151
      %p163 = scmp.eq.s32.totalorder %s22, 5
      %p164 = por %p162, %p163
      %p166 = scmp.ne.s32.totalorder %s151, %s165
      %p167 = scmp.eq.s32.totalorder %s22, 0
      %p168 = por %p166, %p167
      %s170 = sadd.s32 %s169, 1
      %p173 = scmp.eq.s32.totalorder %s16, 5
      %p174 = scmp.ne.s32.totalorder %s169, %s171
      %p175 = scmp.eq.s32.totalorder %s16, 0
      %p176 = por %p174, %p175
      %p177 = scmp.ne.s32.totalorder %s169, %s171
      %p178 = scmp.eq.s32.totalorder %s21, 5
      %p179 = por %p177, %p178
      %p180 = scmp.ne.s32.totalorder %s171, %s172
      %p181 = scmp.eq.s32.totalorder %s21, 0
      %p182 = por %p180, %p181
      %p183 = scmp.ne.s32.totalorder %s171, %s172
      %p184 = scmp.eq.s32.totalorder %s22, 5
      %p185 = por %p183, %p184
      %p187 = scmp.ne.s32.totalorder %s172, %s186
      %p188 = scmp.eq.s32.totalorder %s22, 0
      %p189 = por %p187, %p188
      %s190 = ssub.s32 %s23, %s35
      %p191 = scmp.eq.s32.totalorder %s190, 0
      %s193 = sadd.s32 %s192, 1
      %s194 = scalar_select %p191, %s192, %s193
      %p197 = pneg %p191
      %p198 = scmp.eq.s32.totalorder %s16, 5
      %p199 = por %p197, %p198
      %p200 = scmp.ne.s32.totalorder %s192, %s195
      %p201 = scmp.eq.s32.totalorder %s16, 0
      %p202 = por %p200, %p201
      %p203 = scmp.ne.s32.totalorder %s192, %s195
      %p204 = scmp.eq.s32.totalorder %s21, 5
      %p205 = por %p203, %p204
      %p206 = scmp.ne.s32.totalorder %s195, %s196
      %p207 = scmp.eq.s32.totalorder %s21, 0
      %p208 = por %p206, %p207
      %p209 = scmp.ne.s32.totalorder %s195, %s196
      %p210 = scmp.eq.s32.totalorder %s22, 5
      %p211 = por %p209, %p210
      %p213 = scmp.ne.s32.totalorder %s196, %s212
      %p214 = scmp.eq.s32.totalorder %s22, 0
      %p215 = por %p213, %p214
      %p216 = scmp.le.s32.totalorder 1, %s16
      %p217 = scmp.lt.s32.totalorder %s16, 7
      %p218 = pnand %p216, %p217
      %p219 = pneg %p218
      // Predicated region
      $region9: #{tpu_custom_call.1} parent=5 // pred_check
        _
      $region10: #{tpu_custom_call.1} parent=5 // pred_check_branch
        %221 = sbr.rel (%p218) target = $region12
      $region11: #{tpu_custom_call.1} parent=5 // pred_region
        %s222 = ssub.s32 %s16, 1
        // Predicated region
        $region13: #{tpu_custom_call.1} parent=11 // pred_check
          %p223 = pneg %p77
        $region14: #{tpu_custom_call.1} parent=11 // pred_check_branch
          %225 = sbr.rel (%p223) target = $region16
        $region15: #{tpu_custom_call.1} parent=11 // pred_region
          _
        $region16: #{tpu_custom_call.1} parent=11 // pred_fallthru
          _
        // Predicated region
        $region17: #{tpu_custom_call.1} parent=11 // pred_check
          %p226 = pneg %p98
        $region18: #{tpu_custom_call.1} parent=11 // pred_check_branch
          %228 = sbr.rel (%p226) target = $region20
        $region19: #{tpu_custom_call.1} parent=11 // pred_region
          _
        $region20: #{tpu_custom_call.1} parent=11 // pred_fallthru
          _
        // Predicated region
        $region21: #{tpu_custom_call.1} parent=11 // pred_check
          %p229 = pneg %p119
        $region22: #{tpu_custom_call.1} parent=11 // pred_check_branch
          %231 = sbr.rel (%p229) target = $region24
        $region23: #{tpu_custom_call.1} parent=11 // pred_region
          _
        $region24: #{tpu_custom_call.1} parent=11 // pred_fallthru
          _
        // Predicated region
        $region25: #{tpu_custom_call.1} parent=11 // pred_check
          %p232 = pneg %p140
        $region26: #{tpu_custom_call.1} parent=11 // pred_check_branch
          %234 = sbr.rel (%p232) target = $region28
        $region27: #{tpu_custom_call.1} parent=11 // pred_region
          _
        $region28: #{tpu_custom_call.1} parent=11 // pred_fallthru
          _
        // Predicated region
        $region29: #{tpu_custom_call.1} parent=11 // pred_check
          %p235 = pneg %p161
        $region30: #{tpu_custom_call.1} parent=11 // pred_check_branch
          %237 = sbr.rel (%p235) target = $region32
        $region31: #{tpu_custom_call.1} parent=11 // pred_region
          _
        $region32: #{tpu_custom_call.1} parent=11 // pred_fallthru
          _
        // Predicated region
        $region33: #{tpu_custom_call.1} parent=11 // pred_check
          %p238 = pneg %p182
        $region34: #{tpu_custom_call.1} parent=11 // pred_check_branch
          %240 = sbr.rel (%p238) target = $region36
        $region35: #{tpu_custom_call.1} parent=11 // pred_region
          _
        $region36: #{tpu_custom_call.1} parent=11 // pred_fallthru
          _
      $region12: #{tpu_custom_call.1} parent=5 // pred_fallthru
        _
      %p241 = scmp.lt.s32.totalorder %s16, 6
      // Predicated region
      $region37: #{tpu_custom_call.1} parent=5 // pred_check
        %p242 = pneg %p241
      $region38: #{tpu_custom_call.1} parent=5 // pred_check_branch
        %244 = sbr.rel (%p242) target = $region40
      $region39: #{tpu_custom_call.1} parent=5 // pred_region
        // Predicated region
        $region41: #{tpu_custom_call.1} parent=39 // pred_check
          %p245 = pneg %p50
        $region42: #{tpu_custom_call.1} parent=39 // pred_check_branch
          %247 = sbr.rel (%p245) target = $region44
        $region43: #{tpu_custom_call.1} parent=39 // pred_region
          %s248 = smul.u32 64, %s24
          %s249 = ssub.s32 137, %s248
          %p250 = scmp.lt.s32.totalorder %s249, 64
          %s251 = scalar_select %p250, %s249, 64
          %s252 = smul.u32 64, %s251
          %p253 = scmp.lt.s32.totalorder %s23, 1
          %s254 = scalar_select %p253, %s23, 1
          %p255 = scmp.lt.s32.totalorder %s248, 136
          %s256 = scalar_select %p255, %s248, 136
          %s257 = smul.addr %s254, 137
          %s258 = sadd.s32 %s256, %s257
          %s259 = smul.addr %s258, 4
          %s260 = scalar_lea.vmem %s0, %s259
          %s261 = smul.u32 64, %s24
          %s262 = ssub.s32 137, %s261
          %p263 = scmp.lt.s32.totalorder %s262, 64
          %s264 = scalar_select %p263, %s262, 64
          %s265 = smul.u32 64, %s264
        $region44: #{tpu_custom_call.1} parent=39 // pred_fallthru
          _
      $region40: #{tpu_custom_call.1} parent=5 // pred_fallthru
        _
      %p266 = scmp.le.s32.totalorder 1, %s16
      %p267 = scmp.lt.s32.totalorder %s16, 7
      %p268 = pnand %p266, %p267
      %p269 = pneg %p268
      // Predicated region
      $region45: #{tpu_custom_call.1} parent=5 // pred_check
        _
      $region46: #{tpu_custom_call.1} parent=5 // pred_check_branch
        %271 = sbr.rel (%p268) target = $region48
      $region47: #{tpu_custom_call.1} parent=5 // pred_region
        %s272 = ssub.s32 %s16, 1
        %s273 = smul.u32 64, %s26
        %s274 = ssub.s32 137, %s273
        %p275 = scmp.lt.s32.totalorder %s274, 64
        %s276 = scalar_select %p275, %s274, 64
        %s277 = smul.u32 64, %s276
        %p278 = scmp.lt.s32.totalorder %s25, 1
        %s279 = scalar_select %p278, %s25, 1
        %p280 = scmp.lt.s32.totalorder %s273, 136
        %s281 = scalar_select %p280, %s273, 136
        %s282 = smul.addr %s279, 137
        %s283 = sadd.s32 %s281, %s282
        %s284 = smul.addr %s283, 4
        %s285 = scalar_lea.vmem %s0, %s284
        %p286 = pneg %p56
        %p287 = pneg %p53
        %p288 = pneg %p77
        %p289 = pneg %p74
        %p290 = pneg %p98
        %p291 = pneg %p95
        %p292 = pneg %p119
        %p293 = pneg %p116
        %p294 = pneg %p140
        %p295 = pneg %p137
        %p296 = pneg %p161
        %p297 = pneg %p158
        %p298 = pneg %p182
        %p299 = pneg %p179
        %p300 = pneg %p208
        %p301 = pneg %p205
        %s302 = sand.u32 %s195, 1
        %s303 = scalar_lea.sflag [#allocation4], %s302
        %s304 = sand.u32 %s195, 1
        %s305 = scalar_lea.vmem [#allocation3], %s304
        %s306 = smul.u32 64, %s26
        %s307 = ssub.s32 137, %s306
        %p308 = scmp.lt.s32.totalorder %s307, 64
        %s309 = scalar_select %p308, %s307, 64
        %s310 = smul.u32 64, %s309
        %p311 = scmp.lt.s32.totalorder %s25, 1
        %s312 = scalar_select %p311, %s25, 1
        %p313 = scmp.lt.s32.totalorder %s306, 136
        %s314 = scalar_select %p313, %s306, 136
        %s315 = smul.addr %s312, 137
        %s316 = sadd.s32 %s314, %s315
        %s317 = smul.addr %s316, 4
        %s318 = scalar_lea.vmem %s0, %s317
        %s319 = smul.u32 64, %s26
        %s320 = ssub.s32 137, %s319
        %p321 = scmp.lt.s32.totalorder %s320, 64
        %s322 = scalar_select %p321, %s320, 64
        %s323 = smul.u32 64, %s322
        %p325 = scmp.eq.s32.totalorder %s26, 0
        // Predicated region
        $region49: #{tpu_custom_call.1} parent=47 // pred_check
          %p326 = pneg %p325
        $region50: #{tpu_custom_call.1} parent=47 // pred_check_branch
          %328 = sbr.rel (%p326) target = $region52
        $region51: #{tpu_custom_call.1} parent=47 // pred_region
          %329 = vst [vmem:[#allocation2] sm:$0xff] 0.0
          %330 = vst [vmem:[#allocation2 + $0x8] sm:$0xff] 0.0
        $region52: #{tpu_custom_call.1} parent=47 // pred_fallthru
          _
        %s331 = smul.u32 %s26, 512
        %v332 = vlaneseq
        %v333 = vshrl.u32 %v332, 7
        %v334 = vadd.s32 %v333, 8
        %v335 = vadd.s32 %v333, 16
        %v336 = vadd.s32 %v333, 24
        %v337 = vadd.s32 %v333, 32
        %v338 = vadd.s32 %v333, 40
        %v339 = vadd.s32 %v333, 48
        %v340 = vadd.s32 %v333, 56
        %v341 = vadd.s32 %v333, 64
        %v342 = vadd.s32 %v333, 72
        %v343 = vadd.s32 %v333, 80
        %v344 = vadd.s32 %v333, 88
        %v345 = vadd.s32 %v333, 96
        %v346 = vadd.s32 %v333, 104
        %v347 = vadd.s32 %v333, 112
        %v348 = vadd.s32 %v333, 120
        %v349 = vadd.s32 %v333, 128
        %v350 = vadd.s32 %v333, 136
        %v351 = vadd.s32 %v333, 144
        %v352 = vadd.s32 %v333, 152
        %v353 = vadd.s32 %v333, 160
        %v354 = vadd.s32 %v333, 168
        %v355 = vadd.s32 %v333, 176
        %v356 = vadd.s32 %v333, 184
        %v357 = vadd.s32 %v333, 192
        %v358 = vadd.s32 %v333, 200
        %v359 = vadd.s32 %v333, 208
        %v360 = vadd.s32 %v333, 216
        %v361 = vadd.s32 %v333, 224
        %v362 = vadd.s32 %v333, 232
        %v363 = vadd.s32 %v333, 240
        %v364 = vadd.s32 %v333, 248
        %v365 = vadd.s32 %v333, 256
        %v366 = vadd.s32 %v333, 264
        %v367 = vadd.s32 %v333, 272
        %v368 = vadd.s32 %v333, 280
        %v369 = vadd.s32 %v333, 288
        %v370 = vadd.s32 %v333, 296
        %v371 = vadd.s32 %v333, 304
        %v372 = vadd.s32 %v333, 312
        %v373 = vadd.s32 %v333, 320
        %v374 = vadd.s32 %v333, 328
        %v375 = vadd.s32 %v333, 336
        %v376 = vadd.s32 %v333, 344
        %v377 = vadd.s32 %v333, 352
        %v378 = vadd.s32 %v333, 360
        %v379 = vadd.s32 %v333, 368
        %v380 = vadd.s32 %v333, 376
        %v381 = vadd.s32 %v333, 384
        %v382 = vadd.s32 %v333, 392
        %v383 = vadd.s32 %v333, 400
        %v384 = vadd.s32 %v333, 408
        %v385 = vadd.s32 %v333, 416
        %v386 = vadd.s32 %v333, 424
        %v387 = vadd.s32 %v333, 432
        %v388 = vadd.s32 %v333, 440
        %v389 = vadd.s32 %v333, 448
        %v390 = vadd.s32 %v333, 456
        %v391 = vadd.s32 %v333, 464
        %v392 = vadd.s32 %v333, 472
        %v393 = vadd.s32 %v333, 480
        %v394 = vadd.s32 %v333, 488
        %v395 = vadd.s32 %v333, 496
        %v396 = vadd.s32 %v333, 504
        %v397 = vstv %s331
        %v398 = vadd.s32 %v397, %v333
        %v399 = vadd.s32 %v397, %v334
        %v400 = vadd.s32 %v397, %v335
        %v401 = vadd.s32 %v397, %v336
        %v402 = vadd.s32 %v397, %v337
        %v403 = vadd.s32 %v397, %v338
        %v404 = vadd.s32 %v397, %v339
        %v405 = vadd.s32 %v397, %v340
        %v406 = vadd.s32 %v397, %v341
        %v407 = vadd.s32 %v397, %v342
        %v408 = vadd.s32 %v397, %v343
        %v409 = vadd.s32 %v397, %v344
        %v410 = vadd.s32 %v397, %v345
        %v411 = vadd.s32 %v397, %v346
        %v412 = vadd.s32 %v397, %v347
        %v413 = vadd.s32 %v397, %v348
        %v414 = vadd.s32 %v397, %v349
        %v415 = vadd.s32 %v397, %v350
        %v416 = vadd.s32 %v397, %v351
        %v417 = vadd.s32 %v397, %v352
        %v418 = vadd.s32 %v397, %v353
        %v419 = vadd.s32 %v397, %v354
        %v420 = vadd.s32 %v397, %v355
        %v421 = vadd.s32 %v397, %v356
        %v422 = vadd.s32 %v397, %v357
        %v423 = vadd.s32 %v397, %v358
        %v424 = vadd.s32 %v397, %v359
        %v425 = vadd.s32 %v397, %v360
        %v426 = vadd.s32 %v397, %v361
        %v427 = vadd.s32 %v397, %v362
        %v428 = vadd.s32 %v397, %v363
        %v429 = vadd.s32 %v397, %v364
        %v430 = vadd.s32 %v397, %v365
        %v431 = vadd.s32 %v397, %v366
        %v432 = vadd.s32 %v397, %v367
        %v433 = vadd.s32 %v397, %v368
        %v434 = vadd.s32 %v397, %v369
        %v435 = vadd.s32 %v397, %v370
        %v436 = vadd.s32 %v397, %v371
        %v437 = vadd.s32 %v397, %v372
        %v438 = vadd.s32 %v397, %v373
        %v439 = vadd.s32 %v397, %v374
        %v440 = vadd.s32 %v397, %v375
        %v441 = vadd.s32 %v397, %v376
        %v442 = vadd.s32 %v397, %v377
        %v443 = vadd.s32 %v397, %v378
        %v444 = vadd.s32 %v397, %v379
        %v445 = vadd.s32 %v397, %v380
        %v446 = vadd.s32 %v397, %v381
        %v447 = vadd.s32 %v397, %v382
        %v448 = vadd.s32 %v397, %v383
        %v449 = vadd.s32 %v397, %v384
        %v450 = vadd.s32 %v397, %v385
        %v451 = vadd.s32 %v397, %v386
        %v452 = vadd.s32 %v397, %v387
        %v453 = vadd.s32 %v397, %v388
        %v454 = vadd.s32 %v397, %v389
        %v455 = vadd.s32 %v397, %v390
        %v456 = vadd.s32 %v397, %v391
        %v457 = vadd.s32 %v397, %v392
        %v458 = vadd.s32 %v397, %v393
        %v459 = vadd.s32 %v397, %v394
        %v460 = vadd.s32 %v397, %v395
        %v461 = vadd.s32 %v397, %v396
        %v462 = vlaneseq
        %v463 = vand.u32 %v462, 127
        %v464 = vadd.s32 %v463, 128
        %v465 = vadd.s32 %v463, 256
        %v466 = vadd.s32 %v463, 384
        %v467 = vadd.s32 %v397, %v463
        %v468 = vadd.s32 %v397, %v464
        %v469 = vadd.s32 %v397, %v465
        %v470 = vadd.s32 %v397, %v466
        %v471 = vld [vmem:[%s318] sm:$0xf]
        %v472 = vld [vmem:[%s318 + $0x4] sm:$0xf]
        %v473 = vld [vmem:[%s318 + $0x8] sm:$0xf]
        %v474 = vld [vmem:[%s318 + $0xc] sm:$0xf]
        %v475 = vld [vmem:[%s318 + $0x10] sm:$0xf]
        %v476 = vld [vmem:[%s318 + $0x14] sm:$0xf]
        %v477 = vld [vmem:[%s318 + $0x18] sm:$0xf]
        %v478 = vld [vmem:[%s318 + $0x1c] sm:$0xf]
        %v479 = vld [vmem:[%s318 + $0x20] sm:$0xf]
        %v480 = vld [vmem:[%s318 + $0x24] sm:$0xf]
        %v481 = vld [vmem:[%s318 + $0x28] sm:$0xf]
        %v482 = vld [vmem:[%s318 + $0x2c] sm:$0xf]
        %v483 = vld [vmem:[%s318 + $0x30] sm:$0xf]
        %v484 = vld [vmem:[%s318 + $0x34] sm:$0xf]
        %v485 = vld [vmem:[%s318 + $0x38] sm:$0xf]
        %v486 = vld [vmem:[%s318 + $0x3c] sm:$0xf]
        %v487 = vld [vmem:[%s318 + $0x40] sm:$0xf]
        %v488 = vld [vmem:[%s318 + $0x44] sm:$0xf]
        %v489 = vld [vmem:[%s318 + $0x48] sm:$0xf]
        %v490 = vld [vmem:[%s318 + $0x4c] sm:$0xf]
        %v491 = vld [vmem:[%s318 + $0x50] sm:$0xf]
        %v492 = vld [vmem:[%s318 + $0x54] sm:$0xf]
        %v493 = vld [vmem:[%s318 + $0x58] sm:$0xf]
        %v494 = vld [vmem:[%s318 + $0x5c] sm:$0xf]
        %v495 = vld [vmem:[%s318 + $0x60] sm:$0xf]
        %v496 = vld [vmem:[%s318 + $0x64] sm:$0xf]
        %v497 = vld [vmem:[%s318 + $0x68] sm:$0xf]
        %v498 = vld [vmem:[%s318 + $0x6c] sm:$0xf]
        %v499 = vld [vmem:[%s318 + $0x70] sm:$0xf]
        %v500 = vld [vmem:[%s318 + $0x74] sm:$0xf]
        %v501 = vld [vmem:[%s318 + $0x78] sm:$0xf]
        %v502 = vld [vmem:[%s318 + $0x7c] sm:$0xf]
        %v503 = vld [vmem:[%s318 + $0x80] sm:$0xf]
        %v504 = vld [vmem:[%s318 + $0x84] sm:$0xf]
        %v505 = vld [vmem:[%s318 + $0x88] sm:$0xf]
        %v506 = vld [vmem:[%s318 + $0x8c] sm:$0xf]
        %v507 = vld [vmem:[%s318 + $0x90] sm:$0xf]
        %v508 = vld [vmem:[%s318 + $0x94] sm:$0xf]
        %v509 = vld [vmem:[%s318 + $0x98] sm:$0xf]
        %v510 = vld [vmem:[%s318 + $0x9c] sm:$0xf]
        %v511 = vld [vmem:[%s318 + $0xa0] sm:$0xf]
        %v512 = vld [vmem:[%s318 + $0xa4] sm:$0xf]
        %v513 = vld [vmem:[%s318 + $0xa8] sm:$0xf]
        %v514 = vld [vmem:[%s318 + $0xac] sm:$0xf]
        %v515 = vld [vmem:[%s318 + $0xb0] sm:$0xf]
        %v516 = vld [vmem:[%s318 + $0xb4] sm:$0xf]
        %v517 = vld [vmem:[%s318 + $0xb8] sm:$0xf]
        %v518 = vld [vmem:[%s318 + $0xbc] sm:$0xf]
        %v519 = vld [vmem:[%s318 + $0xc0] sm:$0xf]
        %v520 = vld [vmem:[%s318 + $0xc4] sm:$0xf]
        %v521 = vld [vmem:[%s318 + $0xc8] sm:$0xf]
        %v522 = vld [vmem:[%s318 + $0xcc] sm:$0xf]
        %v523 = vld [vmem:[%s318 + $0xd0] sm:$0xf]
        %v524 = vld [vmem:[%s318 + $0xd4] sm:$0xf]
        %v525 = vld [vmem:[%s318 + $0xd8] sm:$0xf]
        %v526 = vld [vmem:[%s318 + $0xdc] sm:$0xf]
        %v527 = vld [vmem:[%s318 + $0xe0] sm:$0xf]
        %v528 = vld [vmem:[%s318 + $0xe4] sm:$0xf]
        %v529 = vld [vmem:[%s318 + $0xe8] sm:$0xf]
        %v530 = vld [vmem:[%s318 + $0xec] sm:$0xf]
        %v531 = vld [vmem:[%s318 + $0xf0] sm:$0xf]
        %v532 = vld [vmem:[%s318 + $0xf4] sm:$0xf]
        %v533 = vld [vmem:[%s318 + $0xf8] sm:$0xf]
        %v534 = vld [vmem:[%s318 + $0xfc] sm:$0xf]
        %vm535 = vcmp.lt.s32.totalorder %v398, 1089
        %vm536 = vcmp.lt.s32.totalorder %v399, 1089
        %vm537 = vcmp.lt.s32.totalorder %v400, 1089
        %vm538 = vcmp.lt.s32.totalorder %v401, 1089
        %vm539 = vcmp.lt.s32.totalorder %v402, 1089
        %vm540 = vcmp.lt.s32.totalorder %v403, 1089
        %vm541 = vcmp.lt.s32.totalorder %v404, 1089
        %vm542 = vcmp.lt.s32.totalorder %v405, 1089
        %vm543 = vcmp.lt.s32.totalorder %v406, 1089
        %vm544 = vcmp.lt.s32.totalorder %v407, 1089
        %vm545 = vcmp.lt.s32.totalorder %v408, 1089
        %vm546 = vcmp.lt.s32.totalorder %v409, 1089
        %vm547 = vcmp.lt.s32.totalorder %v410, 1089
        %vm548 = vcmp.lt.s32.totalorder %v411, 1089
        %vm549 = vcmp.lt.s32.totalorder %v412, 1089
        %vm550 = vcmp.lt.s32.totalorder %v413, 1089
        %vm551 = vcmp.lt.s32.totalorder %v414, 1089
        %vm552 = vcmp.lt.s32.totalorder %v415, 1089
        %vm553 = vcmp.lt.s32.totalorder %v416, 1089
        %vm554 = vcmp.lt.s32.totalorder %v417, 1089
        %vm555 = vcmp.lt.s32.totalorder %v418, 1089
        %vm556 = vcmp.lt.s32.totalorder %v419, 1089
        %vm557 = vcmp.lt.s32.totalorder %v420, 1089
        %vm558 = vcmp.lt.s32.totalorder %v421, 1089
        %vm559 = vcmp.lt.s32.totalorder %v422, 1089
        %vm560 = vcmp.lt.s32.totalorder %v423, 1089
        %vm561 = vcmp.lt.s32.totalorder %v424, 1089
        %vm562 = vcmp.lt.s32.totalorder %v425, 1089
        %vm563 = vcmp.lt.s32.totalorder %v426, 1089
        %vm564 = vcmp.lt.s32.totalorder %v427, 1089
        %vm565 = vcmp.lt.s32.totalorder %v428, 1089
        %vm566 = vcmp.lt.s32.totalorder %v429, 1089
        %vm567 = vcmp.lt.s32.totalorder %v430, 1089
        %vm568 = vcmp.lt.s32.totalorder %v431, 1089
        %vm569 = vcmp.lt.s32.totalorder %v432, 1089
        %vm570 = vcmp.lt.s32.totalorder %v433, 1089
        %vm571 = vcmp.lt.s32.totalorder %v434, 1089
        %vm572 = vcmp.lt.s32.totalorder %v435, 1089
        %vm573 = vcmp.lt.s32.totalorder %v436, 1089
        %vm574 = vcmp.lt.s32.totalorder %v437, 1089
        %vm575 = vcmp.lt.s32.totalorder %v438, 1089
        %vm576 = vcmp.lt.s32.totalorder %v439, 1089
        %vm577 = vcmp.lt.s32.totalorder %v440, 1089
        %vm578 = vcmp.lt.s32.totalorder %v441, 1089
        %vm579 = vcmp.lt.s32.totalorder %v442, 1089
        %vm580 = vcmp.lt.s32.totalorder %v443, 1089
        %vm581 = vcmp.lt.s32.totalorder %v444, 1089
        %vm582 = vcmp.lt.s32.totalorder %v445, 1089
        %vm583 = vcmp.lt.s32.totalorder %v446, 1089
        %vm584 = vcmp.lt.s32.totalorder %v447, 1089
        %vm585 = vcmp.lt.s32.totalorder %v448, 1089
        %vm586 = vcmp.lt.s32.totalorder %v449, 1089
        %vm587 = vcmp.lt.s32.totalorder %v450, 1089
        %vm588 = vcmp.lt.s32.totalorder %v451, 1089
        %vm589 = vcmp.lt.s32.totalorder %v452, 1089
        %vm590 = vcmp.lt.s32.totalorder %v453, 1089
        %vm591 = vcmp.lt.s32.totalorder %v454, 1089
        %vm592 = vcmp.lt.s32.totalorder %v455, 1089
        %vm593 = vcmp.lt.s32.totalorder %v456, 1089
        %vm594 = vcmp.lt.s32.totalorder %v457, 1089
        %vm595 = vcmp.lt.s32.totalorder %v458, 1089
        %vm596 = vcmp.lt.s32.totalorder %v459, 1089
        %vm597 = vcmp.lt.s32.totalorder %v460, 1089
        %vm598 = vcmp.lt.s32.totalorder %v461, 1089
        %v599 = vsel %vm535, 1, 0
        %v600 = vsel %vm536, 1, 0
        %v601 = vsel %vm537, 1, 0
        %v602 = vsel %vm538, 1, 0
        %v603 = vsel %vm539, 1, 0
        %v604 = vsel %vm540, 1, 0
        %v605 = vsel %vm541, 1, 0
        %v606 = vsel %vm542, 1, 0
        %v607 = vsel %vm543, 1, 0
        %v608 = vsel %vm544, 1, 0
        %v609 = vsel %vm545, 1, 0
        %v610 = vsel %vm546, 1, 0
        %v611 = vsel %vm547, 1, 0
        %v612 = vsel %vm548, 1, 0
        %v613 = vsel %vm549, 1, 0
        %v614 = vsel %vm550, 1, 0
        %v615 = vsel %vm551, 1, 0
        %v616 = vsel %vm552, 1, 0
        %v617 = vsel %vm553, 1, 0
        %v618 = vsel %vm554, 1, 0
        %v619 = vsel %vm555, 1, 0
        %v620 = vsel %vm556, 1, 0
        %v621 = vsel %vm557, 1, 0
        %v622 = vsel %vm558, 1, 0
        %v623 = vsel %vm559, 1, 0
        %v624 = vsel %vm560, 1, 0
        %v625 = vsel %vm561, 1, 0
        %v626 = vsel %vm562, 1, 0
        %v627 = vsel %vm563, 1, 0
        %v628 = vsel %vm564, 1, 0
        %v629 = vsel %vm565, 1, 0
        %v630 = vsel %vm566, 1, 0
        %v631 = vsel %vm567, 1, 0
        %v632 = vsel %vm568, 1, 0
        %v633 = vsel %vm569, 1, 0
        %v634 = vsel %vm570, 1, 0
        %v635 = vsel %vm571, 1, 0
        %v636 = vsel %vm572, 1, 0
        %v637 = vsel %vm573, 1, 0
        %v638 = vsel %vm574, 1, 0
        %v639 = vsel %vm575, 1, 0
        %v640 = vsel %vm576, 1, 0
        %v641 = vsel %vm577, 1, 0
        %v642 = vsel %vm578, 1, 0
        %v643 = vsel %vm579, 1, 0
        %v644 = vsel %vm580, 1, 0
        %v645 = vsel %vm581, 1, 0
        %v646 = vsel %vm582, 1, 0
        %v647 = vsel %vm583, 1, 0
        %v648 = vsel %vm584, 1, 0
        %v649 = vsel %vm585, 1, 0
        %v650 = vsel %vm586, 1, 0
        %v651 = vsel %vm587, 1, 0
        %v652 = vsel %vm588, 1, 0
        %v653 = vsel %vm589, 1, 0
        %v654 = vsel %vm590, 1, 0
        %v655 = vsel %vm591, 1, 0
        %v656 = vsel %vm592, 1, 0
        %v657 = vsel %vm593, 1, 0
        %v658 = vsel %vm594, 1, 0
        %v659 = vsel %vm595, 1, 0
        %v660 = vsel %vm596, 1, 0
        %v661 = vsel %vm597, 1, 0
        %v662 = vsel %vm598, 1, 0
        %vm663 = vcmp.eq.s32.totalorder %v599, 1
        %vm664 = vcmp.eq.s32.totalorder %v600, 1
        %vm665 = vcmp.eq.s32.totalorder %v601, 1
        %vm666 = vcmp.eq.s32.totalorder %v602, 1
        %vm667 = vcmp.eq.s32.totalorder %v603, 1
        %vm668 = vcmp.eq.s32.totalorder %v604, 1
        %vm669 = vcmp.eq.s32.totalorder %v605, 1
        %vm670 = vcmp.eq.s32.totalorder %v606, 1
        %vm671 = vcmp.eq.s32.totalorder %v607, 1
        %vm672 = vcmp.eq.s32.totalorder %v608, 1
        %vm673 = vcmp.eq.s32.totalorder %v609, 1
        %vm674 = vcmp.eq.s32.totalorder %v610, 1
        %vm675 = vcmp.eq.s32.totalorder %v611, 1
        %vm676 = vcmp.eq.s32.totalorder %v612, 1
        %vm677 = vcmp.eq.s32.totalorder %v613, 1
        %vm678 = vcmp.eq.s32.totalorder %v614, 1
        %vm679 = vcmp.eq.s32.totalorder %v615, 1
        %vm680 = vcmp.eq.s32.totalorder %v616, 1
        %vm681 = vcmp.eq.s32.totalorder %v617, 1
        %vm682 = vcmp.eq.s32.totalorder %v618, 1
        %vm683 = vcmp.eq.s32.totalorder %v619, 1
        %vm684 = vcmp.eq.s32.totalorder %v620, 1
        %vm685 = vcmp.eq.s32.totalorder %v621, 1
        %vm686 = vcmp.eq.s32.totalorder %v622, 1
        %vm687 = vcmp.eq.s32.totalorder %v623, 1
        %vm688 = vcmp.eq.s32.totalorder %v624, 1
        %vm689 = vcmp.eq.s32.totalorder %v625, 1
        %vm690 = vcmp.eq.s32.totalorder %v626, 1
        %vm691 = vcmp.eq.s32.totalorder %v627, 1
        %vm692 = vcmp.eq.s32.totalorder %v628, 1
        %vm693 = vcmp.eq.s32.totalorder %v629, 1
        %vm694 = vcmp.eq.s32.totalorder %v630, 1
        %vm695 = vcmp.eq.s32.totalorder %v631, 1
        %vm696 = vcmp.eq.s32.totalorder %v632, 1
        %vm697 = vcmp.eq.s32.totalorder %v633, 1
        %vm698 = vcmp.eq.s32.totalorder %v634, 1
        %vm699 = vcmp.eq.s32.totalorder %v635, 1
        %vm700 = vcmp.eq.s32.totalorder %v636, 1
        %vm701 = vcmp.eq.s32.totalorder %v637, 1
        %vm702 = vcmp.eq.s32.totalorder %v638, 1
        %vm703 = vcmp.eq.s32.totalorder %v639, 1
        %vm704 = vcmp.eq.s32.totalorder %v640, 1
        %vm705 = vcmp.eq.s32.totalorder %v641, 1
        %vm706 = vcmp.eq.s32.totalorder %v642, 1
        %vm707 = vcmp.eq.s32.totalorder %v643, 1
        %vm708 = vcmp.eq.s32.totalorder %v644, 1
        %vm709 = vcmp.eq.s32.totalorder %v645, 1
        %vm710 = vcmp.eq.s32.totalorder %v646, 1
        %vm711 = vcmp.eq.s32.totalorder %v647, 1
        %vm712 = vcmp.eq.s32.totalorder %v648, 1
        %vm713 = vcmp.eq.s32.totalorder %v649, 1
        %vm714 = vcmp.eq.s32.totalorder %v650, 1
        %vm715 = vcmp.eq.s32.totalorder %v651, 1
        %vm716 = vcmp.eq.s32.totalorder %v652, 1
        %vm717 = vcmp.eq.s32.totalorder %v653, 1
        %vm718 = vcmp.eq.s32.totalorder %v654, 1
        %vm719 = vcmp.eq.s32.totalorder %v655, 1
        %vm720 = vcmp.eq.s32.totalorder %v656, 1
        %vm721 = vcmp.eq.s32.totalorder %v657, 1
        %vm722 = vcmp.eq.s32.totalorder %v658, 1
        %vm723 = vcmp.eq.s32.totalorder %v659, 1
        %vm724 = vcmp.eq.s32.totalorder %v660, 1
        %vm725 = vcmp.eq.s32.totalorder %v661, 1
        %vm726 = vcmp.eq.s32.totalorder %v662, 1
        %vm727 = vmpackc.low %vm663, %vm663
        %vm728 = vmpackc.low %vm664, %vm664
        %vm729 = vmpackc.low %vm665, %vm665
        %vm730 = vmpackc.low %vm666, %vm666
        %vm731 = vmpackc.low %vm667, %vm667
        %vm732 = vmpackc.low %vm668, %vm668
        %vm733 = vmpackc.low %vm669, %vm669
        %vm734 = vmpackc.low %vm670, %vm670
        %vm735 = vmpackc.low %vm671, %vm671
        %vm736 = vmpackc.low %vm672, %vm672
        %vm737 = vmpackc.low %vm673, %vm673
        %vm738 = vmpackc.low %vm674, %vm674
        %vm739 = vmpackc.low %vm675, %vm675
        %vm740 = vmpackc.low %vm676, %vm676
        %vm741 = vmpackc.low %vm677, %vm677
        %vm742 = vmpackc.low %vm678, %vm678
        %vm743 = vmpackc.low %vm679, %vm679
        %vm744 = vmpackc.low %vm680, %vm680
        %vm745 = vmpackc.low %vm681, %vm681
        %vm746 = vmpackc.low %vm682, %vm682
        %vm747 = vmpackc.low %vm683, %vm683
        %vm748 = vmpackc.low %vm684, %vm684
        %vm749 = vmpackc.low %vm685, %vm685
        %vm750 = vmpackc.low %vm686, %vm686
        %vm751 = vmpackc.low %vm687, %vm687
        %vm752 = vmpackc.low %vm688, %vm688
        %vm753 = vmpackc.low %vm689, %vm689
        %vm754 = vmpackc.low %vm690, %vm690
        %vm755 = vmpackc.low %vm691, %vm691
        %vm756 = vmpackc.low %vm692, %vm692
        %vm757 = vmpackc.low %vm693, %vm693
        %vm758 = vmpackc.low %vm694, %vm694
        %vm759 = vmpackc.low %vm695, %vm695
        %vm760 = vmpackc.low %vm696, %vm696
        %vm761 = vmpackc.low %vm697, %vm697
        %vm762 = vmpackc.low %vm698, %vm698
        %vm763 = vmpackc.low %vm699, %vm699
        %vm764 = vmpackc.low %vm700, %vm700
        %vm765 = vmpackc.low %vm701, %vm701
        %vm766 = vmpackc.low %vm702, %vm702
        %vm767 = vmpackc.low %vm703, %vm703
        %vm768 = vmpackc.low %vm704, %vm704
        %vm769 = vmpackc.low %vm705, %vm705
        %vm770 = vmpackc.low %vm706, %vm706
        %vm771 = vmpackc.low %vm707, %vm707
        %vm772 = vmpackc.low %vm708, %vm708
        %vm773 = vmpackc.low %vm709, %vm709
        %vm774 = vmpackc.low %vm710, %vm710
        %vm775 = vmpackc.low %vm711, %vm711
        %vm776 = vmpackc.low %vm712, %vm712
        %vm777 = vmpackc.low %vm713, %vm713
        %vm778 = vmpackc.low %vm714, %vm714
        %vm779 = vmpackc.low %vm715, %vm715
        %vm780 = vmpackc.low %vm716, %vm716
        %vm781 = vmpackc.low %vm717, %vm717
        %vm782 = vmpackc.low %vm718, %vm718
        %vm783 = vmpackc.low %vm719, %vm719
        %vm784 = vmpackc.low %vm720, %vm720
        %vm785 = vmpackc.low %vm721, %vm721
        %vm786 = vmpackc.low %vm722, %vm722
        %vm787 = vmpackc.low %vm723, %vm723
        %vm788 = vmpackc.low %vm724, %vm724
        %vm789 = vmpackc.low %vm725, %vm725
        %vm790 = vmpackc.low %vm726, %vm726
        %v791 = vsel %vm727, %v471, 0
        %v792 = vsel %vm728, %v472, 0
        %v793 = vsel %vm729, %v473, 0
        %v794 = vsel %vm730, %v474, 0
        %v795 = vsel %vm731, %v475, 0
        %v796 = vsel %vm732, %v476, 0
        %v797 = vsel %vm733, %v477, 0
        %v798 = vsel %vm734, %v478, 0
        %v799 = vsel %vm735, %v479, 0
        %v800 = vsel %vm736, %v480, 0
        %v801 = vsel %vm737, %v481, 0
        %v802 = vsel %vm738, %v482, 0
        %v803 = vsel %vm739, %v483, 0
        %v804 = vsel %vm740, %v484, 0
        %v805 = vsel %vm741, %v485, 0
        %v806 = vsel %vm742, %v486, 0
        %v807 = vsel %vm743, %v487, 0
        %v808 = vsel %vm744, %v488, 0
        %v809 = vsel %vm745, %v489, 0
        %v810 = vsel %vm746, %v490, 0
        %v811 = vsel %vm747, %v491, 0
        %v812 = vsel %vm748, %v492, 0
        %v813 = vsel %vm749, %v493, 0
        %v814 = vsel %vm750, %v494, 0
        %v815 = vsel %vm751, %v495, 0
        %v816 = vsel %vm752, %v496, 0
        %v817 = vsel %vm753, %v497, 0
        %v818 = vsel %vm754, %v498, 0
        %v819 = vsel %vm755, %v499, 0
        %v820 = vsel %vm756, %v500, 0
        %v821 = vsel %vm757, %v501, 0
        %v822 = vsel %vm758, %v502, 0
        %v823 = vsel %vm759, %v503, 0
        %v824 = vsel %vm760, %v504, 0
        %v825 = vsel %vm761, %v505, 0
        %v826 = vsel %vm762, %v506, 0
        %v827 = vsel %vm763, %v507, 0
        %v828 = vsel %vm764, %v508, 0
        %v829 = vsel %vm765, %v509, 0
        %v830 = vsel %vm766, %v510, 0
        %v831 = vsel %vm767, %v511, 0
        %v832 = vsel %vm768, %v512, 0
        %v833 = vsel %vm769, %v513, 0
        %v834 = vsel %vm770, %v514, 0
        %v835 = vsel %vm771, %v515, 0
        %v836 = vsel %vm772, %v516, 0
        %v837 = vsel %vm773, %v517, 0
        %v838 = vsel %vm774, %v518, 0
        %v839 = vsel %vm775, %v519, 0
        %v840 = vsel %vm776, %v520, 0
        %v841 = vsel %vm777, %v521, 0
        %v842 = vsel %vm778, %v522, 0
        %v843 = vsel %vm779, %v523, 0
        %v844 = vsel %vm780, %v524, 0
        %v845 = vsel %vm781, %v525, 0
        %v846 = vsel %vm782, %v526, 0
        %v847 = vsel %vm783, %v527, 0
        %v848 = vsel %vm784, %v528, 0
        %v849 = vsel %vm785, %v529, 0
        %v850 = vsel %vm786, %v530, 0
        %v851 = vsel %vm787, %v531, 0
        %v852 = vsel %vm788, %v532, 0
        %v853 = vsel %vm789, %v533, 0
        %v854 = vsel %vm790, %v534, 0
        %v855 = vld [vmem:[%s1] sm:$0xf]
        %v856 = vld [vmem:[%s1 + $0x4] sm:$0xf]
        %v857 = vld [vmem:[%s1 + $0x8] sm:$0xf]
        %v858 = vld [vmem:[%s1 + $0xc] sm:$0x3]
        %v859 = vld [vmem:[%s2] sm:$0x1]
        %v861 = vlaneseq
        %v862 = vshrl.u32 %v861, 7
        %v863 = vsub.s32 0, %v862
        %v864 = vrot.slane %v859, %v863
        %v930 = vunpack.c.l.b16 %v791
        %v931 = vunpack.c.l.b16 %v792
        %v932 = vunpack.c.l.b16 %v793
        %v933 = vunpack.c.l.b16 %v794
        %v934 = vunpack.c.l.b16 %v795
        %v935 = vunpack.c.l.b16 %v796
        %v936 = vunpack.c.l.b16 %v797
        %v937 = vunpack.c.l.b16 %v798
        %v938 = vunpack.c.l.b16 %v799
        %v939 = vunpack.c.l.b16 %v800
        %v940 = vunpack.c.l.b16 %v801
        %v941 = vunpack.c.l.b16 %v802
        %v942 = vunpack.c.l.b16 %v803
        %v943 = vunpack.c.l.b16 %v804
        %v944 = vunpack.c.l.b16 %v805
        %v945 = vunpack.c.l.b16 %v806
        %v946 = vunpack.c.l.b16 %v807
        %v947 = vunpack.c.l.b16 %v808
        %v948 = vunpack.c.l.b16 %v809
        %v949 = vunpack.c.l.b16 %v810
        %v950 = vunpack.c.l.b16 %v811
        %v951 = vunpack.c.l.b16 %v812
        %v952 = vunpack.c.l.b16 %v813
        %v953 = vunpack.c.l.b16 %v814
        %v954 = vunpack.c.l.b16 %v815
        %v955 = vunpack.c.l.b16 %v816
        %v956 = vunpack.c.l.b16 %v817
        %v957 = vunpack.c.l.b16 %v818
        %v958 = vunpack.c.l.b16 %v819
        %v959 = vunpack.c.l.b16 %v820
        %v960 = vunpack.c.l.b16 %v821
        %v961 = vunpack.c.l.b16 %v822
        %v962 = vunpack.c.l.b16 %v823
        %v963 = vunpack.c.l.b16 %v824
        %v964 = vunpack.c.l.b16 %v825
        %v965 = vunpack.c.l.b16 %v826
        %v966 = vunpack.c.l.b16 %v827
        %v967 = vunpack.c.l.b16 %v828
        %v968 = vunpack.c.l.b16 %v829
        %v969 = vunpack.c.l.b16 %v830
        %v970 = vunpack.c.l.b16 %v831
        %v971 = vunpack.c.l.b16 %v832
        %v972 = vunpack.c.l.b16 %v833
        %v973 = vunpack.c.l.b16 %v834
        %v974 = vunpack.c.l.b16 %v835
        %v975 = vunpack.c.l.b16 %v836
        %v976 = vunpack.c.l.b16 %v837
        %v977 = vunpack.c.l.b16 %v838
        %v978 = vunpack.c.l.b16 %v839
        %v979 = vunpack.c.l.b16 %v840
        %v980 = vunpack.c.l.b16 %v841
        %v981 = vunpack.c.l.b16 %v842
        %v982 = vunpack.c.l.b16 %v843
        %v983 = vunpack.c.l.b16 %v844
        %v984 = vunpack.c.l.b16 %v845
        %v985 = vunpack.c.l.b16 %v846
        %v986 = vunpack.c.l.b16 %v847
        %v987 = vunpack.c.l.b16 %v848
        %v988 = vunpack.c.l.b16 %v849
        %v989 = vunpack.c.l.b16 %v850
        %v990 = vunpack.c.l.b16 %v851
        %v991 = vunpack.c.l.b16 %v852
        %v992 = vunpack.c.l.b16 %v853
        %v993 = vunpack.c.l.b16 %v854
        %v994 = vpack.c.b16 %v931, %v930
        %v995 = vpack.c.b16 %v933, %v932
        %v996 = vpack.c.b16 %v935, %v934
        %v997 = vpack.c.b16 %v937, %v936
        %v998 = vpack.c.b16 %v939, %v938
        %v999 = vpack.c.b16 %v941, %v940
        %v1000 = vpack.c.b16 %v943, %v942
        %v1001 = vpack.c.b16 %v945, %v944
        %v1002 = vpack.c.b16 %v947, %v946
        %v1003 = vpack.c.b16 %v949, %v948
        %v1004 = vpack.c.b16 %v951, %v950
        %v1005 = vpack.c.b16 %v953, %v952
        %v1006 = vpack.c.b16 %v955, %v954
        %v1007 = vpack.c.b16 %v957, %v956
        %v1008 = vpack.c.b16 %v959, %v958
        %v1009 = vpack.c.b16 %v961, %v960
        %v1010 = vpack.c.b16 %v963, %v962
        %v1011 = vpack.c.b16 %v965, %v964
        %v1012 = vpack.c.b16 %v967, %v966
        %v1013 = vpack.c.b16 %v969, %v968
        %v1014 = vpack.c.b16 %v971, %v970
        %v1015 = vpack.c.b16 %v973, %v972
        %v1016 = vpack.c.b16 %v975, %v974
        %v1017 = vpack.c.b16 %v977, %v976
        %v1018 = vpack.c.b16 %v979, %v978
        %v1019 = vpack.c.b16 %v981, %v980
        %v1020 = vpack.c.b16 %v983, %v982
        %v1021 = vpack.c.b16 %v985, %v984
        %v1022 = vpack.c.b16 %v987, %v986
        %v1023 = vpack.c.b16 %v989, %v988
        %v1024 = vpack.c.b16 %v991, %v990
        %v1025 = vpack.c.b16 %v993, %v992
        %v1030 = vunpack.c.l.b16 %v855
        %v1031 = vunpack.c.l.b16 %v856
        %v1032 = vunpack.c.l.b16 %v857
        %v1033 = vunpack.c.l.b16 %v858
        %v1034 = vpack.c.b16 %v1031, %v1030
        %v1035 = vpack.c.b16 %v1033, %v1032
        %vm1037 = vcmask 220160
        %v1039 = vsel %vm1037, %v994, 0
        %v1042 = vsel %vm1037, %v995, 0
        %v1045 = vsel %vm1037, %v996, 0
        %v1048 = vsel %vm1037, %v997, 0
        %v1051 = vsel %vm1037, %v998, 0
        %v1054 = vsel %vm1037, %v999, 0
        %v1057 = vsel %vm1037, %v1000, 0
        %v1060 = vsel %vm1037, %v1001, 0
        %v1063 = vsel %vm1037, %v1002, 0
        %v1066 = vsel %vm1037, %v1003, 0
        %v1069 = vsel %vm1037, %v1004, 0
        %v1072 = vsel %vm1037, %v1005, 0
        %v1075 = vsel %vm1037, %v1006, 0
        %v1078 = vsel %vm1037, %v1007, 0
        %v1081 = vsel %vm1037, %v1008, 0
        %v1084 = vsel %vm1037, %v1009, 0
        %v1087 = vsel %vm1037, %v1010, 0
        %v1090 = vsel %vm1037, %v1011, 0
        %v1093 = vsel %vm1037, %v1012, 0
        %v1096 = vsel %vm1037, %v1013, 0
        %v1099 = vsel %vm1037, %v1014, 0
        %v1102 = vsel %vm1037, %v1015, 0
        %v1105 = vsel %vm1037, %v1016, 0
        %v1108 = vsel %vm1037, %v1017, 0
        %v1111 = vsel %vm1037, %v1018, 0
        %v1114 = vsel %vm1037, %v1019, 0
        %v1117 = vsel %vm1037, %v1020, 0
        %v1120 = vsel %vm1037, %v1021, 0
        %v1123 = vsel %vm1037, %v1022, 0
        %v1126 = vsel %vm1037, %v1023, 0
        %v1129 = vsel %vm1037, %v1024, 0
        %v1132 = vsel %vm1037, %v1025, 0
        %vm1134 = vcmask 1044480
        %vm1135 = vcmask 1045504
        %v1136 = vsel %vm1134, 4294967295, 65535
        %v1137 = vsel %vm1135, %v1136, 0
        %v1139 = vand.u32 %v1035, %v1137
        %1141 = vmatprep.subr.bf16.mxu0 0
        %1142 = vmatpush1.bf16.msra.mxu0 %v1034
        %1143 = vmatprep.subr.bf16.mxu0 0
        %1144 = vmatpush1.bf16.msra.mxu0 %v1139
        %1145 = vmatprep.subr.bf16.mxu0 0
        %1146 = vmatpush1.bf16.msra.mxu0 0
        %1147 = vmatprep.subr.bf16.mxu0 0
        %1148 = vmatpush1.bf16.msra.mxu0 0
        %1149 = vmatprep.subr.bf16.mxu0 0
        %1150 = vmatpush1.bf16.msra.mxu0 0
        %1151 = vmatprep.subr.bf16.mxu0 0
        %1152 = vmatpush1.bf16.msra.mxu0 0
        %1153 = vmatprep.subr.bf16.mxu0 0
        %1154 = vmatpush1.bf16.msra.mxu0 0
        %1155 = vmatprep.subr.bf16.mxu0 0
        %1156 = vmatpush1.bf16.msra.mxu0 0
        %1157 = vmatprep.subr.bf16.mxu0 0
        %1158 = vmatpush1.bf16.msra.mxu0 0
        %1159 = vmatprep.subr.bf16.mxu0 0
        %1160 = vmatpush1.bf16.msra.mxu0 0
        %1161 = vmatprep.subr.bf16.mxu0 0
        %1162 = vmatpush1.bf16.msra.mxu0 0
        %1163 = vmatprep.subr.bf16.mxu0 0
        %1164 = vmatpush1.bf16.msra.mxu0 0
        %1165 = vmatprep.subr.bf16.mxu0 0
        %1166 = vmatpush1.bf16.msra.mxu0 0
        %1167 = vmatprep.subr.bf16.mxu0 0
        %1168 = vmatpush1.bf16.msra.mxu0 0
        %1169 = vmatprep.subr.bf16.mxu0 0
        %1170 = vmatpush1.bf16.msra.mxu0 0
        %1171 = vmatprep.subr.bf16.mxu0 0
        %1172 = vmatpush1.bf16.msra.mxu0 0
        %1173 = vmatprep.mubr.bf16.mxu0 0
        %1174 = vmatmul.mubr.bf16.gmra.mrb[0].mxu0 %v1039
        %v1175 = vpop.f32.mrb[0].mxu0
        %v1176 = vadd.f32 %v864, %v1175
        %v1177 = vpop.f32.mrb[0].mxu0
        %v1178 = vpop.f32.mrb[0].mxu0
        %v1179 = vadd.f32 %v864, %v1178
        %v1180 = vpop.f32.mrb[0].mxu0
        %1181 = vmatprep.mubr.bf16.mxu0 0
        %1182 = vmatmul.mubr.bf16.gmra.mrb[0].mxu0 %v1042
        %v1183 = vpop.f32.mrb[0].mxu0
        %v1184 = vadd.f32 %v864, %v1183
        %v1185 = vpop.f32.mrb[0].mxu0
        %v1186 = vpop.f32.mrb[0].mxu0
        %v1187 = vadd.f32 %v864, %v1186
        %v1188 = vpop.f32.mrb[0].mxu0
        %1189 = vmatprep.mubr.bf16.mxu0 0
        %1190 = vmatmul.mubr.bf16.gmra.mrb[0].mxu0 %v1045
        %v1191 = vpop.f32.mrb[0].mxu0
        %v1192 = vadd.f32 %v864, %v1191
        %v1193 = vpop.f32.mrb[0].mxu0
        %v1194 = vpop.f32.mrb[0].mxu0
        %v1195 = vadd.f32 %v864, %v1194
        %v1196 = vpop.f32.mrb[0].mxu0
        %1197 = vmatprep.mubr.bf16.mxu0 0
        %1198 = vmatmul.mubr.bf16.gmra.mrb[0].mxu0 %v1048
        %v1199 = vpop.f32.mrb[0].mxu0
        %v1200 = vadd.f32 %v864, %v1199
        %v1201 = vpop.f32.mrb[0].mxu0
        %v1202 = vpop.f32.mrb[0].mxu0
        %v1203 = vadd.f32 %v864, %v1202
        %v1204 = vpop.f32.mrb[0].mxu0
        %1205 = vmatprep.mubr.bf16.mxu0 0
        %1206 = vmatmul.mubr.bf16.gmra.mrb[0].mxu0 %v1051
        %v1207 = vpop.f32.mrb[0].mxu0
        %v1208 = vadd.f32 %v864, %v1207
        %v1209 = vpop.f32.mrb[0].mxu0
        %v1210 = vpop.f32.mrb[0].mxu0
        %v1211 = vadd.f32 %v864, %v1210
        %v1212 = vpop.f32.mrb[0].mxu0
        %1213 = vmatprep.mubr.bf16.mxu0 0
        %1214 = vmatmul.mubr.bf16.gmra.mrb[0].mxu0 %v1054
        %v1215 = vpop.f32.mrb[0].mxu0
        %v1216 = vadd.f32 %v864, %v1215
        %v1217 = vpop.f32.mrb[0].mxu0
        %v1218 = vpop.f32.mrb[0].mxu0
        %v1219 = vadd.f32 %v864, %v1218
        %v1220 = vpop.f32.mrb[0].mxu0
        %1221 = vmatprep.mubr.bf16.mxu0 0
        %1222 = vmatmul.mubr.bf16.gmra.mrb[0].mxu0 %v1057
        %v1223 = vpop.f32.mrb[0].mxu0
        %v1224 = vadd.f32 %v864, %v1223
        %v1225 = vpop.f32.mrb[0].mxu0
        %v1226 = vpop.f32.mrb[0].mxu0
        %v1227 = vadd.f32 %v864, %v1226
        %v1228 = vpop.f32.mrb[0].mxu0
        %1229 = vmatprep.mubr.bf16.mxu0 0
        %1230 = vmatmul.mubr.bf16.gmra.mrb[0].mxu0 %v1060
        %v1231 = vpop.f32.mrb[0].mxu0
        %v1232 = vadd.f32 %v864, %v1231
        %v1233 = vpop.f32.mrb[0].mxu0
        %v1234 = vpop.f32.mrb[0].mxu0
        %v1235 = vadd.f32 %v864, %v1234
        %v1236 = vpop.f32.mrb[0].mxu0
        %1237 = vmatprep.mubr.bf16.mxu0 0
        %1238 = vmatmul.mubr.bf16.gmra.mrb[0].mxu0 %v1063
        %v1239 = vpop.f32.mrb[0].mxu0
        %v1240 = vadd.f32 %v864, %v1239
        %v1241 = vpop.f32.mrb[0].mxu0
        %v1242 = vpop.f32.mrb[0].mxu0
        %v1243 = vadd.f32 %v864, %v1242
        %v1244 = vpop.f32.mrb[0].mxu0
        %1245 = vmatprep.mubr.bf16.mxu0 0
        %1246 = vmatmul.mubr.bf16.gmra.mrb[0].mxu0 %v1066
        %v1247 = vpop.f32.mrb[0].mxu0
        %v1248 = vadd.f32 %v864, %v1247
        %v1249 = vpop.f32.mrb[0].mxu0
        %v1250 = vpop.f32.mrb[0].mxu0
        %v1251 = vadd.f32 %v864, %v1250
        %v1252 = vpop.f32.mrb[0].mxu0
        %1253 = vmatprep.mubr.bf16.mxu0 0
        %1254 = vmatmul.mubr.bf16.gmra.mrb[0].mxu0 %v1069
        %v1255 = vpop.f32.mrb[0].mxu0
        %v1256 = vadd.f32 %v864, %v1255
        %v1257 = vpop.f32.mrb[0].mxu0
        %v1258 = vpop.f32.mrb[0].mxu0
        %v1259 = vadd.f32 %v864, %v1258
        %v1260 = vpop.f32.mrb[0].mxu0
        %1261 = vmatprep.mubr.bf16.mxu0 0
        %1262 = vmatmul.mubr.bf16.gmra.mrb[0].mxu0 %v1072
        %v1263 = vpop.f32.mrb[0].mxu0
        %v1264 = vadd.f32 %v864, %v1263
        %v1265 = vpop.f32.mrb[0].mxu0
        %v1266 = vpop.f32.mrb[0].mxu0
        %v1267 = vadd.f32 %v864, %v1266
        %v1268 = vpop.f32.mrb[0].mxu0
        %1269 = vmatprep.mubr.bf16.mxu0 0
        %1270 = vmatmul.mubr.bf16.gmra.mrb[0].mxu0 %v1075
        %v1271 = vpop.f32.mrb[0].mxu0
        %v1272 = vadd.f32 %v864, %v1271
        %v1273 = vpop.f32.mrb[0].mxu0
        %v1274 = vpop.f32.mrb[0].mxu0
        %v1275 = vadd.f32 %v864, %v1274
        %v1276 = vpop.f32.mrb[0].mxu0
        %1277 = vmatprep.mubr.bf16.mxu0 0
        %1278 = vmatmul.mubr.bf16.gmra.mrb[0].mxu0 %v1078
        %v1279 = vpop.f32.mrb[0].mxu0
        %v1280 = vadd.f32 %v864, %v1279
        %v1281 = vpop.f32.mrb[0].mxu0
        %v1282 = vpop.f32.mrb[0].mxu0
        %v1283 = vadd.f32 %v864, %v1282
        %v1284 = vpop.f32.mrb[0].mxu0
        %1285 = vmatprep.mubr.bf16.mxu0 0
        %1286 = vmatmul.mubr.bf16.gmra.mrb[0].mxu0 %v1081
        %v1287 = vpop.f32.mrb[0].mxu0
        %v1288 = vadd.f32 %v864, %v1287
        %v1289 = vpop.f32.mrb[0].mxu0
        %v1290 = vpop.f32.mrb[0].mxu0
        %v1291 = vadd.f32 %v864, %v1290
        %v1292 = vpop.f32.mrb[0].mxu0
        %1293 = vmatprep.mubr.bf16.mxu0 0
        %1294 = vmatmul.mubr.bf16.gmra.mrb[0].mxu0 %v1084
        %v1295 = vpop.f32.mrb[0].mxu0
        %v1296 = vadd.f32 %v864, %v1295
        %v1297 = vpop.f32.mrb[0].mxu0
        %v1298 = vpop.f32.mrb[0].mxu0
        %v1299 = vadd.f32 %v864, %v1298
        %v1300 = vpop.f32.mrb[0].mxu0
        %1301 = vmatprep.mubr.bf16.mxu0 0
        %1302 = vmatmul.mubr.bf16.gmra.mrb[0].mxu0 %v1087
        %v1303 = vpop.f32.mrb[0].mxu0
        %v1304 = vadd.f32 %v864, %v1303
        %v1305 = vpop.f32.mrb[0].mxu0
        %v1306 = vpop.f32.mrb[0].mxu0
        %v1307 = vadd.f32 %v864, %v1306
        %v1308 = vpop.f32.mrb[0].mxu0
        %1309 = vmatprep.mubr.bf16.mxu0 0
        %1310 = vmatmul.mubr.bf16.gmra.mrb[0].mxu0 %v1090
        %v1311 = vpop.f32.mrb[0].mxu0
        %v1312 = vadd.f32 %v864, %v1311
        %v1313 = vpop.f32.mrb[0].mxu0
        %v1314 = vpop.f32.mrb[0].mxu0
        %v1315 = vadd.f32 %v864, %v1314
        %v1316 = vpop.f32.mrb[0].mxu0
        %1317 = vmatprep.mubr.bf16.mxu0 0
        %1318 = vmatmul.mubr.bf16.gmra.mrb[0].mxu0 %v1093
        %v1319 = vpop.f32.mrb[0].mxu0
        %v1320 = vadd.f32 %v864, %v1319
        %v1321 = vpop.f32.mrb[0].mxu0
        %v1322 = vpop.f32.mrb[0].mxu0
        %v1323 = vadd.f32 %v864, %v1322
        %v1324 = vpop.f32.mrb[0].mxu0
        %1325 = vmatprep.mubr.bf16.mxu0 0
        %1326 = vmatmul.mubr.bf16.gmra.mrb[0].mxu0 %v1096
        %v1327 = vpop.f32.mrb[0].mxu0
        %v1328 = vadd.f32 %v864, %v1327
        %v1329 = vpop.f32.mrb[0].mxu0
        %v1330 = vpop.f32.mrb[0].mxu0
        %v1331 = vadd.f32 %v864, %v1330
        %v1332 = vpop.f32.mrb[0].mxu0
        %1333 = vmatprep.mubr.bf16.mxu0 0
        %1334 = vmatmul.mubr.bf16.gmra.mrb[0].mxu0 %v1099
        %v1335 = vpop.f32.mrb[0].mxu0
        %v1336 = vadd.f32 %v864, %v1335
        %v1337 = vpop.f32.mrb[0].mxu0
        %v1338 = vpop.f32.mrb[0].mxu0
        %v1339 = vadd.f32 %v864, %v1338
        %v1340 = vpop.f32.mrb[0].mxu0
        %1341 = vmatprep.mubr.bf16.mxu0 0
        %1342 = vmatmul.mubr.bf16.gmra.mrb[0].mxu0 %v1102
        %v1343 = vpop.f32.mrb[0].mxu0
        %v1344 = vadd.f32 %v864, %v1343
        %v1345 = vpop.f32.mrb[0].mxu0
        %v1346 = vpop.f32.mrb[0].mxu0
        %v1347 = vadd.f32 %v864, %v1346
        %v1348 = vpop.f32.mrb[0].mxu0
        %1349 = vmatprep.mubr.bf16.mxu0 0
        %1350 = vmatmul.mubr.bf16.gmra.mrb[0].mxu0 %v1105
        %v1351 = vpop.f32.mrb[0].mxu0
        %v1352 = vadd.f32 %v864, %v1351
        %v1353 = vpop.f32.mrb[0].mxu0
        %v1354 = vpop.f32.mrb[0].mxu0
        %v1355 = vadd.f32 %v864, %v1354
        %v1356 = vpop.f32.mrb[0].mxu0
        %1357 = vmatprep.mubr.bf16.mxu0 0
        %1358 = vmatmul.mubr.bf16.gmra.mrb[0].mxu0 %v1108
        %v1359 = vpop.f32.mrb[0].mxu0
        %v1360 = vadd.f32 %v864, %v1359
        %v1361 = vpop.f32.mrb[0].mxu0
        %v1362 = vpop.f32.mrb[0].mxu0
        %v1363 = vadd.f32 %v864, %v1362
        %v1364 = vpop.f32.mrb[0].mxu0
        %1365 = vmatprep.mubr.bf16.mxu0 0
        %1366 = vmatmul.mubr.bf16.gmra.mrb[0].mxu0 %v1111
        %v1367 = vpop.f32.mrb[0].mxu0
        %v1368 = vadd.f32 %v864, %v1367
        %v1369 = vpop.f32.mrb[0].mxu0
        %v1370 = vpop.f32.mrb[0].mxu0
        %v1371 = vadd.f32 %v864, %v1370
        %v1372 = vpop.f32.mrb[0].mxu0
        %1373 = vmatprep.mubr.bf16.mxu0 0
        %1374 = vmatmul.mubr.bf16.gmra.mrb[0].mxu0 %v1114
        %v1375 = vpop.f32.mrb[0].mxu0
        %v1376 = vadd.f32 %v864, %v1375
        %v1377 = vpop.f32.mrb[0].mxu0
        %v1378 = vpop.f32.mrb[0].mxu0
        %v1379 = vadd.f32 %v864, %v1378
        %v1380 = vpop.f32.mrb[0].mxu0
        %1381 = vmatprep.mubr.bf16.mxu0 0
        %1382 = vmatmul.mubr.bf16.gmra.mrb[0].mxu0 %v1117
        %v1383 = vpop.f32.mrb[0].mxu0
        %v1384 = vadd.f32 %v864, %v1383
        %v1385 = vpop.f32.mrb[0].mxu0
        %v1386 = vpop.f32.mrb[0].mxu0
        %v1387 = vadd.f32 %v864, %v1386
        %v1388 = vpop.f32.mrb[0].mxu0
        %1389 = vmatprep.mubr.bf16.mxu0 0
        %1390 = vmatmul.mubr.bf16.gmra.mrb[0].mxu0 %v1120
        %v1391 = vpop.f32.mrb[0].mxu0
        %v1392 = vadd.f32 %v864, %v1391
        %v1393 = vpop.f32.mrb[0].mxu0
        %v1394 = vpop.f32.mrb[0].mxu0
        %v1395 = vadd.f32 %v864, %v1394
        %v1396 = vpop.f32.mrb[0].mxu0
        %1397 = vmatprep.mubr.bf16.mxu0 0
        %1398 = vmatmul.mubr.bf16.gmra.mrb[0].mxu0 %v1123
        %v1399 = vpop.f32.mrb[0].mxu0
        %v1400 = vadd.f32 %v864, %v1399
        %v1401 = vpop.f32.mrb[0].mxu0
        %v1402 = vpop.f32.mrb[0].mxu0
        %v1403 = vadd.f32 %v864, %v1402
        %v1404 = vpop.f32.mrb[0].mxu0
        %1405 = vmatprep.mubr.bf16.mxu0 0
        %1406 = vmatmul.mubr.bf16.gmra.mrb[0].mxu0 %v1126
        %v1407 = vpop.f32.mrb[0].mxu0
        %v1408 = vadd.f32 %v864, %v1407
        %v1409 = vpop.f32.mrb[0].mxu0
        %v1410 = vpop.f32.mrb[0].mxu0
        %v1411 = vadd.f32 %v864, %v1410
        %v1412 = vpop.f32.mrb[0].mxu0
        %1413 = vmatprep.mubr.bf16.mxu0 0
        %1414 = vmatmul.mubr.bf16.gmra.mrb[0].mxu0 %v1129
        %v1415 = vpop.f32.mrb[0].mxu0
        %v1416 = vadd.f32 %v864, %v1415
        %v1417 = vpop.f32.mrb[0].mxu0
        %v1418 = vpop.f32.mrb[0].mxu0
        %v1419 = vadd.f32 %v864, %v1418
        %v1420 = vpop.f32.mrb[0].mxu0
        %1421 = vmatprep.mubr.bf16.mxu0 0
        %1422 = vmatmul.mubr.bf16.gmra.mrb[0].mxu0 %v1132
        %v1423 = vpop.f32.mrb[0].mxu0
        %v1424 = vadd.f32 %v864, %v1423
        %v1425 = vpop.f32.mrb[0].mxu0
        %v1426 = vpop.f32.mrb[0].mxu0
        %v1427 = vadd.f32 %v864, %v1426
        %v1428 = vpop.f32.mrb[0].mxu0
        %1429 = vdwg.mxu0
        %v1430 = vmax.f32 %v1176, 0.0
        %v1431 = vmax.f32 %v1179, 0.0
        %v1432 = vmax.f32 %v1184, 0.0
        %v1433 = vmax.f32 %v1187, 0.0
        %v1434 = vmax.f32 %v1192, 0.0
        %v1435 = vmax.f32 %v1195, 0.0
        %v1436 = vmax.f32 %v1200, 0.0
        %v1437 = vmax.f32 %v1203, 0.0
        %v1438 = vmax.f32 %v1208, 0.0
        %v1439 = vmax.f32 %v1211, 0.0
        %v1440 = vmax.f32 %v1216, 0.0
        %v1441 = vmax.f32 %v1219, 0.0
        %v1442 = vmax.f32 %v1224, 0.0
        %v1443 = vmax.f32 %v1227, 0.0
        %v1444 = vmax.f32 %v1232, 0.0
        %v1445 = vmax.f32 %v1235, 0.0
        %v1446 = vmax.f32 %v1240, 0.0
        %v1447 = vmax.f32 %v1243, 0.0
        %v1448 = vmax.f32 %v1248, 0.0
        %v1449 = vmax.f32 %v1251, 0.0
        %v1450 = vmax.f32 %v1256, 0.0
        %v1451 = vmax.f32 %v1259, 0.0
        %v1452 = vmax.f32 %v1264, 0.0
        %v1453 = vmax.f32 %v1267, 0.0
        %v1454 = vmax.f32 %v1272, 0.0
        %v1455 = vmax.f32 %v1275, 0.0
        %v1456 = vmax.f32 %v1280, 0.0
        %v1457 = vmax.f32 %v1283, 0.0
        %v1458 = vmax.f32 %v1288, 0.0
        %v1459 = vmax.f32 %v1291, 0.0
        %v1460 = vmax.f32 %v1296, 0.0
        %v1461 = vmax.f32 %v1299, 0.0
        %v1462 = vmax.f32 %v1304, 0.0
        %v1463 = vmax.f32 %v1307, 0.0
        %v1464 = vmax.f32 %v1312, 0.0
        %v1465 = vmax.f32 %v1315, 0.0
        %v1466 = vmax.f32 %v1320, 0.0
        %v1467 = vmax.f32 %v1323, 0.0
        %v1468 = vmax.f32 %v1328, 0.0
        %v1469 = vmax.f32 %v1331, 0.0
        %v1470 = vmax.f32 %v1336, 0.0
        %v1471 = vmax.f32 %v1339, 0.0
        %v1472 = vmax.f32 %v1344, 0.0
        %v1473 = vmax.f32 %v1347, 0.0
        %v1474 = vmax.f32 %v1352, 0.0
        %v1475 = vmax.f32 %v1355, 0.0
        %v1476 = vmax.f32 %v1360, 0.0
        %v1477 = vmax.f32 %v1363, 0.0
        %v1478 = vmax.f32 %v1368, 0.0
        %v1479 = vmax.f32 %v1371, 0.0
        %v1480 = vmax.f32 %v1376, 0.0
        %v1481 = vmax.f32 %v1379, 0.0
        %v1482 = vmax.f32 %v1384, 0.0
        %v1483 = vmax.f32 %v1387, 0.0
        %v1484 = vmax.f32 %v1392, 0.0
        %v1485 = vmax.f32 %v1395, 0.0
        %v1486 = vmax.f32 %v1400, 0.0
        %v1487 = vmax.f32 %v1403, 0.0
        %v1488 = vmax.f32 %v1408, 0.0
        %v1489 = vmax.f32 %v1411, 0.0
        %v1490 = vmax.f32 %v1416, 0.0
        %v1491 = vmax.f32 %v1419, 0.0
        %v1492 = vmax.f32 %v1424, 0.0
        %v1493 = vmax.f32 %v1427, 0.0
        %v1494 = vpack.c.bf16 %v1431, %v1430
        %v1495 = vpack.c.bf16 %v1433, %v1432
        %v1496 = vpack.c.bf16 %v1435, %v1434
        %v1497 = vpack.c.bf16 %v1437, %v1436
        %v1498 = vpack.c.bf16 %v1439, %v1438
        %v1499 = vpack.c.bf16 %v1441, %v1440
        %v1500 = vpack.c.bf16 %v1443, %v1442
        %v1501 = vpack.c.bf16 %v1445, %v1444
        %v1502 = vpack.c.bf16 %v1447, %v1446
        %v1503 = vpack.c.bf16 %v1449, %v1448
        %v1504 = vpack.c.bf16 %v1451, %v1450
        %v1505 = vpack.c.bf16 %v1453, %v1452
        %v1506 = vpack.c.bf16 %v1455, %v1454
        %v1507 = vpack.c.bf16 %v1457, %v1456
        %v1508 = vpack.c.bf16 %v1459, %v1458
        %v1509 = vpack.c.bf16 %v1461, %v1460
        %v1510 = vpack.c.bf16 %v1463, %v1462
        %v1511 = vpack.c.bf16 %v1465, %v1464
        %v1512 = vpack.c.bf16 %v1467, %v1466
        %v1513 = vpack.c.bf16 %v1469, %v1468
        %v1514 = vpack.c.bf16 %v1471, %v1470
        %v1515 = vpack.c.bf16 %v1473, %v1472
        %v1516 = vpack.c.bf16 %v1475, %v1474
        %v1517 = vpack.c.bf16 %v1477, %v1476
        %v1518 = vpack.c.bf16 %v1479, %v1478
        %v1519 = vpack.c.bf16 %v1481, %v1480
        %v1520 = vpack.c.bf16 %v1483, %v1482
        %v1521 = vpack.c.bf16 %v1485, %v1484
        %v1522 = vpack.c.bf16 %v1487, %v1486
        %v1523 = vpack.c.bf16 %v1489, %v1488
        %v1524 = vpack.c.bf16 %v1491, %v1490
        %v1525 = vpack.c.bf16 %v1493, %v1492
        %v1526 = vld [vmem:[%s3] sm:$0xff]
        %v1527 = vld [vmem:[%s3 + $0x8] sm:$0xff]
        %v1528 = vld [vmem:[%s3 + $0x10] sm:$0xff]
        %v1529 = vld [vmem:[%s3 + $0x18] sm:$0xff]
        %v1530 = vld [vmem:[%s3 + $0x20] sm:$0xff]
        %v1531 = vld [vmem:[%s3 + $0x28] sm:$0xff]
        %v1532 = vld [vmem:[%s3 + $0x30] sm:$0xff]
        %v1533 = vld [vmem:[%s3 + $0x38] sm:$0xff]
        %v1534 = vld [vmem:[%s3 + $0x40] sm:$0xff]
        %v1535 = vld [vmem:[%s3 + $0x48] sm:$0xff]
        %v1536 = vld [vmem:[%s3 + $0x50] sm:$0xff]
        %v1537 = vld [vmem:[%s3 + $0x58] sm:$0xff]
        %v1538 = vld [vmem:[%s3 + $0x60] sm:$0xff]
        %v1539 = vld [vmem:[%s3 + $0x68] sm:$0xff]
        %v1540 = vld [vmem:[%s3 + $0x70] sm:$0xff]
        %v1541 = vld [vmem:[%s3 + $0x78] sm:$0xff]
        %v1542 = vld [vmem:[%s3 + $0x80] sm:$0xff]
        %v1543 = vld [vmem:[%s3 + $0x88] sm:$0xff]
        %v1544 = vld [vmem:[%s3 + $0x90] sm:$0xff]
        %v1545 = vld [vmem:[%s3 + $0x98] sm:$0xff]
        %v1546 = vld [vmem:[%s3 + $0xa0] sm:$0xff]
        %v1547 = vld [vmem:[%s3 + $0xa8] sm:$0xff]
        %v1548 = vld [vmem:[%s3 + $0xb0] sm:$0xff]
        %v1549 = vld [vmem:[%s3 + $0xb8] sm:$0xff]
        %v1550 = vld [vmem:[%s3 + $0xc0] sm:$0xff]
        %v1551 = vld [vmem:[%s3 + $0xc8] sm:$0xff]
        %v1552 = vld [vmem:[%s3 + $0xd0] sm:$0xff]
        %v1553 = vld [vmem:[%s3 + $0xd8] sm:$0xff]
        %v1554 = vld [vmem:[%s3 + $0xe0] sm:$0xff]
        %v1555 = vld [vmem:[%s3 + $0xe8] sm:$0xff]
        %v1556 = vld [vmem:[%s3 + $0xf0] sm:$0xff]
        %v1557 = vld [vmem:[%s3 + $0xf8] sm:$0xff]
        %v1558 = vld [vmem:[%s4] sm:$0xff]
        %v1559 = vld [vmem:[%s4 + $0x8] sm:$0xff]
        %v1562 = vlaneseq
        %v1563 = vshrl.u32 %v1562, 7
        %v1564 = vsub.s32 0, %v1563
        %v1565 = vrot.slane %v1558, %v1564
        %v1566 = vlaneseq
        %v1567 = vshrl.u32 %v1566, 7
        %v1568 = vsub.s32 1, %v1567
        %v1569 = vrot.slane %v1558, %v1568
        %v1570 = vlaneseq
        %v1571 = vshrl.u32 %v1570, 7
        %v1572 = vsub.s32 2, %v1571
        %v1573 = vrot.slane %v1558, %v1572
        %v1574 = vlaneseq
        %v1575 = vshrl.u32 %v1574, 7
        %v1576 = vsub.s32 3, %v1575
        %v1577 = vrot.slane %v1558, %v1576
        %v1578 = vlaneseq
        %v1579 = vshrl.u32 %v1578, 7
        %v1580 = vsub.s32 4, %v1579
        %v1581 = vrot.slane %v1558, %v1580
        %v1582 = vlaneseq
        %v1583 = vshrl.u32 %v1582, 7
        %v1584 = vsub.s32 5, %v1583
        %v1585 = vrot.slane %v1558, %v1584
        %v1586 = vlaneseq
        %v1587 = vshrl.u32 %v1586, 7
        %v1588 = vsub.s32 6, %v1587
        %v1589 = vrot.slane %v1558, %v1588
        %v1590 = vlaneseq
        %v1591 = vshrl.u32 %v1590, 7
        %v1592 = vsub.s32 7, %v1591
        %v1593 = vrot.slane %v1558, %v1592
        %v1594 = vlaneseq
        %v1595 = vshrl.u32 %v1594, 7
        %v1596 = vsub.s32 0, %v1595
        %v1597 = vrot.slane %v1559, %v1596
        %v1598 = vlaneseq
        %v1599 = vshrl.u32 %v1598, 7
        %v1600 = vsub.s32 1, %v1599
        %v1601 = vrot.slane %v1559, %v1600
        %v1602 = vlaneseq
        %v1603 = vshrl.u32 %v1602, 7
        %v1604 = vsub.s32 2, %v1603
        %v1605 = vrot.slane %v1559, %v1604
        %v1606 = vlaneseq
        %v1607 = vshrl.u32 %v1606, 7
        %v1608 = vsub.s32 3, %v1607
        %v1609 = vrot.slane %v1559, %v1608
        %v1610 = vlaneseq
        %v1611 = vshrl.u32 %v1610, 7
        %v1612 = vsub.s32 4, %v1611
        %v1613 = vrot.slane %v1559, %v1612
        %v1614 = vlaneseq
        %v1615 = vshrl.u32 %v1614, 7
        %v1616 = vsub.s32 5, %v1615
        %v1617 = vrot.slane %v1559, %v1616
        %v1618 = vlaneseq
        %v1619 = vshrl.u32 %v1618, 7
        %v1620 = vsub.s32 6, %v1619
        %v1621 = vrot.slane %v1559, %v1620
        %v1622 = vlaneseq
        %v1623 = vshrl.u32 %v1622, 7
        %v1624 = vsub.s32 7, %v1623
        %v1625 = vrot.slane %v1559, %v1624
        %v1674 = vunpack.c.l.b16 %v1526
        %v1675 = vunpack.c.h.b16 %v1526
        %v1676 = vunpack.c.l.b16 %v1527
        %v1677 = vunpack.c.h.b16 %v1527
        %v1678 = vunpack.c.l.b16 %v1528
        %v1679 = vunpack.c.h.b16 %v1528
        %v1680 = vunpack.c.l.b16 %v1529
        %v1681 = vunpack.c.h.b16 %v1529
        %v1682 = vunpack.c.l.b16 %v1530
        %v1683 = vunpack.c.h.b16 %v1530
        %v1684 = vunpack.c.l.b16 %v1531
        %v1685 = vunpack.c.h.b16 %v1531
        %v1686 = vunpack.c.l.b16 %v1532
        %v1687 = vunpack.c.h.b16 %v1532
        %v1688 = vunpack.c.l.b16 %v1533
        %v1689 = vunpack.c.h.b16 %v1533
        %v1690 = vunpack.c.l.b16 %v1534
        %v1691 = vunpack.c.h.b16 %v1534
        %v1692 = vunpack.c.l.b16 %v1535
        %v1693 = vunpack.c.h.b16 %v1535
        %v1694 = vunpack.c.l.b16 %v1536
        %v1695 = vunpack.c.h.b16 %v1536
        %v1696 = vunpack.c.l.b16 %v1537
        %v1697 = vunpack.c.h.b16 %v1537
        %v1698 = vunpack.c.l.b16 %v1538
        %v1699 = vunpack.c.h.b16 %v1538
        %v1700 = vunpack.c.l.b16 %v1539
        %v1701 = vunpack.c.h.b16 %v1539
        %v1702 = vunpack.c.l.b16 %v1540
        %v1703 = vunpack.c.h.b16 %v1540
        %v1704 = vunpack.c.l.b16 %v1541
        %v1705 = vunpack.c.h.b16 %v1541
        %v1706 = vunpack.c.l.b16 %v1542
        %v1707 = vunpack.c.h.b16 %v1542
        %v1708 = vunpack.c.l.b16 %v1543
        %v1709 = vunpack.c.h.b16 %v1543
        %v1710 = vunpack.c.l.b16 %v1544
        %v1711 = vunpack.c.h.b16 %v1544
        %v1712 = vunpack.c.l.b16 %v1545
        %v1713 = vunpack.c.h.b16 %v1545
        %v1714 = vunpack.c.l.b16 %v1546
        %v1715 = vunpack.c.h.b16 %v1546
        %v1716 = vunpack.c.l.b16 %v1547
        %v1717 = vunpack.c.h.b16 %v1547
        %v1718 = vunpack.c.l.b16 %v1548
        %v1719 = vunpack.c.h.b16 %v1548
        %v1720 = vunpack.c.l.b16 %v1549
        %v1721 = vunpack.c.h.b16 %v1549
        %v1722 = vunpack.c.l.b16 %v1550
        %v1723 = vunpack.c.h.b16 %v1550
        %v1724 = vunpack.c.l.b16 %v1551
        %v1725 = vunpack.c.h.b16 %v1551
        %v1726 = vunpack.c.l.b16 %v1552
        %v1727 = vunpack.c.h.b16 %v1552
        %v1728 = vunpack.c.l.b16 %v1553
        %v1729 = vunpack.c.h.b16 %v1553
        %v1730 = vunpack.c.l.b16 %v1554
        %v1731 = vunpack.c.h.b16 %v1554
        %v1732 = vunpack.c.l.b16 %v1555
        %v1733 = vunpack.c.h.b16 %v1555
        %v1734 = vunpack.c.l.b16 %v1556
        %v1735 = vunpack.c.h.b16 %v1556
        %v1736 = vunpack.c.l.b16 %v1557
        %v1737 = vunpack.c.h.b16 %v1557
        %v1738 = vpack.c.b16 %v1690, %v1674
        %v1739 = vpack.c.b16 %v1691, %v1675
        %v1740 = vpack.c.b16 %v1692, %v1676
        %v1741 = vpack.c.b16 %v1693, %v1677
        %v1742 = vpack.c.b16 %v1694, %v1678
        %v1743 = vpack.c.b16 %v1695, %v1679
        %v1744 = vpack.c.b16 %v1696, %v1680
        %v1745 = vpack.c.b16 %v1697, %v1681
        %v1746 = vpack.c.b16 %v1698, %v1682
        %v1747 = vpack.c.b16 %v1699, %v1683
        %v1748 = vpack.c.b16 %v1700, %v1684
        %v1749 = vpack.c.b16 %v1701, %v1685
        %v1750 = vpack.c.b16 %v1702, %v1686
        %v1751 = vpack.c.b16 %v1703, %v1687
        %v1752 = vpack.c.b16 %v1704, %v1688
        %v1753 = vpack.c.b16 %v1705, %v1689
        %v1754 = vpack.c.b16 %v1722, %v1706
        %v1755 = vpack.c.b16 %v1723, %v1707
        %v1756 = vpack.c.b16 %v1724, %v1708
        %v1757 = vpack.c.b16 %v1725, %v1709
        %v1758 = vpack.c.b16 %v1726, %v1710
        %v1759 = vpack.c.b16 %v1727, %v1711
        %v1760 = vpack.c.b16 %v1728, %v1712
        %v1761 = vpack.c.b16 %v1729, %v1713
        %v1762 = vpack.c.b16 %v1730, %v1714
        %v1763 = vpack.c.b16 %v1731, %v1715
        %v1764 = vpack.c.b16 %v1732, %v1716
        %v1765 = vpack.c.b16 %v1733, %v1717
        %v1766 = vpack.c.b16 %v1734, %v1718
        %v1767 = vpack.c.b16 %v1735, %v1719
        %v1768 = vpack.c.b16 %v1736, %v1720
        %v1769 = vpack.c.b16 %v1737, %v1721
        %vm1802 = vcmask 261120
        %v1804 = vsel %vm1802, %v1494, 0
        %v1807 = vsel %vm1802, %v1495, 0
        %v1810 = vsel %vm1802, %v1496, 0
        %v1813 = vsel %vm1802, %v1497, 0
        %v1816 = vsel %vm1802, %v1498, 0
        %v1819 = vsel %vm1802, %v1499, 0
        %v1822 = vsel %vm1802, %v1500, 0
        %v1825 = vsel %vm1802, %v1501, 0
        %v1828 = vsel %vm1802, %v1502, 0
        %v1831 = vsel %vm1802, %v1503, 0
        %v1834 = vsel %vm1802, %v1504, 0
        %v1837 = vsel %vm1802, %v1505, 0
        %v1840 = vsel %vm1802, %v1506, 0
        %v1843 = vsel %vm1802, %v1507, 0
        %v1846 = vsel %vm1802, %v1508, 0
        %v1849 = vsel %vm1802, %v1509, 0
        %v1852 = vsel %vm1802, %v1510, 0
        %v1855 = vsel %vm1802, %v1511, 0
        %v1858 = vsel %vm1802, %v1512, 0
        %v1861 = vsel %vm1802, %v1513, 0
        %v1864 = vsel %vm1802, %v1514, 0
        %v1867 = vsel %vm1802, %v1515, 0
        %v1870 = vsel %vm1802, %v1516, 0
        %v1873 = vsel %vm1802, %v1517, 0
        %v1876 = vsel %vm1802, %v1518, 0
        %v1879 = vsel %vm1802, %v1519, 0
        %v1882 = vsel %vm1802, %v1520, 0
        %v1885 = vsel %vm1802, %v1521, 0
        %v1888 = vsel %vm1802, %v1522, 0
        %v1891 = vsel %vm1802, %v1523, 0
        %v1894 = vsel %vm1802, %v1524, 0
        %v1897 = vsel %vm1802, %v1525, 0
        %1899 = vmatprep.subr.bf16.mxu0 %v1739
        %1900 = vmatpush1.bf16.msra.mxu0 %v1738
        %1901 = vmatprep.subr.bf16.mxu0 %v1755
        %1902 = vmatpush1.bf16.msra.mxu0 %v1754
        %1903 = vmatprep.subr.bf16.mxu0 0
        %1904 = vmatpush1.bf16.msra.mxu0 0
        %1905 = vmatprep.subr.bf16.mxu0 0
        %1906 = vmatpush1.bf16.msra.mxu0 0
        %1907 = vmatprep.subr.bf16.mxu0 0
        %1908 = vmatpush1.bf16.msra.mxu0 0
        %1909 = vmatprep.subr.bf16.mxu0 0
        %1910 = vmatpush1.bf16.msra.mxu0 0
        %1911 = vmatprep.subr.bf16.mxu0 0
        %1912 = vmatpush1.bf16.msra.mxu0 0
        %1913 = vmatprep.subr.bf16.mxu0 0
        %1914 = vmatpush1.bf16.msra.mxu0 0
        %1915 = vmatprep.subr.bf16.mxu0 0
        %1916 = vmatpush1.bf16.msra.mxu0 0
        %1917 = vmatprep.subr.bf16.mxu0 0
        %1918 = vmatpush1.bf16.msra.mxu0 0
        %1919 = vmatprep.subr.bf16.mxu0 0
        %1920 = vmatpush1.bf16.msra.mxu0 0
        %1921 = vmatprep.subr.bf16.mxu0 0
        %1922 = vmatpush1.bf16.msra.mxu0 0
        %1923 = vmatprep.subr.bf16.mxu0 0
        %1924 = vmatpush1.bf16.msra.mxu0 0
        %1925 = vmatprep.subr.bf16.mxu0 0
        %1926 = vmatpush1.bf16.msra.mxu0 0
        %1927 = vmatprep.subr.bf16.mxu0 0
        %1928 = vmatpush1.bf16.msra.mxu0 0
        %1929 = vmatprep.subr.bf16.mxu0 0
        %1930 = vmatpush1.bf16.msra.mxu0 0
        %1931 = vmatprep.mubr.bf16.mxu0 0
        %1932 = vmatmul.mubr.bf16.gmra.mrb[0].mxu0 %v1804
        %v1933 = vpop.f32.mrb[0].mxu0
        %v1934 = vadd.f32 %v1565, %v1933
        %v1935 = vpop.f32.mrb[0].mxu0
        %v1936 = vadd.f32 %v1569, %v1935
        %v1937 = vpop.f32.mrb[0].mxu0
        %v1938 = vadd.f32 %v1565, %v1937
        %v1939 = vpop.f32.mrb[0].mxu0
        %v1940 = vadd.f32 %v1569, %v1939
        %1941 = vmatprep.mubr.bf16.mxu0 0
        %1942 = vmatmul.mubr.bf16.gmra.mrb[0].mxu0 %v1807
        %v1943 = vpop.f32.mrb[0].mxu0
        %v1944 = vadd.f32 %v1565, %v1943
        %v1945 = vpop.f32.mrb[0].mxu0
        %v1946 = vadd.f32 %v1569, %v1945
        %v1947 = vpop.f32.mrb[0].mxu0
        %v1948 = vadd.f32 %v1565, %v1947
        %v1949 = vpop.f32.mrb[0].mxu0
        %v1950 = vadd.f32 %v1569, %v1949
        %1951 = vmatprep.mubr.bf16.mxu0 0
        %1952 = vmatmul.mubr.bf16.gmra.mrb[0].mxu0 %v1810
        %v1953 = vpop.f32.mrb[0].mxu0
        %v1954 = vadd.f32 %v1565, %v1953
        %v1955 = vpop.f32.mrb[0].mxu0
        %v1956 = vadd.f32 %v1569, %v1955
        %v1957 = vpop.f32.mrb[0].mxu0
        %v1958 = vadd.f32 %v1565, %v1957
        %v1959 = vpop.f32.mrb[0].mxu0
        %v1960 = vadd.f32 %v1569, %v1959
        %1961 = vmatprep.mubr.bf16.mxu0 0
        %1962 = vmatmul.mubr.bf16.gmra.mrb[0].mxu0 %v1813
        %v1963 = vpop.f32.mrb[0].mxu0
        %v1964 = vadd.f32 %v1565, %v1963
        %v1965 = vpop.f32.mrb[0].mxu0
        %v1966 = vadd.f32 %v1569, %v1965
        %v1967 = vpop.f32.mrb[0].mxu0
        %v1968 = vadd.f32 %v1565, %v1967
        %v1969 = vpop.f32.mrb[0].mxu0
        %v1970 = vadd.f32 %v1569, %v1969
        %1971 = vmatprep.mubr.bf16.mxu0 0
        %1972 = vmatmul.mubr.bf16.gmra.mrb[0].mxu0 %v1816
        %v1973 = vpop.f32.mrb[0].mxu0
        %v1974 = vadd.f32 %v1565, %v1973
        %v1975 = vpop.f32.mrb[0].mxu0
        %v1976 = vadd.f32 %v1569, %v1975
        %v1977 = vpop.f32.mrb[0].mxu0
        %v1978 = vadd.f32 %v1565, %v1977
        %v1979 = vpop.f32.mrb[0].mxu0
        %v1980 = vadd.f32 %v1569, %v1979
        %1981 = vmatprep.mubr.bf16.mxu0 0
        %1982 = vmatmul.mubr.bf16.gmra.mrb[0].mxu0 %v1819
        %v1983 = vpop.f32.mrb[0].mxu0
        %v1984 = vadd.f32 %v1565, %v1983
        %v1985 = vpop.f32.mrb[0].mxu0
        %v1986 = vadd.f32 %v1569, %v1985
        %v1987 = vpop.f32.mrb[0].mxu0
        %v1988 = vadd.f32 %v1565, %v1987
        %v1989 = vpop.f32.mrb[0].mxu0
        %v1990 = vadd.f32 %v1569, %v1989
        %1991 = vmatprep.mubr.bf16.mxu0 0
        %1992 = vmatmul.mubr.bf16.gmra.mrb[0].mxu0 %v1822
        %v1993 = vpop.f32.mrb[0].mxu0
        %v1994 = vadd.f32 %v1565, %v1993
        %v1995 = vpop.f32.mrb[0].mxu0
        %v1996 = vadd.f32 %v1569, %v1995
        %v1997 = vpop.f32.mrb[0].mxu0
        %v1998 = vadd.f32 %v1565, %v1997
        %v1999 = vpop.f32.mrb[0].mxu0
        %v2000 = vadd.f32 %v1569, %v1999
        %2001 = vmatprep.mubr.bf16.mxu0 0
        %2002 = vmatmul.mubr.bf16.gmra.mrb[0].mxu0 %v1825
        %v2003 = vpop.f32.mrb[0].mxu0
        %v2004 = vadd.f32 %v1565, %v2003
        %v2005 = vpop.f32.mrb[0].mxu0
        %v2006 = vadd.f32 %v1569, %v2005
        %v2007 = vpop.f32.mrb[0].mxu0
        %v2008 = vadd.f32 %v1565, %v2007
        %v2009 = vpop.f32.mrb[0].mxu0
        %v2010 = vadd.f32 %v1569, %v2009
        %2011 = vmatprep.mubr.bf16.mxu0 0
        %2012 = vmatmul.mubr.bf16.gmra.mrb[0].mxu0 %v1828
        %v2013 = vpop.f32.mrb[0].mxu0
        %v2014 = vadd.f32 %v1565, %v2013
        %v2015 = vpop.f32.mrb[0].mxu0
        %v2016 = vadd.f32 %v1569, %v2015
        %v2017 = vpop.f32.mrb[0].mxu0
        %v2018 = vadd.f32 %v1565, %v2017
        %v2019 = vpop.f32.mrb[0].mxu0
        %v2020 = vadd.f32 %v1569, %v2019
        %2021 = vmatprep.mubr.bf16.mxu0 0
        %2022 = vmatmul.mubr.bf16.gmra.mrb[0].mxu0 %v1831
        %v2023 = vpop.f32.mrb[0].mxu0
        %v2024 = vadd.f32 %v1565, %v2023
        %v2025 = vpop.f32.mrb[0].mxu0
        %v2026 = vadd.f32 %v1569, %v2025
        %v2027 = vpop.f32.mrb[0].mxu0
        %v2028 = vadd.f32 %v1565, %v2027
        %v2029 = vpop.f32.mrb[0].mxu0
        %v2030 = vadd.f32 %v1569, %v2029
        %2031 = vmatprep.mubr.bf16.mxu0 0
        %2032 = vmatmul.mubr.bf16.gmra.mrb[0].mxu0 %v1834
        %v2033 = vpop.f32.mrb[0].mxu0
        %v2034 = vadd.f32 %v1565, %v2033
        %v2035 = vpop.f32.mrb[0].mxu0
        %v2036 = vadd.f32 %v1569, %v2035
        %v2037 = vpop.f32.mrb[0].mxu0
        %v2038 = vadd.f32 %v1565, %v2037
        %v2039 = vpop.f32.mrb[0].mxu0
        %v2040 = vadd.f32 %v1569, %v2039
        %2041 = vmatprep.mubr.bf16.mxu0 0
        %2042 = vmatmul.mubr.bf16.gmra.mrb[0].mxu0 %v1837
        %v2043 = vpop.f32.mrb[0].mxu0
        %v2044 = vadd.f32 %v1565, %v2043
        %v2045 = vpop.f32.mrb[0].mxu0
        %v2046 = vadd.f32 %v1569, %v2045
        %v2047 = vpop.f32.mrb[0].mxu0
        %v2048 = vadd.f32 %v1565, %v2047
        %v2049 = vpop.f32.mrb[0].mxu0
        %v2050 = vadd.f32 %v1569, %v2049
        %2051 = vmatprep.mubr.bf16.mxu0 0
        %2052 = vmatmul.mubr.bf16.gmra.mrb[0].mxu0 %v1840
        %v2053 = vpop.f32.mrb[0].mxu0
        %v2054 = vadd.f32 %v1565, %v2053
        %v2055 = vpop.f32.mrb[0].mxu0
        %v2056 = vadd.f32 %v1569, %v2055
        %v2057 = vpop.f32.mrb[0].mxu0
        %v2058 = vadd.f32 %v1565, %v2057
        %v2059 = vpop.f32.mrb[0].mxu0
        %v2060 = vadd.f32 %v1569, %v2059
        %2061 = vmatprep.mubr.bf16.mxu0 0
        %2062 = vmatmul.mubr.bf16.gmra.mrb[0].mxu0 %v1843
        %v2063 = vpop.f32.mrb[0].mxu0
        %v2064 = vadd.f32 %v1565, %v2063
        %v2065 = vpop.f32.mrb[0].mxu0
        %v2066 = vadd.f32 %v1569, %v2065
        %v2067 = vpop.f32.mrb[0].mxu0
        %v2068 = vadd.f32 %v1565, %v2067
        %v2069 = vpop.f32.mrb[0].mxu0
        %v2070 = vadd.f32 %v1569, %v2069
        %2071 = vmatprep.mubr.bf16.mxu0 0
        %2072 = vmatmul.mubr.bf16.gmra.mrb[0].mxu0 %v1846
        %v2073 = vpop.f32.mrb[0].mxu0
        %v2074 = vadd.f32 %v1565, %v2073
        %v2075 = vpop.f32.mrb[0].mxu0
        %v2076 = vadd.f32 %v1569, %v2075
        %v2077 = vpop.f32.mrb[0].mxu0
        %v2078 = vadd.f32 %v1565, %v2077
        %v2079 = vpop.f32.mrb[0].mxu0
        %v2080 = vadd.f32 %v1569, %v2079
        %2081 = vmatprep.mubr.bf16.mxu0 0
        %2082 = vmatmul.mubr.bf16.gmra.mrb[0].mxu0 %v1849
        %v2083 = vpop.f32.mrb[0].mxu0
        %v2084 = vadd.f32 %v1565, %v2083
        %v2085 = vpop.f32.mrb[0].mxu0
        %v2086 = vadd.f32 %v1569, %v2085
        %v2087 = vpop.f32.mrb[0].mxu0
        %v2088 = vadd.f32 %v1565, %v2087
        %v2089 = vpop.f32.mrb[0].mxu0
        %v2090 = vadd.f32 %v1569, %v2089
        %2091 = vmatprep.mubr.bf16.mxu0 0
        %2092 = vmatmul.mubr.bf16.gmra.mrb[0].mxu0 %v1852
        %v2093 = vpop.f32.mrb[0].mxu0
        %v2094 = vadd.f32 %v1565, %v2093
        %v2095 = vpop.f32.mrb[0].mxu0
        %v2096 = vadd.f32 %v1569, %v2095
        %v2097 = vpop.f32.mrb[0].mxu0
        %v2098 = vadd.f32 %v1565, %v2097
        %v2099 = vpop.f32.mrb[0].mxu0
        %v2100 = vadd.f32 %v1569, %v2099
        %2101 = vmatprep.mubr.bf16.mxu0 0
        %2102 = vmatmul.mubr.bf16.gmra.mrb[0].mxu0 %v1855
        %v2103 = vpop.f32.mrb[0].mxu0
        %v2104 = vadd.f32 %v1565, %v2103
        %v2105 = vpop.f32.mrb[0].mxu0
        %v2106 = vadd.f32 %v1569, %v2105
        %v2107 = vpop.f32.mrb[0].mxu0
        %v2108 = vadd.f32 %v1565, %v2107
        %v2109 = vpop.f32.mrb[0].mxu0
        %v2110 = vadd.f32 %v1569, %v2109
        %2111 = vmatprep.mubr.bf16.mxu0 0
        %2112 = vmatmul.mubr.bf16.gmra.mrb[0].mxu0 %v1858
        %v2113 = vpop.f32.mrb[0].mxu0
        %v2114 = vadd.f32 %v1565, %v2113
        %v2115 = vpop.f32.mrb[0].mxu0
        %v2116 = vadd.f32 %v1569, %v2115
        %v2117 = vpop.f32.mrb[0].mxu0
        %v2118 = vadd.f32 %v1565, %v2117
        %v2119 = vpop.f32.mrb[0].mxu0
        %v2120 = vadd.f32 %v1569, %v2119
        %2121 = vmatprep.mubr.bf16.mxu0 0
        %2122 = vmatmul.mubr.bf16.gmra.mrb[0].mxu0 %v1861
        %v2123 = vpop.f32.mrb[0].mxu0
        %v2124 = vadd.f32 %v1565, %v2123
        %v2125 = vpop.f32.mrb[0].mxu0
        %v2126 = vadd.f32 %v1569, %v2125
        %v2127 = vpop.f32.mrb[0].mxu0
        %v2128 = vadd.f32 %v1565, %v2127
        %v2129 = vpop.f32.mrb[0].mxu0
        %v2130 = vadd.f32 %v1569, %v2129
        %2131 = vmatprep.mubr.bf16.mxu0 0
        %2132 = vmatmul.mubr.bf16.gmra.mrb[0].mxu0 %v1864
        %v2133 = vpop.f32.mrb[0].mxu0
        %v2134 = vadd.f32 %v1565, %v2133
        %v2135 = vpop.f32.mrb[0].mxu0
        %v2136 = vadd.f32 %v1569, %v2135
        %v2137 = vpop.f32.mrb[0].mxu0
        %v2138 = vadd.f32 %v1565, %v2137
        %v2139 = vpop.f32.mrb[0].mxu0
        %v2140 = vadd.f32 %v1569, %v2139
        %2141 = vmatprep.mubr.bf16.mxu0 0
        %2142 = vmatmul.mubr.bf16.gmra.mrb[0].mxu0 %v1867
        %v2143 = vpop.f32.mrb[0].mxu0
        %v2144 = vadd.f32 %v1565, %v2143
        %v2145 = vpop.f32.mrb[0].mxu0
        %v2146 = vadd.f32 %v1569, %v2145
        %v2147 = vpop.f32.mrb[0].mxu0
        %v2148 = vadd.f32 %v1565, %v2147
        %v2149 = vpop.f32.mrb[0].mxu0
        %v2150 = vadd.f32 %v1569, %v2149
        %2151 = vmatprep.mubr.bf16.mxu0 0
        %2152 = vmatmul.mubr.bf16.gmra.mrb[0].mxu0 %v1870
        %v2153 = vpop.f32.mrb[0].mxu0
        %v2154 = vadd.f32 %v1565, %v2153
        %v2155 = vpop.f32.mrb[0].mxu0
        %v2156 = vadd.f32 %v1569, %v2155
        %v2157 = vpop.f32.mrb[0].mxu0
        %v2158 = vadd.f32 %v1565, %v2157
        %v2159 = vpop.f32.mrb[0].mxu0
        %v2160 = vadd.f32 %v1569, %v2159
        %2161 = vmatprep.mubr.bf16.mxu0 0
        %2162 = vmatmul.mubr.bf16.gmra.mrb[0].mxu0 %v1873
        %v2163 = vpop.f32.mrb[0].mxu0
        %v2164 = vadd.f32 %v1565, %v2163
        %v2165 = vpop.f32.mrb[0].mxu0
        %v2166 = vadd.f32 %v1569, %v2165
        %v2167 = vpop.f32.mrb[0].mxu0
        %v2168 = vadd.f32 %v1565, %v2167
        %v2169 = vpop.f32.mrb[0].mxu0
        %v2170 = vadd.f32 %v1569, %v2169
        %2171 = vmatprep.mubr.bf16.mxu0 0
        %2172 = vmatmul.mubr.bf16.gmra.mrb[0].mxu0 %v1876
        %v2173 = vpop.f32.mrb[0].mxu0
        %v2174 = vadd.f32 %v1565, %v2173
        %v2175 = vpop.f32.mrb[0].mxu0
        %v2176 = vadd.f32 %v1569, %v2175
        %v2177 = vpop.f32.mrb[0].mxu0
        %v2178 = vadd.f32 %v1565, %v2177
        %v2179 = vpop.f32.mrb[0].mxu0
        %v2180 = vadd.f32 %v1569, %v2179
        %2181 = vmatprep.mubr.bf16.mxu0 0
        %2182 = vmatmul.mubr.bf16.gmra.mrb[0].mxu0 %v1879
        %v2183 = vpop.f32.mrb[0].mxu0
        %v2184 = vadd.f32 %v1565, %v2183
        %v2185 = vpop.f32.mrb[0].mxu0
        %v2186 = vadd.f32 %v1569, %v2185
        %v2187 = vpop.f32.mrb[0].mxu0
        %v2188 = vadd.f32 %v1565, %v2187
        %v2189 = vpop.f32.mrb[0].mxu0
        %v2190 = vadd.f32 %v1569, %v2189
        %2191 = vmatprep.mubr.bf16.mxu0 0
        %2192 = vmatmul.mubr.bf16.gmra.mrb[0].mxu0 %v1882
        %v2193 = vpop.f32.mrb[0].mxu0
        %v2194 = vadd.f32 %v1565, %v2193
        %v2195 = vpop.f32.mrb[0].mxu0
        %v2196 = vadd.f32 %v1569, %v2195
        %v2197 = vpop.f32.mrb[0].mxu0
        %v2198 = vadd.f32 %v1565, %v2197
        %v2199 = vpop.f32.mrb[0].mxu0
        %v2200 = vadd.f32 %v1569, %v2199
        %2201 = vmatprep.mubr.bf16.mxu0 0
        %2202 = vmatmul.mubr.bf16.gmra.mrb[0].mxu0 %v1885
        %v2203 = vpop.f32.mrb[0].mxu0
        %v2204 = vadd.f32 %v1565, %v2203
        %v2205 = vpop.f32.mrb[0].mxu0
        %v2206 = vadd.f32 %v1569, %v2205
        %v2207 = vpop.f32.mrb[0].mxu0
        %v2208 = vadd.f32 %v1565, %v2207
        %v2209 = vpop.f32.mrb[0].mxu0
        %v2210 = vadd.f32 %v1569, %v2209
        %2211 = vmatprep.mubr.bf16.mxu0 0
        %2212 = vmatmul.mubr.bf16.gmra.mrb[0].mxu0 %v1888
        %v2213 = vpop.f32.mrb[0].mxu0
        %v2214 = vadd.f32 %v1565, %v2213
        %v2215 = vpop.f32.mrb[0].mxu0
        %v2216 = vadd.f32 %v1569, %v2215
        %v2217 = vpop.f32.mrb[0].mxu0
        %v2218 = vadd.f32 %v1565, %v2217
        %v2219 = vpop.f32.mrb[0].mxu0
        %v2220 = vadd.f32 %v1569, %v2219
        %2221 = vmatprep.mubr.bf16.mxu0 0
        %2222 = vmatmul.mubr.bf16.gmra.mrb[0].mxu0 %v1891
        %v2223 = vpop.f32.mrb[0].mxu0
        %v2224 = vadd.f32 %v1565, %v2223
        %v2225 = vpop.f32.mrb[0].mxu0
        %v2226 = vadd.f32 %v1569, %v2225
        %v2227 = vpop.f32.mrb[0].mxu0
        %v2228 = vadd.f32 %v1565, %v2227
        %v2229 = vpop.f32.mrb[0].mxu0
        %v2230 = vadd.f32 %v1569, %v2229
        %2231 = vmatprep.mubr.bf16.mxu0 0
        %2232 = vmatmul.mubr.bf16.gmra.mrb[0].mxu0 %v1894
        %v2233 = vpop.f32.mrb[0].mxu0
        %v2234 = vadd.f32 %v1565, %v2233
        %v2235 = vpop.f32.mrb[0].mxu0
        %v2236 = vadd.f32 %v1569, %v2235
        %v2237 = vpop.f32.mrb[0].mxu0
        %v2238 = vadd.f32 %v1565, %v2237
        %v2239 = vpop.f32.mrb[0].mxu0
        %v2240 = vadd.f32 %v1569, %v2239
        %2241 = vmatprep.mubr.bf16.mxu0 0
        %2242 = vmatmul.mubr.bf16.gmra.mrb[0].mxu0 %v1897
        %v2243 = vpop.f32.mrb[0].mxu0
        %v2244 = vadd.f32 %v1565, %v2243
        %v2245 = vpop.f32.mrb[0].mxu0
        %v2246 = vadd.f32 %v1569, %v2245
        %v2247 = vpop.f32.mrb[0].mxu0
        %v2248 = vadd.f32 %v1565, %v2247
        %v2249 = vpop.f32.mrb[0].mxu0
        %v2250 = vadd.f32 %v1569, %v2249
        %2251 = vdwg.mxu0
        %2252 = vmatprep.subr.bf16.mxu0 %v1741
        %2253 = vmatpush1.bf16.msra.mxu0 %v1740
        %2254 = vmatprep.subr.bf16.mxu0 %v1757
        %2255 = vmatpush1.bf16.msra.mxu0 %v1756
        %2256 = vmatprep.subr.bf16.mxu0 0
        %2257 = vmatpush1.bf16.msra.mxu0 0
        %2258 = vmatprep.subr.bf16.mxu0 0
        %2259 = vmatpush1.bf16.msra.mxu0 0
        %2260 = vmatprep.subr.bf16.mxu0 0
        %2261 = vmatpush1.bf16.msra.mxu0 0
        %2262 = vmatprep.subr.bf16.mxu0 0
        %2263 = vmatpush1.bf16.msra.mxu0 0
        %2264 = vmatprep.subr.bf16.mxu0 0
        %2265 = vmatpush1.bf16.msra.mxu0 0
        %2266 = vmatprep.subr.bf16.mxu0 0
        %2267 = vmatpush1.bf16.msra.mxu0 0
        %2268 = vmatprep.subr.bf16.mxu0 0
        %2269 = vmatpush1.bf16.msra.mxu0 0
        %2270 = vmatprep.subr.bf16.mxu0 0
        %2271 = vmatpush1.bf16.msra.mxu0 0
        %2272 = vmatprep.subr.bf16.mxu0 0
        %2273 = vmatpush1.bf16.msra.mxu0 0
        %2274 = vmatprep.subr.bf16.mxu0 0
        %2275 = vmatpush1.bf16.msra.mxu0 0
        %2276 = vmatprep.subr.bf16.mxu0 0
        %2277 = vmatpush1.bf16.msra.mxu0 0
        %2278 = vmatprep.subr.bf16.mxu0 0
        %2279 = vmatpush1.bf16.msra.mxu0 0
        %2280 = vmatprep.subr.bf16.mxu0 0
        %2281 = vmatpush1.bf16.msra.mxu0 0
        %2282 = vmatprep.subr.bf16.mxu0 0
        %2283 = vmatpush1.bf16.msra.mxu0 0
        %2284 = vmatprep.mubr.bf16.mxu0 0
        %2285 = vmatmul.mubr.bf16.gmra.mrb[0].mxu0 %v1804
        %v2286 = vpop.f32.mrb[0].mxu0
        %v2287 = vadd.f32 %v1573, %v2286
        %v2288 = vpop.f32.mrb[0].mxu0
        %v2289 = vadd.f32 %v1577, %v2288
        %v2290 = vpop.f32.mrb[0].mxu0
        %v2291 = vadd.f32 %v1573, %v2290
        %v2292 = vpop.f32.mrb[0].mxu0
        %v2293 = vadd.f32 %v1577, %v2292
        %2294 = vmatprep.mubr.bf16.mxu0 0
        %2295 = vmatmul.mubr.bf16.gmra.mrb[0].mxu0 %v1807
        %v2296 = vpop.f32.mrb[0].mxu0
        %v2297 = vadd.f32 %v1573, %v2296
        %v2298 = vpop.f32.mrb[0].mxu0
        %v2299 = vadd.f32 %v1577, %v2298
        %v2300 = vpop.f32.mrb[0].mxu0
        %v2301 = vadd.f32 %v1573, %v2300
        %v2302 = vpop.f32.mrb[0].mxu0
        %v2303 = vadd.f32 %v1577, %v2302
        %2304 = vmatprep.mubr.bf16.mxu0 0
        %2305 = vmatmul.mubr.bf16.gmra.mrb[0].mxu0 %v1810
        %v2306 = vpop.f32.mrb[0].mxu0
        %v2307 = vadd.f32 %v1573, %v2306
        %v2308 = vpop.f32.mrb[0].mxu0
        %v2309 = vadd.f32 %v1577, %v2308
        %v2310 = vpop.f32.mrb[0].mxu0
        %v2311 = vadd.f32 %v1573, %v2310
        %v2312 = vpop.f32.mrb[0].mxu0
        %v2313 = vadd.f32 %v1577, %v2312
        %2314 = vmatprep.mubr.bf16.mxu0 0
        %2315 = vmatmul.mubr.bf16.gmra.mrb[0].mxu0 %v1813
        %v2316 = vpop.f32.mrb[0].mxu0
        %v2317 = vadd.f32 %v1573, %v2316
        %v2318 = vpop.f32.mrb[0].mxu0
        %v2319 = vadd.f32 %v1577, %v2318
        %v2320 = vpop.f32.mrb[0].mxu0
        %v2321 = vadd.f32 %v1573, %v2320
        %v2322 = vpop.f32.mrb[0].mxu0
        %v2323 = vadd.f32 %v1577, %v2322
        %2324 = vmatprep.mubr.bf16.mxu0 0
        %2325 = vmatmul.mubr.bf16.gmra.mrb[0].mxu0 %v1816
        %v2326 = vpop.f32.mrb[0].mxu0
        %v2327 = vadd.f32 %v1573, %v2326
        %v2328 = vpop.f32.mrb[0].mxu0
        %v2329 = vadd.f32 %v1577, %v2328
        %v2330 = vpop.f32.mrb[0].mxu0
        %v2331 = vadd.f32 %v1573, %v2330
        %v2332 = vpop.f32.mrb[0].mxu0
        %v2333 = vadd.f32 %v1577, %v2332
        %2334 = vmatprep.mubr.bf16.mxu0 0
        %2335 = vmatmul.mubr.bf16.gmra.mrb[0].mxu0 %v1819
        %v2336 = vpop.f32.mrb[0].mxu0
        %v2337 = vadd.f32 %v1573, %v2336
        %v2338 = vpop.f32.mrb[0].mxu0
        %v2339 = vadd.f32 %v1577, %v2338
        %v2340 = vpop.f32.mrb[0].mxu0
        %v2341 = vadd.f32 %v1573, %v2340
        %v2342 = vpop.f32.mrb[0].mxu0
        %v2343 = vadd.f32 %v1577, %v2342
        %2344 = vmatprep.mubr.bf16.mxu0 0
        %2345 = vmatmul.mubr.bf16.gmra.mrb[0].mxu0 %v1822
        %v2346 = vpop.f32.mrb[0].mxu0
        %v2347 = vadd.f32 %v1573, %v2346
        %v2348 = vpop.f32.mrb[0].mxu0
        %v2349 = vadd.f32 %v1577, %v2348
        %v2350 = vpop.f32.mrb[0].mxu0
        %v2351 = vadd.f32 %v1573, %v2350
        %v2352 = vpop.f32.mrb[0].mxu0
        %v2353 = vadd.f32 %v1577, %v2352
        %2354 = vmatprep.mubr.bf16.mxu0 0
        %2355 = vmatmul.mubr.bf16.gmra.mrb[0].mxu0 %v1825
        %v2356 = vpop.f32.mrb[0].mxu0
        %v2357 = vadd.f32 %v1573, %v2356
        %v2358 = vpop.f32.mrb[0].mxu0
        %v2359 = vadd.f32 %v1577, %v2358
        %v2360 = vpop.f32.mrb[0].mxu0
        %v2361 = vadd.f32 %v1573, %v2360
        %v2362 = vpop.f32.mrb[0].mxu0
        %v2363 = vadd.f32 %v1577, %v2362
        %2364 = vmatprep.mubr.bf16.mxu0 0
        %2365 = vmatmul.mubr.bf16.gmra.mrb[0].mxu0 %v1828
        %v2366 = vpop.f32.mrb[0].mxu0
        %v2367 = vadd.f32 %v1573, %v2366
        %v2368 = vpop.f32.mrb[0].mxu0
        %v2369 = vadd.f32 %v1577, %v2368
        %v2370 = vpop.f32.mrb[0].mxu0
        %v2371 = vadd.f32 %v1573, %v2370
        %v2372 = vpop.f32.mrb[0].mxu0
        %v2373 = vadd.f32 %v1577, %v2372
        %2374 = vmatprep.mubr.bf16.mxu0 0
        %2375 = vmatmul.mubr.bf16.gmra.mrb[0].mxu0 %v1831
        %v2376 = vpop.f32.mrb[0].mxu0
        %v2377 = vadd.f32 %v1573, %v2376
        %v2378 = vpop.f32.mrb[0].mxu0
        %v2379 = vadd.f32 %v1577, %v2378
        %v2380 = vpop.f32.mrb[0].mxu0
        %v2381 = vadd.f32 %v1573, %v2380
        %v2382 = vpop.f32.mrb[0].mxu0
        %v2383 = vadd.f32 %v1577, %v2382
        %2384 = vmatprep.mubr.bf16.mxu0 0
        %2385 = vmatmul.mubr.bf16.gmra.mrb[0].mxu0 %v1834
        %v2386 = vpop.f32.mrb[0].mxu0
        %v2387 = vadd.f32 %v1573, %v2386
        %v2388 = vpop.f32.mrb[0].mxu0
        %v2389 = vadd.f32 %v1577, %v2388
        %v2390 = vpop.f32.mrb[0].mxu0
        %v2391 = vadd.f32 %v1573, %v2390
        %v2392 = vpop.f32.mrb[0].mxu0
        %v2393 = vadd.f32 %v1577, %v2392
        %2394 = vmatprep.mubr.bf16.mxu0 0
        %2395 = vmatmul.mubr.bf16.gmra.mrb[0].mxu0 %v1837
        %v2396 = vpop.f32.mrb[0].mxu0
        %v2397 = vadd.f32 %v1573, %v2396
        %v2398 = vpop.f32.mrb[0].mxu0
        %v2399 = vadd.f32 %v1577, %v2398
        %v2400 = vpop.f32.mrb[0].mxu0
        %v2401 = vadd.f32 %v1573, %v2400
        %v2402 = vpop.f32.mrb[0].mxu0
        %v2403 = vadd.f32 %v1577, %v2402
        %2404 = vmatprep.mubr.bf16.mxu0 0
        %2405 = vmatmul.mubr.bf16.gmra.mrb[0].mxu0 %v1840
        %v2406 = vpop.f32.mrb[0].mxu0
        %v2407 = vadd.f32 %v1573, %v2406
        %v2408 = vpop.f32.mrb[0].mxu0
        %v2409 = vadd.f32 %v1577, %v2408
        %v2410 = vpop.f32.mrb[0].mxu0
        %v2411 = vadd.f32 %v1573, %v2410
        %v2412 = vpop.f32.mrb[0].mxu0
        %v2413 = vadd.f32 %v1577, %v2412
        %2414 = vmatprep.mubr.bf16.mxu0 0
        %2415 = vmatmul.mubr.bf16.gmra.mrb[0].mxu0 %v1843
        %v2416 = vpop.f32.mrb[0].mxu0
        %v2417 = vadd.f32 %v1573, %v2416
        %v2418 = vpop.f32.mrb[0].mxu0
        %v2419 = vadd.f32 %v1577, %v2418
        %v2420 = vpop.f32.mrb[0].mxu0
        %v2421 = vadd.f32 %v1573, %v2420
        %v2422 = vpop.f32.mrb[0].mxu0
        %v2423 = vadd.f32 %v1577, %v2422
        %2424 = vmatprep.mubr.bf16.mxu0 0
        %2425 = vmatmul.mubr.bf16.gmra.mrb[0].mxu0 %v1846
        %v2426 = vpop.f32.mrb[0].mxu0
        %v2427 = vadd.f32 %v1573, %v2426
        %v2428 = vpop.f32.mrb[0].mxu0
        %v2429 = vadd.f32 %v1577, %v2428
        %v2430 = vpop.f32.mrb[0].mxu0
        %v2431 = vadd.f32 %v1573, %v2430
        %v2432 = vpop.f32.mrb[0].mxu0
        %v2433 = vadd.f32 %v1577, %v2432
        %2434 = vmatprep.mubr.bf16.mxu0 0
        %2435 = vmatmul.mubr.bf16.gmra.mrb[0].mxu0 %v1849
        %v2436 = vpop.f32.mrb[0].mxu0
        %v2437 = vadd.f32 %v1573, %v2436
        %v2438 = vpop.f32.mrb[0].mxu0
        %v2439 = vadd.f32 %v1577, %v2438
        %v2440 = vpop.f32.mrb[0].mxu0
        %v2441 = vadd.f32 %v1573, %v2440
        %v2442 = vpop.f32.mrb[0].mxu0
        %v2443 = vadd.f32 %v1577, %v2442
        %2444 = vmatprep.mubr.bf16.mxu0 0
        %2445 = vmatmul.mubr.bf16.gmra.mrb[0].mxu0 %v1852
        %v2446 = vpop.f32.mrb[0].mxu0
        %v2447 = vadd.f32 %v1573, %v2446
        %v2448 = vpop.f32.mrb[0].mxu0
        %v2449 = vadd.f32 %v1577, %v2448
        %v2450 = vpop.f32.mrb[0].mxu0
        %v2451 = vadd.f32 %v1573, %v2450
        %v2452 = vpop.f32.mrb[0].mxu0
        %v2453 = vadd.f32 %v1577, %v2452
        %2454 = vmatprep.mubr.bf16.mxu0 0
        %2455 = vmatmul.mubr.bf16.gmra.mrb[0].mxu0 %v1855
        %v2456 = vpop.f32.mrb[0].mxu0
        %v2457 = vadd.f32 %v1573, %v2456
        %v2458 = vpop.f32.mrb[0].mxu0
        %v2459 = vadd.f32 %v1577, %v2458
        %v2460 = vpop.f32.mrb[0].mxu0
        %v2461 = vadd.f32 %v1573, %v2460
        %v2462 = vpop.f32.mrb[0].mxu0
        %v2463 = vadd.f32 %v1577, %v2462
        %2464 = vmatprep.mubr.bf16.mxu0 0
        %2465 = vmatmul.mubr.bf16.gmra.mrb[0].mxu0 %v1858
        %v2466 = vpop.f32.mrb[0].mxu0
        %v2467 = vadd.f32 %v1573, %v2466
        %v2468 = vpop.f32.mrb[0].mxu0
        %v2469 = vadd.f32 %v1577, %v2468
        %v2470 = vpop.f32.mrb[0].mxu0
        %v2471 = vadd.f32 %v1573, %v2470
        %v2472 = vpop.f32.mrb[0].mxu0
        %v2473 = vadd.f32 %v1577, %v2472
        %2474 = vmatprep.mubr.bf16.mxu0 0
        %2475 = vmatmul.mubr.bf16.gmra.mrb[0].mxu0 %v1861
        %v2476 = vpop.f32.mrb[0].mxu0
        %v2477 = vadd.f32 %v1573, %v2476
        %v2478 = vpop.f32.mrb[0].mxu0
        %v2479 = vadd.f32 %v1577, %v2478
        %v2480 = vpop.f32.mrb[0].mxu0
        %v2481 = vadd.f32 %v1573, %v2480
        %v2482 = vpop.f32.mrb[0].mxu0
        %v2483 = vadd.f32 %v1577, %v2482
        %2484 = vmatprep.mubr.bf16.mxu0 0
        %2485 = vmatmul.mubr.bf16.gmra.mrb[0].mxu0 %v1864
        %v2486 = vpop.f32.mrb[0].mxu0
        %v2487 = vadd.f32 %v1573, %v2486
        %v2488 = vpop.f32.mrb[0].mxu0
        %v2489 = vadd.f32 %v1577, %v2488
        %v2490 = vpop.f32.mrb[0].mxu0
        %v2491 = vadd.f32 %v1573, %v2490
        %v2492 = vpop.f32.mrb[0].mxu0
        %v2493 = vadd.f32 %v1577, %v2492
        %2494 = vmatprep.mubr.bf16.mxu0 0
        %2495 = vmatmul.mubr.bf16.gmra.mrb[0].mxu0 %v1867
        %v2496 = vpop.f32.mrb[0].mxu0
        %v2497 = vadd.f32 %v1573, %v2496
        %v2498 = vpop.f32.mrb[0].mxu0
        %v2499 = vadd.f32 %v1577, %v2498
        %v2500 = vpop.f32.mrb[0].mxu0
        %v2501 = vadd.f32 %v1573, %v2500
        %v2502 = vpop.f32.mrb[0].mxu0
        %v2503 = vadd.f32 %v1577, %v2502
        %2504 = vmatprep.mubr.bf16.mxu0 0
        %2505 = vmatmul.mubr.bf16.gmra.mrb[0].mxu0 %v1870
        %v2506 = vpop.f32.mrb[0].mxu0
        %v2507 = vadd.f32 %v1573, %v2506
        %v2508 = vpop.f32.mrb[0].mxu0
        %v2509 = vadd.f32 %v1577, %v2508
        %v2510 = vpop.f32.mrb[0].mxu0
        %v2511 = vadd.f32 %v1573, %v2510
        %v2512 = vpop.f32.mrb[0].mxu0
        %v2513 = vadd.f32 %v1577, %v2512
        %2514 = vmatprep.mubr.bf16.mxu0 0
        %2515 = vmatmul.mubr.bf16.gmra.mrb[0].mxu0 %v1873
        %v2516 = vpop.f32.mrb[0].mxu0
        %v2517 = vadd.f32 %v1573, %v2516
        %v2518 = vpop.f32.mrb[0].mxu0
        %v2519 = vadd.f32 %v1577, %v2518
        %v2520 = vpop.f32.mrb[0].mxu0
        %v2521 = vadd.f32 %v1573, %v2520
        %v2522 = vpop.f32.mrb[0].mxu0
        %v2523 = vadd.f32 %v1577, %v2522
        %2524 = vmatprep.mubr.bf16.mxu0 0
        %2525 = vmatmul.mubr.bf16.gmra.mrb[0].mxu0 %v1876
        %v2526 = vpop.f32.mrb[0].mxu0
        %v2527 = vadd.f32 %v1573, %v2526
        %v2528 = vpop.f32.mrb[0].mxu0
        %v2529 = vadd.f32 %v1577, %v2528
        %v2530 = vpop.f32.mrb[0].mxu0
        %v2531 = vadd.f32 %v1573, %v2530
        %v2532 = vpop.f32.mrb[0].mxu0
        %v2533 = vadd.f32 %v1577, %v2532
        %2534 = vmatprep.mubr.bf16.mxu0 0
        %2535 = vmatmul.mubr.bf16.gmra.mrb[0].mxu0 %v1879
        %v2536 = vpop.f32.mrb[0].mxu0
        %v2537 = vadd.f32 %v1573, %v2536
        %v2538 = vpop.f32.mrb[0].mxu0
        %v2539 = vadd.f32 %v1577, %v2538
        %v2540 = vpop.f32.mrb[0].mxu0
        %v2541 = vadd.f32 %v1573, %v2540
        %v2542 = vpop.f32.mrb[0].mxu0
        %v2543 = vadd.f32 %v1577, %v2542
        %2544 = vmatprep.mubr.bf16.mxu0 0
        %2545 = vmatmul.mubr.bf16.gmra.mrb[0].mxu0 %v1882
        %v2546 = vpop.f32.mrb[0].mxu0
        %v2547 = vadd.f32 %v1573, %v2546
        %v2548 = vpop.f32.mrb[0].mxu0
        %v2549 = vadd.f32 %v1577, %v2548
        %v2550 = vpop.f32.mrb[0].mxu0
        %v2551 = vadd.f32 %v1573, %v2550
        %v2552 = vpop.f32.mrb[0].mxu0
        %v2553 = vadd.f32 %v1577, %v2552
        %2554 = vmatprep.mubr.bf16.mxu0 0
        %2555 = vmatmul.mubr.bf16.gmra.mrb[0].mxu0 %v1885
        %v2556 = vpop.f32.mrb[0].mxu0
        %v2557 = vadd.f32 %v1573, %v2556
        %v2558 = vpop.f32.mrb[0].mxu0
        %v2559 = vadd.f32 %v1577, %v2558
        %v2560 = vpop.f32.mrb[0].mxu0
        %v2561 = vadd.f32 %v1573, %v2560
        %v2562 = vpop.f32.mrb[0].mxu0
        %v2563 = vadd.f32 %v1577, %v2562
        %2564 = vmatprep.mubr.bf16.mxu0 0
        %2565 = vmatmul.mubr.bf16.gmra.mrb[0].mxu0 %v1888
        %v2566 = vpop.f32.mrb[0].mxu0
        %v2567 = vadd.f32 %v1573, %v2566
        %v2568 = vpop.f32.mrb[0].mxu0
        %v2569 = vadd.f32 %v1577, %v2568
        %v2570 = vpop.f32.mrb[0].mxu0
        %v2571 = vadd.f32 %v1573, %v2570
        %v2572 = vpop.f32.mrb[0].mxu0
        %v2573 = vadd.f32 %v1577, %v2572
        %2574 = vmatprep.mubr.bf16.mxu0 0
        %2575 = vmatmul.mubr.bf16.gmra.mrb[0].mxu0 %v1891
        %v2576 = vpop.f32.mrb[0].mxu0
        %v2577 = vadd.f32 %v1573, %v2576
        %v2578 = vpop.f32.mrb[0].mxu0
        %v2579 = vadd.f32 %v1577, %v2578
        %v2580 = vpop.f32.mrb[0].mxu0
        %v2581 = vadd.f32 %v1573, %v2580
        %v2582 = vpop.f32.mrb[0].mxu0
        %v2583 = vadd.f32 %v1577, %v2582
        %2584 = vmatprep.mubr.bf16.mxu0 0
        %2585 = vmatmul.mubr.bf16.gmra.mrb[0].mxu0 %v1894
        %v2586 = vpop.f32.mrb[0].mxu0
        %v2587 = vadd.f32 %v1573, %v2586
        %v2588 = vpop.f32.mrb[0].mxu0
        %v2589 = vadd.f32 %v1577, %v2588
        %v2590 = vpop.f32.mrb[0].mxu0
        %v2591 = vadd.f32 %v1573, %v2590
        %v2592 = vpop.f32.mrb[0].mxu0
        %v2593 = vadd.f32 %v1577, %v2592
        %2594 = vmatprep.mubr.bf16.mxu0 0
        %2595 = vmatmul.mubr.bf16.gmra.mrb[0].mxu0 %v1897
        %v2596 = vpop.f32.mrb[0].mxu0
        %v2597 = vadd.f32 %v1573, %v2596
        %v2598 = vpop.f32.mrb[0].mxu0
        %v2599 = vadd.f32 %v1577, %v2598
        %v2600 = vpop.f32.mrb[0].mxu0
        %v2601 = vadd.f32 %v1573, %v2600
        %v2602 = vpop.f32.mrb[0].mxu0
        %v2603 = vadd.f32 %v1577, %v2602
        %2604 = vdwg.mxu0
        %2605 = vmatprep.subr.bf16.mxu0 %v1743
        %2606 = vmatpush1.bf16.msra.mxu0 %v1742
        %2607 = vmatprep.subr.bf16.mxu0 %v1759
        %2608 = vmatpush1.bf16.msra.mxu0 %v1758
        %2609 = vmatprep.subr.bf16.mxu0 0
        %2610 = vmatpush1.bf16.msra.mxu0 0
        %2611 = vmatprep.subr.bf16.mxu0 0
        %2612 = vmatpush1.bf16.msra.mxu0 0
        %2613 = vmatprep.subr.bf16.mxu0 0
        %2614 = vmatpush1.bf16.msra.mxu0 0
        %2615 = vmatprep.subr.bf16.mxu0 0
        %2616 = vmatpush1.bf16.msra.mxu0 0
        %2617 = vmatprep.subr.bf16.mxu0 0
        %2618 = vmatpush1.bf16.msra.mxu0 0
        %2619 = vmatprep.subr.bf16.mxu0 0
        %2620 = vmatpush1.bf16.msra.mxu0 0
        %2621 = vmatprep.subr.bf16.mxu0 0
        %2622 = vmatpush1.bf16.msra.mxu0 0
        %2623 = vmatprep.subr.bf16.mxu0 0
        %2624 = vmatpush1.bf16.msra.mxu0 0
        %2625 = vmatprep.subr.bf16.mxu0 0
        %2626 = vmatpush1.bf16.msra.mxu0 0
        %2627 = vmatprep.subr.bf16.mxu0 0
        %2628 = vmatpush1.bf16.msra.mxu0 0
        %2629 = vmatprep.subr.bf16.mxu0 0
        %2630 = vmatpush1.bf16.msra.mxu0 0
        %2631 = vmatprep.subr.bf16.mxu0 0
        %2632 = vmatpush1.bf16.msra.mxu0 0
        %2633 = vmatprep.subr.bf16.mxu0 0
        %2634 = vmatpush1.bf16.msra.mxu0 0
        %2635 = vmatprep.subr.bf16.mxu0 0
        %2636 = vmatpush1.bf16.msra.mxu0 0
        %2637 = vmatprep.mubr.bf16.mxu0 0
        %2638 = vmatmul.mubr.bf16.gmra.mrb[0].mxu0 %v1804
        %v2639 = vpop.f32.mrb[0].mxu0
        %v2640 = vadd.f32 %v1581, %v2639
        %v2641 = vpop.f32.mrb[0].mxu0
        %v2642 = vadd.f32 %v1585, %v2641
        %v2643 = vpop.f32.mrb[0].mxu0
        %v2644 = vadd.f32 %v1581, %v2643
        %v2645 = vpop.f32.mrb[0].mxu0
        %v2646 = vadd.f32 %v1585, %v2645
        %2647 = vmatprep.mubr.bf16.mxu0 0
        %2648 = vmatmul.mubr.bf16.gmra.mrb[0].mxu0 %v1807
        %v2649 = vpop.f32.mrb[0].mxu0
        %v2650 = vadd.f32 %v1581, %v2649
        %v2651 = vpop.f32.mrb[0].mxu0
        %v2652 = vadd.f32 %v1585, %v2651
        %v2653 = vpop.f32.mrb[0].mxu0
        %v2654 = vadd.f32 %v1581, %v2653
        %v2655 = vpop.f32.mrb[0].mxu0
        %v2656 = vadd.f32 %v1585, %v2655
        %2657 = vmatprep.mubr.bf16.mxu0 0
        %2658 = vmatmul.mubr.bf16.gmra.mrb[0].mxu0 %v1810
        %v2659 = vpop.f32.mrb[0].mxu0
        %v2660 = vadd.f32 %v1581, %v2659
        %v2661 = vpop.f32.mrb[0].mxu0
        %v2662 = vadd.f32 %v1585, %v2661
        %v2663 = vpop.f32.mrb[0].mxu0
        %v2664 = vadd.f32 %v1581, %v2663
        %v2665 = vpop.f32.mrb[0].mxu0
        %v2666 = vadd.f32 %v1585, %v2665
        %2667 = vmatprep.mubr.bf16.mxu0 0
        %2668 = vmatmul.mubr.bf16.gmra.mrb[0].mxu0 %v1813
        %v2669 = vpop.f32.mrb[0].mxu0
        %v2670 = vadd.f32 %v1581, %v2669
        %v2671 = vpop.f32.mrb[0].mxu0
        %v2672 = vadd.f32 %v1585, %v2671
        %v2673 = vpop.f32.mrb[0].mxu0
        %v2674 = vadd.f32 %v1581, %v2673
        %v2675 = vpop.f32.mrb[0].mxu0
        %v2676 = vadd.f32 %v1585, %v2675
        %2677 = vmatprep.mubr.bf16.mxu0 0
        %2678 = vmatmul.mubr.bf16.gmra.mrb[0].mxu0 %v1816
        %v2679 = vpop.f32.mrb[0].mxu0
        %v2680 = vadd.f32 %v1581, %v2679
        %v2681 = vpop.f32.mrb[0].mxu0
        %v2682 = vadd.f32 %v1585, %v2681
        %v2683 = vpop.f32.mrb[0].mxu0
        %v2684 = vadd.f32 %v1581, %v2683
        %v2685 = vpop.f32.mrb[0].mxu0
        %v2686 = vadd.f32 %v1585, %v2685
        %2687 = vmatprep.mubr.bf16.mxu0 0
        %2688 = vmatmul.mubr.bf16.gmra.mrb[0].mxu0 %v1819
        %v2689 = vpop.f32.mrb[0].mxu0
        %v2690 = vadd.f32 %v1581, %v2689
        %v2691 = vpop.f32.mrb[0].mxu0
        %v2692 = vadd.f32 %v1585, %v2691
        %v2693 = vpop.f32.mrb[0].mxu0
        %v2694 = vadd.f32 %v1581, %v2693
        %v2695 = vpop.f32.mrb[0].mxu0
        %v2696 = vadd.f32 %v1585, %v2695
        %2697 = vmatprep.mubr.bf16.mxu0 0
        %2698 = vmatmul.mubr.bf16.gmra.mrb[0].mxu0 %v1822
        %v2699 = vpop.f32.mrb[0].mxu0
        %v2700 = vadd.f32 %v1581, %v2699
        %v2701 = vpop.f32.mrb[0].mxu0
        %v2702 = vadd.f32 %v1585, %v2701
        %v2703 = vpop.f32.mrb[0].mxu0
        %v2704 = vadd.f32 %v1581, %v2703
        %v2705 = vpop.f32.mrb[0].mxu0
        %v2706 = vadd.f32 %v1585, %v2705
        %2707 = vmatprep.mubr.bf16.mxu0 0
        %2708 = vmatmul.mubr.bf16.gmra.mrb[0].mxu0 %v1825
        %v2709 = vpop.f32.mrb[0].mxu0
        %v2710 = vadd.f32 %v1581, %v2709
        %v2711 = vpop.f32.mrb[0].mxu0
        %v2712 = vadd.f32 %v1585, %v2711
        %v2713 = vpop.f32.mrb[0].mxu0
        %v2714 = vadd.f32 %v1581, %v2713
        %v2715 = vpop.f32.mrb[0].mxu0
        %v2716 = vadd.f32 %v1585, %v2715
        %2717 = vmatprep.mubr.bf16.mxu0 0
        %2718 = vmatmul.mubr.bf16.gmra.mrb[0].mxu0 %v1828
        %v2719 = vpop.f32.mrb[0].mxu0
        %v2720 = vadd.f32 %v1581, %v2719
        %v2721 = vpop.f32.mrb[0].mxu0
        %v2722 = vadd.f32 %v1585, %v2721
        %v2723 = vpop.f32.mrb[0].mxu0
        %v2724 = vadd.f32 %v1581, %v2723
        %v2725 = vpop.f32.mrb[0].mxu0
        %v2726 = vadd.f32 %v1585, %v2725
        %2727 = vmatprep.mubr.bf16.mxu0 0
        %2728 = vmatmul.mubr.bf16.gmra.mrb[0].mxu0 %v1831
        %v2729 = vpop.f32.mrb[0].mxu0
        %v2730 = vadd.f32 %v1581, %v2729
        %v2731 = vpop.f32.mrb[0].mxu0
        %v2732 = vadd.f32 %v1585, %v2731
        %v2733 = vpop.f32.mrb[0].mxu0
        %v2734 = vadd.f32 %v1581, %v2733
        %v2735 = vpop.f32.mrb[0].mxu0
        %v2736 = vadd.f32 %v1585, %v2735
        %2737 = vmatprep.mubr.bf16.mxu0 0
        %2738 = vmatmul.mubr.bf16.gmra.mrb[0].mxu0 %v1834
        %v2739 = vpop.f32.mrb[0].mxu0
        %v2740 = vadd.f32 %v1581, %v2739
        %v2741 = vpop.f32.mrb[0].mxu0
        %v2742 = vadd.f32 %v1585, %v2741
        %v2743 = vpop.f32.mrb[0].mxu0
        %v2744 = vadd.f32 %v1581, %v2743
        %v2745 = vpop.f32.mrb[0].mxu0
        %v2746 = vadd.f32 %v1585, %v2745
        %2747 = vmatprep.mubr.bf16.mxu0 0
        %2748 = vmatmul.mubr.bf16.gmra.mrb[0].mxu0 %v1837
        %v2749 = vpop.f32.mrb[0].mxu0
        %v2750 = vadd.f32 %v1581, %v2749
        %v2751 = vpop.f32.mrb[0].mxu0
        %v2752 = vadd.f32 %v1585, %v2751
        %v2753 = vpop.f32.mrb[0].mxu0
        %v2754 = vadd.f32 %v1581, %v2753
        %v2755 = vpop.f32.mrb[0].mxu0
        %v2756 = vadd.f32 %v1585, %v2755
        %2757 = vmatprep.mubr.bf16.mxu0 0
        %2758 = vmatmul.mubr.bf16.gmra.mrb[0].mxu0 %v1840
        %v2759 = vpop.f32.mrb[0].mxu0
        %v2760 = vadd.f32 %v1581, %v2759
        %v2761 = vpop.f32.mrb[0].mxu0
        %v2762 = vadd.f32 %v1585, %v2761
        %v2763 = vpop.f32.mrb[0].mxu0
        %v2764 = vadd.f32 %v1581, %v2763
        %v2765 = vpop.f32.mrb[0].mxu0
        %v2766 = vadd.f32 %v1585, %v2765
        %2767 = vmatprep.mubr.bf16.mxu0 0
        %2768 = vmatmul.mubr.bf16.gmra.mrb[0].mxu0 %v1843
        %v2769 = vpop.f32.mrb[0].mxu0
        %v2770 = vadd.f32 %v1581, %v2769
        %v2771 = vpop.f32.mrb[0].mxu0
        %v2772 = vadd.f32 %v1585, %v2771
        %v2773 = vpop.f32.mrb[0].mxu0
        %v2774 = vadd.f32 %v1581, %v2773
        %v2775 = vpop.f32.mrb[0].mxu0
        %v2776 = vadd.f32 %v1585, %v2775
        %2777 = vmatprep.mubr.bf16.mxu0 0
        %2778 = vmatmul.mubr.bf16.gmra.mrb[0].mxu0 %v1846
        %v2779 = vpop.f32.mrb[0].mxu0
        %v2780 = vadd.f32 %v1581, %v2779
        %v2781 = vpop.f32.mrb[0].mxu0
        %v2782 = vadd.f32 %v1585, %v2781
        %v2783 = vpop.f32.mrb[0].mxu0
        %v2784 = vadd.f32 %v1581, %v2783
        %v2785 = vpop.f32.mrb[0].mxu0
        %v2786 = vadd.f32 %v1585, %v2785
        %2787 = vmatprep.mubr.bf16.mxu0 0
        %2788 = vmatmul.mubr.bf16.gmra.mrb[0].mxu0 %v1849
        %v2789 = vpop.f32.mrb[0].mxu0
        %v2790 = vadd.f32 %v1581, %v2789
        %v2791 = vpop.f32.mrb[0].mxu0
        %v2792 = vadd.f32 %v1585, %v2791
        %v2793 = vpop.f32.mrb[0].mxu0
        %v2794 = vadd.f32 %v1581, %v2793
        %v2795 = vpop.f32.mrb[0].mxu0
        %v2796 = vadd.f32 %v1585, %v2795
        %2797 = vmatprep.mubr.bf16.mxu0 0
        %2798 = vmatmul.mubr.bf16.gmra.mrb[0].mxu0 %v1852
        %v2799 = vpop.f32.mrb[0].mxu0
        %v2800 = vadd.f32 %v1581, %v2799
        %v2801 = vpop.f32.mrb[0].mxu0
        %v2802 = vadd.f32 %v1585, %v2801
        %v2803 = vpop.f32.mrb[0].mxu0
        %v2804 = vadd.f32 %v1581, %v2803
        %v2805 = vpop.f32.mrb[0].mxu0
        %v2806 = vadd.f32 %v1585, %v2805
        %2807 = vmatprep.mubr.bf16.mxu0 0
        %2808 = vmatmul.mubr.bf16.gmra.mrb[0].mxu0 %v1855
        %v2809 = vpop.f32.mrb[0].mxu0
        %v2810 = vadd.f32 %v1581, %v2809
        %v2811 = vpop.f32.mrb[0].mxu0
        %v2812 = vadd.f32 %v1585, %v2811
        %v2813 = vpop.f32.mrb[0].mxu0
        %v2814 = vadd.f32 %v1581, %v2813
        %v2815 = vpop.f32.mrb[0].mxu0
        %v2816 = vadd.f32 %v1585, %v2815
        %2817 = vmatprep.mubr.bf16.mxu0 0
        %2818 = vmatmul.mubr.bf16.gmra.mrb[0].mxu0 %v1858
        %v2819 = vpop.f32.mrb[0].mxu0
        %v2820 = vadd.f32 %v1581, %v2819
        %v2821 = vpop.f32.mrb[0].mxu0
        %v2822 = vadd.f32 %v1585, %v2821
        %v2823 = vpop.f32.mrb[0].mxu0
        %v2824 = vadd.f32 %v1581, %v2823
        %v2825 = vpop.f32.mrb[0].mxu0
        %v2826 = vadd.f32 %v1585, %v2825
        %2827 = vmatprep.mubr.bf16.mxu0 0
        %2828 = vmatmul.mubr.bf16.gmra.mrb[0].mxu0 %v1861
        %v2829 = vpop.f32.mrb[0].mxu0
        %v2830 = vadd.f32 %v1581, %v2829
        %v2831 = vpop.f32.mrb[0].mxu0
        %v2832 = vadd.f32 %v1585, %v2831
        %v2833 = vpop.f32.mrb[0].mxu0
        %v2834 = vadd.f32 %v1581, %v2833
        %v2835 = vpop.f32.mrb[0].mxu0
        %v2836 = vadd.f32 %v1585, %v2835
        %2837 = vmatprep.mubr.bf16.mxu0 0
        %2838 = vmatmul.mubr.bf16.gmra.mrb[0].mxu0 %v1864
        %v2839 = vpop.f32.mrb[0].mxu0
        %v2840 = vadd.f32 %v1581, %v2839
        %v2841 = vpop.f32.mrb[0].mxu0
        %v2842 = vadd.f32 %v1585, %v2841
        %v2843 = vpop.f32.mrb[0].mxu0
        %v2844 = vadd.f32 %v1581, %v2843
        %v2845 = vpop.f32.mrb[0].mxu0
        %v2846 = vadd.f32 %v1585, %v2845
        %2847 = vmatprep.mubr.bf16.mxu0 0
        %2848 = vmatmul.mubr.bf16.gmra.mrb[0].mxu0 %v1867
        %v2849 = vpop.f32.mrb[0].mxu0
        %v2850 = vadd.f32 %v1581, %v2849
        %v2851 = vpop.f32.mrb[0].mxu0
        %v2852 = vadd.f32 %v1585, %v2851
        %v2853 = vpop.f32.mrb[0].mxu0
        %v2854 = vadd.f32 %v1581, %v2853
        %v2855 = vpop.f32.mrb[0].mxu0
        %v2856 = vadd.f32 %v1585, %v2855
        %2857 = vmatprep.mubr.bf16.mxu0 0
        %2858 = vmatmul.mubr.bf16.gmra.mrb[0].mxu0 %v1870
        %v2859 = vpop.f32.mrb[0].mxu0
        %v2860 = vadd.f32 %v1581, %v2859
        %v2861 = vpop.f32.mrb[0].mxu0
        %v2862 = vadd.f32 %v1585, %v2861
        %v2863 = vpop.f32.mrb[0].mxu0
        %v2864 = vadd.f32 %v1581, %v2863
        %v2865 = vpop.f32.mrb[0].mxu0
        %v2866 = vadd.f32 %v1585, %v2865
        %2867 = vmatprep.mubr.bf16.mxu0 0
        %2868 = vmatmul.mubr.bf16.gmra.mrb[0].mxu0 %v1873
        %v2869 = vpop.f32.mrb[0].mxu0
        %v2870 = vadd.f32 %v1581, %v2869
        %v2871 = vpop.f32.mrb[0].mxu0
        %v2872 = vadd.f32 %v1585, %v2871
        %v2873 = vpop.f32.mrb[0].mxu0
        %v2874 = vadd.f32 %v1581, %v2873
        %v2875 = vpop.f32.mrb[0].mxu0
        %v2876 = vadd.f32 %v1585, %v2875
        %2877 = vmatprep.mubr.bf16.mxu0 0
        %2878 = vmatmul.mubr.bf16.gmra.mrb[0].mxu0 %v1876
        %v2879 = vpop.f32.mrb[0].mxu0
        %v2880 = vadd.f32 %v1581, %v2879
        %v2881 = vpop.f32.mrb[0].mxu0
        %v2882 = vadd.f32 %v1585, %v2881
        %v2883 = vpop.f32.mrb[0].mxu0
        %v2884 = vadd.f32 %v1581, %v2883
        %v2885 = vpop.f32.mrb[0].mxu0
        %v2886 = vadd.f32 %v1585, %v2885
        %2887 = vmatprep.mubr.bf16.mxu0 0
        %2888 = vmatmul.mubr.bf16.gmra.mrb[0].mxu0 %v1879
        %v2889 = vpop.f32.mrb[0].mxu0
        %v2890 = vadd.f32 %v1581, %v2889
        %v2891 = vpop.f32.mrb[0].mxu0
        %v2892 = vadd.f32 %v1585, %v2891
        %v2893 = vpop.f32.mrb[0].mxu0
        %v2894 = vadd.f32 %v1581, %v2893
        %v2895 = vpop.f32.mrb[0].mxu0
        %v2896 = vadd.f32 %v1585, %v2895
        %2897 = vmatprep.mubr.bf16.mxu0 0
        %2898 = vmatmul.mubr.bf16.gmra.mrb[0].mxu0 %v1882
        %v2899 = vpop.f32.mrb[0].mxu0
        %v2900 = vadd.f32 %v1581, %v2899
        %v2901 = vpop.f32.mrb[0].mxu0
        %v2902 = vadd.f32 %v1585, %v2901
        %v2903 = vpop.f32.mrb[0].mxu0
        %v2904 = vadd.f32 %v1581, %v2903
        %v2905 = vpop.f32.mrb[0].mxu0
        %v2906 = vadd.f32 %v1585, %v2905
        %2907 = vmatprep.mubr.bf16.mxu0 0
        %2908 = vmatmul.mubr.bf16.gmra.mrb[0].mxu0 %v1885
        %v2909 = vpop.f32.mrb[0].mxu0
        %v2910 = vadd.f32 %v1581, %v2909
        %v2911 = vpop.f32.mrb[0].mxu0
        %v2912 = vadd.f32 %v1585, %v2911
        %v2913 = vpop.f32.mrb[0].mxu0
        %v2914 = vadd.f32 %v1581, %v2913
        %v2915 = vpop.f32.mrb[0].mxu0
        %v2916 = vadd.f32 %v1585, %v2915
        %2917 = vmatprep.mubr.bf16.mxu0 0
        %2918 = vmatmul.mubr.bf16.gmra.mrb[0].mxu0 %v1888
        %v2919 = vpop.f32.mrb[0].mxu0
        %v2920 = vadd.f32 %v1581, %v2919
        %v2921 = vpop.f32.mrb[0].mxu0
        %v2922 = vadd.f32 %v1585, %v2921
        %v2923 = vpop.f32.mrb[0].mxu0
        %v2924 = vadd.f32 %v1581, %v2923
        %v2925 = vpop.f32.mrb[0].mxu0
        %v2926 = vadd.f32 %v1585, %v2925
        %2927 = vmatprep.mubr.bf16.mxu0 0
        %2928 = vmatmul.mubr.bf16.gmra.mrb[0].mxu0 %v1891
        %v2929 = vpop.f32.mrb[0].mxu0
        %v2930 = vadd.f32 %v1581, %v2929
        %v2931 = vpop.f32.mrb[0].mxu0
        %v2932 = vadd.f32 %v1585, %v2931
        %v2933 = vpop.f32.mrb[0].mxu0
        %v2934 = vadd.f32 %v1581, %v2933
        %v2935 = vpop.f32.mrb[0].mxu0
        %v2936 = vadd.f32 %v1585, %v2935
        %2937 = vmatprep.mubr.bf16.mxu0 0
        %2938 = vmatmul.mubr.bf16.gmra.mrb[0].mxu0 %v1894
        %v2939 = vpop.f32.mrb[0].mxu0
        %v2940 = vadd.f32 %v1581, %v2939
        %v2941 = vpop.f32.mrb[0].mxu0
        %v2942 = vadd.f32 %v1585, %v2941
        %v2943 = vpop.f32.mrb[0].mxu0
        %v2944 = vadd.f32 %v1581, %v2943
        %v2945 = vpop.f32.mrb[0].mxu0
        %v2946 = vadd.f32 %v1585, %v2945
        %2947 = vmatprep.mubr.bf16.mxu0 0
        %2948 = vmatmul.mubr.bf16.gmra.mrb[0].mxu0 %v1897
        %v2949 = vpop.f32.mrb[0].mxu0
        %v2950 = vadd.f32 %v1581, %v2949
        %v2951 = vpop.f32.mrb[0].mxu0
        %v2952 = vadd.f32 %v1585, %v2951
        %v2953 = vpop.f32.mrb[0].mxu0
        %v2954 = vadd.f32 %v1581, %v2953
        %v2955 = vpop.f32.mrb[0].mxu0
        %v2956 = vadd.f32 %v1585, %v2955
        %2957 = vdwg.mxu0
        %2958 = vmatprep.subr.bf16.mxu0 %v1745
        %2959 = vmatpush1.bf16.msra.mxu0 %v1744
        %2960 = vmatprep.subr.bf16.mxu0 %v1761
        %2961 = vmatpush1.bf16.msra.mxu0 %v1760
        %2962 = vmatprep.subr.bf16.mxu0 0
        %2963 = vmatpush1.bf16.msra.mxu0 0
        %2964 = vmatprep.subr.bf16.mxu0 0
        %2965 = vmatpush1.bf16.msra.mxu0 0
        %2966 = vmatprep.subr.bf16.mxu0 0
        %2967 = vmatpush1.bf16.msra.mxu0 0
        %2968 = vmatprep.subr.bf16.mxu0 0
        %2969 = vmatpush1.bf16.msra.mxu0 0
        %2970 = vmatprep.subr.bf16.mxu0 0
        %2971 = vmatpush1.bf16.msra.mxu0 0
        %2972 = vmatprep.subr.bf16.mxu0 0
        %2973 = vmatpush1.bf16.msra.mxu0 0
        %2974 = vmatprep.subr.bf16.mxu0 0
        %2975 = vmatpush1.bf16.msra.mxu0 0
        %2976 = vmatprep.subr.bf16.mxu0 0
        %2977 = vmatpush1.bf16.msra.mxu0 0
        %2978 = vmatprep.subr.bf16.mxu0 0
        %2979 = vmatpush1.bf16.msra.mxu0 0
        %2980 = vmatprep.subr.bf16.mxu0 0
        %2981 = vmatpush1.bf16.msra.mxu0 0
        %2982 = vmatprep.subr.bf16.mxu0 0
        %2983 = vmatpush1.bf16.msra.mxu0 0
        %2984 = vmatprep.subr.bf16.mxu0 0
        %2985 = vmatpush1.bf16.msra.mxu0 0
        %2986 = vmatprep.subr.bf16.mxu0 0
        %2987 = vmatpush1.bf16.msra.mxu0 0
        %2988 = vmatprep.subr.bf16.mxu0 0
        %2989 = vmatpush1.bf16.msra.mxu0 0
        %2990 = vmatprep.mubr.bf16.mxu0 0
        %2991 = vmatmul.mubr.bf16.gmra.mrb[0].mxu0 %v1804
        %v2992 = vpop.f32.mrb[0].mxu0
        %v2993 = vadd.f32 %v1589, %v2992
        %v2994 = vpop.f32.mrb[0].mxu0
        %v2995 = vadd.f32 %v1593, %v2994
        %v2996 = vpop.f32.mrb[0].mxu0
        %v2997 = vadd.f32 %v1589, %v2996
        %v2998 = vpop.f32.mrb[0].mxu0
        %v2999 = vadd.f32 %v1593, %v2998
        %3000 = vmatprep.mubr.bf16.mxu0 0
        %3001 = vmatmul.mubr.bf16.gmra.mrb[0].mxu0 %v1807
        %v3002 = vpop.f32.mrb[0].mxu0
        %v3003 = vadd.f32 %v1589, %v3002
        %v3004 = vpop.f32.mrb[0].mxu0
        %v3005 = vadd.f32 %v1593, %v3004
        %v3006 = vpop.f32.mrb[0].mxu0
        %v3007 = vadd.f32 %v1589, %v3006
        %v3008 = vpop.f32.mrb[0].mxu0
        %v3009 = vadd.f32 %v1593, %v3008
        %3010 = vmatprep.mubr.bf16.mxu0 0
        %3011 = vmatmul.mubr.bf16.gmra.mrb[0].mxu0 %v1810
        %v3012 = vpop.f32.mrb[0].mxu0
        %v3013 = vadd.f32 %v1589, %v3012
        %v3014 = vpop.f32.mrb[0].mxu0
        %v3015 = vadd.f32 %v1593, %v3014
        %v3016 = vpop.f32.mrb[0].mxu0
        %v3017 = vadd.f32 %v1589, %v3016
        %v3018 = vpop.f32.mrb[0].mxu0
        %v3019 = vadd.f32 %v1593, %v3018
        %3020 = vmatprep.mubr.bf16.mxu0 0
        %3021 = vmatmul.mubr.bf16.gmra.mrb[0].mxu0 %v1813
        %v3022 = vpop.f32.mrb[0].mxu0
        %v3023 = vadd.f32 %v1589, %v3022
        %v3024 = vpop.f32.mrb[0].mxu0
        %v3025 = vadd.f32 %v1593, %v3024
        %v3026 = vpop.f32.mrb[0].mxu0
        %v3027 = vadd.f32 %v1589, %v3026
        %v3028 = vpop.f32.mrb[0].mxu0
        %v3029 = vadd.f32 %v1593, %v3028
        %3030 = vmatprep.mubr.bf16.mxu0 0
        %3031 = vmatmul.mubr.bf16.gmra.mrb[0].mxu0 %v1816
        %v3032 = vpop.f32.mrb[0].mxu0
        %v3033 = vadd.f32 %v1589, %v3032
        %v3034 = vpop.f32.mrb[0].mxu0
        %v3035 = vadd.f32 %v1593, %v3034
        %v3036 = vpop.f32.mrb[0].mxu0
        %v3037 = vadd.f32 %v1589, %v3036
        %v3038 = vpop.f32.mrb[0].mxu0
        %v3039 = vadd.f32 %v1593, %v3038
        %3040 = vmatprep.mubr.bf16.mxu0 0
        %3041 = vmatmul.mubr.bf16.gmra.mrb[0].mxu0 %v1819
        %v3042 = vpop.f32.mrb[0].mxu0
        %v3043 = vadd.f32 %v1589, %v3042
        %v3044 = vpop.f32.mrb[0].mxu0
        %v3045 = vadd.f32 %v1593, %v3044
        %v3046 = vpop.f32.mrb[0].mxu0
        %v3047 = vadd.f32 %v1589, %v3046
        %v3048 = vpop.f32.mrb[0].mxu0
        %v3049 = vadd.f32 %v1593, %v3048
        %3050 = vmatprep.mubr.bf16.mxu0 0
        %3051 = vmatmul.mubr.bf16.gmra.mrb[0].mxu0 %v1822
        %v3052 = vpop.f32.mrb[0].mxu0
        %v3053 = vadd.f32 %v1589, %v3052
        %v3054 = vpop.f32.mrb[0].mxu0
        %v3055 = vadd.f32 %v1593, %v3054
        %v3056 = vpop.f32.mrb[0].mxu0
        %v3057 = vadd.f32 %v1589, %v3056
        %v3058 = vpop.f32.mrb[0].mxu0
        %v3059 = vadd.f32 %v1593, %v3058
        %3060 = vmatprep.mubr.bf16.mxu0 0
        %3061 = vmatmul.mubr.bf16.gmra.mrb[0].mxu0 %v1825
        %v3062 = vpop.f32.mrb[0].mxu0
        %v3063 = vadd.f32 %v1589, %v3062
        %v3064 = vpop.f32.mrb[0].mxu0
        %v3065 = vadd.f32 %v1593, %v3064
        %v3066 = vpop.f32.mrb[0].mxu0
        %v3067 = vadd.f32 %v1589, %v3066
        %v3068 = vpop.f32.mrb[0].mxu0
        %v3069 = vadd.f32 %v1593, %v3068
        %3070 = vmatprep.mubr.bf16.mxu0 0
        %3071 = vmatmul.mubr.bf16.gmra.mrb[0].mxu0 %v1828
        %v3072 = vpop.f32.mrb[0].mxu0
        %v3073 = vadd.f32 %v1589, %v3072
        %v3074 = vpop.f32.mrb[0].mxu0
        %v3075 = vadd.f32 %v1593, %v3074
        %v3076 = vpop.f32.mrb[0].mxu0
        %v3077 = vadd.f32 %v1589, %v3076
        %v3078 = vpop.f32.mrb[0].mxu0
        %v3079 = vadd.f32 %v1593, %v3078
        %3080 = vmatprep.mubr.bf16.mxu0 0
        %3081 = vmatmul.mubr.bf16.gmra.mrb[0].mxu0 %v1831
        %v3082 = vpop.f32.mrb[0].mxu0
        %v3083 = vadd.f32 %v1589, %v3082
        %v3084 = vpop.f32.mrb[0].mxu0
        %v3085 = vadd.f32 %v1593, %v3084
        %v3086 = vpop.f32.mrb[0].mxu0
        %v3087 = vadd.f32 %v1589, %v3086
        %v3088 = vpop.f32.mrb[0].mxu0
        %v3089 = vadd.f32 %v1593, %v3088
        %3090 = vmatprep.mubr.bf16.mxu0 0
        %3091 = vmatmul.mubr.bf16.gmra.mrb[0].mxu0 %v1834
        %v3092 = vpop.f32.mrb[0].mxu0
        %v3093 = vadd.f32 %v1589, %v3092
        %v3094 = vpop.f32.mrb[0].mxu0
        %v3095 = vadd.f32 %v1593, %v3094
        %v3096 = vpop.f32.mrb[0].mxu0
        %v3097 = vadd.f32 %v1589, %v3096
        %v3098 = vpop.f32.mrb[0].mxu0
        %v3099 = vadd.f32 %v1593, %v3098
        %3100 = vmatprep.mubr.bf16.mxu0 0
        %3101 = vmatmul.mubr.bf16.gmra.mrb[0].mxu0 %v1837
        %v3102 = vpop.f32.mrb[0].mxu0
        %v3103 = vadd.f32 %v1589, %v3102
        %v3104 = vpop.f32.mrb[0].mxu0
        %v3105 = vadd.f32 %v1593, %v3104
        %v3106 = vpop.f32.mrb[0].mxu0
        %v3107 = vadd.f32 %v1589, %v3106
        %v3108 = vpop.f32.mrb[0].mxu0
        %v3109 = vadd.f32 %v1593, %v3108
        %3110 = vmatprep.mubr.bf16.mxu0 0
        %3111 = vmatmul.mubr.bf16.gmra.mrb[0].mxu0 %v1840
        %v3112 = vpop.f32.mrb[0].mxu0
        %v3113 = vadd.f32 %v1589, %v3112
        %v3114 = vpop.f32.mrb[0].mxu0
        %v3115 = vadd.f32 %v1593, %v3114
        %v3116 = vpop.f32.mrb[0].mxu0
        %v3117 = vadd.f32 %v1589, %v3116
        %v3118 = vpop.f32.mrb[0].mxu0
        %v3119 = vadd.f32 %v1593, %v3118
        %3120 = vmatprep.mubr.bf16.mxu0 0
        %3121 = vmatmul.mubr.bf16.gmra.mrb[0].mxu0 %v1843
        %v3122 = vpop.f32.mrb[0].mxu0
        %v3123 = vadd.f32 %v1589, %v3122
        %v3124 = vpop.f32.mrb[0].mxu0
        %v3125 = vadd.f32 %v1593, %v3124
        %v3126 = vpop.f32.mrb[0].mxu0
        %v3127 = vadd.f32 %v1589, %v3126
        %v3128 = vpop.f32.mrb[0].mxu0
        %v3129 = vadd.f32 %v1593, %v3128
        %3130 = vmatprep.mubr.bf16.mxu0 0
        %3131 = vmatmul.mubr.bf16.gmra.mrb[0].mxu0 %v1846
        %v3132 = vpop.f32.mrb[0].mxu0
        %v3133 = vadd.f32 %v1589, %v3132
        %v3134 = vpop.f32.mrb[0].mxu0
        %v3135 = vadd.f32 %v1593, %v3134
        %v3136 = vpop.f32.mrb[0].mxu0
        %v3137 = vadd.f32 %v1589, %v3136
        %v3138 = vpop.f32.mrb[0].mxu0
        %v3139 = vadd.f32 %v1593, %v3138
        %3140 = vmatprep.mubr.bf16.mxu0 0
        %3141 = vmatmul.mubr.bf16.gmra.mrb[0].mxu0 %v1849
        %v3142 = vpop.f32.mrb[0].mxu0
        %v3143 = vadd.f32 %v1589, %v3142
        %v3144 = vpop.f32.mrb[0].mxu0
        %v3145 = vadd.f32 %v1593, %v3144
        %v3146 = vpop.f32.mrb[0].mxu0
        %v3147 = vadd.f32 %v1589, %v3146
        %v3148 = vpop.f32.mrb[0].mxu0
        %v3149 = vadd.f32 %v1593, %v3148
        %3150 = vmatprep.mubr.bf16.mxu0 0
        %3151 = vmatmul.mubr.bf16.gmra.mrb[0].mxu0 %v1852
        %v3152 = vpop.f32.mrb[0].mxu0
        %v3153 = vadd.f32 %v1589, %v3152
        %v3154 = vpop.f32.mrb[0].mxu0
        %v3155 = vadd.f32 %v1593, %v3154
        %v3156 = vpop.f32.mrb[0].mxu0
        %v3157 = vadd.f32 %v1589, %v3156
        %v3158 = vpop.f32.mrb[0].mxu0
        %v3159 = vadd.f32 %v1593, %v3158
        %3160 = vmatprep.mubr.bf16.mxu0 0
        %3161 = vmatmul.mubr.bf16.gmra.mrb[0].mxu0 %v1855
        %v3162 = vpop.f32.mrb[0].mxu0
        %v3163 = vadd.f32 %v1589, %v3162
        %v3164 = vpop.f32.mrb[0].mxu0
        %v3165 = vadd.f32 %v1593, %v3164
        %v3166 = vpop.f32.mrb[0].mxu0
        %v3167 = vadd.f32 %v1589, %v3166
        %v3168 = vpop.f32.mrb[0].mxu0
        %v3169 = vadd.f32 %v1593, %v3168
        %3170 = vmatprep.mubr.bf16.mxu0 0
        %3171 = vmatmul.mubr.bf16.gmra.mrb[0].mxu0 %v1858
        %v3172 = vpop.f32.mrb[0].mxu0
        %v3173 = vadd.f32 %v1589, %v3172
        %v3174 = vpop.f32.mrb[0].mxu0
        %v3175 = vadd.f32 %v1593, %v3174
        %v3176 = vpop.f32.mrb[0].mxu0
        %v3177 = vadd.f32 %v1589, %v3176
        %v3178 = vpop.f32.mrb[0].mxu0
        %v3179 = vadd.f32 %v1593, %v3178
        %3180 = vmatprep.mubr.bf16.mxu0 0
        %3181 = vmatmul.mubr.bf16.gmra.mrb[0].mxu0 %v1861
        %v3182 = vpop.f32.mrb[0].mxu0
        %v3183 = vadd.f32 %v1589, %v3182
        %v3184 = vpop.f32.mrb[0].mxu0
        %v3185 = vadd.f32 %v1593, %v3184
        %v3186 = vpop.f32.mrb[0].mxu0
        %v3187 = vadd.f32 %v1589, %v3186
        %v3188 = vpop.f32.mrb[0].mxu0
        %v3189 = vadd.f32 %v1593, %v3188
        %3190 = vmatprep.mubr.bf16.mxu0 0
        %3191 = vmatmul.mubr.bf16.gmra.mrb[0].mxu0 %v1864
        %v3192 = vpop.f32.mrb[0].mxu0
        %v3193 = vadd.f32 %v1589, %v3192
        %v3194 = vpop.f32.mrb[0].mxu0
        %v3195 = vadd.f32 %v1593, %v3194
        %v3196 = vpop.f32.mrb[0].mxu0
        %v3197 = vadd.f32 %v1589, %v3196
        %v3198 = vpop.f32.mrb[0].mxu0
        %v3199 = vadd.f32 %v1593, %v3198
        %3200 = vmatprep.mubr.bf16.mxu0 0
        %3201 = vmatmul.mubr.bf16.gmra.mrb[0].mxu0 %v1867
        %v3202 = vpop.f32.mrb[0].mxu0
        %v3203 = vadd.f32 %v1589, %v3202
        %v3204 = vpop.f32.mrb[0].mxu0
        %v3205 = vadd.f32 %v1593, %v3204
        %v3206 = vpop.f32.mrb[0].mxu0
        %v3207 = vadd.f32 %v1589, %v3206
        %v3208 = vpop.f32.mrb[0].mxu0
        %v3209 = vadd.f32 %v1593, %v3208
        %3210 = vmatprep.mubr.bf16.mxu0 0
        %3211 = vmatmul.mubr.bf16.gmra.mrb[0].mxu0 %v1870
        %v3212 = vpop.f32.mrb[0].mxu0
        %v3213 = vadd.f32 %v1589, %v3212
        %v3214 = vpop.f32.mrb[0].mxu0
        %v3215 = vadd.f32 %v1593, %v3214
        %v3216 = vpop.f32.mrb[0].mxu0
        %v3217 = vadd.f32 %v1589, %v3216
        %v3218 = vpop.f32.mrb[0].mxu0
        %v3219 = vadd.f32 %v1593, %v3218
        %3220 = vmatprep.mubr.bf16.mxu0 0
        %3221 = vmatmul.mubr.bf16.gmra.mrb[0].mxu0 %v1873
        %v3222 = vpop.f32.mrb[0].mxu0
        %v3223 = vadd.f32 %v1589, %v3222
        %v3224 = vpop.f32.mrb[0].mxu0
        %v3225 = vadd.f32 %v1593, %v3224
        %v3226 = vpop.f32.mrb[0].mxu0
        %v3227 = vadd.f32 %v1589, %v3226
        %v3228 = vpop.f32.mrb[0].mxu0
        %v3229 = vadd.f32 %v1593, %v3228
        %3230 = vmatprep.mubr.bf16.mxu0 0
        %3231 = vmatmul.mubr.bf16.gmra.mrb[0].mxu0 %v1876
        %v3232 = vpop.f32.mrb[0].mxu0
        %v3233 = vadd.f32 %v1589, %v3232
        %v3234 = vpop.f32.mrb[0].mxu0
        %v3235 = vadd.f32 %v1593, %v3234
        %v3236 = vpop.f32.mrb[0].mxu0
        %v3237 = vadd.f32 %v1589, %v3236
        %v3238 = vpop.f32.mrb[0].mxu0
        %v3239 = vadd.f32 %v1593, %v3238
        %3240 = vmatprep.mubr.bf16.mxu0 0
        %3241 = vmatmul.mubr.bf16.gmra.mrb[0].mxu0 %v1879
        %v3242 = vpop.f32.mrb[0].mxu0
        %v3243 = vadd.f32 %v1589, %v3242
        %v3244 = vpop.f32.mrb[0].mxu0
        %v3245 = vadd.f32 %v1593, %v3244
        %v3246 = vpop.f32.mrb[0].mxu0
        %v3247 = vadd.f32 %v1589, %v3246
        %v3248 = vpop.f32.mrb[0].mxu0
        %v3249 = vadd.f32 %v1593, %v3248
        %3250 = vmatprep.mubr.bf16.mxu0 0
        %3251 = vmatmul.mubr.bf16.gmra.mrb[0].mxu0 %v1882
        %v3252 = vpop.f32.mrb[0].mxu0
        %v3253 = vadd.f32 %v1589, %v3252
        %v3254 = vpop.f32.mrb[0].mxu0
        %v3255 = vadd.f32 %v1593, %v3254
        %v3256 = vpop.f32.mrb[0].mxu0
        %v3257 = vadd.f32 %v1589, %v3256
        %v3258 = vpop.f32.mrb[0].mxu0
        %v3259 = vadd.f32 %v1593, %v3258
        %3260 = vmatprep.mubr.bf16.mxu0 0
        %3261 = vmatmul.mubr.bf16.gmra.mrb[0].mxu0 %v1885
        %v3262 = vpop.f32.mrb[0].mxu0
        %v3263 = vadd.f32 %v1589, %v3262
        %v3264 = vpop.f32.mrb[0].mxu0
        %v3265 = vadd.f32 %v1593, %v3264
        %v3266 = vpop.f32.mrb[0].mxu0
        %v3267 = vadd.f32 %v1589, %v3266
        %v3268 = vpop.f32.mrb[0].mxu0
        %v3269 = vadd.f32 %v1593, %v3268
        %3270 = vmatprep.mubr.bf16.mxu0 0
        %3271 = vmatmul.mubr.bf16.gmra.mrb[0].mxu0 %v1888
        %v3272 = vpop.f32.mrb[0].mxu0
        %v3273 = vadd.f32 %v1589, %v3272
        %v3274 = vpop.f32.mrb[0].mxu0
        %v3275 = vadd.f32 %v1593, %v3274
        %v3276 = vpop.f32.mrb[0].mxu0
        %v3277 = vadd.f32 %v1589, %v3276
        %v3278 = vpop.f32.mrb[0].mxu0
        %v3279 = vadd.f32 %v1593, %v3278
        %3280 = vmatprep.mubr.bf16.mxu0 0
        %3281 = vmatmul.mubr.bf16.gmra.mrb[0].mxu0 %v1891
        %v3282 = vpop.f32.mrb[0].mxu0
        %v3283 = vadd.f32 %v1589, %v3282
        %v3284 = vpop.f32.mrb[0].mxu0
        %v3285 = vadd.f32 %v1593, %v3284
        %v3286 = vpop.f32.mrb[0].mxu0
        %v3287 = vadd.f32 %v1589, %v3286
        %v3288 = vpop.f32.mrb[0].mxu0
        %v3289 = vadd.f32 %v1593, %v3288
        %3290 = vmatprep.mubr.bf16.mxu0 0
        %3291 = vmatmul.mubr.bf16.gmra.mrb[0].mxu0 %v1894
        %v3292 = vpop.f32.mrb[0].mxu0
        %v3293 = vadd.f32 %v1589, %v3292
        %v3294 = vpop.f32.mrb[0].mxu0
        %v3295 = vadd.f32 %v1593, %v3294
        %v3296 = vpop.f32.mrb[0].mxu0
        %v3297 = vadd.f32 %v1589, %v3296
        %v3298 = vpop.f32.mrb[0].mxu0
        %v3299 = vadd.f32 %v1593, %v3298
        %3300 = vmatprep.mubr.bf16.mxu0 0
        %3301 = vmatmul.mubr.bf16.gmra.mrb[0].mxu0 %v1897
        %v3302 = vpop.f32.mrb[0].mxu0
        %v3303 = vadd.f32 %v1589, %v3302
        %v3304 = vpop.f32.mrb[0].mxu0
        %v3305 = vadd.f32 %v1593, %v3304
        %v3306 = vpop.f32.mrb[0].mxu0
        %v3307 = vadd.f32 %v1589, %v3306
        %v3308 = vpop.f32.mrb[0].mxu0
        %v3309 = vadd.f32 %v1593, %v3308
        %3310 = vdwg.mxu0
        %3311 = vmatprep.subr.bf16.mxu0 %v1747
        %3312 = vmatpush1.bf16.msra.mxu0 %v1746
        %3313 = vmatprep.subr.bf16.mxu0 %v1763
        %3314 = vmatpush1.bf16.msra.mxu0 %v1762
        %3315 = vmatprep.subr.bf16.mxu0 0
        %3316 = vmatpush1.bf16.msra.mxu0 0
        %3317 = vmatprep.subr.bf16.mxu0 0
        %3318 = vmatpush1.bf16.msra.mxu0 0
        %3319 = vmatprep.subr.bf16.mxu0 0
        %3320 = vmatpush1.bf16.msra.mxu0 0
        %3321 = vmatprep.subr.bf16.mxu0 0
        %3322 = vmatpush1.bf16.msra.mxu0 0
        %3323 = vmatprep.subr.bf16.mxu0 0
        %3324 = vmatpush1.bf16.msra.mxu0 0
        %3325 = vmatprep.subr.bf16.mxu0 0
        %3326 = vmatpush1.bf16.msra.mxu0 0
        %3327 = vmatprep.subr.bf16.mxu0 0
        %3328 = vmatpush1.bf16.msra.mxu0 0
        %3329 = vmatprep.subr.bf16.mxu0 0
        %3330 = vmatpush1.bf16.msra.mxu0 0
        %3331 = vmatprep.subr.bf16.mxu0 0
        %3332 = vmatpush1.bf16.msra.mxu0 0
        %3333 = vmatprep.subr.bf16.mxu0 0
        %3334 = vmatpush1.bf16.msra.mxu0 0
        %3335 = vmatprep.subr.bf16.mxu0 0
        %3336 = vmatpush1.bf16.msra.mxu0 0
        %3337 = vmatprep.subr.bf16.mxu0 0
        %3338 = vmatpush1.bf16.msra.mxu0 0
        %3339 = vmatprep.subr.bf16.mxu0 0
        %3340 = vmatpush1.bf16.msra.mxu0 0
        %3341 = vmatprep.subr.bf16.mxu0 0
        %3342 = vmatpush1.bf16.msra.mxu0 0
        %3343 = vmatprep.mubr.bf16.mxu0 0
        %3344 = vmatmul.mubr.bf16.gmra.mrb[0].mxu0 %v1804
        %v3345 = vpop.f32.mrb[0].mxu0
        %v3346 = vadd.f32 %v1597, %v3345
        %v3347 = vpop.f32.mrb[0].mxu0
        %v3348 = vadd.f32 %v1601, %v3347
        %v3349 = vpop.f32.mrb[0].mxu0
        %v3350 = vadd.f32 %v1597, %v3349
        %v3351 = vpop.f32.mrb[0].mxu0
        %v3352 = vadd.f32 %v1601, %v3351
        %3353 = vmatprep.mubr.bf16.mxu0 0
        %3354 = vmatmul.mubr.bf16.gmra.mrb[0].mxu0 %v1807
        %v3355 = vpop.f32.mrb[0].mxu0
        %v3356 = vadd.f32 %v1597, %v3355
        %v3357 = vpop.f32.mrb[0].mxu0
        %v3358 = vadd.f32 %v1601, %v3357
        %v3359 = vpop.f32.mrb[0].mxu0
        %v3360 = vadd.f32 %v1597, %v3359
        %v3361 = vpop.f32.mrb[0].mxu0
        %v3362 = vadd.f32 %v1601, %v3361
        %3363 = vmatprep.mubr.bf16.mxu0 0
        %3364 = vmatmul.mubr.bf16.gmra.mrb[0].mxu0 %v1810
        %v3365 = vpop.f32.mrb[0].mxu0
        %v3366 = vadd.f32 %v1597, %v3365
        %v3367 = vpop.f32.mrb[0].mxu0
        %v3368 = vadd.f32 %v1601, %v3367
        %v3369 = vpop.f32.mrb[0].mxu0
        %v3370 = vadd.f32 %v1597, %v3369
        %v3371 = vpop.f32.mrb[0].mxu0
        %v3372 = vadd.f32 %v1601, %v3371
        %3373 = vmatprep.mubr.bf16.mxu0 0
        %3374 = vmatmul.mubr.bf16.gmra.mrb[0].mxu0 %v1813
        %v3375 = vpop.f32.mrb[0].mxu0
        %v3376 = vadd.f32 %v1597, %v3375
        %v3377 = vpop.f32.mrb[0].mxu0
        %v3378 = vadd.f32 %v1601, %v3377
        %v3379 = vpop.f32.mrb[0].mxu0
        %v3380 = vadd.f32 %v1597, %v3379
        %v3381 = vpop.f32.mrb[0].mxu0
        %v3382 = vadd.f32 %v1601, %v3381
        %3383 = vmatprep.mubr.bf16.mxu0 0
        %3384 = vmatmul.mubr.bf16.gmra.mrb[0].mxu0 %v1816
        %v3385 = vpop.f32.mrb[0].mxu0
        %v3386 = vadd.f32 %v1597, %v3385
        %v3387 = vpop.f32.mrb[0].mxu0
        %v3388 = vadd.f32 %v1601, %v3387
        %v3389 = vpop.f32.mrb[0].mxu0
        %v3390 = vadd.f32 %v1597, %v3389
        %v3391 = vpop.f32.mrb[0].mxu0
        %v3392 = vadd.f32 %v1601, %v3391
        %3393 = vmatprep.mubr.bf16.mxu0 0
        %3394 = vmatmul.mubr.bf16.gmra.mrb[0].mxu0 %v1819
        %v3395 = vpop.f32.mrb[0].mxu0
        %v3396 = vadd.f32 %v1597, %v3395
        %v3397 = vpop.f32.mrb[0].mxu0
        %v3398 = vadd.f32 %v1601, %v3397
        %v3399 = vpop.f32.mrb[0].mxu0
        %v3400 = vadd.f32 %v1597, %v3399
        %v3401 = vpop.f32.mrb[0].mxu0
        %v3402 = vadd.f32 %v1601, %v3401
        %3403 = vmatprep.mubr.bf16.mxu0 0
        %3404 = vmatmul.mubr.bf16.gmra.mrb[0].mxu0 %v1822
        %v3405 = vpop.f32.mrb[0].mxu0
        %v3406 = vadd.f32 %v1597, %v3405
        %v3407 = vpop.f32.mrb[0].mxu0
        %v3408 = vadd.f32 %v1601, %v3407
        %v3409 = vpop.f32.mrb[0].mxu0
        %v3410 = vadd.f32 %v1597, %v3409
        %v3411 = vpop.f32.mrb[0].mxu0
        %v3412 = vadd.f32 %v1601, %v3411
        %3413 = vmatprep.mubr.bf16.mxu0 0
        %3414 = vmatmul.mubr.bf16.gmra.mrb[0].mxu0 %v1825
        %v3415 = vpop.f32.mrb[0].mxu0
        %v3416 = vadd.f32 %v1597, %v3415
        %v3417 = vpop.f32.mrb[0].mxu0
        %v3418 = vadd.f32 %v1601, %v3417
        %v3419 = vpop.f32.mrb[0].mxu0
        %v3420 = vadd.f32 %v1597, %v3419
        %v3421 = vpop.f32.mrb[0].mxu0
        %v3422 = vadd.f32 %v1601, %v3421
        %3423 = vmatprep.mubr.bf16.mxu0 0
        %3424 = vmatmul.mubr.bf16.gmra.mrb[0].mxu0 %v1828
        %v3425 = vpop.f32.mrb[0].mxu0
        %v3426 = vadd.f32 %v1597, %v3425
        %v3427 = vpop.f32.mrb[0].mxu0
        %v3428 = vadd.f32 %v1601, %v3427
        %v3429 = vpop.f32.mrb[0].mxu0
        %v3430 = vadd.f32 %v1597, %v3429
        %v3431 = vpop.f32.mrb[0].mxu0
        %v3432 = vadd.f32 %v1601, %v3431
        %3433 = vmatprep.mubr.bf16.mxu0 0
        %3434 = vmatmul.mubr.bf16.gmra.mrb[0].mxu0 %v1831
        %v3435 = vpop.f32.mrb[0].mxu0
        %v3436 = vadd.f32 %v1597, %v3435
        %v3437 = vpop.f32.mrb[0].mxu0
        %v3438 = vadd.f32 %v1601, %v3437
        %v3439 = vpop.f32.mrb[0].mxu0
        %v3440 = vadd.f32 %v1597, %v3439
        %v3441 = vpop.f32.mrb[0].mxu0
        %v3442 = vadd.f32 %v1601, %v3441
        %3443 = vmatprep.mubr.bf16.mxu0 0
        %3444 = vmatmul.mubr.bf16.gmra.mrb[0].mxu0 %v1834
        %v3445 = vpop.f32.mrb[0].mxu0
        %v3446 = vadd.f32 %v1597, %v3445
        %v3447 = vpop.f32.mrb[0].mxu0
        %v3448 = vadd.f32 %v1601, %v3447
        %v3449 = vpop.f32.mrb[0].mxu0
        %v3450 = vadd.f32 %v1597, %v3449
        %v3451 = vpop.f32.mrb[0].mxu0
        %v3452 = vadd.f32 %v1601, %v3451
        %3453 = vmatprep.mubr.bf16.mxu0 0
        %3454 = vmatmul.mubr.bf16.gmra.mrb[0].mxu0 %v1837
        %v3455 = vpop.f32.mrb[0].mxu0
        %v3456 = vadd.f32 %v1597, %v3455
        %v3457 = vpop.f32.mrb[0].mxu0
        %v3458 = vadd.f32 %v1601, %v3457
        %v3459 = vpop.f32.mrb[0].mxu0
        %v3460 = vadd.f32 %v1597, %v3459
        %v3461 = vpop.f32.mrb[0].mxu0
        %v3462 = vadd.f32 %v1601, %v3461
        %3463 = vmatprep.mubr.bf16.mxu0 0
        %3464 = vmatmul.mubr.bf16.gmra.mrb[0].mxu0 %v1840
        %v3465 = vpop.f32.mrb[0].mxu0
        %v3466 = vadd.f32 %v1597, %v3465
        %v3467 = vpop.f32.mrb[0].mxu0
        %v3468 = vadd.f32 %v1601, %v3467
        %v3469 = vpop.f32.mrb[0].mxu0
        %v3470 = vadd.f32 %v1597, %v3469
        %v3471 = vpop.f32.mrb[0].mxu0
        %v3472 = vadd.f32 %v1601, %v3471
        %3473 = vmatprep.mubr.bf16.mxu0 0
        %3474 = vmatmul.mubr.bf16.gmra.mrb[0].mxu0 %v1843
        %v3475 = vpop.f32.mrb[0].mxu0
        %v3476 = vadd.f32 %v1597, %v3475
        %v3477 = vpop.f32.mrb[0].mxu0
        %v3478 = vadd.f32 %v1601, %v3477
        %v3479 = vpop.f32.mrb[0].mxu0
        %v3480 = vadd.f32 %v1597, %v3479
        %v3481 = vpop.f32.mrb[0].mxu0
        %v3482 = vadd.f32 %v1601, %v3481
        %3483 = vmatprep.mubr.bf16.mxu0 0
        %3484 = vmatmul.mubr.bf16.gmra.mrb[0].mxu0 %v1846
        %v3485 = vpop.f32.mrb[0].mxu0
        %v3486 = vadd.f32 %v1597, %v3485
        %v3487 = vpop.f32.mrb[0].mxu0
        %v3488 = vadd.f32 %v1601, %v3487
        %v3489 = vpop.f32.mrb[0].mxu0
        %v3490 = vadd.f32 %v1597, %v3489
        %v3491 = vpop.f32.mrb[0].mxu0
        %v3492 = vadd.f32 %v1601, %v3491
        %3493 = vmatprep.mubr.bf16.mxu0 0
        %3494 = vmatmul.mubr.bf16.gmra.mrb[0].mxu0 %v1849
        %v3495 = vpop.f32.mrb[0].mxu0
        %v3496 = vadd.f32 %v1597, %v3495
        %v3497 = vpop.f32.mrb[0].mxu0
        %v3498 = vadd.f32 %v1601, %v3497
        %v3499 = vpop.f32.mrb[0].mxu0
        %v3500 = vadd.f32 %v1597, %v3499
        %v3501 = vpop.f32.mrb[0].mxu0
        %v3502 = vadd.f32 %v1601, %v3501
        %3503 = vmatprep.mubr.bf16.mxu0 0
        %3504 = vmatmul.mubr.bf16.gmra.mrb[0].mxu0 %v1852
        %v3505 = vpop.f32.mrb[0].mxu0
        %v3506 = vadd.f32 %v1597, %v3505
        %v3507 = vpop.f32.mrb[0].mxu0
        %v3508 = vadd.f32 %v1601, %v3507
        %v3509 = vpop.f32.mrb[0].mxu0
        %v3510 = vadd.f32 %v1597, %v3509
        %v3511 = vpop.f32.mrb[0].mxu0
        %v3512 = vadd.f32 %v1601, %v3511
        %3513 = vmatprep.mubr.bf16.mxu0 0
        %3514 = vmatmul.mubr.bf16.gmra.mrb[0].mxu0 %v1855
        %v3515 = vpop.f32.mrb[0].mxu0
        %v3516 = vadd.f32 %v1597, %v3515
        %v3517 = vpop.f32.mrb[0].mxu0
        %v3518 = vadd.f32 %v1601, %v3517
        %v3519 = vpop.f32.mrb[0].mxu0
        %v3520 = vadd.f32 %v1597, %v3519
        %v3521 = vpop.f32.mrb[0].mxu0
        %v3522 = vadd.f32 %v1601, %v3521
        %3523 = vmatprep.mubr.bf16.mxu0 0
        %3524 = vmatmul.mubr.bf16.gmra.mrb[0].mxu0 %v1858
        %v3525 = vpop.f32.mrb[0].mxu0
        %v3526 = vadd.f32 %v1597, %v3525
        %v3527 = vpop.f32.mrb[0].mxu0
        %v3528 = vadd.f32 %v1601, %v3527
        %v3529 = vpop.f32.mrb[0].mxu0
        %v3530 = vadd.f32 %v1597, %v3529
        %v3531 = vpop.f32.mrb[0].mxu0
        %v3532 = vadd.f32 %v1601, %v3531
        %3533 = vmatprep.mubr.bf16.mxu0 0
        %3534 = vmatmul.mubr.bf16.gmra.mrb[0].mxu0 %v1861
        %v3535 = vpop.f32.mrb[0].mxu0
        %v3536 = vadd.f32 %v1597, %v3535
        %v3537 = vpop.f32.mrb[0].mxu0
        %v3538 = vadd.f32 %v1601, %v3537
        %v3539 = vpop.f32.mrb[0].mxu0
        %v3540 = vadd.f32 %v1597, %v3539
        %v3541 = vpop.f32.mrb[0].mxu0
        %v3542 = vadd.f32 %v1601, %v3541
        %3543 = vmatprep.mubr.bf16.mxu0 0
        %3544 = vmatmul.mubr.bf16.gmra.mrb[0].mxu0 %v1864
        %v3545 = vpop.f32.mrb[0].mxu0
        %v3546 = vadd.f32 %v1597, %v3545
        %v3547 = vpop.f32.mrb[0].mxu0
        %v3548 = vadd.f32 %v1601, %v3547
        %v3549 = vpop.f32.mrb[0].mxu0
        %v3550 = vadd.f32 %v1597, %v3549
        %v3551 = vpop.f32.mrb[0].mxu0
        %v3552 = vadd.f32 %v1601, %v3551
        %3553 = vmatprep.mubr.bf16.mxu0 0
        %3554 = vmatmul.mubr.bf16.gmra.mrb[0].mxu0 %v1867
        %v3555 = vpop.f32.mrb[0].mxu0
        %v3556 = vadd.f32 %v1597, %v3555
        %v3557 = vpop.f32.mrb[0].mxu0
        %v3558 = vadd.f32 %v1601, %v3557
        %v3559 = vpop.f32.mrb[0].mxu0
        %v3560 = vadd.f32 %v1597, %v3559
        %v3561 = vpop.f32.mrb[0].mxu0
        %v3562 = vadd.f32 %v1601, %v3561
        %3563 = vmatprep.mubr.bf16.mxu0 0
        %3564 = vmatmul.mubr.bf16.gmra.mrb[0].mxu0 %v1870
        %v3565 = vpop.f32.mrb[0].mxu0
        %v3566 = vadd.f32 %v1597, %v3565
        %v3567 = vpop.f32.mrb[0].mxu0
        %v3568 = vadd.f32 %v1601, %v3567
        %v3569 = vpop.f32.mrb[0].mxu0
        %v3570 = vadd.f32 %v1597, %v3569
        %v3571 = vpop.f32.mrb[0].mxu0
        %v3572 = vadd.f32 %v1601, %v3571
        %3573 = vmatprep.mubr.bf16.mxu0 0
        %3574 = vmatmul.mubr.bf16.gmra.mrb[0].mxu0 %v1873
        %v3575 = vpop.f32.mrb[0].mxu0
        %v3576 = vadd.f32 %v1597, %v3575
        %v3577 = vpop.f32.mrb[0].mxu0
        %v3578 = vadd.f32 %v1601, %v3577
        %v3579 = vpop.f32.mrb[0].mxu0
        %v3580 = vadd.f32 %v1597, %v3579
        %v3581 = vpop.f32.mrb[0].mxu0
        %v3582 = vadd.f32 %v1601, %v3581
        %3583 = vmatprep.mubr.bf16.mxu0 0
        %3584 = vmatmul.mubr.bf16.gmra.mrb[0].mxu0 %v1876
        %v3585 = vpop.f32.mrb[0].mxu0
        %v3586 = vadd.f32 %v1597, %v3585
        %v3587 = vpop.f32.mrb[0].mxu0
        %v3588 = vadd.f32 %v1601, %v3587
        %v3589 = vpop.f32.mrb[0].mxu0
        %v3590 = vadd.f32 %v1597, %v3589
        %v3591 = vpop.f32.mrb[0].mxu0
        %v3592 = vadd.f32 %v1601, %v3591
        %3593 = vmatprep.mubr.bf16.mxu0 0
        %3594 = vmatmul.mubr.bf16.gmra.mrb[0].mxu0 %v1879
        %v3595 = vpop.f32.mrb[0].mxu0
        %v3596 = vadd.f32 %v1597, %v3595
        %v3597 = vpop.f32.mrb[0].mxu0
        %v3598 = vadd.f32 %v1601, %v3597
        %v3599 = vpop.f32.mrb[0].mxu0
        %v3600 = vadd.f32 %v1597, %v3599
        %v3601 = vpop.f32.mrb[0].mxu0
        %v3602 = vadd.f32 %v1601, %v3601
        %3603 = vmatprep.mubr.bf16.mxu0 0
        %3604 = vmatmul.mubr.bf16.gmra.mrb[0].mxu0 %v1882
        %v3605 = vpop.f32.mrb[0].mxu0
        %v3606 = vadd.f32 %v1597, %v3605
        %v3607 = vpop.f32.mrb[0].mxu0
        %v3608 = vadd.f32 %v1601, %v3607
        %v3609 = vpop.f32.mrb[0].mxu0
        %v3610 = vadd.f32 %v1597, %v3609
        %v3611 = vpop.f32.mrb[0].mxu0
        %v3612 = vadd.f32 %v1601, %v3611
        %3613 = vmatprep.mubr.bf16.mxu0 0
        %3614 = vmatmul.mubr.bf16.gmra.mrb[0].mxu0 %v1885
        %v3615 = vpop.f32.mrb[0].mxu0
        %v3616 = vadd.f32 %v1597, %v3615
        %v3617 = vpop.f32.mrb[0].mxu0
        %v3618 = vadd.f32 %v1601, %v3617
        %v3619 = vpop.f32.mrb[0].mxu0
        %v3620 = vadd.f32 %v1597, %v3619
        %v3621 = vpop.f32.mrb[0].mxu0
        %v3622 = vadd.f32 %v1601, %v3621
        %3623 = vmatprep.mubr.bf16.mxu0 0
        %3624 = vmatmul.mubr.bf16.gmra.mrb[0].mxu0 %v1888
        %v3625 = vpop.f32.mrb[0].mxu0
        %v3626 = vadd.f32 %v1597, %v3625
        %v3627 = vpop.f32.mrb[0].mxu0
        %v3628 = vadd.f32 %v1601, %v3627
        %v3629 = vpop.f32.mrb[0].mxu0
        %v3630 = vadd.f32 %v1597, %v3629
        %v3631 = vpop.f32.mrb[0].mxu0
        %v3632 = vadd.f32 %v1601, %v3631
        %3633 = vmatprep.mubr.bf16.mxu0 0
        %3634 = vmatmul.mubr.bf16.gmra.mrb[0].mxu0 %v1891
        %v3635 = vpop.f32.mrb[0].mxu0
        %v3636 = vadd.f32 %v1597, %v3635
        %v3637 = vpop.f32.mrb[0].mxu0
        %v3638 = vadd.f32 %v1601, %v3637
        %v3639 = vpop.f32.mrb[0].mxu0
        %v3640 = vadd.f32 %v1597, %v3639
        %v3641 = vpop.f32.mrb[0].mxu0
        %v3642 = vadd.f32 %v1601, %v3641
        %3643 = vmatprep.mubr.bf16.mxu0 0
        %3644 = vmatmul.mubr.bf16.gmra.mrb[0].mxu0 %v1894
        %v3645 = vpop.f32.mrb[0].mxu0
        %v3646 = vadd.f32 %v1597, %v3645
        %v3647 = vpop.f32.mrb[0].mxu0
        %v3648 = vadd.f32 %v1601, %v3647
        %v3649 = vpop.f32.mrb[0].mxu0
        %v3650 = vadd.f32 %v1597, %v3649
        %v3651 = vpop.f32.mrb[0].mxu0
        %v3652 = vadd.f32 %v1601, %v3651
        %3653 = vmatprep.mubr.bf16.mxu0 0
        %3654 = vmatmul.mubr.bf16.gmra.mrb[0].mxu0 %v1897
        %v3655 = vpop.f32.mrb[0].mxu0
        %v3656 = vadd.f32 %v1597, %v3655
        %v3657 = vpop.f32.mrb[0].mxu0
        %v3658 = vadd.f32 %v1601, %v3657
        %v3659 = vpop.f32.mrb[0].mxu0
        %v3660 = vadd.f32 %v1597, %v3659
        %v3661 = vpop.f32.mrb[0].mxu0
        %v3662 = vadd.f32 %v1601, %v3661
        %3663 = vdwg.mxu0
        %3664 = vmatprep.subr.bf16.mxu0 %v1749
        %3665 = vmatpush1.bf16.msra.mxu0 %v1748
        %3666 = vmatprep.subr.bf16.mxu0 %v1765
        %3667 = vmatpush1.bf16.msra.mxu0 %v1764
        %3668 = vmatprep.subr.bf16.mxu0 0
        %3669 = vmatpush1.bf16.msra.mxu0 0
        %3670 = vmatprep.subr.bf16.mxu0 0
        %3671 = vmatpush1.bf16.msra.mxu0 0
        %3672 = vmatprep.subr.bf16.mxu0 0
        %3673 = vmatpush1.bf16.msra.mxu0 0
        %3674 = vmatprep.subr.bf16.mxu0 0
        %3675 = vmatpush1.bf16.msra.mxu0 0
        %3676 = vmatprep.subr.bf16.mxu0 0
        %3677 = vmatpush1.bf16.msra.mxu0 0
        %3678 = vmatprep.subr.bf16.mxu0 0
        %3679 = vmatpush1.bf16.msra.mxu0 0
        %3680 = vmatprep.subr.bf16.mxu0 0
        %3681 = vmatpush1.bf16.msra.mxu0 0
        %3682 = vmatprep.subr.bf16.mxu0 0
        %3683 = vmatpush1.bf16.msra.mxu0 0
        %3684 = vmatprep.subr.bf16.mxu0 0
        %3685 = vmatpush1.bf16.msra.mxu0 0
        %3686 = vmatprep.subr.bf16.mxu0 0
        %3687 = vmatpush1.bf16.msra.mxu0 0
        %3688 = vmatprep.subr.bf16.mxu0 0
        %3689 = vmatpush1.bf16.msra.mxu0 0
        %3690 = vmatprep.subr.bf16.mxu0 0
        %3691 = vmatpush1.bf16.msra.mxu0 0
        %3692 = vmatprep.subr.bf16.mxu0 0
        %3693 = vmatpush1.bf16.msra.mxu0 0
        %3694 = vmatprep.subr.bf16.mxu0 0
        %3695 = vmatpush1.bf16.msra.mxu0 0
        %3696 = vmatprep.mubr.bf16.mxu0 0
        %3697 = vmatmul.mubr.bf16.gmra.mrb[0].mxu0 %v1804
        %v3698 = vpop.f32.mrb[0].mxu0
        %v3699 = vadd.f32 %v1605, %v3698
        %v3700 = vpop.f32.mrb[0].mxu0
        %v3701 = vadd.f32 %v1609, %v3700
        %v3702 = vpop.f32.mrb[0].mxu0
        %v3703 = vadd.f32 %v1605, %v3702
        %v3704 = vpop.f32.mrb[0].mxu0
        %v3705 = vadd.f32 %v1609, %v3704
        %3706 = vmatprep.mubr.bf16.mxu0 0
        %3707 = vmatmul.mubr.bf16.gmra.mrb[0].mxu0 %v1807
        %v3708 = vpop.f32.mrb[0].mxu0
        %v3709 = vadd.f32 %v1605, %v3708
        %v3710 = vpop.f32.mrb[0].mxu0
        %v3711 = vadd.f32 %v1609, %v3710
        %v3712 = vpop.f32.mrb[0].mxu0
        %v3713 = vadd.f32 %v1605, %v3712
        %v3714 = vpop.f32.mrb[0].mxu0
        %v3715 = vadd.f32 %v1609, %v3714
        %3716 = vmatprep.mubr.bf16.mxu0 0
        %3717 = vmatmul.mubr.bf16.gmra.mrb[0].mxu0 %v1810
        %v3718 = vpop.f32.mrb[0].mxu0
        %v3719 = vadd.f32 %v1605, %v3718
        %v3720 = vpop.f32.mrb[0].mxu0
        %v3721 = vadd.f32 %v1609, %v3720
        %v3722 = vpop.f32.mrb[0].mxu0
        %v3723 = vadd.f32 %v1605, %v3722
        %v3724 = vpop.f32.mrb[0].mxu0
        %v3725 = vadd.f32 %v1609, %v3724
        %3726 = vmatprep.mubr.bf16.mxu0 0
        %3727 = vmatmul.mubr.bf16.gmra.mrb[0].mxu0 %v1813
        %v3728 = vpop.f32.mrb[0].mxu0
        %v3729 = vadd.f32 %v1605, %v3728
        %v3730 = vpop.f32.mrb[0].mxu0
        %v3731 = vadd.f32 %v1609, %v3730
        %v3732 = vpop.f32.mrb[0].mxu0
        %v3733 = vadd.f32 %v1605, %v3732
        %v3734 = vpop.f32.mrb[0].mxu0
        %v3735 = vadd.f32 %v1609, %v3734
        %3736 = vmatprep.mubr.bf16.mxu0 0
        %3737 = vmatmul.mubr.bf16.gmra.mrb[0].mxu0 %v1816
        %v3738 = vpop.f32.mrb[0].mxu0
        %v3739 = vadd.f32 %v1605, %v3738
        %v3740 = vpop.f32.mrb[0].mxu0
        %v3741 = vadd.f32 %v1609, %v3740
        %v3742 = vpop.f32.mrb[0].mxu0
        %v3743 = vadd.f32 %v1605, %v3742
        %v3744 = vpop.f32.mrb[0].mxu0
        %v3745 = vadd.f32 %v1609, %v3744
        %3746 = vmatprep.mubr.bf16.mxu0 0
        %3747 = vmatmul.mubr.bf16.gmra.mrb[0].mxu0 %v1819
        %v3748 = vpop.f32.mrb[0].mxu0
        %v3749 = vadd.f32 %v1605, %v3748
        %v3750 = vpop.f32.mrb[0].mxu0
        %v3751 = vadd.f32 %v1609, %v3750
        %v3752 = vpop.f32.mrb[0].mxu0
        %v3753 = vadd.f32 %v1605, %v3752
        %v3754 = vpop.f32.mrb[0].mxu0
        %v3755 = vadd.f32 %v1609, %v3754
        %3756 = vmatprep.mubr.bf16.mxu0 0
        %3757 = vmatmul.mubr.bf16.gmra.mrb[0].mxu0 %v1822
        %v3758 = vpop.f32.mrb[0].mxu0
        %v3759 = vadd.f32 %v1605, %v3758
        %v3760 = vpop.f32.mrb[0].mxu0
        %v3761 = vadd.f32 %v1609, %v3760
        %v3762 = vpop.f32.mrb[0].mxu0
        %v3763 = vadd.f32 %v1605, %v3762
        %v3764 = vpop.f32.mrb[0].mxu0
        %v3765 = vadd.f32 %v1609, %v3764
        %3766 = vmatprep.mubr.bf16.mxu0 0
        %3767 = vmatmul.mubr.bf16.gmra.mrb[0].mxu0 %v1825
        %v3768 = vpop.f32.mrb[0].mxu0
        %v3769 = vadd.f32 %v1605, %v3768
        %v3770 = vpop.f32.mrb[0].mxu0
        %v3771 = vadd.f32 %v1609, %v3770
        %v3772 = vpop.f32.mrb[0].mxu0
        %v3773 = vadd.f32 %v1605, %v3772
        %v3774 = vpop.f32.mrb[0].mxu0
        %v3775 = vadd.f32 %v1609, %v3774
        %3776 = vmatprep.mubr.bf16.mxu0 0
        %3777 = vmatmul.mubr.bf16.gmra.mrb[0].mxu0 %v1828
        %v3778 = vpop.f32.mrb[0].mxu0
        %v3779 = vadd.f32 %v1605, %v3778
        %v3780 = vpop.f32.mrb[0].mxu0
        %v3781 = vadd.f32 %v1609, %v3780
        %v3782 = vpop.f32.mrb[0].mxu0
        %v3783 = vadd.f32 %v1605, %v3782
        %v3784 = vpop.f32.mrb[0].mxu0
        %v3785 = vadd.f32 %v1609, %v3784
        %3786 = vmatprep.mubr.bf16.mxu0 0
        %3787 = vmatmul.mubr.bf16.gmra.mrb[0].mxu0 %v1831
        %v3788 = vpop.f32.mrb[0].mxu0
        %v3789 = vadd.f32 %v1605, %v3788
        %v3790 = vpop.f32.mrb[0].mxu0
        %v3791 = vadd.f32 %v1609, %v3790
        %v3792 = vpop.f32.mrb[0].mxu0
        %v3793 = vadd.f32 %v1605, %v3792
        %v3794 = vpop.f32.mrb[0].mxu0
        %v3795 = vadd.f32 %v1609, %v3794
        %3796 = vmatprep.mubr.bf16.mxu0 0
        %3797 = vmatmul.mubr.bf16.gmra.mrb[0].mxu0 %v1834
        %v3798 = vpop.f32.mrb[0].mxu0
        %v3799 = vadd.f32 %v1605, %v3798
        %v3800 = vpop.f32.mrb[0].mxu0
        %v3801 = vadd.f32 %v1609, %v3800
        %v3802 = vpop.f32.mrb[0].mxu0
        %v3803 = vadd.f32 %v1605, %v3802
        %v3804 = vpop.f32.mrb[0].mxu0
        %v3805 = vadd.f32 %v1609, %v3804
        %3806 = vmatprep.mubr.bf16.mxu0 0
        %3807 = vmatmul.mubr.bf16.gmra.mrb[0].mxu0 %v1837
        %v3808 = vpop.f32.mrb[0].mxu0
        %v3809 = vadd.f32 %v1605, %v3808
        %v3810 = vpop.f32.mrb[0].mxu0
        %v3811 = vadd.f32 %v1609, %v3810
        %v3812 = vpop.f32.mrb[0].mxu0
        %v3813 = vadd.f32 %v1605, %v3812
        %v3814 = vpop.f32.mrb[0].mxu0
        %v3815 = vadd.f32 %v1609, %v3814
        %3816 = vmatprep.mubr.bf16.mxu0 0
        %3817 = vmatmul.mubr.bf16.gmra.mrb[0].mxu0 %v1840
        %v3818 = vpop.f32.mrb[0].mxu0
        %v3819 = vadd.f32 %v1605, %v3818
        %v3820 = vpop.f32.mrb[0].mxu0
        %v3821 = vadd.f32 %v1609, %v3820
        %v3822 = vpop.f32.mrb[0].mxu0
        %v3823 = vadd.f32 %v1605, %v3822
        %v3824 = vpop.f32.mrb[0].mxu0
        %v3825 = vadd.f32 %v1609, %v3824
        %3826 = vmatprep.mubr.bf16.mxu0 0
        %3827 = vmatmul.mubr.bf16.gmra.mrb[0].mxu0 %v1843
        %v3828 = vpop.f32.mrb[0].mxu0
        %v3829 = vadd.f32 %v1605, %v3828
        %v3830 = vpop.f32.mrb[0].mxu0
        %v3831 = vadd.f32 %v1609, %v3830
        %v3832 = vpop.f32.mrb[0].mxu0
        %v3833 = vadd.f32 %v1605, %v3832
        %v3834 = vpop.f32.mrb[0].mxu0
        %v3835 = vadd.f32 %v1609, %v3834
        %3836 = vmatprep.mubr.bf16.mxu0 0
        %3837 = vmatmul.mubr.bf16.gmra.mrb[0].mxu0 %v1846
        %v3838 = vpop.f32.mrb[0].mxu0
        %v3839 = vadd.f32 %v1605, %v3838
        %v3840 = vpop.f32.mrb[0].mxu0
        %v3841 = vadd.f32 %v1609, %v3840
        %v3842 = vpop.f32.mrb[0].mxu0
        %v3843 = vadd.f32 %v1605, %v3842
        %v3844 = vpop.f32.mrb[0].mxu0
        %v3845 = vadd.f32 %v1609, %v3844
        %3846 = vmatprep.mubr.bf16.mxu0 0
        %3847 = vmatmul.mubr.bf16.gmra.mrb[0].mxu0 %v1849
        %v3848 = vpop.f32.mrb[0].mxu0
        %v3849 = vadd.f32 %v1605, %v3848
        %v3850 = vpop.f32.mrb[0].mxu0
        %v3851 = vadd.f32 %v1609, %v3850
        %v3852 = vpop.f32.mrb[0].mxu0
        %v3853 = vadd.f32 %v1605, %v3852
        %v3854 = vpop.f32.mrb[0].mxu0
        %v3855 = vadd.f32 %v1609, %v3854
        %3856 = vmatprep.mubr.bf16.mxu0 0
        %3857 = vmatmul.mubr.bf16.gmra.mrb[0].mxu0 %v1852
        %v3858 = vpop.f32.mrb[0].mxu0
        %v3859 = vadd.f32 %v1605, %v3858
        %v3860 = vpop.f32.mrb[0].mxu0
        %v3861 = vadd.f32 %v1609, %v3860
        %v3862 = vpop.f32.mrb[0].mxu0
        %v3863 = vadd.f32 %v1605, %v3862
        %v3864 = vpop.f32.mrb[0].mxu0
        %v3865 = vadd.f32 %v1609, %v3864
        %3866 = vmatprep.mubr.bf16.mxu0 0
        %3867 = vmatmul.mubr.bf16.gmra.mrb[0].mxu0 %v1855
        %v3868 = vpop.f32.mrb[0].mxu0
        %v3869 = vadd.f32 %v1605, %v3868
        %v3870 = vpop.f32.mrb[0].mxu0
        %v3871 = vadd.f32 %v1609, %v3870
        %v3872 = vpop.f32.mrb[0].mxu0
        %v3873 = vadd.f32 %v1605, %v3872
        %v3874 = vpop.f32.mrb[0].mxu0
        %v3875 = vadd.f32 %v1609, %v3874
        %3876 = vmatprep.mubr.bf16.mxu0 0
        %3877 = vmatmul.mubr.bf16.gmra.mrb[0].mxu0 %v1858
        %v3878 = vpop.f32.mrb[0].mxu0
        %v3879 = vadd.f32 %v1605, %v3878
        %v3880 = vpop.f32.mrb[0].mxu0
        %v3881 = vadd.f32 %v1609, %v3880
        %v3882 = vpop.f32.mrb[0].mxu0
        %v3883 = vadd.f32 %v1605, %v3882
        %v3884 = vpop.f32.mrb[0].mxu0
        %v3885 = vadd.f32 %v1609, %v3884
        %3886 = vmatprep.mubr.bf16.mxu0 0
        %3887 = vmatmul.mubr.bf16.gmra.mrb[0].mxu0 %v1861
        %v3888 = vpop.f32.mrb[0].mxu0
        %v3889 = vadd.f32 %v1605, %v3888
        %v3890 = vpop.f32.mrb[0].mxu0
        %v3891 = vadd.f32 %v1609, %v3890
        %v3892 = vpop.f32.mrb[0].mxu0
        %v3893 = vadd.f32 %v1605, %v3892
        %v3894 = vpop.f32.mrb[0].mxu0
        %v3895 = vadd.f32 %v1609, %v3894
        %3896 = vmatprep.mubr.bf16.mxu0 0
        %3897 = vmatmul.mubr.bf16.gmra.mrb[0].mxu0 %v1864
        %v3898 = vpop.f32.mrb[0].mxu0
        %v3899 = vadd.f32 %v1605, %v3898
        %v3900 = vpop.f32.mrb[0].mxu0
        %v3901 = vadd.f32 %v1609, %v3900
        %v3902 = vpop.f32.mrb[0].mxu0
        %v3903 = vadd.f32 %v1605, %v3902
        %v3904 = vpop.f32.mrb[0].mxu0
        %v3905 = vadd.f32 %v1609, %v3904
        %3906 = vmatprep.mubr.bf16.mxu0 0
        %3907 = vmatmul.mubr.bf16.gmra.mrb[0].mxu0 %v1867
        %v3908 = vpop.f32.mrb[0].mxu0
        %v3909 = vadd.f32 %v1605, %v3908
        %v3910 = vpop.f32.mrb[0].mxu0
        %v3911 = vadd.f32 %v1609, %v3910
        %v3912 = vpop.f32.mrb[0].mxu0
        %v3913 = vadd.f32 %v1605, %v3912
        %v3914 = vpop.f32.mrb[0].mxu0
        %v3915 = vadd.f32 %v1609, %v3914
        %3916 = vmatprep.mubr.bf16.mxu0 0
        %3917 = vmatmul.mubr.bf16.gmra.mrb[0].mxu0 %v1870
        %v3918 = vpop.f32.mrb[0].mxu0
        %v3919 = vadd.f32 %v1605, %v3918
        %v3920 = vpop.f32.mrb[0].mxu0
        %v3921 = vadd.f32 %v1609, %v3920
        %v3922 = vpop.f32.mrb[0].mxu0
        %v3923 = vadd.f32 %v1605, %v3922
        %v3924 = vpop.f32.mrb[0].mxu0
        %v3925 = vadd.f32 %v1609, %v3924
        %3926 = vmatprep.mubr.bf16.mxu0 0
        %3927 = vmatmul.mubr.bf16.gmra.mrb[0].mxu0 %v1873
        %v3928 = vpop.f32.mrb[0].mxu0
        %v3929 = vadd.f32 %v1605, %v3928
        %v3930 = vpop.f32.mrb[0].mxu0
        %v3931 = vadd.f32 %v1609, %v3930
        %v3932 = vpop.f32.mrb[0].mxu0
        %v3933 = vadd.f32 %v1605, %v3932
        %v3934 = vpop.f32.mrb[0].mxu0
        %v3935 = vadd.f32 %v1609, %v3934
        %3936 = vmatprep.mubr.bf16.mxu0 0
        %3937 = vmatmul.mubr.bf16.gmra.mrb[0].mxu0 %v1876
        %v3938 = vpop.f32.mrb[0].mxu0
        %v3939 = vadd.f32 %v1605, %v3938
        %v3940 = vpop.f32.mrb[0].mxu0
        %v3941 = vadd.f32 %v1609, %v3940
        %v3942 = vpop.f32.mrb[0].mxu0
        %v3943 = vadd.f32 %v1605, %v3942
        %v3944 = vpop.f32.mrb[0].mxu0
        %v3945 = vadd.f32 %v1609, %v3944
        %3946 = vmatprep.mubr.bf16.mxu0 0
        %3947 = vmatmul.mubr.bf16.gmra.mrb[0].mxu0 %v1879
        %v3948 = vpop.f32.mrb[0].mxu0
        %v3949 = vadd.f32 %v1605, %v3948
        %v3950 = vpop.f32.mrb[0].mxu0
        %v3951 = vadd.f32 %v1609, %v3950
        %v3952 = vpop.f32.mrb[0].mxu0
        %v3953 = vadd.f32 %v1605, %v3952
        %v3954 = vpop.f32.mrb[0].mxu0
        %v3955 = vadd.f32 %v1609, %v3954
        %3956 = vmatprep.mubr.bf16.mxu0 0
        %3957 = vmatmul.mubr.bf16.gmra.mrb[0].mxu0 %v1882
        %v3958 = vpop.f32.mrb[0].mxu0
        %v3959 = vadd.f32 %v1605, %v3958
        %v3960 = vpop.f32.mrb[0].mxu0
        %v3961 = vadd.f32 %v1609, %v3960
        %v3962 = vpop.f32.mrb[0].mxu0
        %v3963 = vadd.f32 %v1605, %v3962
        %v3964 = vpop.f32.mrb[0].mxu0
        %v3965 = vadd.f32 %v1609, %v3964
        %3966 = vmatprep.mubr.bf16.mxu0 0
        %3967 = vmatmul.mubr.bf16.gmra.mrb[0].mxu0 %v1885
        %v3968 = vpop.f32.mrb[0].mxu0
        %v3969 = vadd.f32 %v1605, %v3968
        %v3970 = vpop.f32.mrb[0].mxu0
        %v3971 = vadd.f32 %v1609, %v3970
        %v3972 = vpop.f32.mrb[0].mxu0
        %v3973 = vadd.f32 %v1605, %v3972
        %v3974 = vpop.f32.mrb[0].mxu0
        %v3975 = vadd.f32 %v1609, %v3974
        %3976 = vmatprep.mubr.bf16.mxu0 0
        %3977 = vmatmul.mubr.bf16.gmra.mrb[0].mxu0 %v1888
        %v3978 = vpop.f32.mrb[0].mxu0
        %v3979 = vadd.f32 %v1605, %v3978
        %v3980 = vpop.f32.mrb[0].mxu0
        %v3981 = vadd.f32 %v1609, %v3980
        %v3982 = vpop.f32.mrb[0].mxu0
        %v3983 = vadd.f32 %v1605, %v3982
        %v3984 = vpop.f32.mrb[0].mxu0
        %v3985 = vadd.f32 %v1609, %v3984
        %3986 = vmatprep.mubr.bf16.mxu0 0
        %3987 = vmatmul.mubr.bf16.gmra.mrb[0].mxu0 %v1891
        %v3988 = vpop.f32.mrb[0].mxu0
        %v3989 = vadd.f32 %v1605, %v3988
        %v3990 = vpop.f32.mrb[0].mxu0
        %v3991 = vadd.f32 %v1609, %v3990
        %v3992 = vpop.f32.mrb[0].mxu0
        %v3993 = vadd.f32 %v1605, %v3992
        %v3994 = vpop.f32.mrb[0].mxu0
        %v3995 = vadd.f32 %v1609, %v3994
        %3996 = vmatprep.mubr.bf16.mxu0 0
        %3997 = vmatmul.mubr.bf16.gmra.mrb[0].mxu0 %v1894
        %v3998 = vpop.f32.mrb[0].mxu0
        %v3999 = vadd.f32 %v1605, %v3998
        %v4000 = vpop.f32.mrb[0].mxu0
        %v4001 = vadd.f32 %v1609, %v4000
        %v4002 = vpop.f32.mrb[0].mxu0
        %v4003 = vadd.f32 %v1605, %v4002
        %v4004 = vpop.f32.mrb[0].mxu0
        %v4005 = vadd.f32 %v1609, %v4004
        %4006 = vmatprep.mubr.bf16.mxu0 0
        %4007 = vmatmul.mubr.bf16.gmra.mrb[0].mxu0 %v1897
        %v4008 = vpop.f32.mrb[0].mxu0
        %v4009 = vadd.f32 %v1605, %v4008
        %v4010 = vpop.f32.mrb[0].mxu0
        %v4011 = vadd.f32 %v1609, %v4010
        %v4012 = vpop.f32.mrb[0].mxu0
        %v4013 = vadd.f32 %v1605, %v4012
        %v4014 = vpop.f32.mrb[0].mxu0
        %v4015 = vadd.f32 %v1609, %v4014
        %4016 = vdwg.mxu0
        %4017 = vmatprep.subr.bf16.mxu0 %v1751
        %4018 = vmatpush1.bf16.msra.mxu0 %v1750
        %4019 = vmatprep.subr.bf16.mxu0 %v1767
        %4020 = vmatpush1.bf16.msra.mxu0 %v1766
        %4021 = vmatprep.subr.bf16.mxu0 0
        %4022 = vmatpush1.bf16.msra.mxu0 0
        %4023 = vmatprep.subr.bf16.mxu0 0
        %4024 = vmatpush1.bf16.msra.mxu0 0
        %4025 = vmatprep.subr.bf16.mxu0 0
        %4026 = vmatpush1.bf16.msra.mxu0 0
        %4027 = vmatprep.subr.bf16.mxu0 0
        %4028 = vmatpush1.bf16.msra.mxu0 0
        %4029 = vmatprep.subr.bf16.mxu0 0
        %4030 = vmatpush1.bf16.msra.mxu0 0
        %4031 = vmatprep.subr.bf16.mxu0 0
        %4032 = vmatpush1.bf16.msra.mxu0 0
        %4033 = vmatprep.subr.bf16.mxu0 0
        %4034 = vmatpush1.bf16.msra.mxu0 0
        %4035 = vmatprep.subr.bf16.mxu0 0
        %4036 = vmatpush1.bf16.msra.mxu0 0
        %4037 = vmatprep.subr.bf16.mxu0 0
        %4038 = vmatpush1.bf16.msra.mxu0 0
        %4039 = vmatprep.subr.bf16.mxu0 0
        %4040 = vmatpush1.bf16.msra.mxu0 0
        %4041 = vmatprep.subr.bf16.mxu0 0
        %4042 = vmatpush1.bf16.msra.mxu0 0
        %4043 = vmatprep.subr.bf16.mxu0 0
        %4044 = vmatpush1.bf16.msra.mxu0 0
        %4045 = vmatprep.subr.bf16.mxu0 0
        %4046 = vmatpush1.bf16.msra.mxu0 0
        %4047 = vmatprep.subr.bf16.mxu0 0
        %4048 = vmatpush1.bf16.msra.mxu0 0
        %4049 = vmatprep.mubr.bf16.mxu0 0
        %4050 = vmatmul.mubr.bf16.gmra.mrb[0].mxu0 %v1804
        %v4051 = vpop.f32.mrb[0].mxu0
        %v4052 = vadd.f32 %v1613, %v4051
        %v4053 = vpop.f32.mrb[0].mxu0
        %v4054 = vadd.f32 %v1617, %v4053
        %v4055 = vpop.f32.mrb[0].mxu0
        %v4056 = vadd.f32 %v1613, %v4055
        %v4057 = vpop.f32.mrb[0].mxu0
        %v4058 = vadd.f32 %v1617, %v4057
        %4059 = vmatprep.mubr.bf16.mxu0 0
        %4060 = vmatmul.mubr.bf16.gmra.mrb[0].mxu0 %v1807
        %v4061 = vpop.f32.mrb[0].mxu0
        %v4062 = vadd.f32 %v1613, %v4061
        %v4063 = vpop.f32.mrb[0].mxu0
        %v4064 = vadd.f32 %v1617, %v4063
        %v4065 = vpop.f32.mrb[0].mxu0
        %v4066 = vadd.f32 %v1613, %v4065
        %v4067 = vpop.f32.mrb[0].mxu0
        %v4068 = vadd.f32 %v1617, %v4067
        %4069 = vmatprep.mubr.bf16.mxu0 0
        %4070 = vmatmul.mubr.bf16.gmra.mrb[0].mxu0 %v1810
        %v4071 = vpop.f32.mrb[0].mxu0
        %v4072 = vadd.f32 %v1613, %v4071
        %v4073 = vpop.f32.mrb[0].mxu0
        %v4074 = vadd.f32 %v1617, %v4073
        %v4075 = vpop.f32.mrb[0].mxu0
        %v4076 = vadd.f32 %v1613, %v4075
        %v4077 = vpop.f32.mrb[0].mxu0
        %v4078 = vadd.f32 %v1617, %v4077
        %4079 = vmatprep.mubr.bf16.mxu0 0
        %4080 = vmatmul.mubr.bf16.gmra.mrb[0].mxu0 %v1813
        %v4081 = vpop.f32.mrb[0].mxu0
        %v4082 = vadd.f32 %v1613, %v4081
        %v4083 = vpop.f32.mrb[0].mxu0
        %v4084 = vadd.f32 %v1617, %v4083
        %v4085 = vpop.f32.mrb[0].mxu0
        %v4086 = vadd.f32 %v1613, %v4085
        %v4087 = vpop.f32.mrb[0].mxu0
        %v4088 = vadd.f32 %v1617, %v4087
        %4089 = vmatprep.mubr.bf16.mxu0 0
        %4090 = vmatmul.mubr.bf16.gmra.mrb[0].mxu0 %v1816
        %v4091 = vpop.f32.mrb[0].mxu0
        %v4092 = vadd.f32 %v1613, %v4091
        %v4093 = vpop.f32.mrb[0].mxu0
        %v4094 = vadd.f32 %v1617, %v4093
        %v4095 = vpop.f32.mrb[0].mxu0
        %v4096 = vadd.f32 %v1613, %v4095
        %v4097 = vpop.f32.mrb[0].mxu0
        %v4098 = vadd.f32 %v1617, %v4097
        %4099 = vmatprep.mubr.bf16.mxu0 0
        %4100 = vmatmul.mubr.bf16.gmra.mrb[0].mxu0 %v1819
        %v4101 = vpop.f32.mrb[0].mxu0
        %v4102 = vadd.f32 %v1613, %v4101
        %v4103 = vpop.f32.mrb[0].mxu0
        %v4104 = vadd.f32 %v1617, %v4103
        %v4105 = vpop.f32.mrb[0].mxu0
        %v4106 = vadd.f32 %v1613, %v4105
        %v4107 = vpop.f32.mrb[0].mxu0
        %v4108 = vadd.f32 %v1617, %v4107
        %4109 = vmatprep.mubr.bf16.mxu0 0
        %4110 = vmatmul.mubr.bf16.gmra.mrb[0].mxu0 %v1822
        %v4111 = vpop.f32.mrb[0].mxu0
        %v4112 = vadd.f32 %v1613, %v4111
        %v4113 = vpop.f32.mrb[0].mxu0
        %v4114 = vadd.f32 %v1617, %v4113
        %v4115 = vpop.f32.mrb[0].mxu0
        %v4116 = vadd.f32 %v1613, %v4115
        %v4117 = vpop.f32.mrb[0].mxu0
        %v4118 = vadd.f32 %v1617, %v4117
        %4119 = vmatprep.mubr.bf16.mxu0 0
        %4120 = vmatmul.mubr.bf16.gmra.mrb[0].mxu0 %v1825
        %v4121 = vpop.f32.mrb[0].mxu0
        %v4122 = vadd.f32 %v1613, %v4121
        %v4123 = vpop.f32.mrb[0].mxu0
        %v4124 = vadd.f32 %v1617, %v4123
        %v4125 = vpop.f32.mrb[0].mxu0
        %v4126 = vadd.f32 %v1613, %v4125
        %v4127 = vpop.f32.mrb[0].mxu0
        %v4128 = vadd.f32 %v1617, %v4127
        %4129 = vmatprep.mubr.bf16.mxu0 0
        %4130 = vmatmul.mubr.bf16.gmra.mrb[0].mxu0 %v1828
        %v4131 = vpop.f32.mrb[0].mxu0
        %v4132 = vadd.f32 %v1613, %v4131
        %v4133 = vpop.f32.mrb[0].mxu0
        %v4134 = vadd.f32 %v1617, %v4133
        %v4135 = vpop.f32.mrb[0].mxu0
        %v4136 = vadd.f32 %v1613, %v4135
        %v4137 = vpop.f32.mrb[0].mxu0
        %v4138 = vadd.f32 %v1617, %v4137
        %4139 = vmatprep.mubr.bf16.mxu0 0
        %4140 = vmatmul.mubr.bf16.gmra.mrb[0].mxu0 %v1831
        %v4141 = vpop.f32.mrb[0].mxu0
        %v4142 = vadd.f32 %v1613, %v4141
        %v4143 = vpop.f32.mrb[0].mxu0
        %v4144 = vadd.f32 %v1617, %v4143
        %v4145 = vpop.f32.mrb[0].mxu0
        %v4146 = vadd.f32 %v1613, %v4145
        %v4147 = vpop.f32.mrb[0].mxu0
        %v4148 = vadd.f32 %v1617, %v4147
        %4149 = vmatprep.mubr.bf16.mxu0 0
        %4150 = vmatmul.mubr.bf16.gmra.mrb[0].mxu0 %v1834
        %v4151 = vpop.f32.mrb[0].mxu0
        %v4152 = vadd.f32 %v1613, %v4151
        %v4153 = vpop.f32.mrb[0].mxu0
        %v4154 = vadd.f32 %v1617, %v4153
        %v4155 = vpop.f32.mrb[0].mxu0
        %v4156 = vadd.f32 %v1613, %v4155
        %v4157 = vpop.f32.mrb[0].mxu0
        %v4158 = vadd.f32 %v1617, %v4157
        %4159 = vmatprep.mubr.bf16.mxu0 0
        %4160 = vmatmul.mubr.bf16.gmra.mrb[0].mxu0 %v1837
        %v4161 = vpop.f32.mrb[0].mxu0
        %v4162 = vadd.f32 %v1613, %v4161
        %v4163 = vpop.f32.mrb[0].mxu0
        %v4164 = vadd.f32 %v1617, %v4163
        %v4165 = vpop.f32.mrb[0].mxu0
        %v4166 = vadd.f32 %v1613, %v4165
        %v4167 = vpop.f32.mrb[0].mxu0
        %v4168 = vadd.f32 %v1617, %v4167
        %4169 = vmatprep.mubr.bf16.mxu0 0
        %4170 = vmatmul.mubr.bf16.gmra.mrb[0].mxu0 %v1840
        %v4171 = vpop.f32.mrb[0].mxu0
        %v4172 = vadd.f32 %v1613, %v4171
        %v4173 = vpop.f32.mrb[0].mxu0
        %v4174 = vadd.f32 %v1617, %v4173
        %v4175 = vpop.f32.mrb[0].mxu0
        %v4176 = vadd.f32 %v1613, %v4175
        %v4177 = vpop.f32.mrb[0].mxu0
        %v4178 = vadd.f32 %v1617, %v4177
        %4179 = vmatprep.mubr.bf16.mxu0 0
        %4180 = vmatmul.mubr.bf16.gmra.mrb[0].mxu0 %v1843
        %v4181 = vpop.f32.mrb[0].mxu0
        %v4182 = vadd.f32 %v1613, %v4181
        %v4183 = vpop.f32.mrb[0].mxu0
        %v4184 = vadd.f32 %v1617, %v4183
        %v4185 = vpop.f32.mrb[0].mxu0
        %v4186 = vadd.f32 %v1613, %v4185
        %v4187 = vpop.f32.mrb[0].mxu0
        %v4188 = vadd.f32 %v1617, %v4187
        %4189 = vmatprep.mubr.bf16.mxu0 0
        %4190 = vmatmul.mubr.bf16.gmra.mrb[0].mxu0 %v1846
        %v4191 = vpop.f32.mrb[0].mxu0
        %v4192 = vadd.f32 %v1613, %v4191
        %v4193 = vpop.f32.mrb[0].mxu0
        %v4194 = vadd.f32 %v1617, %v4193
        %v4195 = vpop.f32.mrb[0].mxu0
        %v4196 = vadd.f32 %v1613, %v4195
        %v4197 = vpop.f32.mrb[0].mxu0
        %v4198 = vadd.f32 %v1617, %v4197
        %4199 = vmatprep.mubr.bf16.mxu0 0
        %4200 = vmatmul.mubr.bf16.gmra.mrb[0].mxu0 %v1849
        %v4201 = vpop.f32.mrb[0].mxu0
        %v4202 = vadd.f32 %v1613, %v4201
        %v4203 = vpop.f32.mrb[0].mxu0
        %v4204 = vadd.f32 %v1617, %v4203
        %v4205 = vpop.f32.mrb[0].mxu0
        %v4206 = vadd.f32 %v1613, %v4205
        %v4207 = vpop.f32.mrb[0].mxu0
        %v4208 = vadd.f32 %v1617, %v4207
        %4209 = vmatprep.mubr.bf16.mxu0 0
        %4210 = vmatmul.mubr.bf16.gmra.mrb[0].mxu0 %v1852
        %v4211 = vpop.f32.mrb[0].mxu0
        %v4212 = vadd.f32 %v1613, %v4211
        %v4213 = vpop.f32.mrb[0].mxu0
        %v4214 = vadd.f32 %v1617, %v4213
        %v4215 = vpop.f32.mrb[0].mxu0
        %v4216 = vadd.f32 %v1613, %v4215
        %v4217 = vpop.f32.mrb[0].mxu0
        %v4218 = vadd.f32 %v1617, %v4217
        %4219 = vmatprep.mubr.bf16.mxu0 0
        %4220 = vmatmul.mubr.bf16.gmra.mrb[0].mxu0 %v1855
        %v4221 = vpop.f32.mrb[0].mxu0
        %v4222 = vadd.f32 %v1613, %v4221
        %v4223 = vpop.f32.mrb[0].mxu0
        %v4224 = vadd.f32 %v1617, %v4223
        %v4225 = vpop.f32.mrb[0].mxu0
        %v4226 = vadd.f32 %v1613, %v4225
        %v4227 = vpop.f32.mrb[0].mxu0
        %v4228 = vadd.f32 %v1617, %v4227
        %4229 = vmatprep.mubr.bf16.mxu0 0
        %4230 = vmatmul.mubr.bf16.gmra.mrb[0].mxu0 %v1858
        %v4231 = vpop.f32.mrb[0].mxu0
        %v4232 = vadd.f32 %v1613, %v4231
        %v4233 = vpop.f32.mrb[0].mxu0
        %v4234 = vadd.f32 %v1617, %v4233
        %v4235 = vpop.f32.mrb[0].mxu0
        %v4236 = vadd.f32 %v1613, %v4235
        %v4237 = vpop.f32.mrb[0].mxu0
        %v4238 = vadd.f32 %v1617, %v4237
        %4239 = vmatprep.mubr.bf16.mxu0 0
        %4240 = vmatmul.mubr.bf16.gmra.mrb[0].mxu0 %v1861
        %v4241 = vpop.f32.mrb[0].mxu0
        %v4242 = vadd.f32 %v1613, %v4241
        %v4243 = vpop.f32.mrb[0].mxu0
        %v4244 = vadd.f32 %v1617, %v4243
        %v4245 = vpop.f32.mrb[0].mxu0
        %v4246 = vadd.f32 %v1613, %v4245
        %v4247 = vpop.f32.mrb[0].mxu0
        %v4248 = vadd.f32 %v1617, %v4247
        %4249 = vmatprep.mubr.bf16.mxu0 0
        %4250 = vmatmul.mubr.bf16.gmra.mrb[0].mxu0 %v1864
        %v4251 = vpop.f32.mrb[0].mxu0
        %v4252 = vadd.f32 %v1613, %v4251
        %v4253 = vpop.f32.mrb[0].mxu0
        %v4254 = vadd.f32 %v1617, %v4253
        %v4255 = vpop.f32.mrb[0].mxu0
        %v4256 = vadd.f32 %v1613, %v4255
        %v4257 = vpop.f32.mrb[0].mxu0
        %v4258 = vadd.f32 %v1617, %v4257
        %4259 = vmatprep.mubr.bf16.mxu0 0
        %4260 = vmatmul.mubr.bf16.gmra.mrb[0].mxu0 %v1867
        %v4261 = vpop.f32.mrb[0].mxu0
        %v4262 = vadd.f32 %v1613, %v4261
        %v4263 = vpop.f32.mrb[0].mxu0
        %v4264 = vadd.f32 %v1617, %v4263
        %v4265 = vpop.f32.mrb[0].mxu0
        %v4266 = vadd.f32 %v1613, %v4265
        %v4267 = vpop.f32.mrb[0].mxu0
        %v4268 = vadd.f32 %v1617, %v4267
        %4269 = vmatprep.mubr.bf16.mxu0 0
        %4270 = vmatmul.mubr.bf16.gmra.mrb[0].mxu0 %v1870
        %v4271 = vpop.f32.mrb[0].mxu0
        %v4272 = vadd.f32 %v1613, %v4271
        %v4273 = vpop.f32.mrb[0].mxu0
        %v4274 = vadd.f32 %v1617, %v4273
        %v4275 = vpop.f32.mrb[0].mxu0
        %v4276 = vadd.f32 %v1613, %v4275
        %v4277 = vpop.f32.mrb[0].mxu0
        %v4278 = vadd.f32 %v1617, %v4277
        %4279 = vmatprep.mubr.bf16.mxu0 0
        %4280 = vmatmul.mubr.bf16.gmra.mrb[0].mxu0 %v1873
        %v4281 = vpop.f32.mrb[0].mxu0
        %v4282 = vadd.f32 %v1613, %v4281
        %v4283 = vpop.f32.mrb[0].mxu0
        %v4284 = vadd.f32 %v1617, %v4283
        %v4285 = vpop.f32.mrb[0].mxu0
        %v4286 = vadd.f32 %v1613, %v4285
        %v4287 = vpop.f32.mrb[0].mxu0
        %v4288 = vadd.f32 %v1617, %v4287
        %4289 = vmatprep.mubr.bf16.mxu0 0
        %4290 = vmatmul.mubr.bf16.gmra.mrb[0].mxu0 %v1876
        %v4291 = vpop.f32.mrb[0].mxu0
        %v4292 = vadd.f32 %v1613, %v4291
        %v4293 = vpop.f32.mrb[0].mxu0
        %v4294 = vadd.f32 %v1617, %v4293
        %v4295 = vpop.f32.mrb[0].mxu0
        %v4296 = vadd.f32 %v1613, %v4295
        %v4297 = vpop.f32.mrb[0].mxu0
        %v4298 = vadd.f32 %v1617, %v4297
        %4299 = vmatprep.mubr.bf16.mxu0 0
        %4300 = vmatmul.mubr.bf16.gmra.mrb[0].mxu0 %v1879
        %v4301 = vpop.f32.mrb[0].mxu0
        %v4302 = vadd.f32 %v1613, %v4301
        %v4303 = vpop.f32.mrb[0].mxu0
        %v4304 = vadd.f32 %v1617, %v4303
        %v4305 = vpop.f32.mrb[0].mxu0
        %v4306 = vadd.f32 %v1613, %v4305
        %v4307 = vpop.f32.mrb[0].mxu0
        %v4308 = vadd.f32 %v1617, %v4307
        %4309 = vmatprep.mubr.bf16.mxu0 0
        %4310 = vmatmul.mubr.bf16.gmra.mrb[0].mxu0 %v1882
        %v4311 = vpop.f32.mrb[0].mxu0
        %v4312 = vadd.f32 %v1613, %v4311
        %v4313 = vpop.f32.mrb[0].mxu0
        %v4314 = vadd.f32 %v1617, %v4313
        %v4315 = vpop.f32.mrb[0].mxu0
        %v4316 = vadd.f32 %v1613, %v4315
        %v4317 = vpop.f32.mrb[0].mxu0
        %v4318 = vadd.f32 %v1617, %v4317
        %4319 = vmatprep.mubr.bf16.mxu0 0
        %4320 = vmatmul.mubr.bf16.gmra.mrb[0].mxu0 %v1885
        %v4321 = vpop.f32.mrb[0].mxu0
        %v4322 = vadd.f32 %v1613, %v4321
        %v4323 = vpop.f32.mrb[0].mxu0
        %v4324 = vadd.f32 %v1617, %v4323
        %v4325 = vpop.f32.mrb[0].mxu0
        %v4326 = vadd.f32 %v1613, %v4325
        %v4327 = vpop.f32.mrb[0].mxu0
        %v4328 = vadd.f32 %v1617, %v4327
        %4329 = vmatprep.mubr.bf16.mxu0 0
        %4330 = vmatmul.mubr.bf16.gmra.mrb[0].mxu0 %v1888
        %v4331 = vpop.f32.mrb[0].mxu0
        %v4332 = vadd.f32 %v1613, %v4331
        %v4333 = vpop.f32.mrb[0].mxu0
        %v4334 = vadd.f32 %v1617, %v4333
        %v4335 = vpop.f32.mrb[0].mxu0
        %v4336 = vadd.f32 %v1613, %v4335
        %v4337 = vpop.f32.mrb[0].mxu0
        %v4338 = vadd.f32 %v1617, %v4337
        %4339 = vmatprep.mubr.bf16.mxu0 0
        %4340 = vmatmul.mubr.bf16.gmra.mrb[0].mxu0 %v1891
        %v4341 = vpop.f32.mrb[0].mxu0
        %v4342 = vadd.f32 %v1613, %v4341
        %v4343 = vpop.f32.mrb[0].mxu0
        %v4344 = vadd.f32 %v1617, %v4343
        %v4345 = vpop.f32.mrb[0].mxu0
        %v4346 = vadd.f32 %v1613, %v4345
        %v4347 = vpop.f32.mrb[0].mxu0
        %v4348 = vadd.f32 %v1617, %v4347
        %4349 = vmatprep.mubr.bf16.mxu0 0
        %4350 = vmatmul.mubr.bf16.gmra.mrb[0].mxu0 %v1894
        %v4351 = vpop.f32.mrb[0].mxu0
        %v4352 = vadd.f32 %v1613, %v4351
        %v4353 = vpop.f32.mrb[0].mxu0
        %v4354 = vadd.f32 %v1617, %v4353
        %v4355 = vpop.f32.mrb[0].mxu0
        %v4356 = vadd.f32 %v1613, %v4355
        %v4357 = vpop.f32.mrb[0].mxu0
        %v4358 = vadd.f32 %v1617, %v4357
        %4359 = vmatprep.mubr.bf16.mxu0 0
        %4360 = vmatmul.mubr.bf16.gmra.mrb[0].mxu0 %v1897
        %v4361 = vpop.f32.mrb[0].mxu0
        %v4362 = vadd.f32 %v1613, %v4361
        %v4363 = vpop.f32.mrb[0].mxu0
        %v4364 = vadd.f32 %v1617, %v4363
        %v4365 = vpop.f32.mrb[0].mxu0
        %v4366 = vadd.f32 %v1613, %v4365
        %v4367 = vpop.f32.mrb[0].mxu0
        %v4368 = vadd.f32 %v1617, %v4367
        %4369 = vdwg.mxu0
        %4370 = vmatprep.subr.bf16.mxu0 %v1753
        %4371 = vmatpush1.bf16.msra.mxu0 %v1752
        %4372 = vmatprep.subr.bf16.mxu0 %v1769
        %4373 = vmatpush1.bf16.msra.mxu0 %v1768
        %4374 = vmatprep.subr.bf16.mxu0 0
        %4375 = vmatpush1.bf16.msra.mxu0 0
        %4376 = vmatprep.subr.bf16.mxu0 0
        %4377 = vmatpush1.bf16.msra.mxu0 0
        %4378 = vmatprep.subr.bf16.mxu0 0
        %4379 = vmatpush1.bf16.msra.mxu0 0
        %4380 = vmatprep.subr.bf16.mxu0 0
        %4381 = vmatpush1.bf16.msra.mxu0 0
        %4382 = vmatprep.subr.bf16.mxu0 0
        %4383 = vmatpush1.bf16.msra.mxu0 0
        %4384 = vmatprep.subr.bf16.mxu0 0
        %4385 = vmatpush1.bf16.msra.mxu0 0
        %4386 = vmatprep.subr.bf16.mxu0 0
        %4387 = vmatpush1.bf16.msra.mxu0 0
        %4388 = vmatprep.subr.bf16.mxu0 0
        %4389 = vmatpush1.bf16.msra.mxu0 0
        %4390 = vmatprep.subr.bf16.mxu0 0
        %4391 = vmatpush1.bf16.msra.mxu0 0
        %4392 = vmatprep.subr.bf16.mxu0 0
        %4393 = vmatpush1.bf16.msra.mxu0 0
        %4394 = vmatprep.subr.bf16.mxu0 0
        %4395 = vmatpush1.bf16.msra.mxu0 0
        %4396 = vmatprep.subr.bf16.mxu0 0
        %4397 = vmatpush1.bf16.msra.mxu0 0
        %4398 = vmatprep.subr.bf16.mxu0 0
        %4399 = vmatpush1.bf16.msra.mxu0 0
        %4400 = vmatprep.subr.bf16.mxu0 0
        %4401 = vmatpush1.bf16.msra.mxu0 0
        %4402 = vmatprep.mubr.bf16.mxu0 0
        %4403 = vmatmul.mubr.bf16.gmra.mrb[0].mxu0 %v1804
        %v4404 = vpop.f32.mrb[0].mxu0
        %v4405 = vadd.f32 %v1621, %v4404
        %v4406 = vpop.f32.mrb[0].mxu0
        %v4407 = vadd.f32 %v1625, %v4406
        %v4408 = vpop.f32.mrb[0].mxu0
        %v4409 = vadd.f32 %v1621, %v4408
        %v4410 = vpop.f32.mrb[0].mxu0
        %v4411 = vadd.f32 %v1625, %v4410
        %4412 = vmatprep.mubr.bf16.mxu0 0
        %4413 = vmatmul.mubr.bf16.gmra.mrb[0].mxu0 %v1807
        %v4414 = vpop.f32.mrb[0].mxu0
        %v4415 = vadd.f32 %v1621, %v4414
        %v4416 = vpop.f32.mrb[0].mxu0
        %v4417 = vadd.f32 %v1625, %v4416
        %v4418 = vpop.f32.mrb[0].mxu0
        %v4419 = vadd.f32 %v1621, %v4418
        %v4420 = vpop.f32.mrb[0].mxu0
        %v4421 = vadd.f32 %v1625, %v4420
        %4422 = vmatprep.mubr.bf16.mxu0 0
        %4423 = vmatmul.mubr.bf16.gmra.mrb[0].mxu0 %v1810
        %v4424 = vpop.f32.mrb[0].mxu0
        %v4425 = vadd.f32 %v1621, %v4424
        %v4426 = vpop.f32.mrb[0].mxu0
        %v4427 = vadd.f32 %v1625, %v4426
        %v4428 = vpop.f32.mrb[0].mxu0
        %v4429 = vadd.f32 %v1621, %v4428
        %v4430 = vpop.f32.mrb[0].mxu0
        %v4431 = vadd.f32 %v1625, %v4430
        %4432 = vmatprep.mubr.bf16.mxu0 0
        %4433 = vmatmul.mubr.bf16.gmra.mrb[0].mxu0 %v1813
        %v4434 = vpop.f32.mrb[0].mxu0
        %v4435 = vadd.f32 %v1621, %v4434
        %v4436 = vpop.f32.mrb[0].mxu0
        %v4437 = vadd.f32 %v1625, %v4436
        %v4438 = vpop.f32.mrb[0].mxu0
        %v4439 = vadd.f32 %v1621, %v4438
        %v4440 = vpop.f32.mrb[0].mxu0
        %v4441 = vadd.f32 %v1625, %v4440
        %4442 = vmatprep.mubr.bf16.mxu0 0
        %4443 = vmatmul.mubr.bf16.gmra.mrb[0].mxu0 %v1816
        %v4444 = vpop.f32.mrb[0].mxu0
        %v4445 = vadd.f32 %v1621, %v4444
        %v4446 = vpop.f32.mrb[0].mxu0
        %v4447 = vadd.f32 %v1625, %v4446
        %v4448 = vpop.f32.mrb[0].mxu0
        %v4449 = vadd.f32 %v1621, %v4448
        %v4450 = vpop.f32.mrb[0].mxu0
        %v4451 = vadd.f32 %v1625, %v4450
        %4452 = vmatprep.mubr.bf16.mxu0 0
        %4453 = vmatmul.mubr.bf16.gmra.mrb[0].mxu0 %v1819
        %v4454 = vpop.f32.mrb[0].mxu0
        %v4455 = vadd.f32 %v1621, %v4454
        %v4456 = vpop.f32.mrb[0].mxu0
        %v4457 = vadd.f32 %v1625, %v4456
        %v4458 = vpop.f32.mrb[0].mxu0
        %v4459 = vadd.f32 %v1621, %v4458
        %v4460 = vpop.f32.mrb[0].mxu0
        %v4461 = vadd.f32 %v1625, %v4460
        %4462 = vmatprep.mubr.bf16.mxu0 0
        %4463 = vmatmul.mubr.bf16.gmra.mrb[0].mxu0 %v1822
        %v4464 = vpop.f32.mrb[0].mxu0
        %v4465 = vadd.f32 %v1621, %v4464
        %v4466 = vpop.f32.mrb[0].mxu0
        %v4467 = vadd.f32 %v1625, %v4466
        %v4468 = vpop.f32.mrb[0].mxu0
        %v4469 = vadd.f32 %v1621, %v4468
        %v4470 = vpop.f32.mrb[0].mxu0
        %v4471 = vadd.f32 %v1625, %v4470
        %4472 = vmatprep.mubr.bf16.mxu0 0
        %4473 = vmatmul.mubr.bf16.gmra.mrb[0].mxu0 %v1825
        %v4474 = vpop.f32.mrb[0].mxu0
        %v4475 = vadd.f32 %v1621, %v4474
        %v4476 = vpop.f32.mrb[0].mxu0
        %v4477 = vadd.f32 %v1625, %v4476
        %v4478 = vpop.f32.mrb[0].mxu0
        %v4479 = vadd.f32 %v1621, %v4478
        %v4480 = vpop.f32.mrb[0].mxu0
        %v4481 = vadd.f32 %v1625, %v4480
        %4482 = vmatprep.mubr.bf16.mxu0 0
        %4483 = vmatmul.mubr.bf16.gmra.mrb[0].mxu0 %v1828
        %v4484 = vpop.f32.mrb[0].mxu0
        %v4485 = vadd.f32 %v1621, %v4484
        %v4486 = vpop.f32.mrb[0].mxu0
        %v4487 = vadd.f32 %v1625, %v4486
        %v4488 = vpop.f32.mrb[0].mxu0
        %v4489 = vadd.f32 %v1621, %v4488
        %v4490 = vpop.f32.mrb[0].mxu0
        %v4491 = vadd.f32 %v1625, %v4490
        %4492 = vmatprep.mubr.bf16.mxu0 0
        %4493 = vmatmul.mubr.bf16.gmra.mrb[0].mxu0 %v1831
        %v4494 = vpop.f32.mrb[0].mxu0
        %v4495 = vadd.f32 %v1621, %v4494
        %v4496 = vpop.f32.mrb[0].mxu0
        %v4497 = vadd.f32 %v1625, %v4496
        %v4498 = vpop.f32.mrb[0].mxu0
        %v4499 = vadd.f32 %v1621, %v4498
        %v4500 = vpop.f32.mrb[0].mxu0
        %v4501 = vadd.f32 %v1625, %v4500
        %4502 = vmatprep.mubr.bf16.mxu0 0
        %4503 = vmatmul.mubr.bf16.gmra.mrb[0].mxu0 %v1834
        %v4504 = vpop.f32.mrb[0].mxu0
        %v4505 = vadd.f32 %v1621, %v4504
        %v4506 = vpop.f32.mrb[0].mxu0
        %v4507 = vadd.f32 %v1625, %v4506
        %v4508 = vpop.f32.mrb[0].mxu0
        %v4509 = vadd.f32 %v1621, %v4508
        %v4510 = vpop.f32.mrb[0].mxu0
        %v4511 = vadd.f32 %v1625, %v4510
        %4512 = vmatprep.mubr.bf16.mxu0 0
        %4513 = vmatmul.mubr.bf16.gmra.mrb[0].mxu0 %v1837
        %v4514 = vpop.f32.mrb[0].mxu0
        %v4515 = vadd.f32 %v1621, %v4514
        %v4516 = vpop.f32.mrb[0].mxu0
        %v4517 = vadd.f32 %v1625, %v4516
        %v4518 = vpop.f32.mrb[0].mxu0
        %v4519 = vadd.f32 %v1621, %v4518
        %v4520 = vpop.f32.mrb[0].mxu0
        %v4521 = vadd.f32 %v1625, %v4520
        %4522 = vmatprep.mubr.bf16.mxu0 0
        %4523 = vmatmul.mubr.bf16.gmra.mrb[0].mxu0 %v1840
        %v4524 = vpop.f32.mrb[0].mxu0
        %v4525 = vadd.f32 %v1621, %v4524
        %v4526 = vpop.f32.mrb[0].mxu0
        %v4527 = vadd.f32 %v1625, %v4526
        %v4528 = vpop.f32.mrb[0].mxu0
        %v4529 = vadd.f32 %v1621, %v4528
        %v4530 = vpop.f32.mrb[0].mxu0
        %v4531 = vadd.f32 %v1625, %v4530
        %4532 = vmatprep.mubr.bf16.mxu0 0
        %4533 = vmatmul.mubr.bf16.gmra.mrb[0].mxu0 %v1843
        %v4534 = vpop.f32.mrb[0].mxu0
        %v4535 = vadd.f32 %v1621, %v4534
        %v4536 = vpop.f32.mrb[0].mxu0
        %v4537 = vadd.f32 %v1625, %v4536
        %v4538 = vpop.f32.mrb[0].mxu0
        %v4539 = vadd.f32 %v1621, %v4538
        %v4540 = vpop.f32.mrb[0].mxu0
        %v4541 = vadd.f32 %v1625, %v4540
        %4542 = vmatprep.mubr.bf16.mxu0 0
        %4543 = vmatmul.mubr.bf16.gmra.mrb[0].mxu0 %v1846
        %v4544 = vpop.f32.mrb[0].mxu0
        %v4545 = vadd.f32 %v1621, %v4544
        %v4546 = vpop.f32.mrb[0].mxu0
        %v4547 = vadd.f32 %v1625, %v4546
        %v4548 = vpop.f32.mrb[0].mxu0
        %v4549 = vadd.f32 %v1621, %v4548
        %v4550 = vpop.f32.mrb[0].mxu0
        %v4551 = vadd.f32 %v1625, %v4550
        %4552 = vmatprep.mubr.bf16.mxu0 0
        %4553 = vmatmul.mubr.bf16.gmra.mrb[0].mxu0 %v1849
        %v4554 = vpop.f32.mrb[0].mxu0
        %v4555 = vadd.f32 %v1621, %v4554
        %v4556 = vpop.f32.mrb[0].mxu0
        %v4557 = vadd.f32 %v1625, %v4556
        %v4558 = vpop.f32.mrb[0].mxu0
        %v4559 = vadd.f32 %v1621, %v4558
        %v4560 = vpop.f32.mrb[0].mxu0
        %v4561 = vadd.f32 %v1625, %v4560
        %4562 = vmatprep.mubr.bf16.mxu0 0
        %4563 = vmatmul.mubr.bf16.gmra.mrb[0].mxu0 %v1852
        %v4564 = vpop.f32.mrb[0].mxu0
        %v4565 = vadd.f32 %v1621, %v4564
        %v4566 = vpop.f32.mrb[0].mxu0
        %v4567 = vadd.f32 %v1625, %v4566
        %v4568 = vpop.f32.mrb[0].mxu0
        %v4569 = vadd.f32 %v1621, %v4568
        %v4570 = vpop.f32.mrb[0].mxu0
        %v4571 = vadd.f32 %v1625, %v4570
        %4572 = vmatprep.mubr.bf16.mxu0 0
        %4573 = vmatmul.mubr.bf16.gmra.mrb[0].mxu0 %v1855
        %v4574 = vpop.f32.mrb[0].mxu0
        %v4575 = vadd.f32 %v1621, %v4574
        %v4576 = vpop.f32.mrb[0].mxu0
        %v4577 = vadd.f32 %v1625, %v4576
        %v4578 = vpop.f32.mrb[0].mxu0
        %v4579 = vadd.f32 %v1621, %v4578
        %v4580 = vpop.f32.mrb[0].mxu0
        %v4581 = vadd.f32 %v1625, %v4580
        %4582 = vmatprep.mubr.bf16.mxu0 0
        %4583 = vmatmul.mubr.bf16.gmra.mrb[0].mxu0 %v1858
        %v4584 = vpop.f32.mrb[0].mxu0
        %v4585 = vadd.f32 %v1621, %v4584
        %v4586 = vpop.f32.mrb[0].mxu0
        %v4587 = vadd.f32 %v1625, %v4586
        %v4588 = vpop.f32.mrb[0].mxu0
        %v4589 = vadd.f32 %v1621, %v4588
        %v4590 = vpop.f32.mrb[0].mxu0
        %v4591 = vadd.f32 %v1625, %v4590
        %4592 = vmatprep.mubr.bf16.mxu0 0
        %4593 = vmatmul.mubr.bf16.gmra.mrb[0].mxu0 %v1861
        %v4594 = vpop.f32.mrb[0].mxu0
        %v4595 = vadd.f32 %v1621, %v4594
        %v4596 = vpop.f32.mrb[0].mxu0
        %v4597 = vadd.f32 %v1625, %v4596
        %v4598 = vpop.f32.mrb[0].mxu0
        %v4599 = vadd.f32 %v1621, %v4598
        %v4600 = vpop.f32.mrb[0].mxu0
        %v4601 = vadd.f32 %v1625, %v4600
        %4602 = vmatprep.mubr.bf16.mxu0 0
        %4603 = vmatmul.mubr.bf16.gmra.mrb[0].mxu0 %v1864
        %v4604 = vpop.f32.mrb[0].mxu0
        %v4605 = vadd.f32 %v1621, %v4604
        %v4606 = vpop.f32.mrb[0].mxu0
        %v4607 = vadd.f32 %v1625, %v4606
        %v4608 = vpop.f32.mrb[0].mxu0
        %v4609 = vadd.f32 %v1621, %v4608
        %v4610 = vpop.f32.mrb[0].mxu0
        %v4611 = vadd.f32 %v1625, %v4610
        %4612 = vmatprep.mubr.bf16.mxu0 0
        %4613 = vmatmul.mubr.bf16.gmra.mrb[0].mxu0 %v1867
        %v4614 = vpop.f32.mrb[0].mxu0
        %v4615 = vadd.f32 %v1621, %v4614
        %v4616 = vpop.f32.mrb[0].mxu0
        %v4617 = vadd.f32 %v1625, %v4616
        %v4618 = vpop.f32.mrb[0].mxu0
        %v4619 = vadd.f32 %v1621, %v4618
        %v4620 = vpop.f32.mrb[0].mxu0
        %v4621 = vadd.f32 %v1625, %v4620
        %4622 = vmatprep.mubr.bf16.mxu0 0
        %4623 = vmatmul.mubr.bf16.gmra.mrb[0].mxu0 %v1870
        %v4624 = vpop.f32.mrb[0].mxu0
        %v4625 = vadd.f32 %v1621, %v4624
        %v4626 = vpop.f32.mrb[0].mxu0
        %v4627 = vadd.f32 %v1625, %v4626
        %v4628 = vpop.f32.mrb[0].mxu0
        %v4629 = vadd.f32 %v1621, %v4628
        %v4630 = vpop.f32.mrb[0].mxu0
        %v4631 = vadd.f32 %v1625, %v4630
        %4632 = vmatprep.mubr.bf16.mxu0 0
        %4633 = vmatmul.mubr.bf16.gmra.mrb[0].mxu0 %v1873
        %v4634 = vpop.f32.mrb[0].mxu0
        %v4635 = vadd.f32 %v1621, %v4634
        %v4636 = vpop.f32.mrb[0].mxu0
        %v4637 = vadd.f32 %v1625, %v4636
        %v4638 = vpop.f32.mrb[0].mxu0
        %v4639 = vadd.f32 %v1621, %v4638
        %v4640 = vpop.f32.mrb[0].mxu0
        %v4641 = vadd.f32 %v1625, %v4640
        %4642 = vmatprep.mubr.bf16.mxu0 0
        %4643 = vmatmul.mubr.bf16.gmra.mrb[0].mxu0 %v1876
        %v4644 = vpop.f32.mrb[0].mxu0
        %v4645 = vadd.f32 %v1621, %v4644
        %v4646 = vpop.f32.mrb[0].mxu0
        %v4647 = vadd.f32 %v1625, %v4646
        %v4648 = vpop.f32.mrb[0].mxu0
        %v4649 = vadd.f32 %v1621, %v4648
        %v4650 = vpop.f32.mrb[0].mxu0
        %v4651 = vadd.f32 %v1625, %v4650
        %4652 = vmatprep.mubr.bf16.mxu0 0
        %4653 = vmatmul.mubr.bf16.gmra.mrb[0].mxu0 %v1879
        %v4654 = vpop.f32.mrb[0].mxu0
        %v4655 = vadd.f32 %v1621, %v4654
        %v4656 = vpop.f32.mrb[0].mxu0
        %v4657 = vadd.f32 %v1625, %v4656
        %v4658 = vpop.f32.mrb[0].mxu0
        %v4659 = vadd.f32 %v1621, %v4658
        %v4660 = vpop.f32.mrb[0].mxu0
        %v4661 = vadd.f32 %v1625, %v4660
        %4662 = vmatprep.mubr.bf16.mxu0 0
        %4663 = vmatmul.mubr.bf16.gmra.mrb[0].mxu0 %v1882
        %v4664 = vpop.f32.mrb[0].mxu0
        %v4665 = vadd.f32 %v1621, %v4664
        %v4666 = vpop.f32.mrb[0].mxu0
        %v4667 = vadd.f32 %v1625, %v4666
        %v4668 = vpop.f32.mrb[0].mxu0
        %v4669 = vadd.f32 %v1621, %v4668
        %v4670 = vpop.f32.mrb[0].mxu0
        %v4671 = vadd.f32 %v1625, %v4670
        %4672 = vmatprep.mubr.bf16.mxu0 0
        %4673 = vmatmul.mubr.bf16.gmra.mrb[0].mxu0 %v1885
        %v4674 = vpop.f32.mrb[0].mxu0
        %v4675 = vadd.f32 %v1621, %v4674
        %v4676 = vpop.f32.mrb[0].mxu0
        %v4677 = vadd.f32 %v1625, %v4676
        %v4678 = vpop.f32.mrb[0].mxu0
        %v4679 = vadd.f32 %v1621, %v4678
        %v4680 = vpop.f32.mrb[0].mxu0
        %v4681 = vadd.f32 %v1625, %v4680
        %4682 = vmatprep.mubr.bf16.mxu0 0
        %4683 = vmatmul.mubr.bf16.gmra.mrb[0].mxu0 %v1888
        %v4684 = vpop.f32.mrb[0].mxu0
        %v4685 = vadd.f32 %v1621, %v4684
        %v4686 = vpop.f32.mrb[0].mxu0
        %v4687 = vadd.f32 %v1625, %v4686
        %v4688 = vpop.f32.mrb[0].mxu0
        %v4689 = vadd.f32 %v1621, %v4688
        %v4690 = vpop.f32.mrb[0].mxu0
        %v4691 = vadd.f32 %v1625, %v4690
        %4692 = vmatprep.mubr.bf16.mxu0 0
        %4693 = vmatmul.mubr.bf16.gmra.mrb[0].mxu0 %v1891
        %v4694 = vpop.f32.mrb[0].mxu0
        %v4695 = vadd.f32 %v1621, %v4694
        %v4696 = vpop.f32.mrb[0].mxu0
        %v4697 = vadd.f32 %v1625, %v4696
        %v4698 = vpop.f32.mrb[0].mxu0
        %v4699 = vadd.f32 %v1621, %v4698
        %v4700 = vpop.f32.mrb[0].mxu0
        %v4701 = vadd.f32 %v1625, %v4700
        %4702 = vmatprep.mubr.bf16.mxu0 0
        %4703 = vmatmul.mubr.bf16.gmra.mrb[0].mxu0 %v1894
        %v4704 = vpop.f32.mrb[0].mxu0
        %v4705 = vadd.f32 %v1621, %v4704
        %v4706 = vpop.f32.mrb[0].mxu0
        %v4707 = vadd.f32 %v1625, %v4706
        %v4708 = vpop.f32.mrb[0].mxu0
        %v4709 = vadd.f32 %v1621, %v4708
        %v4710 = vpop.f32.mrb[0].mxu0
        %v4711 = vadd.f32 %v1625, %v4710
        %4712 = vmatprep.mubr.bf16.mxu0 0
        %4713 = vmatmul.mubr.bf16.gmra.mrb[0].mxu0 %v1897
        %v4714 = vpop.f32.mrb[0].mxu0
        %v4715 = vadd.f32 %v1621, %v4714
        %v4716 = vpop.f32.mrb[0].mxu0
        %v4717 = vadd.f32 %v1625, %v4716
        %v4718 = vpop.f32.mrb[0].mxu0
        %v4719 = vadd.f32 %v1621, %v4718
        %v4720 = vpop.f32.mrb[0].mxu0
        %v4721 = vadd.f32 %v1625, %v4720
        %4722 = vdwg.mxu0
        %v4723 = vmax.f32 %v1934, 0.0
        %v4724 = vmax.f32 %v1936, 0.0
        %v4725 = vmax.f32 %v2287, 0.0
        %v4726 = vmax.f32 %v2289, 0.0
        %v4727 = vmax.f32 %v2640, 0.0
        %v4728 = vmax.f32 %v2642, 0.0
        %v4729 = vmax.f32 %v2993, 0.0
        %v4730 = vmax.f32 %v2995, 0.0
        %v4731 = vmax.f32 %v3346, 0.0
        %v4732 = vmax.f32 %v3348, 0.0
        %v4733 = vmax.f32 %v3699, 0.0
        %v4734 = vmax.f32 %v3701, 0.0
        %v4735 = vmax.f32 %v4052, 0.0
        %v4736 = vmax.f32 %v4054, 0.0
        %v4737 = vmax.f32 %v4405, 0.0
        %v4738 = vmax.f32 %v4407, 0.0
        %v4739 = vmax.f32 %v1938, 0.0
        %v4740 = vmax.f32 %v1940, 0.0
        %v4741 = vmax.f32 %v2291, 0.0
        %v4742 = vmax.f32 %v2293, 0.0
        %v4743 = vmax.f32 %v2644, 0.0
        %v4744 = vmax.f32 %v2646, 0.0
        %v4745 = vmax.f32 %v2997, 0.0
        %v4746 = vmax.f32 %v2999, 0.0
        %v4747 = vmax.f32 %v3350, 0.0
        %v4748 = vmax.f32 %v3352, 0.0
        %v4749 = vmax.f32 %v3703, 0.0
        %v4750 = vmax.f32 %v3705, 0.0
        %v4751 = vmax.f32 %v4056, 0.0
        %v4752 = vmax.f32 %v4058, 0.0
        %v4753 = vmax.f32 %v4409, 0.0
        %v4754 = vmax.f32 %v4411, 0.0
        %v4755 = vmax.f32 %v1944, 0.0
        %v4756 = vmax.f32 %v1946, 0.0
        %v4757 = vmax.f32 %v2297, 0.0
        %v4758 = vmax.f32 %v2299, 0.0
        %v4759 = vmax.f32 %v2650, 0.0
        %v4760 = vmax.f32 %v2652, 0.0
        %v4761 = vmax.f32 %v3003, 0.0
        %v4762 = vmax.f32 %v3005, 0.0
        %v4763 = vmax.f32 %v3356, 0.0
        %v4764 = vmax.f32 %v3358, 0.0
        %v4765 = vmax.f32 %v3709, 0.0
        %v4766 = vmax.f32 %v3711, 0.0
        %v4767 = vmax.f32 %v4062, 0.0
        %v4768 = vmax.f32 %v4064, 0.0
        %v4769 = vmax.f32 %v4415, 0.0
        %v4770 = vmax.f32 %v4417, 0.0
        %v4771 = vmax.f32 %v1948, 0.0
        %v4772 = vmax.f32 %v1950, 0.0
        %v4773 = vmax.f32 %v2301, 0.0
        %v4774 = vmax.f32 %v2303, 0.0
        %v4775 = vmax.f32 %v2654, 0.0
        %v4776 = vmax.f32 %v2656, 0.0
        %v4777 = vmax.f32 %v3007, 0.0
        %v4778 = vmax.f32 %v3009, 0.0
        %v4779 = vmax.f32 %v3360, 0.0
        %v4780 = vmax.f32 %v3362, 0.0
        %v4781 = vmax.f32 %v3713, 0.0
        %v4782 = vmax.f32 %v3715, 0.0
        %v4783 = vmax.f32 %v4066, 0.0
        %v4784 = vmax.f32 %v4068, 0.0
        %v4785 = vmax.f32 %v4419, 0.0
        %v4786 = vmax.f32 %v4421, 0.0
        %v4787 = vmax.f32 %v1954, 0.0
        %v4788 = vmax.f32 %v1956, 0.0
        %v4789 = vmax.f32 %v2307, 0.0
        %v4790 = vmax.f32 %v2309, 0.0
        %v4791 = vmax.f32 %v2660, 0.0
        %v4792 = vmax.f32 %v2662, 0.0
        %v4793 = vmax.f32 %v3013, 0.0
        %v4794 = vmax.f32 %v3015, 0.0
        %v4795 = vmax.f32 %v3366, 0.0
        %v4796 = vmax.f32 %v3368, 0.0
        %v4797 = vmax.f32 %v3719, 0.0
        %v4798 = vmax.f32 %v3721, 0.0
        %v4799 = vmax.f32 %v4072, 0.0
        %v4800 = vmax.f32 %v4074, 0.0
        %v4801 = vmax.f32 %v4425, 0.0
        %v4802 = vmax.f32 %v4427, 0.0
        %v4803 = vmax.f32 %v1958, 0.0
        %v4804 = vmax.f32 %v1960, 0.0
        %v4805 = vmax.f32 %v2311, 0.0
        %v4806 = vmax.f32 %v2313, 0.0
        %v4807 = vmax.f32 %v2664, 0.0
        %v4808 = vmax.f32 %v2666, 0.0
        %v4809 = vmax.f32 %v3017, 0.0
        %v4810 = vmax.f32 %v3019, 0.0
        %v4811 = vmax.f32 %v3370, 0.0
        %v4812 = vmax.f32 %v3372, 0.0
        %v4813 = vmax.f32 %v3723, 0.0
        %v4814 = vmax.f32 %v3725, 0.0
        %v4815 = vmax.f32 %v4076, 0.0
        %v4816 = vmax.f32 %v4078, 0.0
        %v4817 = vmax.f32 %v4429, 0.0
        %v4818 = vmax.f32 %v4431, 0.0
        %v4819 = vmax.f32 %v1964, 0.0
        %v4820 = vmax.f32 %v1966, 0.0
        %v4821 = vmax.f32 %v2317, 0.0
        %v4822 = vmax.f32 %v2319, 0.0
        %v4823 = vmax.f32 %v2670, 0.0
        %v4824 = vmax.f32 %v2672, 0.0
        %v4825 = vmax.f32 %v3023, 0.0
        %v4826 = vmax.f32 %v3025, 0.0
        %v4827 = vmax.f32 %v3376, 0.0
        %v4828 = vmax.f32 %v3378, 0.0
        %v4829 = vmax.f32 %v3729, 0.0
        %v4830 = vmax.f32 %v3731, 0.0
        %v4831 = vmax.f32 %v4082, 0.0
        %v4832 = vmax.f32 %v4084, 0.0
        %v4833 = vmax.f32 %v4435, 0.0
        %v4834 = vmax.f32 %v4437, 0.0
        %v4835 = vmax.f32 %v1968, 0.0
        %v4836 = vmax.f32 %v1970, 0.0
        %v4837 = vmax.f32 %v2321, 0.0
        %v4838 = vmax.f32 %v2323, 0.0
        %v4839 = vmax.f32 %v2674, 0.0
        %v4840 = vmax.f32 %v2676, 0.0
        %v4841 = vmax.f32 %v3027, 0.0
        %v4842 = vmax.f32 %v3029, 0.0
        %v4843 = vmax.f32 %v3380, 0.0
        %v4844 = vmax.f32 %v3382, 0.0
        %v4845 = vmax.f32 %v3733, 0.0
        %v4846 = vmax.f32 %v3735, 0.0
        %v4847 = vmax.f32 %v4086, 0.0
        %v4848 = vmax.f32 %v4088, 0.0
        %v4849 = vmax.f32 %v4439, 0.0
        %v4850 = vmax.f32 %v4441, 0.0
        %v4851 = vmax.f32 %v1974, 0.0
        %v4852 = vmax.f32 %v1976, 0.0
        %v4853 = vmax.f32 %v2327, 0.0
        %v4854 = vmax.f32 %v2329, 0.0
        %v4855 = vmax.f32 %v2680, 0.0
        %v4856 = vmax.f32 %v2682, 0.0
        %v4857 = vmax.f32 %v3033, 0.0
        %v4858 = vmax.f32 %v3035, 0.0
        %v4859 = vmax.f32 %v3386, 0.0
        %v4860 = vmax.f32 %v3388, 0.0
        %v4861 = vmax.f32 %v3739, 0.0
        %v4862 = vmax.f32 %v3741, 0.0
        %v4863 = vmax.f32 %v4092, 0.0
        %v4864 = vmax.f32 %v4094, 0.0
        %v4865 = vmax.f32 %v4445, 0.0
        %v4866 = vmax.f32 %v4447, 0.0
        %v4867 = vmax.f32 %v1978, 0.0
        %v4868 = vmax.f32 %v1980, 0.0
        %v4869 = vmax.f32 %v2331, 0.0
        %v4870 = vmax.f32 %v2333, 0.0
        %v4871 = vmax.f32 %v2684, 0.0
        %v4872 = vmax.f32 %v2686, 0.0
        %v4873 = vmax.f32 %v3037, 0.0
        %v4874 = vmax.f32 %v3039, 0.0
        %v4875 = vmax.f32 %v3390, 0.0
        %v4876 = vmax.f32 %v3392, 0.0
        %v4877 = vmax.f32 %v3743, 0.0
        %v4878 = vmax.f32 %v3745, 0.0
        %v4879 = vmax.f32 %v4096, 0.0
        %v4880 = vmax.f32 %v4098, 0.0
        %v4881 = vmax.f32 %v4449, 0.0
        %v4882 = vmax.f32 %v4451, 0.0
        %v4883 = vmax.f32 %v1984, 0.0
        %v4884 = vmax.f32 %v1986, 0.0
        %v4885 = vmax.f32 %v2337, 0.0
        %v4886 = vmax.f32 %v2339, 0.0
        %v4887 = vmax.f32 %v2690, 0.0
        %v4888 = vmax.f32 %v2692, 0.0
        %v4889 = vmax.f32 %v3043, 0.0
        %v4890 = vmax.f32 %v3045, 0.0
        %v4891 = vmax.f32 %v3396, 0.0
        %v4892 = vmax.f32 %v3398, 0.0
        %v4893 = vmax.f32 %v3749, 0.0
        %v4894 = vmax.f32 %v3751, 0.0
        %v4895 = vmax.f32 %v4102, 0.0
        %v4896 = vmax.f32 %v4104, 0.0
        %v4897 = vmax.f32 %v4455, 0.0
        %v4898 = vmax.f32 %v4457, 0.0
        %v4899 = vmax.f32 %v1988, 0.0
        %v4900 = vmax.f32 %v1990, 0.0
        %v4901 = vmax.f32 %v2341, 0.0
        %v4902 = vmax.f32 %v2343, 0.0
        %v4903 = vmax.f32 %v2694, 0.0
        %v4904 = vmax.f32 %v2696, 0.0
        %v4905 = vmax.f32 %v3047, 0.0
        %v4906 = vmax.f32 %v3049, 0.0
        %v4907 = vmax.f32 %v3400, 0.0
        %v4908 = vmax.f32 %v3402, 0.0
        %v4909 = vmax.f32 %v3753, 0.0
        %v4910 = vmax.f32 %v3755, 0.0
        %v4911 = vmax.f32 %v4106, 0.0
        %v4912 = vmax.f32 %v4108, 0.0
        %v4913 = vmax.f32 %v4459, 0.0
        %v4914 = vmax.f32 %v4461, 0.0
        %v4915 = vmax.f32 %v1994, 0.0
        %v4916 = vmax.f32 %v1996, 0.0
        %v4917 = vmax.f32 %v2347, 0.0
        %v4918 = vmax.f32 %v2349, 0.0
        %v4919 = vmax.f32 %v2700, 0.0
        %v4920 = vmax.f32 %v2702, 0.0
        %v4921 = vmax.f32 %v3053, 0.0
        %v4922 = vmax.f32 %v3055, 0.0
        %v4923 = vmax.f32 %v3406, 0.0
        %v4924 = vmax.f32 %v3408, 0.0
        %v4925 = vmax.f32 %v3759, 0.0
        %v4926 = vmax.f32 %v3761, 0.0
        %v4927 = vmax.f32 %v4112, 0.0
        %v4928 = vmax.f32 %v4114, 0.0
        %v4929 = vmax.f32 %v4465, 0.0
        %v4930 = vmax.f32 %v4467, 0.0
        %v4931 = vmax.f32 %v1998, 0.0
        %v4932 = vmax.f32 %v2000, 0.0
        %v4933 = vmax.f32 %v2351, 0.0
        %v4934 = vmax.f32 %v2353, 0.0
        %v4935 = vmax.f32 %v2704, 0.0
        %v4936 = vmax.f32 %v2706, 0.0
        %v4937 = vmax.f32 %v3057, 0.0
        %v4938 = vmax.f32 %v3059, 0.0
        %v4939 = vmax.f32 %v3410, 0.0
        %v4940 = vmax.f32 %v3412, 0.0
        %v4941 = vmax.f32 %v3763, 0.0
        %v4942 = vmax.f32 %v3765, 0.0
        %v4943 = vmax.f32 %v4116, 0.0
        %v4944 = vmax.f32 %v4118, 0.0
        %v4945 = vmax.f32 %v4469, 0.0
        %v4946 = vmax.f32 %v4471, 0.0
        %v4947 = vmax.f32 %v2004, 0.0
        %v4948 = vmax.f32 %v2006, 0.0
        %v4949 = vmax.f32 %v2357, 0.0
        %v4950 = vmax.f32 %v2359, 0.0
        %v4951 = vmax.f32 %v2710, 0.0
        %v4952 = vmax.f32 %v2712, 0.0
        %v4953 = vmax.f32 %v3063, 0.0
        %v4954 = vmax.f32 %v3065, 0.0
        %v4955 = vmax.f32 %v3416, 0.0
        %v4956 = vmax.f32 %v3418, 0.0
        %v4957 = vmax.f32 %v3769, 0.0
        %v4958 = vmax.f32 %v3771, 0.0
        %v4959 = vmax.f32 %v4122, 0.0
        %v4960 = vmax.f32 %v4124, 0.0
        %v4961 = vmax.f32 %v4475, 0.0
        %v4962 = vmax.f32 %v4477, 0.0
        %v4963 = vmax.f32 %v2008, 0.0
        %v4964 = vmax.f32 %v2010, 0.0
        %v4965 = vmax.f32 %v2361, 0.0
        %v4966 = vmax.f32 %v2363, 0.0
        %v4967 = vmax.f32 %v2714, 0.0
        %v4968 = vmax.f32 %v2716, 0.0
        %v4969 = vmax.f32 %v3067, 0.0
        %v4970 = vmax.f32 %v3069, 0.0
        %v4971 = vmax.f32 %v3420, 0.0
        %v4972 = vmax.f32 %v3422, 0.0
        %v4973 = vmax.f32 %v3773, 0.0
        %v4974 = vmax.f32 %v3775, 0.0
        %v4975 = vmax.f32 %v4126, 0.0
        %v4976 = vmax.f32 %v4128, 0.0
        %v4977 = vmax.f32 %v4479, 0.0
        %v4978 = vmax.f32 %v4481, 0.0
        %v4979 = vmax.f32 %v2014, 0.0
        %v4980 = vmax.f32 %v2016, 0.0
        %v4981 = vmax.f32 %v2367, 0.0
        %v4982 = vmax.f32 %v2369, 0.0
        %v4983 = vmax.f32 %v2720, 0.0
        %v4984 = vmax.f32 %v2722, 0.0
        %v4985 = vmax.f32 %v3073, 0.0
        %v4986 = vmax.f32 %v3075, 0.0
        %v4987 = vmax.f32 %v3426, 0.0
        %v4988 = vmax.f32 %v3428, 0.0
        %v4989 = vmax.f32 %v3779, 0.0
        %v4990 = vmax.f32 %v3781, 0.0
        %v4991 = vmax.f32 %v4132, 0.0
        %v4992 = vmax.f32 %v4134, 0.0
        %v4993 = vmax.f32 %v4485, 0.0
        %v4994 = vmax.f32 %v4487, 0.0
        %v4995 = vmax.f32 %v2018, 0.0
        %v4996 = vmax.f32 %v2020, 0.0
        %v4997 = vmax.f32 %v2371, 0.0
        %v4998 = vmax.f32 %v2373, 0.0
        %v4999 = vmax.f32 %v2724, 0.0
        %v5000 = vmax.f32 %v2726, 0.0
        %v5001 = vmax.f32 %v3077, 0.0
        %v5002 = vmax.f32 %v3079, 0.0
        %v5003 = vmax.f32 %v3430, 0.0
        %v5004 = vmax.f32 %v3432, 0.0
        %v5005 = vmax.f32 %v3783, 0.0
        %v5006 = vmax.f32 %v3785, 0.0
        %v5007 = vmax.f32 %v4136, 0.0
        %v5008 = vmax.f32 %v4138, 0.0
        %v5009 = vmax.f32 %v4489, 0.0
        %v5010 = vmax.f32 %v4491, 0.0
        %v5011 = vmax.f32 %v2024, 0.0
        %v5012 = vmax.f32 %v2026, 0.0
        %v5013 = vmax.f32 %v2377, 0.0
        %v5014 = vmax.f32 %v2379, 0.0
        %v5015 = vmax.f32 %v2730, 0.0
        %v5016 = vmax.f32 %v2732, 0.0
        %v5017 = vmax.f32 %v3083, 0.0
        %v5018 = vmax.f32 %v3085, 0.0
        %v5019 = vmax.f32 %v3436, 0.0
        %v5020 = vmax.f32 %v3438, 0.0
        %v5021 = vmax.f32 %v3789, 0.0
        %v5022 = vmax.f32 %v3791, 0.0
        %v5023 = vmax.f32 %v4142, 0.0
        %v5024 = vmax.f32 %v4144, 0.0
        %v5025 = vmax.f32 %v4495, 0.0
        %v5026 = vmax.f32 %v4497, 0.0
        %v5027 = vmax.f32 %v2028, 0.0
        %v5028 = vmax.f32 %v2030, 0.0
        %v5029 = vmax.f32 %v2381, 0.0
        %v5030 = vmax.f32 %v2383, 0.0
        %v5031 = vmax.f32 %v2734, 0.0
        %v5032 = vmax.f32 %v2736, 0.0
        %v5033 = vmax.f32 %v3087, 0.0
        %v5034 = vmax.f32 %v3089, 0.0
        %v5035 = vmax.f32 %v3440, 0.0
        %v5036 = vmax.f32 %v3442, 0.0
        %v5037 = vmax.f32 %v3793, 0.0
        %v5038 = vmax.f32 %v3795, 0.0
        %v5039 = vmax.f32 %v4146, 0.0
        %v5040 = vmax.f32 %v4148, 0.0
        %v5041 = vmax.f32 %v4499, 0.0
        %v5042 = vmax.f32 %v4501, 0.0
        %v5043 = vmax.f32 %v2034, 0.0
        %v5044 = vmax.f32 %v2036, 0.0
        %v5045 = vmax.f32 %v2387, 0.0
        %v5046 = vmax.f32 %v2389, 0.0
        %v5047 = vmax.f32 %v2740, 0.0
        %v5048 = vmax.f32 %v2742, 0.0
        %v5049 = vmax.f32 %v3093, 0.0
        %v5050 = vmax.f32 %v3095, 0.0
        %v5051 = vmax.f32 %v3446, 0.0
        %v5052 = vmax.f32 %v3448, 0.0
        %v5053 = vmax.f32 %v3799, 0.0
        %v5054 = vmax.f32 %v3801, 0.0
        %v5055 = vmax.f32 %v4152, 0.0
        %v5056 = vmax.f32 %v4154, 0.0
        %v5057 = vmax.f32 %v4505, 0.0
        %v5058 = vmax.f32 %v4507, 0.0
        %v5059 = vmax.f32 %v2038, 0.0
        %v5060 = vmax.f32 %v2040, 0.0
        %v5061 = vmax.f32 %v2391, 0.0
        %v5062 = vmax.f32 %v2393, 0.0
        %v5063 = vmax.f32 %v2744, 0.0
        %v5064 = vmax.f32 %v2746, 0.0
        %v5065 = vmax.f32 %v3097, 0.0
        %v5066 = vmax.f32 %v3099, 0.0
        %v5067 = vmax.f32 %v3450, 0.0
        %v5068 = vmax.f32 %v3452, 0.0
        %v5069 = vmax.f32 %v3803, 0.0
        %v5070 = vmax.f32 %v3805, 0.0
        %v5071 = vmax.f32 %v4156, 0.0
        %v5072 = vmax.f32 %v4158, 0.0
        %v5073 = vmax.f32 %v4509, 0.0
        %v5074 = vmax.f32 %v4511, 0.0
        %v5075 = vmax.f32 %v2044, 0.0
        %v5076 = vmax.f32 %v2046, 0.0
        %v5077 = vmax.f32 %v2397, 0.0
        %v5078 = vmax.f32 %v2399, 0.0
        %v5079 = vmax.f32 %v2750, 0.0
        %v5080 = vmax.f32 %v2752, 0.0
        %v5081 = vmax.f32 %v3103, 0.0
        %v5082 = vmax.f32 %v3105, 0.0
        %v5083 = vmax.f32 %v3456, 0.0
        %v5084 = vmax.f32 %v3458, 0.0
        %v5085 = vmax.f32 %v3809, 0.0
        %v5086 = vmax.f32 %v3811, 0.0
        %v5087 = vmax.f32 %v4162, 0.0
        %v5088 = vmax.f32 %v4164, 0.0
        %v5089 = vmax.f32 %v4515, 0.0
        %v5090 = vmax.f32 %v4517, 0.0
        %v5091 = vmax.f32 %v2048, 0.0
        %v5092 = vmax.f32 %v2050, 0.0
        %v5093 = vmax.f32 %v2401, 0.0
        %v5094 = vmax.f32 %v2403, 0.0
        %v5095 = vmax.f32 %v2754, 0.0
        %v5096 = vmax.f32 %v2756, 0.0
        %v5097 = vmax.f32 %v3107, 0.0
        %v5098 = vmax.f32 %v3109, 0.0
        %v5099 = vmax.f32 %v3460, 0.0
        %v5100 = vmax.f32 %v3462, 0.0
        %v5101 = vmax.f32 %v3813, 0.0
        %v5102 = vmax.f32 %v3815, 0.0
        %v5103 = vmax.f32 %v4166, 0.0
        %v5104 = vmax.f32 %v4168, 0.0
        %v5105 = vmax.f32 %v4519, 0.0
        %v5106 = vmax.f32 %v4521, 0.0
        %v5107 = vmax.f32 %v2054, 0.0
        %v5108 = vmax.f32 %v2056, 0.0
        %v5109 = vmax.f32 %v2407, 0.0
        %v5110 = vmax.f32 %v2409, 0.0
        %v5111 = vmax.f32 %v2760, 0.0
        %v5112 = vmax.f32 %v2762, 0.0
        %v5113 = vmax.f32 %v3113, 0.0
        %v5114 = vmax.f32 %v3115, 0.0
        %v5115 = vmax.f32 %v3466, 0.0
        %v5116 = vmax.f32 %v3468, 0.0
        %v5117 = vmax.f32 %v3819, 0.0
        %v5118 = vmax.f32 %v3821, 0.0
        %v5119 = vmax.f32 %v4172, 0.0
        %v5120 = vmax.f32 %v4174, 0.0
        %v5121 = vmax.f32 %v4525, 0.0
        %v5122 = vmax.f32 %v4527, 0.0
        %v5123 = vmax.f32 %v2058, 0.0
        %v5124 = vmax.f32 %v2060, 0.0
        %v5125 = vmax.f32 %v2411, 0.0
        %v5126 = vmax.f32 %v2413, 0.0
        %v5127 = vmax.f32 %v2764, 0.0
        %v5128 = vmax.f32 %v2766, 0.0
        %v5129 = vmax.f32 %v3117, 0.0
        %v5130 = vmax.f32 %v3119, 0.0
        %v5131 = vmax.f32 %v3470, 0.0
        %v5132 = vmax.f32 %v3472, 0.0
        %v5133 = vmax.f32 %v3823, 0.0
        %v5134 = vmax.f32 %v3825, 0.0
        %v5135 = vmax.f32 %v4176, 0.0
        %v5136 = vmax.f32 %v4178, 0.0
        %v5137 = vmax.f32 %v4529, 0.0
        %v5138 = vmax.f32 %v4531, 0.0
        %v5139 = vmax.f32 %v2064, 0.0
        %v5140 = vmax.f32 %v2066, 0.0
        %v5141 = vmax.f32 %v2417, 0.0
        %v5142 = vmax.f32 %v2419, 0.0
        %v5143 = vmax.f32 %v2770, 0.0
        %v5144 = vmax.f32 %v2772, 0.0
        %v5145 = vmax.f32 %v3123, 0.0
        %v5146 = vmax.f32 %v3125, 0.0
        %v5147 = vmax.f32 %v3476, 0.0
        %v5148 = vmax.f32 %v3478, 0.0
        %v5149 = vmax.f32 %v3829, 0.0
        %v5150 = vmax.f32 %v3831, 0.0
        %v5151 = vmax.f32 %v4182, 0.0
        %v5152 = vmax.f32 %v4184, 0.0
        %v5153 = vmax.f32 %v4535, 0.0
        %v5154 = vmax.f32 %v4537, 0.0
        %v5155 = vmax.f32 %v2068, 0.0
        %v5156 = vmax.f32 %v2070, 0.0
        %v5157 = vmax.f32 %v2421, 0.0
        %v5158 = vmax.f32 %v2423, 0.0
        %v5159 = vmax.f32 %v2774, 0.0
        %v5160 = vmax.f32 %v2776, 0.0
        %v5161 = vmax.f32 %v3127, 0.0
        %v5162 = vmax.f32 %v3129, 0.0
        %v5163 = vmax.f32 %v3480, 0.0
        %v5164 = vmax.f32 %v3482, 0.0
        %v5165 = vmax.f32 %v3833, 0.0
        %v5166 = vmax.f32 %v3835, 0.0
        %v5167 = vmax.f32 %v4186, 0.0
        %v5168 = vmax.f32 %v4188, 0.0
        %v5169 = vmax.f32 %v4539, 0.0
        %v5170 = vmax.f32 %v4541, 0.0
        %v5171 = vmax.f32 %v2074, 0.0
        %v5172 = vmax.f32 %v2076, 0.0
        %v5173 = vmax.f32 %v2427, 0.0
        %v5174 = vmax.f32 %v2429, 0.0
        %v5175 = vmax.f32 %v2780, 0.0
        %v5176 = vmax.f32 %v2782, 0.0
        %v5177 = vmax.f32 %v3133, 0.0
        %v5178 = vmax.f32 %v3135, 0.0
        %v5179 = vmax.f32 %v3486, 0.0
        %v5180 = vmax.f32 %v3488, 0.0
        %v5181 = vmax.f32 %v3839, 0.0
        %v5182 = vmax.f32 %v3841, 0.0
        %v5183 = vmax.f32 %v4192, 0.0
        %v5184 = vmax.f32 %v4194, 0.0
        %v5185 = vmax.f32 %v4545, 0.0
        %v5186 = vmax.f32 %v4547, 0.0
        %v5187 = vmax.f32 %v2078, 0.0
        %v5188 = vmax.f32 %v2080, 0.0
        %v5189 = vmax.f32 %v2431, 0.0
        %v5190 = vmax.f32 %v2433, 0.0
        %v5191 = vmax.f32 %v2784, 0.0
        %v5192 = vmax.f32 %v2786, 0.0
        %v5193 = vmax.f32 %v3137, 0.0
        %v5194 = vmax.f32 %v3139, 0.0
        %v5195 = vmax.f32 %v3490, 0.0
        %v5196 = vmax.f32 %v3492, 0.0
        %v5197 = vmax.f32 %v3843, 0.0
        %v5198 = vmax.f32 %v3845, 0.0
        %v5199 = vmax.f32 %v4196, 0.0
        %v5200 = vmax.f32 %v4198, 0.0
        %v5201 = vmax.f32 %v4549, 0.0
        %v5202 = vmax.f32 %v4551, 0.0
        %v5203 = vmax.f32 %v2084, 0.0
        %v5204 = vmax.f32 %v2086, 0.0
        %v5205 = vmax.f32 %v2437, 0.0
        %v5206 = vmax.f32 %v2439, 0.0
        %v5207 = vmax.f32 %v2790, 0.0
        %v5208 = vmax.f32 %v2792, 0.0
        %v5209 = vmax.f32 %v3143, 0.0
        %v5210 = vmax.f32 %v3145, 0.0
        %v5211 = vmax.f32 %v3496, 0.0
        %v5212 = vmax.f32 %v3498, 0.0
        %v5213 = vmax.f32 %v3849, 0.0
        %v5214 = vmax.f32 %v3851, 0.0
        %v5215 = vmax.f32 %v4202, 0.0
        %v5216 = vmax.f32 %v4204, 0.0
        %v5217 = vmax.f32 %v4555, 0.0
        %v5218 = vmax.f32 %v4557, 0.0
        %v5219 = vmax.f32 %v2088, 0.0
        %v5220 = vmax.f32 %v2090, 0.0
        %v5221 = vmax.f32 %v2441, 0.0
        %v5222 = vmax.f32 %v2443, 0.0
        %v5223 = vmax.f32 %v2794, 0.0
        %v5224 = vmax.f32 %v2796, 0.0
        %v5225 = vmax.f32 %v3147, 0.0
        %v5226 = vmax.f32 %v3149, 0.0
        %v5227 = vmax.f32 %v3500, 0.0
        %v5228 = vmax.f32 %v3502, 0.0
        %v5229 = vmax.f32 %v3853, 0.0
        %v5230 = vmax.f32 %v3855, 0.0
        %v5231 = vmax.f32 %v4206, 0.0
        %v5232 = vmax.f32 %v4208, 0.0
        %v5233 = vmax.f32 %v4559, 0.0
        %v5234 = vmax.f32 %v4561, 0.0
        %v5235 = vmax.f32 %v2094, 0.0
        %v5236 = vmax.f32 %v2096, 0.0
        %v5237 = vmax.f32 %v2447, 0.0
        %v5238 = vmax.f32 %v2449, 0.0
        %v5239 = vmax.f32 %v2800, 0.0
        %v5240 = vmax.f32 %v2802, 0.0
        %v5241 = vmax.f32 %v3153, 0.0
        %v5242 = vmax.f32 %v3155, 0.0
        %v5243 = vmax.f32 %v3506, 0.0
        %v5244 = vmax.f32 %v3508, 0.0
        %v5245 = vmax.f32 %v3859, 0.0
        %v5246 = vmax.f32 %v3861, 0.0
        %v5247 = vmax.f32 %v4212, 0.0
        %v5248 = vmax.f32 %v4214, 0.0
        %v5249 = vmax.f32 %v4565, 0.0
        %v5250 = vmax.f32 %v4567, 0.0
        %v5251 = vmax.f32 %v2098, 0.0
        %v5252 = vmax.f32 %v2100, 0.0
        %v5253 = vmax.f32 %v2451, 0.0
        %v5254 = vmax.f32 %v2453, 0.0
        %v5255 = vmax.f32 %v2804, 0.0
        %v5256 = vmax.f32 %v2806, 0.0
        %v5257 = vmax.f32 %v3157, 0.0
        %v5258 = vmax.f32 %v3159, 0.0
        %v5259 = vmax.f32 %v3510, 0.0
        %v5260 = vmax.f32 %v3512, 0.0
        %v5261 = vmax.f32 %v3863, 0.0
        %v5262 = vmax.f32 %v3865, 0.0
        %v5263 = vmax.f32 %v4216, 0.0
        %v5264 = vmax.f32 %v4218, 0.0
        %v5265 = vmax.f32 %v4569, 0.0
        %v5266 = vmax.f32 %v4571, 0.0
        %v5267 = vmax.f32 %v2104, 0.0
        %v5268 = vmax.f32 %v2106, 0.0
        %v5269 = vmax.f32 %v2457, 0.0
        %v5270 = vmax.f32 %v2459, 0.0
        %v5271 = vmax.f32 %v2810, 0.0
        %v5272 = vmax.f32 %v2812, 0.0
        %v5273 = vmax.f32 %v3163, 0.0
        %v5274 = vmax.f32 %v3165, 0.0
        %v5275 = vmax.f32 %v3516, 0.0
        %v5276 = vmax.f32 %v3518, 0.0
        %v5277 = vmax.f32 %v3869, 0.0
        %v5278 = vmax.f32 %v3871, 0.0
        %v5279 = vmax.f32 %v4222, 0.0
        %v5280 = vmax.f32 %v4224, 0.0
        %v5281 = vmax.f32 %v4575, 0.0
        %v5282 = vmax.f32 %v4577, 0.0
        %v5283 = vmax.f32 %v2108, 0.0
        %v5284 = vmax.f32 %v2110, 0.0
        %v5285 = vmax.f32 %v2461, 0.0
        %v5286 = vmax.f32 %v2463, 0.0
        %v5287 = vmax.f32 %v2814, 0.0
        %v5288 = vmax.f32 %v2816, 0.0
        %v5289 = vmax.f32 %v3167, 0.0
        %v5290 = vmax.f32 %v3169, 0.0
        %v5291 = vmax.f32 %v3520, 0.0
        %v5292 = vmax.f32 %v3522, 0.0
        %v5293 = vmax.f32 %v3873, 0.0
        %v5294 = vmax.f32 %v3875, 0.0
        %v5295 = vmax.f32 %v4226, 0.0
        %v5296 = vmax.f32 %v4228, 0.0
        %v5297 = vmax.f32 %v4579, 0.0
        %v5298 = vmax.f32 %v4581, 0.0
        %v5299 = vmax.f32 %v2114, 0.0
        %v5300 = vmax.f32 %v2116, 0.0
        %v5301 = vmax.f32 %v2467, 0.0
        %v5302 = vmax.f32 %v2469, 0.0
        %v5303 = vmax.f32 %v2820, 0.0
        %v5304 = vmax.f32 %v2822, 0.0
        %v5305 = vmax.f32 %v3173, 0.0
        %v5306 = vmax.f32 %v3175, 0.0
        %v5307 = vmax.f32 %v3526, 0.0
        %v5308 = vmax.f32 %v3528, 0.0
        %v5309 = vmax.f32 %v3879, 0.0
        %v5310 = vmax.f32 %v3881, 0.0
        %v5311 = vmax.f32 %v4232, 0.0
        %v5312 = vmax.f32 %v4234, 0.0
        %v5313 = vmax.f32 %v4585, 0.0
        %v5314 = vmax.f32 %v4587, 0.0
        %v5315 = vmax.f32 %v2118, 0.0
        %v5316 = vmax.f32 %v2120, 0.0
        %v5317 = vmax.f32 %v2471, 0.0
        %v5318 = vmax.f32 %v2473, 0.0
        %v5319 = vmax.f32 %v2824, 0.0
        %v5320 = vmax.f32 %v2826, 0.0
        %v5321 = vmax.f32 %v3177, 0.0
        %v5322 = vmax.f32 %v3179, 0.0
        %v5323 = vmax.f32 %v3530, 0.0
        %v5324 = vmax.f32 %v3532, 0.0
        %v5325 = vmax.f32 %v3883, 0.0
        %v5326 = vmax.f32 %v3885, 0.0
        %v5327 = vmax.f32 %v4236, 0.0
        %v5328 = vmax.f32 %v4238, 0.0
        %v5329 = vmax.f32 %v4589, 0.0
        %v5330 = vmax.f32 %v4591, 0.0
        %v5331 = vmax.f32 %v2124, 0.0
        %v5332 = vmax.f32 %v2126, 0.0
        %v5333 = vmax.f32 %v2477, 0.0
        %v5334 = vmax.f32 %v2479, 0.0
        %v5335 = vmax.f32 %v2830, 0.0
        %v5336 = vmax.f32 %v2832, 0.0
        %v5337 = vmax.f32 %v3183, 0.0
        %v5338 = vmax.f32 %v3185, 0.0
        %v5339 = vmax.f32 %v3536, 0.0
        %v5340 = vmax.f32 %v3538, 0.0
        %v5341 = vmax.f32 %v3889, 0.0
        %v5342 = vmax.f32 %v3891, 0.0
        %v5343 = vmax.f32 %v4242, 0.0
        %v5344 = vmax.f32 %v4244, 0.0
        %v5345 = vmax.f32 %v4595, 0.0
        %v5346 = vmax.f32 %v4597, 0.0
        %v5347 = vmax.f32 %v2128, 0.0
        %v5348 = vmax.f32 %v2130, 0.0
        %v5349 = vmax.f32 %v2481, 0.0
        %v5350 = vmax.f32 %v2483, 0.0
        %v5351 = vmax.f32 %v2834, 0.0
        %v5352 = vmax.f32 %v2836, 0.0
        %v5353 = vmax.f32 %v3187, 0.0
        %v5354 = vmax.f32 %v3189, 0.0
        %v5355 = vmax.f32 %v3540, 0.0
        %v5356 = vmax.f32 %v3542, 0.0
        %v5357 = vmax.f32 %v3893, 0.0
        %v5358 = vmax.f32 %v3895, 0.0
        %v5359 = vmax.f32 %v4246, 0.0
        %v5360 = vmax.f32 %v4248, 0.0
        %v5361 = vmax.f32 %v4599, 0.0
        %v5362 = vmax.f32 %v4601, 0.0
        %v5363 = vmax.f32 %v2134, 0.0
        %v5364 = vmax.f32 %v2136, 0.0
        %v5365 = vmax.f32 %v2487, 0.0
        %v5366 = vmax.f32 %v2489, 0.0
        %v5367 = vmax.f32 %v2840, 0.0
        %v5368 = vmax.f32 %v2842, 0.0
        %v5369 = vmax.f32 %v3193, 0.0
        %v5370 = vmax.f32 %v3195, 0.0
        %v5371 = vmax.f32 %v3546, 0.0
        %v5372 = vmax.f32 %v3548, 0.0
        %v5373 = vmax.f32 %v3899, 0.0
        %v5374 = vmax.f32 %v3901, 0.0
        %v5375 = vmax.f32 %v4252, 0.0
        %v5376 = vmax.f32 %v4254, 0.0
        %v5377 = vmax.f32 %v4605, 0.0
        %v5378 = vmax.f32 %v4607, 0.0
        %v5379 = vmax.f32 %v2138, 0.0
        %v5380 = vmax.f32 %v2140, 0.0
        %v5381 = vmax.f32 %v2491, 0.0
        %v5382 = vmax.f32 %v2493, 0.0
        %v5383 = vmax.f32 %v2844, 0.0
        %v5384 = vmax.f32 %v2846, 0.0
        %v5385 = vmax.f32 %v3197, 0.0
        %v5386 = vmax.f32 %v3199, 0.0
        %v5387 = vmax.f32 %v3550, 0.0
        %v5388 = vmax.f32 %v3552, 0.0
        %v5389 = vmax.f32 %v3903, 0.0
        %v5390 = vmax.f32 %v3905, 0.0
        %v5391 = vmax.f32 %v4256, 0.0
        %v5392 = vmax.f32 %v4258, 0.0
        %v5393 = vmax.f32 %v4609, 0.0
        %v5394 = vmax.f32 %v4611, 0.0
        %v5395 = vmax.f32 %v2144, 0.0
        %v5396 = vmax.f32 %v2146, 0.0
        %v5397 = vmax.f32 %v2497, 0.0
        %v5398 = vmax.f32 %v2499, 0.0
        %v5399 = vmax.f32 %v2850, 0.0
        %v5400 = vmax.f32 %v2852, 0.0
        %v5401 = vmax.f32 %v3203, 0.0
        %v5402 = vmax.f32 %v3205, 0.0
        %v5403 = vmax.f32 %v3556, 0.0
        %v5404 = vmax.f32 %v3558, 0.0
        %v5405 = vmax.f32 %v3909, 0.0
        %v5406 = vmax.f32 %v3911, 0.0
        %v5407 = vmax.f32 %v4262, 0.0
        %v5408 = vmax.f32 %v4264, 0.0
        %v5409 = vmax.f32 %v4615, 0.0
        %v5410 = vmax.f32 %v4617, 0.0
        %v5411 = vmax.f32 %v2148, 0.0
        %v5412 = vmax.f32 %v2150, 0.0
        %v5413 = vmax.f32 %v2501, 0.0
        %v5414 = vmax.f32 %v2503, 0.0
        %v5415 = vmax.f32 %v2854, 0.0
        %v5416 = vmax.f32 %v2856, 0.0
        %v5417 = vmax.f32 %v3207, 0.0
        %v5418 = vmax.f32 %v3209, 0.0
        %v5419 = vmax.f32 %v3560, 0.0
        %v5420 = vmax.f32 %v3562, 0.0
        %v5421 = vmax.f32 %v3913, 0.0
        %v5422 = vmax.f32 %v3915, 0.0
        %v5423 = vmax.f32 %v4266, 0.0
        %v5424 = vmax.f32 %v4268, 0.0
        %v5425 = vmax.f32 %v4619, 0.0
        %v5426 = vmax.f32 %v4621, 0.0
        %v5427 = vmax.f32 %v2154, 0.0
        %v5428 = vmax.f32 %v2156, 0.0
        %v5429 = vmax.f32 %v2507, 0.0
        %v5430 = vmax.f32 %v2509, 0.0
        %v5431 = vmax.f32 %v2860, 0.0
        %v5432 = vmax.f32 %v2862, 0.0
        %v5433 = vmax.f32 %v3213, 0.0
        %v5434 = vmax.f32 %v3215, 0.0
        %v5435 = vmax.f32 %v3566, 0.0
        %v5436 = vmax.f32 %v3568, 0.0
        %v5437 = vmax.f32 %v3919, 0.0
        %v5438 = vmax.f32 %v3921, 0.0
        %v5439 = vmax.f32 %v4272, 0.0
        %v5440 = vmax.f32 %v4274, 0.0
        %v5441 = vmax.f32 %v4625, 0.0
        %v5442 = vmax.f32 %v4627, 0.0
        %v5443 = vmax.f32 %v2158, 0.0
        %v5444 = vmax.f32 %v2160, 0.0
        %v5445 = vmax.f32 %v2511, 0.0
        %v5446 = vmax.f32 %v2513, 0.0
        %v5447 = vmax.f32 %v2864, 0.0
        %v5448 = vmax.f32 %v2866, 0.0
        %v5449 = vmax.f32 %v3217, 0.0
        %v5450 = vmax.f32 %v3219, 0.0
        %v5451 = vmax.f32 %v3570, 0.0
        %v5452 = vmax.f32 %v3572, 0.0
        %v5453 = vmax.f32 %v3923, 0.0
        %v5454 = vmax.f32 %v3925, 0.0
        %v5455 = vmax.f32 %v4276, 0.0
        %v5456 = vmax.f32 %v4278, 0.0
        %v5457 = vmax.f32 %v4629, 0.0
        %v5458 = vmax.f32 %v4631, 0.0
        %v5459 = vmax.f32 %v2164, 0.0
        %v5460 = vmax.f32 %v2166, 0.0
        %v5461 = vmax.f32 %v2517, 0.0
        %v5462 = vmax.f32 %v2519, 0.0
        %v5463 = vmax.f32 %v2870, 0.0
        %v5464 = vmax.f32 %v2872, 0.0
        %v5465 = vmax.f32 %v3223, 0.0
        %v5466 = vmax.f32 %v3225, 0.0
        %v5467 = vmax.f32 %v3576, 0.0
        %v5468 = vmax.f32 %v3578, 0.0
        %v5469 = vmax.f32 %v3929, 0.0
        %v5470 = vmax.f32 %v3931, 0.0
        %v5471 = vmax.f32 %v4282, 0.0
        %v5472 = vmax.f32 %v4284, 0.0
        %v5473 = vmax.f32 %v4635, 0.0
        %v5474 = vmax.f32 %v4637, 0.0
        %v5475 = vmax.f32 %v2168, 0.0
        %v5476 = vmax.f32 %v2170, 0.0
        %v5477 = vmax.f32 %v2521, 0.0
        %v5478 = vmax.f32 %v2523, 0.0
        %v5479 = vmax.f32 %v2874, 0.0
        %v5480 = vmax.f32 %v2876, 0.0
        %v5481 = vmax.f32 %v3227, 0.0
        %v5482 = vmax.f32 %v3229, 0.0
        %v5483 = vmax.f32 %v3580, 0.0
        %v5484 = vmax.f32 %v3582, 0.0
        %v5485 = vmax.f32 %v3933, 0.0
        %v5486 = vmax.f32 %v3935, 0.0
        %v5487 = vmax.f32 %v4286, 0.0
        %v5488 = vmax.f32 %v4288, 0.0
        %v5489 = vmax.f32 %v4639, 0.0
        %v5490 = vmax.f32 %v4641, 0.0
        %v5491 = vmax.f32 %v2174, 0.0
        %v5492 = vmax.f32 %v2176, 0.0
        %v5493 = vmax.f32 %v2527, 0.0
        %v5494 = vmax.f32 %v2529, 0.0
        %v5495 = vmax.f32 %v2880, 0.0
        %v5496 = vmax.f32 %v2882, 0.0
        %v5497 = vmax.f32 %v3233, 0.0
        %v5498 = vmax.f32 %v3235, 0.0
        %v5499 = vmax.f32 %v3586, 0.0
        %v5500 = vmax.f32 %v3588, 0.0
        %v5501 = vmax.f32 %v3939, 0.0
        %v5502 = vmax.f32 %v3941, 0.0
        %v5503 = vmax.f32 %v4292, 0.0
        %v5504 = vmax.f32 %v4294, 0.0
        %v5505 = vmax.f32 %v4645, 0.0
        %v5506 = vmax.f32 %v4647, 0.0
        %v5507 = vmax.f32 %v2178, 0.0
        %v5508 = vmax.f32 %v2180, 0.0
        %v5509 = vmax.f32 %v2531, 0.0
        %v5510 = vmax.f32 %v2533, 0.0
        %v5511 = vmax.f32 %v2884, 0.0
        %v5512 = vmax.f32 %v2886, 0.0
        %v5513 = vmax.f32 %v3237, 0.0
        %v5514 = vmax.f32 %v3239, 0.0
        %v5515 = vmax.f32 %v3590, 0.0
        %v5516 = vmax.f32 %v3592, 0.0
        %v5517 = vmax.f32 %v3943, 0.0
        %v5518 = vmax.f32 %v3945, 0.0
        %v5519 = vmax.f32 %v4296, 0.0
        %v5520 = vmax.f32 %v4298, 0.0
        %v5521 = vmax.f32 %v4649, 0.0
        %v5522 = vmax.f32 %v4651, 0.0
        %v5523 = vmax.f32 %v2184, 0.0
        %v5524 = vmax.f32 %v2186, 0.0
        %v5525 = vmax.f32 %v2537, 0.0
        %v5526 = vmax.f32 %v2539, 0.0
        %v5527 = vmax.f32 %v2890, 0.0
        %v5528 = vmax.f32 %v2892, 0.0
        %v5529 = vmax.f32 %v3243, 0.0
        %v5530 = vmax.f32 %v3245, 0.0
        %v5531 = vmax.f32 %v3596, 0.0
        %v5532 = vmax.f32 %v3598, 0.0
        %v5533 = vmax.f32 %v3949, 0.0
        %v5534 = vmax.f32 %v3951, 0.0
        %v5535 = vmax.f32 %v4302, 0.0
        %v5536 = vmax.f32 %v4304, 0.0
        %v5537 = vmax.f32 %v4655, 0.0
        %v5538 = vmax.f32 %v4657, 0.0
        %v5539 = vmax.f32 %v2188, 0.0
        %v5540 = vmax.f32 %v2190, 0.0
        %v5541 = vmax.f32 %v2541, 0.0
        %v5542 = vmax.f32 %v2543, 0.0
        %v5543 = vmax.f32 %v2894, 0.0
        %v5544 = vmax.f32 %v2896, 0.0
        %v5545 = vmax.f32 %v3247, 0.0
        %v5546 = vmax.f32 %v3249, 0.0
        %v5547 = vmax.f32 %v3600, 0.0
        %v5548 = vmax.f32 %v3602, 0.0
        %v5549 = vmax.f32 %v3953, 0.0
        %v5550 = vmax.f32 %v3955, 0.0
        %v5551 = vmax.f32 %v4306, 0.0
        %v5552 = vmax.f32 %v4308, 0.0
        %v5553 = vmax.f32 %v4659, 0.0
        %v5554 = vmax.f32 %v4661, 0.0
        %v5555 = vmax.f32 %v2194, 0.0
        %v5556 = vmax.f32 %v2196, 0.0
        %v5557 = vmax.f32 %v2547, 0.0
        %v5558 = vmax.f32 %v2549, 0.0
        %v5559 = vmax.f32 %v2900, 0.0
        %v5560 = vmax.f32 %v2902, 0.0
        %v5561 = vmax.f32 %v3253, 0.0
        %v5562 = vmax.f32 %v3255, 0.0
        %v5563 = vmax.f32 %v3606, 0.0
        %v5564 = vmax.f32 %v3608, 0.0
        %v5565 = vmax.f32 %v3959, 0.0
        %v5566 = vmax.f32 %v3961, 0.0
        %v5567 = vmax.f32 %v4312, 0.0
        %v5568 = vmax.f32 %v4314, 0.0
        %v5569 = vmax.f32 %v4665, 0.0
        %v5570 = vmax.f32 %v4667, 0.0
        %v5571 = vmax.f32 %v2198, 0.0
        %v5572 = vmax.f32 %v2200, 0.0
        %v5573 = vmax.f32 %v2551, 0.0
        %v5574 = vmax.f32 %v2553, 0.0
        %v5575 = vmax.f32 %v2904, 0.0
        %v5576 = vmax.f32 %v2906, 0.0
        %v5577 = vmax.f32 %v3257, 0.0
        %v5578 = vmax.f32 %v3259, 0.0
        %v5579 = vmax.f32 %v3610, 0.0
        %v5580 = vmax.f32 %v3612, 0.0
        %v5581 = vmax.f32 %v3963, 0.0
        %v5582 = vmax.f32 %v3965, 0.0
        %v5583 = vmax.f32 %v4316, 0.0
        %v5584 = vmax.f32 %v4318, 0.0
        %v5585 = vmax.f32 %v4669, 0.0
        %v5586 = vmax.f32 %v4671, 0.0
        %v5587 = vmax.f32 %v2204, 0.0
        %v5588 = vmax.f32 %v2206, 0.0
        %v5589 = vmax.f32 %v2557, 0.0
        %v5590 = vmax.f32 %v2559, 0.0
        %v5591 = vmax.f32 %v2910, 0.0
        %v5592 = vmax.f32 %v2912, 0.0
        %v5593 = vmax.f32 %v3263, 0.0
        %v5594 = vmax.f32 %v3265, 0.0
        %v5595 = vmax.f32 %v3616, 0.0
        %v5596 = vmax.f32 %v3618, 0.0
        %v5597 = vmax.f32 %v3969, 0.0
        %v5598 = vmax.f32 %v3971, 0.0
        %v5599 = vmax.f32 %v4322, 0.0
        %v5600 = vmax.f32 %v4324, 0.0
        %v5601 = vmax.f32 %v4675, 0.0
        %v5602 = vmax.f32 %v4677, 0.0
        %v5603 = vmax.f32 %v2208, 0.0
        %v5604 = vmax.f32 %v2210, 0.0
        %v5605 = vmax.f32 %v2561, 0.0
        %v5606 = vmax.f32 %v2563, 0.0
        %v5607 = vmax.f32 %v2914, 0.0
        %v5608 = vmax.f32 %v2916, 0.0
        %v5609 = vmax.f32 %v3267, 0.0
        %v5610 = vmax.f32 %v3269, 0.0
        %v5611 = vmax.f32 %v3620, 0.0
        %v5612 = vmax.f32 %v3622, 0.0
        %v5613 = vmax.f32 %v3973, 0.0
        %v5614 = vmax.f32 %v3975, 0.0
        %v5615 = vmax.f32 %v4326, 0.0
        %v5616 = vmax.f32 %v4328, 0.0
        %v5617 = vmax.f32 %v4679, 0.0
        %v5618 = vmax.f32 %v4681, 0.0
        %v5619 = vmax.f32 %v2214, 0.0
        %v5620 = vmax.f32 %v2216, 0.0
        %v5621 = vmax.f32 %v2567, 0.0
        %v5622 = vmax.f32 %v2569, 0.0
        %v5623 = vmax.f32 %v2920, 0.0
        %v5624 = vmax.f32 %v2922, 0.0
        %v5625 = vmax.f32 %v3273, 0.0
        %v5626 = vmax.f32 %v3275, 0.0
        %v5627 = vmax.f32 %v3626, 0.0
        %v5628 = vmax.f32 %v3628, 0.0
        %v5629 = vmax.f32 %v3979, 0.0
        %v5630 = vmax.f32 %v3981, 0.0
        %v5631 = vmax.f32 %v4332, 0.0
        %v5632 = vmax.f32 %v4334, 0.0
        %v5633 = vmax.f32 %v4685, 0.0
        %v5634 = vmax.f32 %v4687, 0.0
        %v5635 = vmax.f32 %v2218, 0.0
        %v5636 = vmax.f32 %v2220, 0.0
        %v5637 = vmax.f32 %v2571, 0.0
        %v5638 = vmax.f32 %v2573, 0.0
        %v5639 = vmax.f32 %v2924, 0.0
        %v5640 = vmax.f32 %v2926, 0.0
        %v5641 = vmax.f32 %v3277, 0.0
        %v5642 = vmax.f32 %v3279, 0.0
        %v5643 = vmax.f32 %v3630, 0.0
        %v5644 = vmax.f32 %v3632, 0.0
        %v5645 = vmax.f32 %v3983, 0.0
        %v5646 = vmax.f32 %v3985, 0.0
        %v5647 = vmax.f32 %v4336, 0.0
        %v5648 = vmax.f32 %v4338, 0.0
        %v5649 = vmax.f32 %v4689, 0.0
        %v5650 = vmax.f32 %v4691, 0.0
        %v5651 = vmax.f32 %v2224, 0.0
        %v5652 = vmax.f32 %v2226, 0.0
        %v5653 = vmax.f32 %v2577, 0.0
        %v5654 = vmax.f32 %v2579, 0.0
        %v5655 = vmax.f32 %v2930, 0.0
        %v5656 = vmax.f32 %v2932, 0.0
        %v5657 = vmax.f32 %v3283, 0.0
        %v5658 = vmax.f32 %v3285, 0.0
        %v5659 = vmax.f32 %v3636, 0.0
        %v5660 = vmax.f32 %v3638, 0.0
        %v5661 = vmax.f32 %v3989, 0.0
        %v5662 = vmax.f32 %v3991, 0.0
        %v5663 = vmax.f32 %v4342, 0.0
        %v5664 = vmax.f32 %v4344, 0.0
        %v5665 = vmax.f32 %v4695, 0.0
        %v5666 = vmax.f32 %v4697, 0.0
        %v5667 = vmax.f32 %v2228, 0.0
        %v5668 = vmax.f32 %v2230, 0.0
        %v5669 = vmax.f32 %v2581, 0.0
        %v5670 = vmax.f32 %v2583, 0.0
        %v5671 = vmax.f32 %v2934, 0.0
        %v5672 = vmax.f32 %v2936, 0.0
        %v5673 = vmax.f32 %v3287, 0.0
        %v5674 = vmax.f32 %v3289, 0.0
        %v5675 = vmax.f32 %v3640, 0.0
        %v5676 = vmax.f32 %v3642, 0.0
        %v5677 = vmax.f32 %v3993, 0.0
        %v5678 = vmax.f32 %v3995, 0.0
        %v5679 = vmax.f32 %v4346, 0.0
        %v5680 = vmax.f32 %v4348, 0.0
        %v5681 = vmax.f32 %v4699, 0.0
        %v5682 = vmax.f32 %v4701, 0.0
        %v5683 = vmax.f32 %v2234, 0.0
        %v5684 = vmax.f32 %v2236, 0.0
        %v5685 = vmax.f32 %v2587, 0.0
        %v5686 = vmax.f32 %v2589, 0.0
        %v5687 = vmax.f32 %v2940, 0.0
        %v5688 = vmax.f32 %v2942, 0.0
        %v5689 = vmax.f32 %v3293, 0.0
        %v5690 = vmax.f32 %v3295, 0.0
        %v5691 = vmax.f32 %v3646, 0.0
        %v5692 = vmax.f32 %v3648, 0.0
        %v5693 = vmax.f32 %v3999, 0.0
        %v5694 = vmax.f32 %v4001, 0.0
        %v5695 = vmax.f32 %v4352, 0.0
        %v5696 = vmax.f32 %v4354, 0.0
        %v5697 = vmax.f32 %v4705, 0.0
        %v5698 = vmax.f32 %v4707, 0.0
        %v5699 = vmax.f32 %v2238, 0.0
        %v5700 = vmax.f32 %v2240, 0.0
        %v5701 = vmax.f32 %v2591, 0.0
        %v5702 = vmax.f32 %v2593, 0.0
        %v5703 = vmax.f32 %v2944, 0.0
        %v5704 = vmax.f32 %v2946, 0.0
        %v5705 = vmax.f32 %v3297, 0.0
        %v5706 = vmax.f32 %v3299, 0.0
        %v5707 = vmax.f32 %v3650, 0.0
        %v5708 = vmax.f32 %v3652, 0.0
        %v5709 = vmax.f32 %v4003, 0.0
        %v5710 = vmax.f32 %v4005, 0.0
        %v5711 = vmax.f32 %v4356, 0.0
        %v5712 = vmax.f32 %v4358, 0.0
        %v5713 = vmax.f32 %v4709, 0.0
        %v5714 = vmax.f32 %v4711, 0.0
        %v5715 = vmax.f32 %v2244, 0.0
        %v5716 = vmax.f32 %v2246, 0.0
        %v5717 = vmax.f32 %v2597, 0.0
        %v5718 = vmax.f32 %v2599, 0.0
        %v5719 = vmax.f32 %v2950, 0.0
        %v5720 = vmax.f32 %v2952, 0.0
        %v5721 = vmax.f32 %v3303, 0.0
        %v5722 = vmax.f32 %v3305, 0.0
        %v5723 = vmax.f32 %v3656, 0.0
        %v5724 = vmax.f32 %v3658, 0.0
        %v5725 = vmax.f32 %v4009, 0.0
        %v5726 = vmax.f32 %v4011, 0.0
        %v5727 = vmax.f32 %v4362, 0.0
        %v5728 = vmax.f32 %v4364, 0.0
        %v5729 = vmax.f32 %v4715, 0.0
        %v5730 = vmax.f32 %v4717, 0.0
        %v5731 = vmax.f32 %v2248, 0.0
        %v5732 = vmax.f32 %v2250, 0.0
        %v5733 = vmax.f32 %v2601, 0.0
        %v5734 = vmax.f32 %v2603, 0.0
        %v5735 = vmax.f32 %v2954, 0.0
        %v5736 = vmax.f32 %v2956, 0.0
        %v5737 = vmax.f32 %v3307, 0.0
        %v5738 = vmax.f32 %v3309, 0.0
        %v5739 = vmax.f32 %v3660, 0.0
        %v5740 = vmax.f32 %v3662, 0.0
        %v5741 = vmax.f32 %v4013, 0.0
        %v5742 = vmax.f32 %v4015, 0.0
        %v5743 = vmax.f32 %v4366, 0.0
        %v5744 = vmax.f32 %v4368, 0.0
        %v5745 = vmax.f32 %v4719, 0.0
        %v5746 = vmax.f32 %v4721, 0.0
        %vm5747 = vcmp.lt.s32.totalorder %v467, 1089
        %vm5748 = vcmp.lt.s32.totalorder %v468, 1089
        %vm5749 = vcmp.lt.s32.totalorder %v469, 1089
        %vm5750 = vcmp.lt.s32.totalorder %v470, 1089
        %v5751 = vsel %vm5747, 1, 0
        %v5752 = vsel %vm5748, 1, 0
        %v5753 = vsel %vm5749, 1, 0
        %v5754 = vsel %vm5750, 1, 0
        %v5755 = vcvt.s32.f32 %v5751
        %v5756 = vcvt.s32.f32 %v5752
        %v5757 = vcvt.s32.f32 %v5753
        %v5758 = vcvt.s32.f32 %v5754
        %v5759 = vld [vmem:[#allocation2] sm:$0xff]
        %v5760 = vld [vmem:[#allocation2 + $0x8] sm:$0xff]
        %5761 = vmatprep.subr.mxu0 %v4724
        %5762 = vmatpush1.msra.mxu0 %v4723
        %5763 = vmatprep.subr.mxu0 %v4740
        %5764 = vmatpush1.msra.mxu0 %v4739
        %5765 = vmatprep.subr.mxu0 %v4756
        %5766 = vmatpush1.msra.mxu0 %v4755
        %5767 = vmatprep.subr.mxu0 %v4772
        %5768 = vmatpush1.msra.mxu0 %v4771
        %5769 = vmatprep.subr.mxu0 %v4788
        %5770 = vmatpush1.msra.mxu0 %v4787
        %5771 = vmatprep.subr.mxu0 %v4804
        %5772 = vmatpush1.msra.mxu0 %v4803
        %5773 = vmatprep.subr.mxu0 %v4820
        %5774 = vmatpush1.msra.mxu0 %v4819
        %5775 = vmatprep.subr.mxu0 %v4836
        %5776 = vmatpush1.msra.mxu0 %v4835
        %5777 = vmatprep.subr.mxu0 %v4852
        %5778 = vmatpush1.msra.mxu0 %v4851
        %5779 = vmatprep.subr.mxu0 %v4868
        %5780 = vmatpush1.msra.mxu0 %v4867
        %5781 = vmatprep.subr.mxu0 %v4884
        %5782 = vmatpush1.msra.mxu0 %v4883
        %5783 = vmatprep.subr.mxu0 %v4900
        %5784 = vmatpush1.msra.mxu0 %v4899
        %5785 = vmatprep.subr.mxu0 %v4916
        %5786 = vmatpush1.msra.mxu0 %v4915
        %5787 = vmatprep.subr.mxu0 %v4932
        %5788 = vmatpush1.msra.mxu0 %v4931
        %5789 = vmatprep.subr.mxu0 %v4948
        %5790 = vmatpush1.msra.mxu0 %v4947
        %5791 = vmatprep.subr.mxu0 %v4964
        %5792 = vmatpush1.msra.mxu0 %v4963
        %5793 = vmatprep.subr.mxu0 %v4980
        %5794 = vmatpush1.msra.mxu0 %v4979
        %5795 = vmatprep.subr.mxu0 %v4996
        %5796 = vmatpush1.msra.mxu0 %v4995
        %5797 = vmatprep.subr.mxu0 %v5012
        %5798 = vmatpush1.msra.mxu0 %v5011
        %5799 = vmatprep.subr.mxu0 %v5028
        %5800 = vmatpush1.msra.mxu0 %v5027
        %5801 = vmatprep.subr.mxu0 %v5044
        %5802 = vmatpush1.msra.mxu0 %v5043
        %5803 = vmatprep.subr.mxu0 %v5060
        %5804 = vmatpush1.msra.mxu0 %v5059
        %5805 = vmatprep.subr.mxu0 %v5076
        %5806 = vmatpush1.msra.mxu0 %v5075
        %5807 = vmatprep.subr.mxu0 %v5092
        %5808 = vmatpush1.msra.mxu0 %v5091
        %5809 = vmatprep.subr.mxu0 %v5108
        %5810 = vmatpush1.msra.mxu0 %v5107
        %5811 = vmatprep.subr.mxu0 %v5124
        %5812 = vmatpush1.msra.mxu0 %v5123
        %5813 = vmatprep.subr.mxu0 %v5140
        %5814 = vmatpush1.msra.mxu0 %v5139
        %5815 = vmatprep.subr.mxu0 %v5156
        %5816 = vmatpush1.msra.mxu0 %v5155
        %5817 = vmatprep.subr.mxu0 %v5172
        %5818 = vmatpush1.msra.mxu0 %v5171
        %5819 = vmatprep.subr.mxu0 %v5188
        %5820 = vmatpush1.msra.mxu0 %v5187
        %5821 = vmatprep.subr.mxu0 %v5204
        %5822 = vmatpush1.msra.mxu0 %v5203
        %5823 = vmatprep.subr.mxu0 %v5220
        %5824 = vmatpush1.msra.mxu0 %v5219
        %5825 = vmatprep.mubr.f32.mxu0 %v5756
        %5826 = vmatmul.mubr.f32.gmra.mrb[0].mxu0 %v5755
        %v5827 = vpop.f32.mrb[0].mxu0
        %v5828 = vadd.f32 0.0, %v5827
        %v5829 = vpop.f32.mrb[0].mxu0
        %v5830 = vadd.f32 0.0, %v5829
        %5831 = vdwg.mxu0
        %5832 = vmatprep.subr.mxu0 %v5236
        %5833 = vmatpush1.msra.mxu0 %v5235
        %5834 = vmatprep.subr.mxu0 %v5252
        %5835 = vmatpush1.msra.mxu0 %v5251
        %5836 = vmatprep.subr.mxu0 %v5268
        %5837 = vmatpush1.msra.mxu0 %v5267
        %5838 = vmatprep.subr.mxu0 %v5284
        %5839 = vmatpush1.msra.mxu0 %v5283
        %5840 = vmatprep.subr.mxu0 %v5300
        %5841 = vmatpush1.msra.mxu0 %v5299
        %5842 = vmatprep.subr.mxu0 %v5316
        %5843 = vmatpush1.msra.mxu0 %v5315
        %5844 = vmatprep.subr.mxu0 %v5332
        %5845 = vmatpush1.msra.mxu0 %v5331
        %5846 = vmatprep.subr.mxu0 %v5348
        %5847 = vmatpush1.msra.mxu0 %v5347
        %5848 = vmatprep.subr.mxu0 %v5364
        %5849 = vmatpush1.msra.mxu0 %v5363
        %5850 = vmatprep.subr.mxu0 %v5380
        %5851 = vmatpush1.msra.mxu0 %v5379
        %5852 = vmatprep.subr.mxu0 %v5396
        %5853 = vmatpush1.msra.mxu0 %v5395
        %5854 = vmatprep.subr.mxu0 %v5412
        %5855 = vmatpush1.msra.mxu0 %v5411
        %5856 = vmatprep.subr.mxu0 %v5428
        %5857 = vmatpush1.msra.mxu0 %v5427
        %5858 = vmatprep.subr.mxu0 %v5444
        %5859 = vmatpush1.msra.mxu0 %v5443
        %5860 = vmatprep.subr.mxu0 %v5460
        %5861 = vmatpush1.msra.mxu0 %v5459
        %5862 = vmatprep.subr.mxu0 %v5476
        %5863 = vmatpush1.msra.mxu0 %v5475
        %5864 = vmatprep.subr.mxu0 %v5492
        %5865 = vmatpush1.msra.mxu0 %v5491
        %5866 = vmatprep.subr.mxu0 %v5508
        %5867 = vmatpush1.msra.mxu0 %v5507
        %5868 = vmatprep.subr.mxu0 %v5524
        %5869 = vmatpush1.msra.mxu0 %v5523
        %5870 = vmatprep.subr.mxu0 %v5540
        %5871 = vmatpush1.msra.mxu0 %v5539
        %5872 = vmatprep.subr.mxu0 %v5556
        %5873 = vmatpush1.msra.mxu0 %v5555
        %5874 = vmatprep.subr.mxu0 %v5572
        %5875 = vmatpush1.msra.mxu0 %v5571
        %5876 = vmatprep.subr.mxu0 %v5588
        %5877 = vmatpush1.msra.mxu0 %v5587
        %5878 = vmatprep.subr.mxu0 %v5604
        %5879 = vmatpush1.msra.mxu0 %v5603
        %5880 = vmatprep.subr.mxu0 %v5620
        %5881 = vmatpush1.msra.mxu0 %v5619
        %5882 = vmatprep.subr.mxu0 %v5636
        %5883 = vmatpush1.msra.mxu0 %v5635
        %5884 = vmatprep.subr.mxu0 %v5652
        %5885 = vmatpush1.msra.mxu0 %v5651
        %5886 = vmatprep.subr.mxu0 %v5668
        %5887 = vmatpush1.msra.mxu0 %v5667
        %5888 = vmatprep.subr.mxu0 %v5684
        %5889 = vmatpush1.msra.mxu0 %v5683
        %5890 = vmatprep.subr.mxu0 %v5700
        %5891 = vmatpush1.msra.mxu0 %v5699
        %5892 = vmatprep.subr.mxu0 %v5716
        %5893 = vmatpush1.msra.mxu0 %v5715
        %5894 = vmatprep.subr.mxu0 %v5732
        %5895 = vmatpush1.msra.mxu0 %v5731
        %5896 = vmatprep.mubr.f32.mxu0 %v5758
        %5897 = vmatmul.mubr.f32.gmra.mrb[0].mxu0 %v5757
        %v5898 = vpop.f32.mrb[0].mxu0
        %v5899 = vadd.f32 %v5828, %v5898
        %v5900 = vpop.f32.mrb[0].mxu0
        %v5901 = vadd.f32 %v5830, %v5900
        %5902 = vdwg.mxu0
        %5903 = vmatprep.subr.mxu0 %v4726
        %5904 = vmatpush1.msra.mxu0 %v4725
        %5905 = vmatprep.subr.mxu0 %v4742
        %5906 = vmatpush1.msra.mxu0 %v4741
        %5907 = vmatprep.subr.mxu0 %v4758
        %5908 = vmatpush1.msra.mxu0 %v4757
        %5909 = vmatprep.subr.mxu0 %v4774
        %5910 = vmatpush1.msra.mxu0 %v4773
        %5911 = vmatprep.subr.mxu0 %v4790
        %5912 = vmatpush1.msra.mxu0 %v4789
        %5913 = vmatprep.subr.mxu0 %v4806
        %5914 = vmatpush1.msra.mxu0 %v4805
        %5915 = vmatprep.subr.mxu0 %v4822
        %5916 = vmatpush1.msra.mxu0 %v4821
        %5917 = vmatprep.subr.mxu0 %v4838
        %5918 = vmatpush1.msra.mxu0 %v4837
        %5919 = vmatprep.subr.mxu0 %v4854
        %5920 = vmatpush1.msra.mxu0 %v4853
        %5921 = vmatprep.subr.mxu0 %v4870
        %5922 = vmatpush1.msra.mxu0 %v4869
        %5923 = vmatprep.subr.mxu0 %v4886
        %5924 = vmatpush1.msra.mxu0 %v4885
        %5925 = vmatprep.subr.mxu0 %v4902
        %5926 = vmatpush1.msra.mxu0 %v4901
        %5927 = vmatprep.subr.mxu0 %v4918
        %5928 = vmatpush1.msra.mxu0 %v4917
        %5929 = vmatprep.subr.mxu0 %v4934
        %5930 = vmatpush1.msra.mxu0 %v4933
        %5931 = vmatprep.subr.mxu0 %v4950
        %5932 = vmatpush1.msra.mxu0 %v4949
        %5933 = vmatprep.subr.mxu0 %v4966
        %5934 = vmatpush1.msra.mxu0 %v4965
        %5935 = vmatprep.subr.mxu0 %v4982
        %5936 = vmatpush1.msra.mxu0 %v4981
        %5937 = vmatprep.subr.mxu0 %v4998
        %5938 = vmatpush1.msra.mxu0 %v4997
        %5939 = vmatprep.subr.mxu0 %v5014
        %5940 = vmatpush1.msra.mxu0 %v5013
        %5941 = vmatprep.subr.mxu0 %v5030
        %5942 = vmatpush1.msra.mxu0 %v5029
        %5943 = vmatprep.subr.mxu0 %v5046
        %5944 = vmatpush1.msra.mxu0 %v5045
        %5945 = vmatprep.subr.mxu0 %v5062
        %5946 = vmatpush1.msra.mxu0 %v5061
        %5947 = vmatprep.subr.mxu0 %v5078
        %5948 = vmatpush1.msra.mxu0 %v5077
        %5949 = vmatprep.subr.mxu0 %v5094
        %5950 = vmatpush1.msra.mxu0 %v5093
        %5951 = vmatprep.subr.mxu0 %v5110
        %5952 = vmatpush1.msra.mxu0 %v5109
        %5953 = vmatprep.subr.mxu0 %v5126
        %5954 = vmatpush1.msra.mxu0 %v5125
        %5955 = vmatprep.subr.mxu0 %v5142
        %5956 = vmatpush1.msra.mxu0 %v5141
        %5957 = vmatprep.subr.mxu0 %v5158
        %5958 = vmatpush1.msra.mxu0 %v5157
        %5959 = vmatprep.subr.mxu0 %v5174
        %5960 = vmatpush1.msra.mxu0 %v5173
        %5961 = vmatprep.subr.mxu0 %v5190
        %5962 = vmatpush1.msra.mxu0 %v5189
        %5963 = vmatprep.subr.mxu0 %v5206
        %5964 = vmatpush1.msra.mxu0 %v5205
        %5965 = vmatprep.subr.mxu0 %v5222
        %5966 = vmatpush1.msra.mxu0 %v5221
        %5967 = vmatprep.mubr.f32.mxu0 %v5756
        %5968 = vmatmul.mubr.f32.gmra.mrb[0].mxu0 %v5755
        %v5969 = vpop.f32.mrb[0].mxu0
        %v5970 = vadd.f32 0.0, %v5969
        %v5971 = vpop.f32.mrb[0].mxu0
        %v5972 = vadd.f32 0.0, %v5971
        %5973 = vdwg.mxu0
        %5974 = vmatprep.subr.mxu0 %v5238
        %5975 = vmatpush1.msra.mxu0 %v5237
        %5976 = vmatprep.subr.mxu0 %v5254
        %5977 = vmatpush1.msra.mxu0 %v5253
        %5978 = vmatprep.subr.mxu0 %v5270
        %5979 = vmatpush1.msra.mxu0 %v5269
        %5980 = vmatprep.subr.mxu0 %v5286
        %5981 = vmatpush1.msra.mxu0 %v5285
        %5982 = vmatprep.subr.mxu0 %v5302
        %5983 = vmatpush1.msra.mxu0 %v5301
        %5984 = vmatprep.subr.mxu0 %v5318
        %5985 = vmatpush1.msra.mxu0 %v5317
        %5986 = vmatprep.subr.mxu0 %v5334
        %5987 = vmatpush1.msra.mxu0 %v5333
        %5988 = vmatprep.subr.mxu0 %v5350
        %5989 = vmatpush1.msra.mxu0 %v5349
        %5990 = vmatprep.subr.mxu0 %v5366
        %5991 = vmatpush1.msra.mxu0 %v5365
        %5992 = vmatprep.subr.mxu0 %v5382
        %5993 = vmatpush1.msra.mxu0 %v5381
        %5994 = vmatprep.subr.mxu0 %v5398
        %5995 = vmatpush1.msra.mxu0 %v5397
        %5996 = vmatprep.subr.mxu0 %v5414
        %5997 = vmatpush1.msra.mxu0 %v5413
        %5998 = vmatprep.subr.mxu0 %v5430
        %5999 = vmatpush1.msra.mxu0 %v5429
        %6000 = vmatprep.subr.mxu0 %v5446
        %6001 = vmatpush1.msra.mxu0 %v5445
        %6002 = vmatprep.subr.mxu0 %v5462
        %6003 = vmatpush1.msra.mxu0 %v5461
        %6004 = vmatprep.subr.mxu0 %v5478
        %6005 = vmatpush1.msra.mxu0 %v5477
        %6006 = vmatprep.subr.mxu0 %v5494
        %6007 = vmatpush1.msra.mxu0 %v5493
        %6008 = vmatprep.subr.mxu0 %v5510
        %6009 = vmatpush1.msra.mxu0 %v5509
        %6010 = vmatprep.subr.mxu0 %v5526
        %6011 = vmatpush1.msra.mxu0 %v5525
        %6012 = vmatprep.subr.mxu0 %v5542
        %6013 = vmatpush1.msra.mxu0 %v5541
        %6014 = vmatprep.subr.mxu0 %v5558
        %6015 = vmatpush1.msra.mxu0 %v5557
        %6016 = vmatprep.subr.mxu0 %v5574
        %6017 = vmatpush1.msra.mxu0 %v5573
        %6018 = vmatprep.subr.mxu0 %v5590
        %6019 = vmatpush1.msra.mxu0 %v5589
        %6020 = vmatprep.subr.mxu0 %v5606
        %6021 = vmatpush1.msra.mxu0 %v5605
        %6022 = vmatprep.subr.mxu0 %v5622
        %6023 = vmatpush1.msra.mxu0 %v5621
        %6024 = vmatprep.subr.mxu0 %v5638
        %6025 = vmatpush1.msra.mxu0 %v5637
        %6026 = vmatprep.subr.mxu0 %v5654
        %6027 = vmatpush1.msra.mxu0 %v5653
        %6028 = vmatprep.subr.mxu0 %v5670
        %6029 = vmatpush1.msra.mxu0 %v5669
        %6030 = vmatprep.subr.mxu0 %v5686
        %6031 = vmatpush1.msra.mxu0 %v5685
        %6032 = vmatprep.subr.mxu0 %v5702
        %6033 = vmatpush1.msra.mxu0 %v5701
        %6034 = vmatprep.subr.mxu0 %v5718
        %6035 = vmatpush1.msra.mxu0 %v5717
        %6036 = vmatprep.subr.mxu0 %v5734
        %6037 = vmatpush1.msra.mxu0 %v5733
        %6038 = vmatprep.mubr.f32.mxu0 %v5758
        %6039 = vmatmul.mubr.f32.gmra.mrb[0].mxu0 %v5757
        %v6040 = vpop.f32.mrb[0].mxu0
        %v6041 = vadd.f32 %v5970, %v6040
        %v6042 = vpop.f32.mrb[0].mxu0
        %v6043 = vadd.f32 %v5972, %v6042
        %6044 = vdwg.mxu0
        %6045 = vmatprep.subr.mxu0 %v4728
        %6046 = vmatpush1.msra.mxu0 %v4727
        %6047 = vmatprep.subr.mxu0 %v4744
        %6048 = vmatpush1.msra.mxu0 %v4743
        %6049 = vmatprep.subr.mxu0 %v4760
        %6050 = vmatpush1.msra.mxu0 %v4759
        %6051 = vmatprep.subr.mxu0 %v4776
        %6052 = vmatpush1.msra.mxu0 %v4775
        %6053 = vmatprep.subr.mxu0 %v4792
        %6054 = vmatpush1.msra.mxu0 %v4791
        %6055 = vmatprep.subr.mxu0 %v4808
        %6056 = vmatpush1.msra.mxu0 %v4807
        %6057 = vmatprep.subr.mxu0 %v4824
        %6058 = vmatpush1.msra.mxu0 %v4823
        %6059 = vmatprep.subr.mxu0 %v4840
        %6060 = vmatpush1.msra.mxu0 %v4839
        %6061 = vmatprep.subr.mxu0 %v4856
        %6062 = vmatpush1.msra.mxu0 %v4855
        %6063 = vmatprep.subr.mxu0 %v4872
        %6064 = vmatpush1.msra.mxu0 %v4871
        %6065 = vmatprep.subr.mxu0 %v4888
        %6066 = vmatpush1.msra.mxu0 %v4887
        %6067 = vmatprep.subr.mxu0 %v4904
        %6068 = vmatpush1.msra.mxu0 %v4903
        %6069 = vmatprep.subr.mxu0 %v4920
        %6070 = vmatpush1.msra.mxu0 %v4919
        %6071 = vmatprep.subr.mxu0 %v4936
        %6072 = vmatpush1.msra.mxu0 %v4935
        %6073 = vmatprep.subr.mxu0 %v4952
        %6074 = vmatpush1.msra.mxu0 %v4951
        %6075 = vmatprep.subr.mxu0 %v4968
        %6076 = vmatpush1.msra.mxu0 %v4967
        %6077 = vmatprep.subr.mxu0 %v4984
        %6078 = vmatpush1.msra.mxu0 %v4983
        %6079 = vmatprep.subr.mxu0 %v5000
        %6080 = vmatpush1.msra.mxu0 %v4999
        %6081 = vmatprep.subr.mxu0 %v5016
        %6082 = vmatpush1.msra.mxu0 %v5015
        %6083 = vmatprep.subr.mxu0 %v5032
        %6084 = vmatpush1.msra.mxu0 %v5031
        %6085 = vmatprep.subr.mxu0 %v5048
        %6086 = vmatpush1.msra.mxu0 %v5047
        %6087 = vmatprep.subr.mxu0 %v5064
        %6088 = vmatpush1.msra.mxu0 %v5063
        %6089 = vmatprep.subr.mxu0 %v5080
        %6090 = vmatpush1.msra.mxu0 %v5079
        %6091 = vmatprep.subr.mxu0 %v5096
        %6092 = vmatpush1.msra.mxu0 %v5095
        %6093 = vmatprep.subr.mxu0 %v5112
        %6094 = vmatpush1.msra.mxu0 %v5111
        %6095 = vmatprep.subr.mxu0 %v5128
        %6096 = vmatpush1.msra.mxu0 %v5127
        %6097 = vmatprep.subr.mxu0 %v5144
        %6098 = vmatpush1.msra.mxu0 %v5143
        %6099 = vmatprep.subr.mxu0 %v5160
        %6100 = vmatpush1.msra.mxu0 %v5159
        %6101 = vmatprep.subr.mxu0 %v5176
        %6102 = vmatpush1.msra.mxu0 %v5175
        %6103 = vmatprep.subr.mxu0 %v5192
        %6104 = vmatpush1.msra.mxu0 %v5191
        %6105 = vmatprep.subr.mxu0 %v5208
        %6106 = vmatpush1.msra.mxu0 %v5207
        %6107 = vmatprep.subr.mxu0 %v5224
        %6108 = vmatpush1.msra.mxu0 %v5223
        %6109 = vmatprep.mubr.f32.mxu0 %v5756
        %6110 = vmatmul.mubr.f32.gmra.mrb[0].mxu0 %v5755
        %v6111 = vpop.f32.mrb[0].mxu0
        %v6112 = vadd.f32 0.0, %v6111
        %v6113 = vpop.f32.mrb[0].mxu0
        %v6114 = vadd.f32 0.0, %v6113
        %6115 = vdwg.mxu0
        %6116 = vmatprep.subr.mxu0 %v5240
        %6117 = vmatpush1.msra.mxu0 %v5239
        %6118 = vmatprep.subr.mxu0 %v5256
        %6119 = vmatpush1.msra.mxu0 %v5255
        %6120 = vmatprep.subr.mxu0 %v5272
        %6121 = vmatpush1.msra.mxu0 %v5271
        %6122 = vmatprep.subr.mxu0 %v5288
        %6123 = vmatpush1.msra.mxu0 %v5287
        %6124 = vmatprep.subr.mxu0 %v5304
        %6125 = vmatpush1.msra.mxu0 %v5303
        %6126 = vmatprep.subr.mxu0 %v5320
        %6127 = vmatpush1.msra.mxu0 %v5319
        %6128 = vmatprep.subr.mxu0 %v5336
        %6129 = vmatpush1.msra.mxu0 %v5335
        %6130 = vmatprep.subr.mxu0 %v5352
        %6131 = vmatpush1.msra.mxu0 %v5351
        %6132 = vmatprep.subr.mxu0 %v5368
        %6133 = vmatpush1.msra.mxu0 %v5367
        %6134 = vmatprep.subr.mxu0 %v5384
        %6135 = vmatpush1.msra.mxu0 %v5383
        %6136 = vmatprep.subr.mxu0 %v5400
        %6137 = vmatpush1.msra.mxu0 %v5399
        %6138 = vmatprep.subr.mxu0 %v5416
        %6139 = vmatpush1.msra.mxu0 %v5415
        %6140 = vmatprep.subr.mxu0 %v5432
        %6141 = vmatpush1.msra.mxu0 %v5431
        %6142 = vmatprep.subr.mxu0 %v5448
        %6143 = vmatpush1.msra.mxu0 %v5447
        %6144 = vmatprep.subr.mxu0 %v5464
        %6145 = vmatpush1.msra.mxu0 %v5463
        %6146 = vmatprep.subr.mxu0 %v5480
        %6147 = vmatpush1.msra.mxu0 %v5479
        %6148 = vmatprep.subr.mxu0 %v5496
        %6149 = vmatpush1.msra.mxu0 %v5495
        %6150 = vmatprep.subr.mxu0 %v5512
        %6151 = vmatpush1.msra.mxu0 %v5511
        %6152 = vmatprep.subr.mxu0 %v5528
        %6153 = vmatpush1.msra.mxu0 %v5527
        %6154 = vmatprep.subr.mxu0 %v5544
        %6155 = vmatpush1.msra.mxu0 %v5543
        %6156 = vmatprep.subr.mxu0 %v5560
        %6157 = vmatpush1.msra.mxu0 %v5559
        %6158 = vmatprep.subr.mxu0 %v5576
        %6159 = vmatpush1.msra.mxu0 %v5575
        %6160 = vmatprep.subr.mxu0 %v5592
        %6161 = vmatpush1.msra.mxu0 %v5591
        %6162 = vmatprep.subr.mxu0 %v5608
        %6163 = vmatpush1.msra.mxu0 %v5607
        %6164 = vmatprep.subr.mxu0 %v5624
        %6165 = vmatpush1.msra.mxu0 %v5623
        %6166 = vmatprep.subr.mxu0 %v5640
        %6167 = vmatpush1.msra.mxu0 %v5639
        %6168 = vmatprep.subr.mxu0 %v5656
        %6169 = vmatpush1.msra.mxu0 %v5655
        %6170 = vmatprep.subr.mxu0 %v5672
        %6171 = vmatpush1.msra.mxu0 %v5671
        %6172 = vmatprep.subr.mxu0 %v5688
        %6173 = vmatpush1.msra.mxu0 %v5687
        %6174 = vmatprep.subr.mxu0 %v5704
        %6175 = vmatpush1.msra.mxu0 %v5703
        %6176 = vmatprep.subr.mxu0 %v5720
        %6177 = vmatpush1.msra.mxu0 %v5719
        %6178 = vmatprep.subr.mxu0 %v5736
        %6179 = vmatpush1.msra.mxu0 %v5735
        %6180 = vmatprep.mubr.f32.mxu0 %v5758
        %6181 = vmatmul.mubr.f32.gmra.mrb[0].mxu0 %v5757
        %v6182 = vpop.f32.mrb[0].mxu0
        %v6183 = vadd.f32 %v6112, %v6182
        %v6184 = vpop.f32.mrb[0].mxu0
        %v6185 = vadd.f32 %v6114, %v6184
        %6186 = vdwg.mxu0
        %6187 = vmatprep.subr.mxu0 %v4730
        %6188 = vmatpush1.msra.mxu0 %v4729
        %6189 = vmatprep.subr.mxu0 %v4746
        %6190 = vmatpush1.msra.mxu0 %v4745
        %6191 = vmatprep.subr.mxu0 %v4762
        %6192 = vmatpush1.msra.mxu0 %v4761
        %6193 = vmatprep.subr.mxu0 %v4778
        %6194 = vmatpush1.msra.mxu0 %v4777
        %6195 = vmatprep.subr.mxu0 %v4794
        %6196 = vmatpush1.msra.mxu0 %v4793
        %6197 = vmatprep.subr.mxu0 %v4810
        %6198 = vmatpush1.msra.mxu0 %v4809
        %6199 = vmatprep.subr.mxu0 %v4826
        %6200 = vmatpush1.msra.mxu0 %v4825
        %6201 = vmatprep.subr.mxu0 %v4842
        %6202 = vmatpush1.msra.mxu0 %v4841
        %6203 = vmatprep.subr.mxu0 %v4858
        %6204 = vmatpush1.msra.mxu0 %v4857
        %6205 = vmatprep.subr.mxu0 %v4874
        %6206 = vmatpush1.msra.mxu0 %v4873
        %6207 = vmatprep.subr.mxu0 %v4890
        %6208 = vmatpush1.msra.mxu0 %v4889
        %6209 = vmatprep.subr.mxu0 %v4906
        %6210 = vmatpush1.msra.mxu0 %v4905
        %6211 = vmatprep.subr.mxu0 %v4922
        %6212 = vmatpush1.msra.mxu0 %v4921
        %6213 = vmatprep.subr.mxu0 %v4938
        %6214 = vmatpush1.msra.mxu0 %v4937
        %6215 = vmatprep.subr.mxu0 %v4954
        %6216 = vmatpush1.msra.mxu0 %v4953
        %6217 = vmatprep.subr.mxu0 %v4970
        %6218 = vmatpush1.msra.mxu0 %v4969
        %6219 = vmatprep.subr.mxu0 %v4986
        %6220 = vmatpush1.msra.mxu0 %v4985
        %6221 = vmatprep.subr.mxu0 %v5002
        %6222 = vmatpush1.msra.mxu0 %v5001
        %6223 = vmatprep.subr.mxu0 %v5018
        %6224 = vmatpush1.msra.mxu0 %v5017
        %6225 = vmatprep.subr.mxu0 %v5034
        %6226 = vmatpush1.msra.mxu0 %v5033
        %6227 = vmatprep.subr.mxu0 %v5050
        %6228 = vmatpush1.msra.mxu0 %v5049
        %6229 = vmatprep.subr.mxu0 %v5066
        %6230 = vmatpush1.msra.mxu0 %v5065
        %6231 = vmatprep.subr.mxu0 %v5082
        %6232 = vmatpush1.msra.mxu0 %v5081
        %6233 = vmatprep.subr.mxu0 %v5098
        %6234 = vmatpush1.msra.mxu0 %v5097
        %6235 = vmatprep.subr.mxu0 %v5114
        %6236 = vmatpush1.msra.mxu0 %v5113
        %6237 = vmatprep.subr.mxu0 %v5130
        %6238 = vmatpush1.msra.mxu0 %v5129
        %6239 = vmatprep.subr.mxu0 %v5146
        %6240 = vmatpush1.msra.mxu0 %v5145
        %6241 = vmatprep.subr.mxu0 %v5162
        %6242 = vmatpush1.msra.mxu0 %v5161
        %6243 = vmatprep.subr.mxu0 %v5178
        %6244 = vmatpush1.msra.mxu0 %v5177
        %6245 = vmatprep.subr.mxu0 %v5194
        %6246 = vmatpush1.msra.mxu0 %v5193
        %6247 = vmatprep.subr.mxu0 %v5210
        %6248 = vmatpush1.msra.mxu0 %v5209
        %6249 = vmatprep.subr.mxu0 %v5226
        %6250 = vmatpush1.msra.mxu0 %v5225
        %6251 = vmatprep.mubr.f32.mxu0 %v5756
        %6252 = vmatmul.mubr.f32.gmra.mrb[0].mxu0 %v5755
        %v6253 = vpop.f32.mrb[0].mxu0
        %v6254 = vadd.f32 0.0, %v6253
        %v6255 = vpop.f32.mrb[0].mxu0
        %v6256 = vadd.f32 0.0, %v6255
        %6257 = vdwg.mxu0
        %6258 = vmatprep.subr.mxu0 %v5242
        %6259 = vmatpush1.msra.mxu0 %v5241
        %6260 = vmatprep.subr.mxu0 %v5258
        %6261 = vmatpush1.msra.mxu0 %v5257
        %6262 = vmatprep.subr.mxu0 %v5274
        %6263 = vmatpush1.msra.mxu0 %v5273
        %6264 = vmatprep.subr.mxu0 %v5290
        %6265 = vmatpush1.msra.mxu0 %v5289
        %6266 = vmatprep.subr.mxu0 %v5306
        %6267 = vmatpush1.msra.mxu0 %v5305
        %6268 = vmatprep.subr.mxu0 %v5322
        %6269 = vmatpush1.msra.mxu0 %v5321
        %6270 = vmatprep.subr.mxu0 %v5338
        %6271 = vmatpush1.msra.mxu0 %v5337
        %6272 = vmatprep.subr.mxu0 %v5354
        %6273 = vmatpush1.msra.mxu0 %v5353
        %6274 = vmatprep.subr.mxu0 %v5370
        %6275 = vmatpush1.msra.mxu0 %v5369
        %6276 = vmatprep.subr.mxu0 %v5386
        %6277 = vmatpush1.msra.mxu0 %v5385
        %6278 = vmatprep.subr.mxu0 %v5402
        %6279 = vmatpush1.msra.mxu0 %v5401
        %6280 = vmatprep.subr.mxu0 %v5418
        %6281 = vmatpush1.msra.mxu0 %v5417
        %6282 = vmatprep.subr.mxu0 %v5434
        %6283 = vmatpush1.msra.mxu0 %v5433
        %6284 = vmatprep.subr.mxu0 %v5450
        %6285 = vmatpush1.msra.mxu0 %v5449
        %6286 = vmatprep.subr.mxu0 %v5466
        %6287 = vmatpush1.msra.mxu0 %v5465
        %6288 = vmatprep.subr.mxu0 %v5482
        %6289 = vmatpush1.msra.mxu0 %v5481
        %6290 = vmatprep.subr.mxu0 %v5498
        %6291 = vmatpush1.msra.mxu0 %v5497
        %6292 = vmatprep.subr.mxu0 %v5514
        %6293 = vmatpush1.msra.mxu0 %v5513
        %6294 = vmatprep.subr.mxu0 %v5530
        %6295 = vmatpush1.msra.mxu0 %v5529
        %6296 = vmatprep.subr.mxu0 %v5546
        %6297 = vmatpush1.msra.mxu0 %v5545
        %6298 = vmatprep.subr.mxu0 %v5562
        %6299 = vmatpush1.msra.mxu0 %v5561
        %6300 = vmatprep.subr.mxu0 %v5578
        %6301 = vmatpush1.msra.mxu0 %v5577
        %6302 = vmatprep.subr.mxu0 %v5594
        %6303 = vmatpush1.msra.mxu0 %v5593
        %6304 = vmatprep.subr.mxu0 %v5610
        %6305 = vmatpush1.msra.mxu0 %v5609
        %6306 = vmatprep.subr.mxu0 %v5626
        %6307 = vmatpush1.msra.mxu0 %v5625
        %6308 = vmatprep.subr.mxu0 %v5642
        %6309 = vmatpush1.msra.mxu0 %v5641
        %6310 = vmatprep.subr.mxu0 %v5658
        %6311 = vmatpush1.msra.mxu0 %v5657
        %6312 = vmatprep.subr.mxu0 %v5674
        %6313 = vmatpush1.msra.mxu0 %v5673
        %6314 = vmatprep.subr.mxu0 %v5690
        %6315 = vmatpush1.msra.mxu0 %v5689
        %6316 = vmatprep.subr.mxu0 %v5706
        %6317 = vmatpush1.msra.mxu0 %v5705
        %6318 = vmatprep.subr.mxu0 %v5722
        %6319 = vmatpush1.msra.mxu0 %v5721
        %6320 = vmatprep.subr.mxu0 %v5738
        %6321 = vmatpush1.msra.mxu0 %v5737
        %6322 = vmatprep.mubr.f32.mxu0 %v5758
        %6323 = vmatmul.mubr.f32.gmra.mrb[0].mxu0 %v5757
        %v6324 = vpop.f32.mrb[0].mxu0
        %v6325 = vadd.f32 %v6254, %v6324
        %v6326 = vpop.f32.mrb[0].mxu0
        %v6327 = vadd.f32 %v6256, %v6326
        %6328 = vdwg.mxu0
        %6329 = vmatprep.subr.mxu0 %v4732
        %6330 = vmatpush1.msra.mxu0 %v4731
        %6331 = vmatprep.subr.mxu0 %v4748
        %6332 = vmatpush1.msra.mxu0 %v4747
        %6333 = vmatprep.subr.mxu0 %v4764
        %6334 = vmatpush1.msra.mxu0 %v4763
        %6335 = vmatprep.subr.mxu0 %v4780
        %6336 = vmatpush1.msra.mxu0 %v4779
        %6337 = vmatprep.subr.mxu0 %v4796
        %6338 = vmatpush1.msra.mxu0 %v4795
        %6339 = vmatprep.subr.mxu0 %v4812
        %6340 = vmatpush1.msra.mxu0 %v4811
        %6341 = vmatprep.subr.mxu0 %v4828
        %6342 = vmatpush1.msra.mxu0 %v4827
        %6343 = vmatprep.subr.mxu0 %v4844
        %6344 = vmatpush1.msra.mxu0 %v4843
        %6345 = vmatprep.subr.mxu0 %v4860
        %6346 = vmatpush1.msra.mxu0 %v4859
        %6347 = vmatprep.subr.mxu0 %v4876
        %6348 = vmatpush1.msra.mxu0 %v4875
        %6349 = vmatprep.subr.mxu0 %v4892
        %6350 = vmatpush1.msra.mxu0 %v4891
        %6351 = vmatprep.subr.mxu0 %v4908
        %6352 = vmatpush1.msra.mxu0 %v4907
        %6353 = vmatprep.subr.mxu0 %v4924
        %6354 = vmatpush1.msra.mxu0 %v4923
        %6355 = vmatprep.subr.mxu0 %v4940
        %6356 = vmatpush1.msra.mxu0 %v4939
        %6357 = vmatprep.subr.mxu0 %v4956
        %6358 = vmatpush1.msra.mxu0 %v4955
        %6359 = vmatprep.subr.mxu0 %v4972
        %6360 = vmatpush1.msra.mxu0 %v4971
        %6361 = vmatprep.subr.mxu0 %v4988
        %6362 = vmatpush1.msra.mxu0 %v4987
        %6363 = vmatprep.subr.mxu0 %v5004
        %6364 = vmatpush1.msra.mxu0 %v5003
        %6365 = vmatprep.subr.mxu0 %v5020
        %6366 = vmatpush1.msra.mxu0 %v5019
        %6367 = vmatprep.subr.mxu0 %v5036
        %6368 = vmatpush1.msra.mxu0 %v5035
        %6369 = vmatprep.subr.mxu0 %v5052
        %6370 = vmatpush1.msra.mxu0 %v5051
        %6371 = vmatprep.subr.mxu0 %v5068
        %6372 = vmatpush1.msra.mxu0 %v5067
        %6373 = vmatprep.subr.mxu0 %v5084
        %6374 = vmatpush1.msra.mxu0 %v5083
        %6375 = vmatprep.subr.mxu0 %v5100
        %6376 = vmatpush1.msra.mxu0 %v5099
        %6377 = vmatprep.subr.mxu0 %v5116
        %6378 = vmatpush1.msra.mxu0 %v5115
        %6379 = vmatprep.subr.mxu0 %v5132
        %6380 = vmatpush1.msra.mxu0 %v5131
        %6381 = vmatprep.subr.mxu0 %v5148
        %6382 = vmatpush1.msra.mxu0 %v5147
        %6383 = vmatprep.subr.mxu0 %v5164
        %6384 = vmatpush1.msra.mxu0 %v5163
        %6385 = vmatprep.subr.mxu0 %v5180
        %6386 = vmatpush1.msra.mxu0 %v5179
        %6387 = vmatprep.subr.mxu0 %v5196
        %6388 = vmatpush1.msra.mxu0 %v5195
        %6389 = vmatprep.subr.mxu0 %v5212
        %6390 = vmatpush1.msra.mxu0 %v5211
        %6391 = vmatprep.subr.mxu0 %v5228
        %6392 = vmatpush1.msra.mxu0 %v5227
        %6393 = vmatprep.mubr.f32.mxu0 %v5756
        %6394 = vmatmul.mubr.f32.gmra.mrb[0].mxu0 %v5755
        %v6395 = vpop.f32.mrb[0].mxu0
        %v6396 = vadd.f32 0.0, %v6395
        %v6397 = vpop.f32.mrb[0].mxu0
        %v6398 = vadd.f32 0.0, %v6397
        %6399 = vdwg.mxu0
        %6400 = vmatprep.subr.mxu0 %v5244
        %6401 = vmatpush1.msra.mxu0 %v5243
        %6402 = vmatprep.subr.mxu0 %v5260
        %6403 = vmatpush1.msra.mxu0 %v5259
        %6404 = vmatprep.subr.mxu0 %v5276
        %6405 = vmatpush1.msra.mxu0 %v5275
        %6406 = vmatprep.subr.mxu0 %v5292
        %6407 = vmatpush1.msra.mxu0 %v5291
        %6408 = vmatprep.subr.mxu0 %v5308
        %6409 = vmatpush1.msra.mxu0 %v5307
        %6410 = vmatprep.subr.mxu0 %v5324
        %6411 = vmatpush1.msra.mxu0 %v5323
        %6412 = vmatprep.subr.mxu0 %v5340
        %6413 = vmatpush1.msra.mxu0 %v5339
        %6414 = vmatprep.subr.mxu0 %v5356
        %6415 = vmatpush1.msra.mxu0 %v5355
        %6416 = vmatprep.subr.mxu0 %v5372
        %6417 = vmatpush1.msra.mxu0 %v5371
        %6418 = vmatprep.subr.mxu0 %v5388
        %6419 = vmatpush1.msra.mxu0 %v5387
        %6420 = vmatprep.subr.mxu0 %v5404
        %6421 = vmatpush1.msra.mxu0 %v5403
        %6422 = vmatprep.subr.mxu0 %v5420
        %6423 = vmatpush1.msra.mxu0 %v5419
        %6424 = vmatprep.subr.mxu0 %v5436
        %6425 = vmatpush1.msra.mxu0 %v5435
        %6426 = vmatprep.subr.mxu0 %v5452
        %6427 = vmatpush1.msra.mxu0 %v5451
        %6428 = vmatprep.subr.mxu0 %v5468
        %6429 = vmatpush1.msra.mxu0 %v5467
        %6430 = vmatprep.subr.mxu0 %v5484
        %6431 = vmatpush1.msra.mxu0 %v5483
        %6432 = vmatprep.subr.mxu0 %v5500
        %6433 = vmatpush1.msra.mxu0 %v5499
        %6434 = vmatprep.subr.mxu0 %v5516
        %6435 = vmatpush1.msra.mxu0 %v5515
        %6436 = vmatprep.subr.mxu0 %v5532
        %6437 = vmatpush1.msra.mxu0 %v5531
        %6438 = vmatprep.subr.mxu0 %v5548
        %6439 = vmatpush1.msra.mxu0 %v5547
        %6440 = vmatprep.subr.mxu0 %v5564
        %6441 = vmatpush1.msra.mxu0 %v5563
        %6442 = vmatprep.subr.mxu0 %v5580
        %6443 = vmatpush1.msra.mxu0 %v5579
        %6444 = vmatprep.subr.mxu0 %v5596
        %6445 = vmatpush1.msra.mxu0 %v5595
        %6446 = vmatprep.subr.mxu0 %v5612
        %6447 = vmatpush1.msra.mxu0 %v5611
        %6448 = vmatprep.subr.mxu0 %v5628
        %6449 = vmatpush1.msra.mxu0 %v5627
        %6450 = vmatprep.subr.mxu0 %v5644
        %6451 = vmatpush1.msra.mxu0 %v5643
        %6452 = vmatprep.subr.mxu0 %v5660
        %6453 = vmatpush1.msra.mxu0 %v5659
        %6454 = vmatprep.subr.mxu0 %v5676
        %6455 = vmatpush1.msra.mxu0 %v5675
        %6456 = vmatprep.subr.mxu0 %v5692
        %6457 = vmatpush1.msra.mxu0 %v5691
        %6458 = vmatprep.subr.mxu0 %v5708
        %6459 = vmatpush1.msra.mxu0 %v5707
        %6460 = vmatprep.subr.mxu0 %v5724
        %6461 = vmatpush1.msra.mxu0 %v5723
        %6462 = vmatprep.subr.mxu0 %v5740
        %6463 = vmatpush1.msra.mxu0 %v5739
        %6464 = vmatprep.mubr.f32.mxu0 %v5758
        %6465 = vmatmul.mubr.f32.gmra.mrb[0].mxu0 %v5757
        %v6466 = vpop.f32.mrb[0].mxu0
        %v6467 = vadd.f32 %v6396, %v6466
        %v6468 = vpop.f32.mrb[0].mxu0
        %v6469 = vadd.f32 %v6398, %v6468
        %6470 = vdwg.mxu0
        %6471 = vmatprep.subr.mxu0 %v4734
        %6472 = vmatpush1.msra.mxu0 %v4733
        %6473 = vmatprep.subr.mxu0 %v4750
        %6474 = vmatpush1.msra.mxu0 %v4749
        %6475 = vmatprep.subr.mxu0 %v4766
        %6476 = vmatpush1.msra.mxu0 %v4765
        %6477 = vmatprep.subr.mxu0 %v4782
        %6478 = vmatpush1.msra.mxu0 %v4781
        %6479 = vmatprep.subr.mxu0 %v4798
        %6480 = vmatpush1.msra.mxu0 %v4797
        %6481 = vmatprep.subr.mxu0 %v4814
        %6482 = vmatpush1.msra.mxu0 %v4813
        %6483 = vmatprep.subr.mxu0 %v4830
        %6484 = vmatpush1.msra.mxu0 %v4829
        %6485 = vmatprep.subr.mxu0 %v4846
        %6486 = vmatpush1.msra.mxu0 %v4845
        %6487 = vmatprep.subr.mxu0 %v4862
        %6488 = vmatpush1.msra.mxu0 %v4861
        %6489 = vmatprep.subr.mxu0 %v4878
        %6490 = vmatpush1.msra.mxu0 %v4877
        %6491 = vmatprep.subr.mxu0 %v4894
        %6492 = vmatpush1.msra.mxu0 %v4893
        %6493 = vmatprep.subr.mxu0 %v4910
        %6494 = vmatpush1.msra.mxu0 %v4909
        %6495 = vmatprep.subr.mxu0 %v4926
        %6496 = vmatpush1.msra.mxu0 %v4925
        %6497 = vmatprep.subr.mxu0 %v4942
        %6498 = vmatpush1.msra.mxu0 %v4941
        %6499 = vmatprep.subr.mxu0 %v4958
        %6500 = vmatpush1.msra.mxu0 %v4957
        %6501 = vmatprep.subr.mxu0 %v4974
        %6502 = vmatpush1.msra.mxu0 %v4973
        %6503 = vmatprep.subr.mxu0 %v4990
        %6504 = vmatpush1.msra.mxu0 %v4989
        %6505 = vmatprep.subr.mxu0 %v5006
        %6506 = vmatpush1.msra.mxu0 %v5005
        %6507 = vmatprep.subr.mxu0 %v5022
        %6508 = vmatpush1.msra.mxu0 %v5021
        %6509 = vmatprep.subr.mxu0 %v5038
        %6510 = vmatpush1.msra.mxu0 %v5037
        %6511 = vmatprep.subr.mxu0 %v5054
        %6512 = vmatpush1.msra.mxu0 %v5053
        %6513 = vmatprep.subr.mxu0 %v5070
        %6514 = vmatpush1.msra.mxu0 %v5069
        %6515 = vmatprep.subr.mxu0 %v5086
        %6516 = vmatpush1.msra.mxu0 %v5085
        %6517 = vmatprep.subr.mxu0 %v5102
        %6518 = vmatpush1.msra.mxu0 %v5101
        %6519 = vmatprep.subr.mxu0 %v5118
        %6520 = vmatpush1.msra.mxu0 %v5117
        %6521 = vmatprep.subr.mxu0 %v5134
        %6522 = vmatpush1.msra.mxu0 %v5133
        %6523 = vmatprep.subr.mxu0 %v5150
        %6524 = vmatpush1.msra.mxu0 %v5149
        %6525 = vmatprep.subr.mxu0 %v5166
        %6526 = vmatpush1.msra.mxu0 %v5165
        %6527 = vmatprep.subr.mxu0 %v5182
        %6528 = vmatpush1.msra.mxu0 %v5181
        %6529 = vmatprep.subr.mxu0 %v5198
        %6530 = vmatpush1.msra.mxu0 %v5197
        %6531 = vmatprep.subr.mxu0 %v5214
        %6532 = vmatpush1.msra.mxu0 %v5213
        %6533 = vmatprep.subr.mxu0 %v5230
        %6534 = vmatpush1.msra.mxu0 %v5229
        %6535 = vmatprep.mubr.f32.mxu0 %v5756
        %6536 = vmatmul.mubr.f32.gmra.mrb[0].mxu0 %v5755
        %v6537 = vpop.f32.mrb[0].mxu0
        %v6538 = vadd.f32 0.0, %v6537
        %v6539 = vpop.f32.mrb[0].mxu0
        %v6540 = vadd.f32 0.0, %v6539
        %6541 = vdwg.mxu0
        %6542 = vmatprep.subr.mxu0 %v5246
        %6543 = vmatpush1.msra.mxu0 %v5245
        %6544 = vmatprep.subr.mxu0 %v5262
        %6545 = vmatpush1.msra.mxu0 %v5261
        %6546 = vmatprep.subr.mxu0 %v5278
        %6547 = vmatpush1.msra.mxu0 %v5277
        %6548 = vmatprep.subr.mxu0 %v5294
        %6549 = vmatpush1.msra.mxu0 %v5293
        %6550 = vmatprep.subr.mxu0 %v5310
        %6551 = vmatpush1.msra.mxu0 %v5309
        %6552 = vmatprep.subr.mxu0 %v5326
        %6553 = vmatpush1.msra.mxu0 %v5325
        %6554 = vmatprep.subr.mxu0 %v5342
        %6555 = vmatpush1.msra.mxu0 %v5341
        %6556 = vmatprep.subr.mxu0 %v5358
        %6557 = vmatpush1.msra.mxu0 %v5357
        %6558 = vmatprep.subr.mxu0 %v5374
        %6559 = vmatpush1.msra.mxu0 %v5373
        %6560 = vmatprep.subr.mxu0 %v5390
        %6561 = vmatpush1.msra.mxu0 %v5389
        %6562 = vmatprep.subr.mxu0 %v5406
        %6563 = vmatpush1.msra.mxu0 %v5405
        %6564 = vmatprep.subr.mxu0 %v5422
        %6565 = vmatpush1.msra.mxu0 %v5421
        %6566 = vmatprep.subr.mxu0 %v5438
        %6567 = vmatpush1.msra.mxu0 %v5437
        %6568 = vmatprep.subr.mxu0 %v5454
        %6569 = vmatpush1.msra.mxu0 %v5453
        %6570 = vmatprep.subr.mxu0 %v5470
        %6571 = vmatpush1.msra.mxu0 %v5469
        %6572 = vmatprep.subr.mxu0 %v5486
        %6573 = vmatpush1.msra.mxu0 %v5485
        %6574 = vmatprep.subr.mxu0 %v5502
        %6575 = vmatpush1.msra.mxu0 %v5501
        %6576 = vmatprep.subr.mxu0 %v5518
        %6577 = vmatpush1.msra.mxu0 %v5517
        %6578 = vmatprep.subr.mxu0 %v5534
        %6579 = vmatpush1.msra.mxu0 %v5533
        %6580 = vmatprep.subr.mxu0 %v5550
        %6581 = vmatpush1.msra.mxu0 %v5549
        %6582 = vmatprep.subr.mxu0 %v5566
        %6583 = vmatpush1.msra.mxu0 %v5565
        %6584 = vmatprep.subr.mxu0 %v5582
        %6585 = vmatpush1.msra.mxu0 %v5581
        %6586 = vmatprep.subr.mxu0 %v5598
        %6587 = vmatpush1.msra.mxu0 %v5597
        %6588 = vmatprep.subr.mxu0 %v5614
        %6589 = vmatpush1.msra.mxu0 %v5613
        %6590 = vmatprep.subr.mxu0 %v5630
        %6591 = vmatpush1.msra.mxu0 %v5629
        %6592 = vmatprep.subr.mxu0 %v5646
        %6593 = vmatpush1.msra.mxu0 %v5645
        %6594 = vmatprep.subr.mxu0 %v5662
        %6595 = vmatpush1.msra.mxu0 %v5661
        %6596 = vmatprep.subr.mxu0 %v5678
        %6597 = vmatpush1.msra.mxu0 %v5677
        %6598 = vmatprep.subr.mxu0 %v5694
        %6599 = vmatpush1.msra.mxu0 %v5693
        %6600 = vmatprep.subr.mxu0 %v5710
        %6601 = vmatpush1.msra.mxu0 %v5709
        %6602 = vmatprep.subr.mxu0 %v5726
        %6603 = vmatpush1.msra.mxu0 %v5725
        %6604 = vmatprep.subr.mxu0 %v5742
        %6605 = vmatpush1.msra.mxu0 %v5741
        %6606 = vmatprep.mubr.f32.mxu0 %v5758
        %6607 = vmatmul.mubr.f32.gmra.mrb[0].mxu0 %v5757
        %v6608 = vpop.f32.mrb[0].mxu0
        %v6609 = vadd.f32 %v6538, %v6608
        %v6610 = vpop.f32.mrb[0].mxu0
        %v6611 = vadd.f32 %v6540, %v6610
        %6612 = vdwg.mxu0
        %6613 = vmatprep.subr.mxu0 %v4736
        %6614 = vmatpush1.msra.mxu0 %v4735
        %6615 = vmatprep.subr.mxu0 %v4752
        %6616 = vmatpush1.msra.mxu0 %v4751
        %6617 = vmatprep.subr.mxu0 %v4768
        %6618 = vmatpush1.msra.mxu0 %v4767
        %6619 = vmatprep.subr.mxu0 %v4784
        %6620 = vmatpush1.msra.mxu0 %v4783
        %6621 = vmatprep.subr.mxu0 %v4800
        %6622 = vmatpush1.msra.mxu0 %v4799
        %6623 = vmatprep.subr.mxu0 %v4816
        %6624 = vmatpush1.msra.mxu0 %v4815
        %6625 = vmatprep.subr.mxu0 %v4832
        %6626 = vmatpush1.msra.mxu0 %v4831
        %6627 = vmatprep.subr.mxu0 %v4848
        %6628 = vmatpush1.msra.mxu0 %v4847
        %6629 = vmatprep.subr.mxu0 %v4864
        %6630 = vmatpush1.msra.mxu0 %v4863
        %6631 = vmatprep.subr.mxu0 %v4880
        %6632 = vmatpush1.msra.mxu0 %v4879
        %6633 = vmatprep.subr.mxu0 %v4896
        %6634 = vmatpush1.msra.mxu0 %v4895
        %6635 = vmatprep.subr.mxu0 %v4912
        %6636 = vmatpush1.msra.mxu0 %v4911
        %6637 = vmatprep.subr.mxu0 %v4928
        %6638 = vmatpush1.msra.mxu0 %v4927
        %6639 = vmatprep.subr.mxu0 %v4944
        %6640 = vmatpush1.msra.mxu0 %v4943
        %6641 = vmatprep.subr.mxu0 %v4960
        %6642 = vmatpush1.msra.mxu0 %v4959
        %6643 = vmatprep.subr.mxu0 %v4976
        %6644 = vmatpush1.msra.mxu0 %v4975
        %6645 = vmatprep.subr.mxu0 %v4992
        %6646 = vmatpush1.msra.mxu0 %v4991
        %6647 = vmatprep.subr.mxu0 %v5008
        %6648 = vmatpush1.msra.mxu0 %v5007
        %6649 = vmatprep.subr.mxu0 %v5024
        %6650 = vmatpush1.msra.mxu0 %v5023
        %6651 = vmatprep.subr.mxu0 %v5040
        %6652 = vmatpush1.msra.mxu0 %v5039
        %6653 = vmatprep.subr.mxu0 %v5056
        %6654 = vmatpush1.msra.mxu0 %v5055
        %6655 = vmatprep.subr.mxu0 %v5072
        %6656 = vmatpush1.msra.mxu0 %v5071
        %6657 = vmatprep.subr.mxu0 %v5088
        %6658 = vmatpush1.msra.mxu0 %v5087
        %6659 = vmatprep.subr.mxu0 %v5104
        %6660 = vmatpush1.msra.mxu0 %v5103
        %6661 = vmatprep.subr.mxu0 %v5120
        %6662 = vmatpush1.msra.mxu0 %v5119
        %6663 = vmatprep.subr.mxu0 %v5136
        %6664 = vmatpush1.msra.mxu0 %v5135
        %6665 = vmatprep.subr.mxu0 %v5152
        %6666 = vmatpush1.msra.mxu0 %v5151
        %6667 = vmatprep.subr.mxu0 %v5168
        %6668 = vmatpush1.msra.mxu0 %v5167
        %6669 = vmatprep.subr.mxu0 %v5184
        %6670 = vmatpush1.msra.mxu0 %v5183
        %6671 = vmatprep.subr.mxu0 %v5200
        %6672 = vmatpush1.msra.mxu0 %v5199
        %6673 = vmatprep.subr.mxu0 %v5216
        %6674 = vmatpush1.msra.mxu0 %v5215
        %6675 = vmatprep.subr.mxu0 %v5232
        %6676 = vmatpush1.msra.mxu0 %v5231
        %6677 = vmatprep.mubr.f32.mxu0 %v5756
        %6678 = vmatmul.mubr.f32.gmra.mrb[0].mxu0 %v5755
        %v6679 = vpop.f32.mrb[0].mxu0
        %v6680 = vadd.f32 0.0, %v6679
        %v6681 = vpop.f32.mrb[0].mxu0
        %v6682 = vadd.f32 0.0, %v6681
        %6683 = vdwg.mxu0
        %6684 = vmatprep.subr.mxu0 %v5248
        %6685 = vmatpush1.msra.mxu0 %v5247
        %6686 = vmatprep.subr.mxu0 %v5264
        %6687 = vmatpush1.msra.mxu0 %v5263
        %6688 = vmatprep.subr.mxu0 %v5280
        %6689 = vmatpush1.msra.mxu0 %v5279
        %6690 = vmatprep.subr.mxu0 %v5296
        %6691 = vmatpush1.msra.mxu0 %v5295
        %6692 = vmatprep.subr.mxu0 %v5312
        %6693 = vmatpush1.msra.mxu0 %v5311
        %6694 = vmatprep.subr.mxu0 %v5328
        %6695 = vmatpush1.msra.mxu0 %v5327
        %6696 = vmatprep.subr.mxu0 %v5344
        %6697 = vmatpush1.msra.mxu0 %v5343
        %6698 = vmatprep.subr.mxu0 %v5360
        %6699 = vmatpush1.msra.mxu0 %v5359
        %6700 = vmatprep.subr.mxu0 %v5376
        %6701 = vmatpush1.msra.mxu0 %v5375
        %6702 = vmatprep.subr.mxu0 %v5392
        %6703 = vmatpush1.msra.mxu0 %v5391
        %6704 = vmatprep.subr.mxu0 %v5408
        %6705 = vmatpush1.msra.mxu0 %v5407
        %6706 = vmatprep.subr.mxu0 %v5424
        %6707 = vmatpush1.msra.mxu0 %v5423
        %6708 = vmatprep.subr.mxu0 %v5440
        %6709 = vmatpush1.msra.mxu0 %v5439
        %6710 = vmatprep.subr.mxu0 %v5456
        %6711 = vmatpush1.msra.mxu0 %v5455
        %6712 = vmatprep.subr.mxu0 %v5472
        %6713 = vmatpush1.msra.mxu0 %v5471
        %6714 = vmatprep.subr.mxu0 %v5488
        %6715 = vmatpush1.msra.mxu0 %v5487
        %6716 = vmatprep.subr.mxu0 %v5504
        %6717 = vmatpush1.msra.mxu0 %v5503
        %6718 = vmatprep.subr.mxu0 %v5520
        %6719 = vmatpush1.msra.mxu0 %v5519
        %6720 = vmatprep.subr.mxu0 %v5536
        %6721 = vmatpush1.msra.mxu0 %v5535
        %6722 = vmatprep.subr.mxu0 %v5552
        %6723 = vmatpush1.msra.mxu0 %v5551
        %6724 = vmatprep.subr.mxu0 %v5568
        %6725 = vmatpush1.msra.mxu0 %v5567
        %6726 = vmatprep.subr.mxu0 %v5584
        %6727 = vmatpush1.msra.mxu0 %v5583
        %6728 = vmatprep.subr.mxu0 %v5600
        %6729 = vmatpush1.msra.mxu0 %v5599
        %6730 = vmatprep.subr.mxu0 %v5616
        %6731 = vmatpush1.msra.mxu0 %v5615
        %6732 = vmatprep.subr.mxu0 %v5632
        %6733 = vmatpush1.msra.mxu0 %v5631
        %6734 = vmatprep.subr.mxu0 %v5648
        %6735 = vmatpush1.msra.mxu0 %v5647
        %6736 = vmatprep.subr.mxu0 %v5664
        %6737 = vmatpush1.msra.mxu0 %v5663
        %6738 = vmatprep.subr.mxu0 %v5680
        %6739 = vmatpush1.msra.mxu0 %v5679
        %6740 = vmatprep.subr.mxu0 %v5696
        %6741 = vmatpush1.msra.mxu0 %v5695
        %6742 = vmatprep.subr.mxu0 %v5712
        %6743 = vmatpush1.msra.mxu0 %v5711
        %6744 = vmatprep.subr.mxu0 %v5728
        %6745 = vmatpush1.msra.mxu0 %v5727
        %6746 = vmatprep.subr.mxu0 %v5744
        %6747 = vmatpush1.msra.mxu0 %v5743
        %6748 = vmatprep.mubr.f32.mxu0 %v5758
        %6749 = vmatmul.mubr.f32.gmra.mrb[0].mxu0 %v5757
        %v6750 = vpop.f32.mrb[0].mxu0
        %v6751 = vadd.f32 %v6680, %v6750
        %v6752 = vpop.f32.mrb[0].mxu0
        %v6753 = vadd.f32 %v6682, %v6752
        %6754 = vdwg.mxu0
        %6755 = vmatprep.subr.mxu0 %v4738
        %6756 = vmatpush1.msra.mxu0 %v4737
        %6757 = vmatprep.subr.mxu0 %v4754
        %6758 = vmatpush1.msra.mxu0 %v4753
        %6759 = vmatprep.subr.mxu0 %v4770
        %6760 = vmatpush1.msra.mxu0 %v4769
        %6761 = vmatprep.subr.mxu0 %v4786
        %6762 = vmatpush1.msra.mxu0 %v4785
        %6763 = vmatprep.subr.mxu0 %v4802
        %6764 = vmatpush1.msra.mxu0 %v4801
        %6765 = vmatprep.subr.mxu0 %v4818
        %6766 = vmatpush1.msra.mxu0 %v4817
        %6767 = vmatprep.subr.mxu0 %v4834
        %6768 = vmatpush1.msra.mxu0 %v4833
        %6769 = vmatprep.subr.mxu0 %v4850
        %6770 = vmatpush1.msra.mxu0 %v4849
        %6771 = vmatprep.subr.mxu0 %v4866
        %6772 = vmatpush1.msra.mxu0 %v4865
        %6773 = vmatprep.subr.mxu0 %v4882
        %6774 = vmatpush1.msra.mxu0 %v4881
        %6775 = vmatprep.subr.mxu0 %v4898
        %6776 = vmatpush1.msra.mxu0 %v4897
        %6777 = vmatprep.subr.mxu0 %v4914
        %6778 = vmatpush1.msra.mxu0 %v4913
        %6779 = vmatprep.subr.mxu0 %v4930
        %6780 = vmatpush1.msra.mxu0 %v4929
        %6781 = vmatprep.subr.mxu0 %v4946
        %6782 = vmatpush1.msra.mxu0 %v4945
        %6783 = vmatprep.subr.mxu0 %v4962
        %6784 = vmatpush1.msra.mxu0 %v4961
        %6785 = vmatprep.subr.mxu0 %v4978
        %6786 = vmatpush1.msra.mxu0 %v4977
        %6787 = vmatprep.subr.mxu0 %v4994
        %6788 = vmatpush1.msra.mxu0 %v4993
        %6789 = vmatprep.subr.mxu0 %v5010
        %6790 = vmatpush1.msra.mxu0 %v5009
        %6791 = vmatprep.subr.mxu0 %v5026
        %6792 = vmatpush1.msra.mxu0 %v5025
        %6793 = vmatprep.subr.mxu0 %v5042
        %6794 = vmatpush1.msra.mxu0 %v5041
        %6795 = vmatprep.subr.mxu0 %v5058
        %6796 = vmatpush1.msra.mxu0 %v5057
        %6797 = vmatprep.subr.mxu0 %v5074
        %6798 = vmatpush1.msra.mxu0 %v5073
        %6799 = vmatprep.subr.mxu0 %v5090
        %6800 = vmatpush1.msra.mxu0 %v5089
        %6801 = vmatprep.subr.mxu0 %v5106
        %6802 = vmatpush1.msra.mxu0 %v5105
        %6803 = vmatprep.subr.mxu0 %v5122
        %6804 = vmatpush1.msra.mxu0 %v5121
        %6805 = vmatprep.subr.mxu0 %v5138
        %6806 = vmatpush1.msra.mxu0 %v5137
        %6807 = vmatprep.subr.mxu0 %v5154
        %6808 = vmatpush1.msra.mxu0 %v5153
        %6809 = vmatprep.subr.mxu0 %v5170
        %6810 = vmatpush1.msra.mxu0 %v5169
        %6811 = vmatprep.subr.mxu0 %v5186
        %6812 = vmatpush1.msra.mxu0 %v5185
        %6813 = vmatprep.subr.mxu0 %v5202
        %6814 = vmatpush1.msra.mxu0 %v5201
        %6815 = vmatprep.subr.mxu0 %v5218
        %6816 = vmatpush1.msra.mxu0 %v5217
        %6817 = vmatprep.subr.mxu0 %v5234
        %6818 = vmatpush1.msra.mxu0 %v5233
        %6819 = vmatprep.mubr.f32.mxu0 %v5756
        %6820 = vmatmul.mubr.f32.gmra.mrb[0].mxu0 %v5755
        %v6821 = vpop.f32.mrb[0].mxu0
        %v6822 = vadd.f32 0.0, %v6821
        %v6823 = vpop.f32.mrb[0].mxu0
        %v6824 = vadd.f32 0.0, %v6823
        %6825 = vdwg.mxu0
        %6826 = vmatprep.subr.mxu0 %v5250
        %6827 = vmatpush1.msra.mxu0 %v5249
        %6828 = vmatprep.subr.mxu0 %v5266
        %6829 = vmatpush1.msra.mxu0 %v5265
        %6830 = vmatprep.subr.mxu0 %v5282
        %6831 = vmatpush1.msra.mxu0 %v5281
        %6832 = vmatprep.subr.mxu0 %v5298
        %6833 = vmatpush1.msra.mxu0 %v5297
        %6834 = vmatprep.subr.mxu0 %v5314
        %6835 = vmatpush1.msra.mxu0 %v5313
        %6836 = vmatprep.subr.mxu0 %v5330
        %6837 = vmatpush1.msra.mxu0 %v5329
        %6838 = vmatprep.subr.mxu0 %v5346
        %6839 = vmatpush1.msra.mxu0 %v5345
        %6840 = vmatprep.subr.mxu0 %v5362
        %6841 = vmatpush1.msra.mxu0 %v5361
        %6842 = vmatprep.subr.mxu0 %v5378
        %6843 = vmatpush1.msra.mxu0 %v5377
        %6844 = vmatprep.subr.mxu0 %v5394
        %6845 = vmatpush1.msra.mxu0 %v5393
        %6846 = vmatprep.subr.mxu0 %v5410
        %6847 = vmatpush1.msra.mxu0 %v5409
        %6848 = vmatprep.subr.mxu0 %v5426
        %6849 = vmatpush1.msra.mxu0 %v5425
        %6850 = vmatprep.subr.mxu0 %v5442
        %6851 = vmatpush1.msra.mxu0 %v5441
        %6852 = vmatprep.subr.mxu0 %v5458
        %6853 = vmatpush1.msra.mxu0 %v5457
        %6854 = vmatprep.subr.mxu0 %v5474
        %6855 = vmatpush1.msra.mxu0 %v5473
        %6856 = vmatprep.subr.mxu0 %v5490
        %6857 = vmatpush1.msra.mxu0 %v5489
        %6858 = vmatprep.subr.mxu0 %v5506
        %6859 = vmatpush1.msra.mxu0 %v5505
        %6860 = vmatprep.subr.mxu0 %v5522
        %6861 = vmatpush1.msra.mxu0 %v5521
        %6862 = vmatprep.subr.mxu0 %v5538
        %6863 = vmatpush1.msra.mxu0 %v5537
        %6864 = vmatprep.subr.mxu0 %v5554
        %6865 = vmatpush1.msra.mxu0 %v5553
        %6866 = vmatprep.subr.mxu0 %v5570
        %6867 = vmatpush1.msra.mxu0 %v5569
        %6868 = vmatprep.subr.mxu0 %v5586
        %6869 = vmatpush1.msra.mxu0 %v5585
        %6870 = vmatprep.subr.mxu0 %v5602
        %6871 = vmatpush1.msra.mxu0 %v5601
        %6872 = vmatprep.subr.mxu0 %v5618
        %6873 = vmatpush1.msra.mxu0 %v5617
        %6874 = vmatprep.subr.mxu0 %v5634
        %6875 = vmatpush1.msra.mxu0 %v5633
        %6876 = vmatprep.subr.mxu0 %v5650
        %6877 = vmatpush1.msra.mxu0 %v5649
        %6878 = vmatprep.subr.mxu0 %v5666
        %6879 = vmatpush1.msra.mxu0 %v5665
        %6880 = vmatprep.subr.mxu0 %v5682
        %6881 = vmatpush1.msra.mxu0 %v5681
        %6882 = vmatprep.subr.mxu0 %v5698
        %6883 = vmatpush1.msra.mxu0 %v5697
        %6884 = vmatprep.subr.mxu0 %v5714
        %6885 = vmatpush1.msra.mxu0 %v5713
        %6886 = vmatprep.subr.mxu0 %v5730
        %6887 = vmatpush1.msra.mxu0 %v5729
        %6888 = vmatprep.subr.mxu0 %v5746
        %6889 = vmatpush1.msra.mxu0 %v5745
        %6890 = vmatprep.mubr.f32.mxu0 %v5758
        %6891 = vmatmul.mubr.f32.gmra.mrb[0].mxu0 %v5757
        %v6892 = vpop.f32.mrb[0].mxu0
        %v6893 = vadd.f32 %v6822, %v6892
        %v6894 = vpop.f32.mrb[0].mxu0
        %v6895 = vadd.f32 %v6824, %v6894
        %6896 = vdwg.mxu0
        %v6913 = vcombine.low %v5899, %v5901
        %v6914 = vcombine.low %v6041, %v6043
        %v6915 = vcombine.low %v6183, %v6185
        %v6916 = vcombine.low %v6325, %v6327
        %v6918 = vunpack.c.l.s4 1966171168
        %v6919 = vunpack.c.0.s8 %v6918
        %v6920 = vlaneseq
        %v6921 = vshrl.u32 %v6920, 7
        %v6922 = vsub.s32 %v6919, %v6921
        %v6923 = vrot.slane %v6913, %v6922
        %v6925 = vunpack.c.l.s4 1966171168
        %v6926 = vunpack.c.0.s8 %v6925
        %v6927 = vlaneseq
        %v6928 = vshrl.u32 %v6927, 7
        %v6929 = vsub.s32 %v6926, %v6928
        %v6930 = vrot.slane %v6914, %v6929
        %v6932 = vunpack.c.l.s4 1966171168
        %v6933 = vunpack.c.0.s8 %v6932
        %v6934 = vlaneseq
        %v6935 = vshrl.u32 %v6934, 7
        %v6936 = vsub.s32 %v6933, %v6935
        %v6937 = vrot.slane %v6915, %v6936
        %v6939 = vunpack.c.l.s4 1966171168
        %v6940 = vunpack.c.0.s8 %v6939
        %v6941 = vlaneseq
        %v6942 = vshrl.u32 %v6941, 7
        %v6943 = vsub.s32 %v6940, %v6942
        %v6944 = vrot.slane %v6916, %v6943
        %v6945 = vcombine.low %v6923, %v6930
        %v6946 = vcombine.low %v6937, %v6944
        %v6948 = vunpack.c.l.s4 1966171168
        %v6949 = vunpack.c.0.s8 %v6948
        %v6950 = vlaneseq
        %v6951 = vshrl.u32 %v6950, 7
        %v6952 = vsub.s32 %v6949, %v6951
        %v6953 = vrot.slane %v6945, %v6952
        %v6955 = vunpack.c.l.s4 1966171168
        %v6956 = vunpack.c.0.s8 %v6955
        %v6957 = vlaneseq
        %v6958 = vshrl.u32 %v6957, 7
        %v6959 = vsub.s32 %v6956, %v6958
        %v6960 = vrot.slane %v6946, %v6959
        %v6961 = vcombine.low %v6953, %v6960
        %v6962 = vcombine.low %v6467, %v6469
        %v6963 = vcombine.low %v6609, %v6611
        %v6964 = vcombine.low %v6751, %v6753
        %v6965 = vcombine.low %v6893, %v6895
        %v6967 = vunpack.c.l.s4 1966171168
        %v6968 = vunpack.c.0.s8 %v6967
        %v6969 = vlaneseq
        %v6970 = vshrl.u32 %v6969, 7
        %v6971 = vsub.s32 %v6968, %v6970
        %v6972 = vrot.slane %v6962, %v6971
        %v6974 = vunpack.c.l.s4 1966171168
        %v6975 = vunpack.c.0.s8 %v6974
        %v6976 = vlaneseq
        %v6977 = vshrl.u32 %v6976, 7
        %v6978 = vsub.s32 %v6975, %v6977
        %v6979 = vrot.slane %v6963, %v6978
        %v6981 = vunpack.c.l.s4 1966171168
        %v6982 = vunpack.c.0.s8 %v6981
        %v6983 = vlaneseq
        %v6984 = vshrl.u32 %v6983, 7
        %v6985 = vsub.s32 %v6982, %v6984
        %v6986 = vrot.slane %v6964, %v6985
        %v6988 = vunpack.c.l.s4 1966171168
        %v6989 = vunpack.c.0.s8 %v6988
        %v6990 = vlaneseq
        %v6991 = vshrl.u32 %v6990, 7
        %v6992 = vsub.s32 %v6989, %v6991
        %v6993 = vrot.slane %v6965, %v6992
        %v6994 = vcombine.low %v6972, %v6979
        %v6995 = vcombine.low %v6986, %v6993
        %v6997 = vunpack.c.l.s4 1966171168
        %v6998 = vunpack.c.0.s8 %v6997
        %v6999 = vlaneseq
        %v7000 = vshrl.u32 %v6999, 7
        %v7001 = vsub.s32 %v6998, %v7000
        %v7002 = vrot.slane %v6994, %v7001
        %v7004 = vunpack.c.l.s4 1966171168
        %v7005 = vunpack.c.0.s8 %v7004
        %v7006 = vlaneseq
        %v7007 = vshrl.u32 %v7006, 7
        %v7008 = vsub.s32 %v7005, %v7007
        %v7009 = vrot.slane %v6995, %v7008
        %v7010 = vcombine.low %v7002, %v7009
        %v7013 = vadd.f32 %v5759, %v6961
        %v7014 = vadd.f32 %v5760, %v7010
        %7015 = vst [vmem:[#allocation2] sm:$0xff] %v7013
        %7016 = vst [vmem:[#allocation2 + $0x8] sm:$0xff] %v7014
        %p7017 = scmp.eq.s32.totalorder %s26, 2
        // Predicated region
        $region53: #{tpu_custom_call.1} parent=47 // pred_check
          %p7018 = pneg %p7017
        $region54: #{tpu_custom_call.1} parent=47 // pred_check_branch
          %7020 = sbr.rel (%p7018) target = $region56
        $region55: #{tpu_custom_call.1} parent=47 // pred_region
          %v7021 = vld [vmem:[#allocation2] sm:$0xff]
          %v7022 = vld [vmem:[#allocation2 + $0x8] sm:$0xff]
          %v7023 = vmul.f32 %v7021, 0.00091827364
          %v7024 = vmul.f32 %v7022, 0.00091827364
          %v7027 = vlaneseq
          %v7028 = vshrl.u32 %v7027, 7
          %v7029 = vsub.s32 0, %v7028
          %v7030 = vrot.slane %v7023, %v7029
          %v7031 = vlaneseq
          %v7032 = vshrl.u32 %v7031, 7
          %v7033 = vsub.s32 1, %v7032
          %v7034 = vrot.slane %v7023, %v7033
          %v7035 = vlaneseq
          %v7036 = vshrl.u32 %v7035, 7
          %v7037 = vsub.s32 2, %v7036
          %v7038 = vrot.slane %v7023, %v7037
          %v7039 = vlaneseq
          %v7040 = vshrl.u32 %v7039, 7
          %v7041 = vsub.s32 3, %v7040
          %v7042 = vrot.slane %v7023, %v7041
          %v7043 = vlaneseq
          %v7044 = vshrl.u32 %v7043, 7
          %v7045 = vsub.s32 4, %v7044
          %v7046 = vrot.slane %v7023, %v7045
          %v7047 = vlaneseq
          %v7048 = vshrl.u32 %v7047, 7
          %v7049 = vsub.s32 5, %v7048
          %v7050 = vrot.slane %v7023, %v7049
          %v7051 = vlaneseq
          %v7052 = vshrl.u32 %v7051, 7
          %v7053 = vsub.s32 6, %v7052
          %v7054 = vrot.slane %v7023, %v7053
          %v7055 = vlaneseq
          %v7056 = vshrl.u32 %v7055, 7
          %v7057 = vsub.s32 7, %v7056
          %v7058 = vrot.slane %v7023, %v7057
          %v7059 = vlaneseq
          %v7060 = vshrl.u32 %v7059, 7
          %v7061 = vsub.s32 0, %v7060
          %v7062 = vrot.slane %v7024, %v7061
          %v7063 = vlaneseq
          %v7064 = vshrl.u32 %v7063, 7
          %v7065 = vsub.s32 1, %v7064
          %v7066 = vrot.slane %v7024, %v7065
          %v7067 = vlaneseq
          %v7068 = vshrl.u32 %v7067, 7
          %v7069 = vsub.s32 2, %v7068
          %v7070 = vrot.slane %v7024, %v7069
          %v7071 = vlaneseq
          %v7072 = vshrl.u32 %v7071, 7
          %v7073 = vsub.s32 3, %v7072
          %v7074 = vrot.slane %v7024, %v7073
          %v7075 = vlaneseq
          %v7076 = vshrl.u32 %v7075, 7
          %v7077 = vsub.s32 4, %v7076
          %v7078 = vrot.slane %v7024, %v7077
          %v7079 = vlaneseq
          %v7080 = vshrl.u32 %v7079, 7
          %v7081 = vsub.s32 5, %v7080
          %v7082 = vrot.slane %v7024, %v7081
          %v7083 = vlaneseq
          %v7084 = vshrl.u32 %v7083, 7
          %v7085 = vsub.s32 6, %v7084
          %v7086 = vrot.slane %v7024, %v7085
          %v7087 = vlaneseq
          %v7088 = vshrl.u32 %v7087, 7
          %v7089 = vsub.s32 7, %v7088
          %v7090 = vrot.slane %v7024, %v7089
          %v7107 = vpack.c.bf16 %v7030, %v7030
          %v7108 = vpack.c.bf16 %v7034, %v7034
          %v7109 = vpack.c.bf16 %v7038, %v7038
          %v7110 = vpack.c.bf16 %v7042, %v7042
          %v7111 = vpack.c.bf16 %v7046, %v7046
          %v7112 = vpack.c.bf16 %v7050, %v7050
          %v7113 = vpack.c.bf16 %v7054, %v7054
          %v7114 = vpack.c.bf16 %v7058, %v7058
          %v7115 = vpack.c.bf16 %v7062, %v7062
          %v7116 = vpack.c.bf16 %v7066, %v7066
          %v7117 = vpack.c.bf16 %v7070, %v7070
          %v7118 = vpack.c.bf16 %v7074, %v7074
          %v7119 = vpack.c.bf16 %v7078, %v7078
          %v7120 = vpack.c.bf16 %v7082, %v7082
          %v7121 = vpack.c.bf16 %v7086, %v7086
          %v7122 = vpack.c.bf16 %v7090, %v7090
          %v7123 = vld [vmem:[%s5] sm:$0xf]
          %v7124 = vld [vmem:[%s5 + $0x4] sm:$0xf]
          %v7125 = vld [vmem:[%s5 + $0x8] sm:$0xf]
          %v7126 = vld [vmem:[%s5 + $0xc] sm:$0xf]
          %v7127 = vld [vmem:[%s5 + $0x10] sm:$0xf]
          %v7128 = vld [vmem:[%s5 + $0x14] sm:$0xf]
          %v7129 = vld [vmem:[%s5 + $0x18] sm:$0xf]
          %v7130 = vld [vmem:[%s5 + $0x1c] sm:$0xf]
          %v7131 = vld [vmem:[%s5 + $0x20] sm:$0xf]
          %v7132 = vld [vmem:[%s5 + $0x24] sm:$0xf]
          %v7133 = vld [vmem:[%s5 + $0x28] sm:$0xf]
          %v7134 = vld [vmem:[%s5 + $0x2c] sm:$0xf]
          %v7135 = vld [vmem:[%s5 + $0x30] sm:$0xf]
          %v7136 = vld [vmem:[%s5 + $0x34] sm:$0xf]
          %v7137 = vld [vmem:[%s5 + $0x38] sm:$0xf]
          %v7138 = vld [vmem:[%s5 + $0x3c] sm:$0xf]
          %v7139 = vld [vmem:[%s5 + $0x40] sm:$0xf]
          %v7140 = vld [vmem:[%s5 + $0x44] sm:$0xf]
          %v7141 = vld [vmem:[%s5 + $0x48] sm:$0xf]
          %v7142 = vld [vmem:[%s5 + $0x4c] sm:$0xf]
          %v7143 = vld [vmem:[%s5 + $0x50] sm:$0xf]
          %v7144 = vld [vmem:[%s5 + $0x54] sm:$0xf]
          %v7145 = vld [vmem:[%s5 + $0x58] sm:$0xf]
          %v7146 = vld [vmem:[%s5 + $0x5c] sm:$0xf]
          %v7147 = vld [vmem:[%s5 + $0x60] sm:$0xf]
          %v7148 = vld [vmem:[%s5 + $0x64] sm:$0xf]
          %v7149 = vld [vmem:[%s5 + $0x68] sm:$0xf]
          %v7150 = vld [vmem:[%s5 + $0x6c] sm:$0xf]
          %v7151 = vld [vmem:[%s5 + $0x70] sm:$0xf]
          %v7152 = vld [vmem:[%s5 + $0x74] sm:$0xf]
          %v7153 = vld [vmem:[%s5 + $0x78] sm:$0xf]
          %v7154 = vld [vmem:[%s5 + $0x7c] sm:$0xf]
          %v7155 = vld [vmem:[%s5 + $0x80] sm:$0xf]
          %v7156 = vld [vmem:[%s5 + $0x84] sm:$0xf]
          %v7157 = vld [vmem:[%s5 + $0x88] sm:$0xf]
          %v7158 = vld [vmem:[%s5 + $0x8c] sm:$0xf]
          %v7159 = vld [vmem:[%s5 + $0x90] sm:$0xf]
          %v7160 = vld [vmem:[%s5 + $0x94] sm:$0xf]
          %v7161 = vld [vmem:[%s5 + $0x98] sm:$0xf]
          %v7162 = vld [vmem:[%s5 + $0x9c] sm:$0xf]
          %v7163 = vld [vmem:[%s5 + $0xa0] sm:$0xf]
          %v7164 = vld [vmem:[%s5 + $0xa4] sm:$0xf]
          %v7165 = vld [vmem:[%s5 + $0xa8] sm:$0xf]
          %v7166 = vld [vmem:[%s5 + $0xac] sm:$0xf]
          %v7167 = vld [vmem:[%s5 + $0xb0] sm:$0xf]
          %v7168 = vld [vmem:[%s5 + $0xb4] sm:$0xf]
          %v7169 = vld [vmem:[%s5 + $0xb8] sm:$0xf]
          %v7170 = vld [vmem:[%s5 + $0xbc] sm:$0xf]
          %v7171 = vld [vmem:[%s5 + $0xc0] sm:$0xf]
          %v7172 = vld [vmem:[%s5 + $0xc4] sm:$0xf]
          %v7173 = vld [vmem:[%s5 + $0xc8] sm:$0xf]
          %v7174 = vld [vmem:[%s5 + $0xcc] sm:$0xf]
          %v7175 = vld [vmem:[%s5 + $0xd0] sm:$0xf]
          %v7176 = vld [vmem:[%s5 + $0xd4] sm:$0xf]
          %v7177 = vld [vmem:[%s5 + $0xd8] sm:$0xf]
          %v7178 = vld [vmem:[%s5 + $0xdc] sm:$0xf]
          %v7179 = vld [vmem:[%s5 + $0xe0] sm:$0xf]
          %v7180 = vld [vmem:[%s5 + $0xe4] sm:$0xf]
          %v7181 = vld [vmem:[%s5 + $0xe8] sm:$0xf]
          %v7182 = vld [vmem:[%s5 + $0xec] sm:$0xf]
          %v7183 = vld [vmem:[%s5 + $0xf0] sm:$0xf]
          %v7184 = vld [vmem:[%s5 + $0xf4] sm:$0xf]
          %v7185 = vld [vmem:[%s5 + $0xf8] sm:$0xf]
          %v7186 = vld [vmem:[%s5 + $0xfc] sm:$0xf]
          %v7187 = vld [vmem:[%s5 + $0x100] sm:$0xf]
          %v7188 = vld [vmem:[%s5 + $0x104] sm:$0xf]
          %v7189 = vld [vmem:[%s5 + $0x108] sm:$0xf]
          %v7190 = vld [vmem:[%s5 + $0x10c] sm:$0xf]
          %v7191 = vld [vmem:[%s5 + $0x110] sm:$0xf]
          %v7192 = vld [vmem:[%s5 + $0x114] sm:$0xf]
          %v7193 = vld [vmem:[%s5 + $0x118] sm:$0xf]
          %v7194 = vld [vmem:[%s5 + $0x11c] sm:$0xf]
          %v7195 = vld [vmem:[%s5 + $0x120] sm:$0xf]
          %v7196 = vld [vmem:[%s5 + $0x124] sm:$0xf]
          %v7197 = vld [vmem:[%s5 + $0x128] sm:$0xf]
          %v7198 = vld [vmem:[%s5 + $0x12c] sm:$0xf]
          %v7199 = vld [vmem:[%s5 + $0x130] sm:$0xf]
          %v7200 = vld [vmem:[%s5 + $0x134] sm:$0xf]
          %v7201 = vld [vmem:[%s5 + $0x138] sm:$0xf]
          %v7202 = vld [vmem:[%s5 + $0x13c] sm:$0xf]
          %v7203 = vld [vmem:[%s5 + $0x140] sm:$0xf]
          %v7204 = vld [vmem:[%s5 + $0x144] sm:$0xf]
          %v7205 = vld [vmem:[%s5 + $0x148] sm:$0xf]
          %v7206 = vld [vmem:[%s5 + $0x14c] sm:$0xf]
          %v7207 = vld [vmem:[%s5 + $0x150] sm:$0xf]
          %v7208 = vld [vmem:[%s5 + $0x154] sm:$0xf]
          %v7209 = vld [vmem:[%s5 + $0x158] sm:$0xf]
          %v7210 = vld [vmem:[%s5 + $0x15c] sm:$0xf]
          %v7211 = vld [vmem:[%s5 + $0x160] sm:$0xf]
          %v7212 = vld [vmem:[%s5 + $0x164] sm:$0xf]
          %v7213 = vld [vmem:[%s5 + $0x168] sm:$0xf]
          %v7214 = vld [vmem:[%s5 + $0x16c] sm:$0xf]
          %v7215 = vld [vmem:[%s5 + $0x170] sm:$0xf]
          %v7216 = vld [vmem:[%s5 + $0x174] sm:$0xf]
          %v7217 = vld [vmem:[%s5 + $0x178] sm:$0xf]
          %v7218 = vld [vmem:[%s5 + $0x17c] sm:$0xf]
          %v7219 = vld [vmem:[%s5 + $0x180] sm:$0xf]
          %v7220 = vld [vmem:[%s5 + $0x184] sm:$0xf]
          %v7221 = vld [vmem:[%s5 + $0x188] sm:$0xf]
          %v7222 = vld [vmem:[%s5 + $0x18c] sm:$0xf]
          %v7223 = vld [vmem:[%s5 + $0x190] sm:$0xf]
          %v7224 = vld [vmem:[%s5 + $0x194] sm:$0xf]
          %v7225 = vld [vmem:[%s5 + $0x198] sm:$0xf]
          %v7226 = vld [vmem:[%s5 + $0x19c] sm:$0xf]
          %v7227 = vld [vmem:[%s5 + $0x1a0] sm:$0xf]
          %v7228 = vld [vmem:[%s5 + $0x1a4] sm:$0xf]
          %v7229 = vld [vmem:[%s5 + $0x1a8] sm:$0xf]
          %v7230 = vld [vmem:[%s5 + $0x1ac] sm:$0xf]
          %v7231 = vld [vmem:[%s5 + $0x1b0] sm:$0xf]
          %v7232 = vld [vmem:[%s5 + $0x1b4] sm:$0xf]
          %v7233 = vld [vmem:[%s5 + $0x1b8] sm:$0xf]
          %v7234 = vld [vmem:[%s5 + $0x1bc] sm:$0xf]
          %v7235 = vld [vmem:[%s5 + $0x1c0] sm:$0xf]
          %v7236 = vld [vmem:[%s5 + $0x1c4] sm:$0xf]
          %v7237 = vld [vmem:[%s5 + $0x1c8] sm:$0xf]
          %v7238 = vld [vmem:[%s5 + $0x1cc] sm:$0xf]
          %v7239 = vld [vmem:[%s5 + $0x1d0] sm:$0xf]
          %v7240 = vld [vmem:[%s5 + $0x1d4] sm:$0xf]
          %v7241 = vld [vmem:[%s5 + $0x1d8] sm:$0xf]
          %v7242 = vld [vmem:[%s5 + $0x1dc] sm:$0xf]
          %v7243 = vld [vmem:[%s5 + $0x1e0] sm:$0xf]
          %v7244 = vld [vmem:[%s5 + $0x1e4] sm:$0xf]
          %v7245 = vld [vmem:[%s5 + $0x1e8] sm:$0xf]
          %v7246 = vld [vmem:[%s5 + $0x1ec] sm:$0xf]
          %v7247 = vld [vmem:[%s5 + $0x1f0] sm:$0xf]
          %v7248 = vld [vmem:[%s5 + $0x1f4] sm:$0xf]
          %v7249 = vld [vmem:[%s5 + $0x1f8] sm:$0xf]
          %v7250 = vld [vmem:[%s5 + $0x1fc] sm:$0xf]
          %v7251 = vld [vmem:[%s5 + $0x200] sm:$0xf]
          %v7252 = vld [vmem:[%s5 + $0x204] sm:$0xf]
          %v7253 = vld [vmem:[%s5 + $0x208] sm:$0xf]
          %v7254 = vld [vmem:[%s5 + $0x20c] sm:$0xf]
          %v7255 = vld [vmem:[%s5 + $0x210] sm:$0xf]
          %v7256 = vld [vmem:[%s5 + $0x214] sm:$0xf]
          %v7257 = vld [vmem:[%s5 + $0x218] sm:$0xf]
          %v7258 = vld [vmem:[%s5 + $0x21c] sm:$0xf]
          %v7259 = vld [vmem:[%s5 + $0x220] sm:$0xf]
          %v7260 = vld [vmem:[%s5 + $0x224] sm:$0xf]
          %v7261 = vld [vmem:[%s5 + $0x228] sm:$0xf]
          %v7262 = vld [vmem:[%s5 + $0x22c] sm:$0xf]
          %v7263 = vld [vmem:[%s5 + $0x230] sm:$0xf]
          %v7264 = vld [vmem:[%s5 + $0x234] sm:$0xf]
          %v7265 = vld [vmem:[%s5 + $0x238] sm:$0xf]
          %v7266 = vld [vmem:[%s5 + $0x23c] sm:$0xf]
          %v7267 = vld [vmem:[%s5 + $0x240] sm:$0xf]
          %v7268 = vld [vmem:[%s5 + $0x244] sm:$0xf]
          %v7269 = vld [vmem:[%s5 + $0x248] sm:$0xf]
          %v7270 = vld [vmem:[%s5 + $0x24c] sm:$0xf]
          %v7271 = vld [vmem:[%s5 + $0x250] sm:$0xf]
          %v7272 = vld [vmem:[%s5 + $0x254] sm:$0xf]
          %v7273 = vld [vmem:[%s5 + $0x258] sm:$0xf]
          %v7274 = vld [vmem:[%s5 + $0x25c] sm:$0xf]
          %v7275 = vld [vmem:[%s5 + $0x260] sm:$0xf]
          %v7276 = vld [vmem:[%s5 + $0x264] sm:$0xf]
          %v7277 = vld [vmem:[%s5 + $0x268] sm:$0xf]
          %v7278 = vld [vmem:[%s5 + $0x26c] sm:$0xf]
          %v7279 = vld [vmem:[%s5 + $0x270] sm:$0xf]
          %v7280 = vld [vmem:[%s5 + $0x274] sm:$0xf]
          %v7281 = vld [vmem:[%s5 + $0x278] sm:$0xf]
          %v7282 = vld [vmem:[%s5 + $0x27c] sm:$0xf]
          %v7283 = vld [vmem:[%s5 + $0x280] sm:$0xf]
          %v7284 = vld [vmem:[%s5 + $0x284] sm:$0xf]
          %v7285 = vld [vmem:[%s5 + $0x288] sm:$0xf]
          %v7286 = vld [vmem:[%s5 + $0x28c] sm:$0xf]
          %v7287 = vld [vmem:[%s5 + $0x290] sm:$0xf]
          %v7288 = vld [vmem:[%s5 + $0x294] sm:$0xf]
          %v7289 = vld [vmem:[%s5 + $0x298] sm:$0xf]
          %v7290 = vld [vmem:[%s5 + $0x29c] sm:$0xf]
          %v7291 = vld [vmem:[%s5 + $0x2a0] sm:$0xf]
          %v7292 = vld [vmem:[%s5 + $0x2a4] sm:$0xf]
          %v7293 = vld [vmem:[%s5 + $0x2a8] sm:$0xf]
          %v7294 = vld [vmem:[%s5 + $0x2ac] sm:$0xf]
          %v7295 = vld [vmem:[%s5 + $0x2b0] sm:$0xf]
          %v7296 = vld [vmem:[%s5 + $0x2b4] sm:$0xf]
          %v7297 = vld [vmem:[%s5 + $0x2b8] sm:$0xf]
          %v7298 = vld [vmem:[%s5 + $0x2bc] sm:$0xf]
          %v7299 = vld [vmem:[%s5 + $0x2c0] sm:$0xf]
          %v7300 = vld [vmem:[%s5 + $0x2c4] sm:$0xf]
          %v7301 = vld [vmem:[%s5 + $0x2c8] sm:$0xf]
          %v7302 = vld [vmem:[%s5 + $0x2cc] sm:$0xf]
          %v7303 = vld [vmem:[%s5 + $0x2d0] sm:$0xf]
          %v7304 = vld [vmem:[%s5 + $0x2d4] sm:$0xf]
          %v7305 = vld [vmem:[%s5 + $0x2d8] sm:$0xf]
          %v7306 = vld [vmem:[%s5 + $0x2dc] sm:$0xf]
          %v7307 = vld [vmem:[%s5 + $0x2e0] sm:$0xf]
          %v7308 = vld [vmem:[%s5 + $0x2e4] sm:$0xf]
          %v7309 = vld [vmem:[%s5 + $0x2e8] sm:$0xf]
          %v7310 = vld [vmem:[%s5 + $0x2ec] sm:$0xf]
          %v7311 = vld [vmem:[%s5 + $0x2f0] sm:$0xf]
          %v7312 = vld [vmem:[%s5 + $0x2f4] sm:$0xf]
          %v7313 = vld [vmem:[%s5 + $0x2f8] sm:$0xf]
          %v7314 = vld [vmem:[%s5 + $0x2fc] sm:$0xf]
          %v7315 = vld [vmem:[%s5 + $0x300] sm:$0xf]
          %v7316 = vld [vmem:[%s5 + $0x304] sm:$0xf]
          %v7317 = vld [vmem:[%s5 + $0x308] sm:$0xf]
          %v7318 = vld [vmem:[%s5 + $0x30c] sm:$0xf]
          %v7319 = vld [vmem:[%s5 + $0x310] sm:$0xf]
          %v7320 = vld [vmem:[%s5 + $0x314] sm:$0xf]
          %v7321 = vld [vmem:[%s5 + $0x318] sm:$0xf]
          %v7322 = vld [vmem:[%s5 + $0x31c] sm:$0xf]
          %v7323 = vld [vmem:[%s5 + $0x320] sm:$0xf]
          %v7324 = vld [vmem:[%s5 + $0x324] sm:$0xf]
          %v7325 = vld [vmem:[%s5 + $0x328] sm:$0xf]
          %v7326 = vld [vmem:[%s5 + $0x32c] sm:$0xf]
          %v7327 = vld [vmem:[%s5 + $0x330] sm:$0xf]
          %v7328 = vld [vmem:[%s5 + $0x334] sm:$0xf]
          %v7329 = vld [vmem:[%s5 + $0x338] sm:$0xf]
          %v7330 = vld [vmem:[%s5 + $0x33c] sm:$0xf]
          %v7331 = vld [vmem:[%s5 + $0x340] sm:$0xf]
          %v7332 = vld [vmem:[%s5 + $0x344] sm:$0xf]
          %v7333 = vld [vmem:[%s5 + $0x348] sm:$0xf]
          %v7334 = vld [vmem:[%s5 + $0x34c] sm:$0xf]
          %v7335 = vld [vmem:[%s5 + $0x350] sm:$0xf]
          %v7336 = vld [vmem:[%s5 + $0x354] sm:$0xf]
          %v7337 = vld [vmem:[%s5 + $0x358] sm:$0xf]
          %v7338 = vld [vmem:[%s5 + $0x35c] sm:$0xf]
          %v7339 = vld [vmem:[%s5 + $0x360] sm:$0xf]
          %v7340 = vld [vmem:[%s5 + $0x364] sm:$0xf]
          %v7341 = vld [vmem:[%s5 + $0x368] sm:$0xf]
          %v7342 = vld [vmem:[%s5 + $0x36c] sm:$0xf]
          %v7343 = vld [vmem:[%s5 + $0x370] sm:$0xf]
          %v7344 = vld [vmem:[%s5 + $0x374] sm:$0xf]
          %v7345 = vld [vmem:[%s5 + $0x378] sm:$0xf]
          %v7346 = vld [vmem:[%s5 + $0x37c] sm:$0xf]
          %v7347 = vld [vmem:[%s5 + $0x380] sm:$0xf]
          %v7348 = vld [vmem:[%s5 + $0x384] sm:$0xf]
          %v7349 = vld [vmem:[%s5 + $0x388] sm:$0xf]
          %v7350 = vld [vmem:[%s5 + $0x38c] sm:$0xf]
          %v7351 = vld [vmem:[%s5 + $0x390] sm:$0xf]
          %v7352 = vld [vmem:[%s5 + $0x394] sm:$0xf]
          %v7353 = vld [vmem:[%s5 + $0x398] sm:$0xf]
          %v7354 = vld [vmem:[%s5 + $0x39c] sm:$0xf]
          %v7355 = vld [vmem:[%s5 + $0x3a0] sm:$0xf]
          %v7356 = vld [vmem:[%s5 + $0x3a4] sm:$0xf]
          %v7357 = vld [vmem:[%s5 + $0x3a8] sm:$0xf]
          %v7358 = vld [vmem:[%s5 + $0x3ac] sm:$0xf]
          %v7359 = vld [vmem:[%s5 + $0x3b0] sm:$0xf]
          %v7360 = vld [vmem:[%s5 + $0x3b4] sm:$0xf]
          %v7361 = vld [vmem:[%s5 + $0x3b8] sm:$0xf]
          %v7362 = vld [vmem:[%s5 + $0x3bc] sm:$0xf]
          %v7363 = vld [vmem:[%s5 + $0x3c0] sm:$0xf]
          %v7364 = vld [vmem:[%s5 + $0x3c4] sm:$0xf]
          %v7365 = vld [vmem:[%s5 + $0x3c8] sm:$0xf]
          %v7366 = vld [vmem:[%s5 + $0x3cc] sm:$0xf]
          %v7367 = vld [vmem:[%s5 + $0x3d0] sm:$0xf]
          %v7368 = vld [vmem:[%s5 + $0x3d4] sm:$0xf]
          %v7369 = vld [vmem:[%s5 + $0x3d8] sm:$0xf]
          %v7370 = vld [vmem:[%s5 + $0x3dc] sm:$0xf]
          %v7371 = vld [vmem:[%s5 + $0x3e0] sm:$0xf]
          %v7372 = vld [vmem:[%s5 + $0x3e4] sm:$0xf]
          %v7373 = vld [vmem:[%s5 + $0x3e8] sm:$0xf]
          %v7374 = vld [vmem:[%s5 + $0x3ec] sm:$0xf]
          %v7375 = vld [vmem:[%s5 + $0x3f0] sm:$0xf]
          %v7376 = vld [vmem:[%s5 + $0x3f4] sm:$0xf]
          %v7377 = vld [vmem:[%s5 + $0x3f8] sm:$0xf]
          %v7378 = vld [vmem:[%s5 + $0x3fc] sm:$0xf]
          %v7379 = vld [vmem:[%s6] sm:$0x1]
          %v7636 = vunpack.c.l.b16 %v7123
          %v7637 = vunpack.c.l.b16 %v7124
          %v7638 = vunpack.c.l.b16 %v7125
          %v7639 = vunpack.c.l.b16 %v7126
          %v7640 = vunpack.c.l.b16 %v7127
          %v7641 = vunpack.c.l.b16 %v7128
          %v7642 = vunpack.c.l.b16 %v7129
          %v7643 = vunpack.c.l.b16 %v7130
          %v7644 = vunpack.c.l.b16 %v7131
          %v7645 = vunpack.c.l.b16 %v7132
          %v7646 = vunpack.c.l.b16 %v7133
          %v7647 = vunpack.c.l.b16 %v7134
          %v7648 = vunpack.c.l.b16 %v7135
          %v7649 = vunpack.c.l.b16 %v7136
          %v7650 = vunpack.c.l.b16 %v7137
          %v7651 = vunpack.c.l.b16 %v7138
          %v7652 = vunpack.c.l.b16 %v7139
          %v7653 = vunpack.c.l.b16 %v7140
          %v7654 = vunpack.c.l.b16 %v7141
          %v7655 = vunpack.c.l.b16 %v7142
          %v7656 = vunpack.c.l.b16 %v7143
          %v7657 = vunpack.c.l.b16 %v7144
          %v7658 = vunpack.c.l.b16 %v7145
          %v7659 = vunpack.c.l.b16 %v7146
          %v7660 = vunpack.c.l.b16 %v7147
          %v7661 = vunpack.c.l.b16 %v7148
          %v7662 = vunpack.c.l.b16 %v7149
          %v7663 = vunpack.c.l.b16 %v7150
          %v7664 = vunpack.c.l.b16 %v7151
          %v7665 = vunpack.c.l.b16 %v7152
          %v7666 = vunpack.c.l.b16 %v7153
          %v7667 = vunpack.c.l.b16 %v7154
          %v7668 = vunpack.c.l.b16 %v7155
          %v7669 = vunpack.c.l.b16 %v7156
          %v7670 = vunpack.c.l.b16 %v7157
          %v7671 = vunpack.c.l.b16 %v7158
          %v7672 = vunpack.c.l.b16 %v7159
          %v7673 = vunpack.c.l.b16 %v7160
          %v7674 = vunpack.c.l.b16 %v7161
          %v7675 = vunpack.c.l.b16 %v7162
          %v7676 = vunpack.c.l.b16 %v7163
          %v7677 = vunpack.c.l.b16 %v7164
          %v7678 = vunpack.c.l.b16 %v7165
          %v7679 = vunpack.c.l.b16 %v7166
          %v7680 = vunpack.c.l.b16 %v7167
          %v7681 = vunpack.c.l.b16 %v7168
          %v7682 = vunpack.c.l.b16 %v7169
          %v7683 = vunpack.c.l.b16 %v7170
          %v7684 = vunpack.c.l.b16 %v7171
          %v7685 = vunpack.c.l.b16 %v7172
          %v7686 = vunpack.c.l.b16 %v7173
          %v7687 = vunpack.c.l.b16 %v7174
          %v7688 = vunpack.c.l.b16 %v7175
          %v7689 = vunpack.c.l.b16 %v7176
          %v7690 = vunpack.c.l.b16 %v7177
          %v7691 = vunpack.c.l.b16 %v7178
          %v7692 = vunpack.c.l.b16 %v7179
          %v7693 = vunpack.c.l.b16 %v7180
          %v7694 = vunpack.c.l.b16 %v7181
          %v7695 = vunpack.c.l.b16 %v7182
          %v7696 = vunpack.c.l.b16 %v7183
          %v7697 = vunpack.c.l.b16 %v7184
          %v7698 = vunpack.c.l.b16 %v7185
          %v7699 = vunpack.c.l.b16 %v7186
          %v7700 = vunpack.c.l.b16 %v7187
          %v7701 = vunpack.c.l.b16 %v7188
          %v7702 = vunpack.c.l.b16 %v7189
          %v7703 = vunpack.c.l.b16 %v7190
          %v7704 = vunpack.c.l.b16 %v7191
          %v7705 = vunpack.c.l.b16 %v7192
          %v7706 = vunpack.c.l.b16 %v7193
          %v7707 = vunpack.c.l.b16 %v7194
          %v7708 = vunpack.c.l.b16 %v7195
          %v7709 = vunpack.c.l.b16 %v7196
          %v7710 = vunpack.c.l.b16 %v7197
          %v7711 = vunpack.c.l.b16 %v7198
          %v7712 = vunpack.c.l.b16 %v7199
          %v7713 = vunpack.c.l.b16 %v7200
          %v7714 = vunpack.c.l.b16 %v7201
          %v7715 = vunpack.c.l.b16 %v7202
          %v7716 = vunpack.c.l.b16 %v7203
          %v7717 = vunpack.c.l.b16 %v7204
          %v7718 = vunpack.c.l.b16 %v7205
          %v7719 = vunpack.c.l.b16 %v7206
          %v7720 = vunpack.c.l.b16 %v7207
          %v7721 = vunpack.c.l.b16 %v7208
          %v7722 = vunpack.c.l.b16 %v7209
          %v7723 = vunpack.c.l.b16 %v7210
          %v7724 = vunpack.c.l.b16 %v7211
          %v7725 = vunpack.c.l.b16 %v7212
          %v7726 = vunpack.c.l.b16 %v7213
          %v7727 = vunpack.c.l.b16 %v7214
          %v7728 = vunpack.c.l.b16 %v7215
          %v7729 = vunpack.c.l.b16 %v7216
          %v7730 = vunpack.c.l.b16 %v7217
          %v7731 = vunpack.c.l.b16 %v7218
          %v7732 = vunpack.c.l.b16 %v7219
          %v7733 = vunpack.c.l.b16 %v7220
          %v7734 = vunpack.c.l.b16 %v7221
          %v7735 = vunpack.c.l.b16 %v7222
          %v7736 = vunpack.c.l.b16 %v7223
          %v7737 = vunpack.c.l.b16 %v7224
          %v7738 = vunpack.c.l.b16 %v7225
          %v7739 = vunpack.c.l.b16 %v7226
          %v7740 = vunpack.c.l.b16 %v7227
          %v7741 = vunpack.c.l.b16 %v7228
          %v7742 = vunpack.c.l.b16 %v7229
          %v7743 = vunpack.c.l.b16 %v7230
          %v7744 = vunpack.c.l.b16 %v7231
          %v7745 = vunpack.c.l.b16 %v7232
          %v7746 = vunpack.c.l.b16 %v7233
          %v7747 = vunpack.c.l.b16 %v7234
          %v7748 = vunpack.c.l.b16 %v7235
          %v7749 = vunpack.c.l.b16 %v7236
          %v7750 = vunpack.c.l.b16 %v7237
          %v7751 = vunpack.c.l.b16 %v7238
          %v7752 = vunpack.c.l.b16 %v7239
          %v7753 = vunpack.c.l.b16 %v7240
          %v7754 = vunpack.c.l.b16 %v7241
          %v7755 = vunpack.c.l.b16 %v7242
          %v7756 = vunpack.c.l.b16 %v7243
          %v7757 = vunpack.c.l.b16 %v7244
          %v7758 = vunpack.c.l.b16 %v7245
          %v7759 = vunpack.c.l.b16 %v7246
          %v7760 = vunpack.c.l.b16 %v7247
          %v7761 = vunpack.c.l.b16 %v7248
          %v7762 = vunpack.c.l.b16 %v7249
          %v7763 = vunpack.c.l.b16 %v7250
          %v7764 = vunpack.c.l.b16 %v7251
          %v7765 = vunpack.c.l.b16 %v7252
          %v7766 = vunpack.c.l.b16 %v7253
          %v7767 = vunpack.c.l.b16 %v7254
          %v7768 = vunpack.c.l.b16 %v7255
          %v7769 = vunpack.c.l.b16 %v7256
          %v7770 = vunpack.c.l.b16 %v7257
          %v7771 = vunpack.c.l.b16 %v7258
          %v7772 = vunpack.c.l.b16 %v7259
          %v7773 = vunpack.c.l.b16 %v7260
          %v7774 = vunpack.c.l.b16 %v7261
          %v7775 = vunpack.c.l.b16 %v7262
          %v7776 = vunpack.c.l.b16 %v7263
          %v7777 = vunpack.c.l.b16 %v7264
          %v7778 = vunpack.c.l.b16 %v7265
          %v7779 = vunpack.c.l.b16 %v7266
          %v7780 = vunpack.c.l.b16 %v7267
          %v7781 = vunpack.c.l.b16 %v7268
          %v7782 = vunpack.c.l.b16 %v7269
          %v7783 = vunpack.c.l.b16 %v7270
          %v7784 = vunpack.c.l.b16 %v7271
          %v7785 = vunpack.c.l.b16 %v7272
          %v7786 = vunpack.c.l.b16 %v7273
          %v7787 = vunpack.c.l.b16 %v7274
          %v7788 = vunpack.c.l.b16 %v7275
          %v7789 = vunpack.c.l.b16 %v7276
          %v7790 = vunpack.c.l.b16 %v7277
          %v7791 = vunpack.c.l.b16 %v7278
          %v7792 = vunpack.c.l.b16 %v7279
          %v7793 = vunpack.c.l.b16 %v7280
          %v7794 = vunpack.c.l.b16 %v7281
          %v7795 = vunpack.c.l.b16 %v7282
          %v7796 = vunpack.c.l.b16 %v7283
          %v7797 = vunpack.c.l.b16 %v7284
          %v7798 = vunpack.c.l.b16 %v7285
          %v7799 = vunpack.c.l.b16 %v7286
          %v7800 = vunpack.c.l.b16 %v7287
          %v7801 = vunpack.c.l.b16 %v7288
          %v7802 = vunpack.c.l.b16 %v7289
          %v7803 = vunpack.c.l.b16 %v7290
          %v7804 = vunpack.c.l.b16 %v7291
          %v7805 = vunpack.c.l.b16 %v7292
          %v7806 = vunpack.c.l.b16 %v7293
          %v7807 = vunpack.c.l.b16 %v7294
          %v7808 = vunpack.c.l.b16 %v7295
          %v7809 = vunpack.c.l.b16 %v7296
          %v7810 = vunpack.c.l.b16 %v7297
          %v7811 = vunpack.c.l.b16 %v7298
          %v7812 = vunpack.c.l.b16 %v7299
          %v7813 = vunpack.c.l.b16 %v7300
          %v7814 = vunpack.c.l.b16 %v7301
          %v7815 = vunpack.c.l.b16 %v7302
          %v7816 = vunpack.c.l.b16 %v7303
          %v7817 = vunpack.c.l.b16 %v7304
          %v7818 = vunpack.c.l.b16 %v7305
          %v7819 = vunpack.c.l.b16 %v7306
          %v7820 = vunpack.c.l.b16 %v7307
          %v7821 = vunpack.c.l.b16 %v7308
          %v7822 = vunpack.c.l.b16 %v7309
          %v7823 = vunpack.c.l.b16 %v7310
          %v7824 = vunpack.c.l.b16 %v7311
          %v7825 = vunpack.c.l.b16 %v7312
          %v7826 = vunpack.c.l.b16 %v7313
          %v7827 = vunpack.c.l.b16 %v7314
          %v7828 = vunpack.c.l.b16 %v7315
          %v7829 = vunpack.c.l.b16 %v7316
          %v7830 = vunpack.c.l.b16 %v7317
          %v7831 = vunpack.c.l.b16 %v7318
          %v7832 = vunpack.c.l.b16 %v7319
          %v7833 = vunpack.c.l.b16 %v7320
          %v7834 = vunpack.c.l.b16 %v7321
          %v7835 = vunpack.c.l.b16 %v7322
          %v7836 = vunpack.c.l.b16 %v7323
          %v7837 = vunpack.c.l.b16 %v7324
          %v7838 = vunpack.c.l.b16 %v7325
          %v7839 = vunpack.c.l.b16 %v7326
          %v7840 = vunpack.c.l.b16 %v7327
          %v7841 = vunpack.c.l.b16 %v7328
          %v7842 = vunpack.c.l.b16 %v7329
          %v7843 = vunpack.c.l.b16 %v7330
          %v7844 = vunpack.c.l.b16 %v7331
          %v7845 = vunpack.c.l.b16 %v7332
          %v7846 = vunpack.c.l.b16 %v7333
          %v7847 = vunpack.c.l.b16 %v7334
          %v7848 = vunpack.c.l.b16 %v7335
          %v7849 = vunpack.c.l.b16 %v7336
          %v7850 = vunpack.c.l.b16 %v7337
          %v7851 = vunpack.c.l.b16 %v7338
          %v7852 = vunpack.c.l.b16 %v7339
          %v7853 = vunpack.c.l.b16 %v7340
          %v7854 = vunpack.c.l.b16 %v7341
          %v7855 = vunpack.c.l.b16 %v7342
          %v7856 = vunpack.c.l.b16 %v7343
          %v7857 = vunpack.c.l.b16 %v7344
          %v7858 = vunpack.c.l.b16 %v7345
          %v7859 = vunpack.c.l.b16 %v7346
          %v7860 = vunpack.c.l.b16 %v7347
          %v7861 = vunpack.c.l.b16 %v7348
          %v7862 = vunpack.c.l.b16 %v7349
          %v7863 = vunpack.c.l.b16 %v7350
          %v7864 = vunpack.c.l.b16 %v7351
          %v7865 = vunpack.c.l.b16 %v7352
          %v7866 = vunpack.c.l.b16 %v7353
          %v7867 = vunpack.c.l.b16 %v7354
          %v7868 = vunpack.c.l.b16 %v7355
          %v7869 = vunpack.c.l.b16 %v7356
          %v7870 = vunpack.c.l.b16 %v7357
          %v7871 = vunpack.c.l.b16 %v7358
          %v7872 = vunpack.c.l.b16 %v7359
          %v7873 = vunpack.c.l.b16 %v7360
          %v7874 = vunpack.c.l.b16 %v7361
          %v7875 = vunpack.c.l.b16 %v7362
          %v7876 = vunpack.c.l.b16 %v7363
          %v7877 = vunpack.c.l.b16 %v7364
          %v7878 = vunpack.c.l.b16 %v7365
          %v7879 = vunpack.c.l.b16 %v7366
          %v7880 = vunpack.c.l.b16 %v7367
          %v7881 = vunpack.c.l.b16 %v7368
          %v7882 = vunpack.c.l.b16 %v7369
          %v7883 = vunpack.c.l.b16 %v7370
          %v7884 = vunpack.c.l.b16 %v7371
          %v7885 = vunpack.c.l.b16 %v7372
          %v7886 = vunpack.c.l.b16 %v7373
          %v7887 = vunpack.c.l.b16 %v7374
          %v7888 = vunpack.c.l.b16 %v7375
          %v7889 = vunpack.c.l.b16 %v7376
          %v7890 = vunpack.c.l.b16 %v7377
          %v7891 = vunpack.c.l.b16 %v7378
          %v7892 = vpack.c.b16 %v7637, %v7636
          %v7893 = vpack.c.b16 %v7639, %v7638
          %v7894 = vpack.c.b16 %v7641, %v7640
          %v7895 = vpack.c.b16 %v7643, %v7642
          %v7896 = vpack.c.b16 %v7645, %v7644
          %v7897 = vpack.c.b16 %v7647, %v7646
          %v7898 = vpack.c.b16 %v7649, %v7648
          %v7899 = vpack.c.b16 %v7651, %v7650
          %v7900 = vpack.c.b16 %v7653, %v7652
          %v7901 = vpack.c.b16 %v7655, %v7654
          %v7902 = vpack.c.b16 %v7657, %v7656
          %v7903 = vpack.c.b16 %v7659, %v7658
          %v7904 = vpack.c.b16 %v7661, %v7660
          %v7905 = vpack.c.b16 %v7663, %v7662
          %v7906 = vpack.c.b16 %v7665, %v7664
          %v7907 = vpack.c.b16 %v7667, %v7666
          %v7908 = vpack.c.b16 %v7669, %v7668
          %v7909 = vpack.c.b16 %v7671, %v7670
          %v7910 = vpack.c.b16 %v7673, %v7672
          %v7911 = vpack.c.b16 %v7675, %v7674
          %v7912 = vpack.c.b16 %v7677, %v7676
          %v7913 = vpack.c.b16 %v7679, %v7678
          %v7914 = vpack.c.b16 %v7681, %v7680
          %v7915 = vpack.c.b16 %v7683, %v7682
          %v7916 = vpack.c.b16 %v7685, %v7684
          %v7917 = vpack.c.b16 %v7687, %v7686
          %v7918 = vpack.c.b16 %v7689, %v7688
          %v7919 = vpack.c.b16 %v7691, %v7690
          %v7920 = vpack.c.b16 %v7693, %v7692
          %v7921 = vpack.c.b16 %v7695, %v7694
          %v7922 = vpack.c.b16 %v7697, %v7696
          %v7923 = vpack.c.b16 %v7699, %v7698
          %v7924 = vpack.c.b16 %v7701, %v7700
          %v7925 = vpack.c.b16 %v7703, %v7702
          %v7926 = vpack.c.b16 %v7705, %v7704
          %v7927 = vpack.c.b16 %v7707, %v7706
          %v7928 = vpack.c.b16 %v7709, %v7708
          %v7929 = vpack.c.b16 %v7711, %v7710
          %v7930 = vpack.c.b16 %v7713, %v7712
          %v7931 = vpack.c.b16 %v7715, %v7714
          %v7932 = vpack.c.b16 %v7717, %v7716
          %v7933 = vpack.c.b16 %v7719, %v7718
          %v7934 = vpack.c.b16 %v7721, %v7720
          %v7935 = vpack.c.b16 %v7723, %v7722
          %v7936 = vpack.c.b16 %v7725, %v7724
          %v7937 = vpack.c.b16 %v7727, %v7726
          %v7938 = vpack.c.b16 %v7729, %v7728
          %v7939 = vpack.c.b16 %v7731, %v7730
          %v7940 = vpack.c.b16 %v7733, %v7732
          %v7941 = vpack.c.b16 %v7735, %v7734
          %v7942 = vpack.c.b16 %v7737, %v7736
          %v7943 = vpack.c.b16 %v7739, %v7738
          %v7944 = vpack.c.b16 %v7741, %v7740
          %v7945 = vpack.c.b16 %v7743, %v7742
          %v7946 = vpack.c.b16 %v7745, %v7744
          %v7947 = vpack.c.b16 %v7747, %v7746
          %v7948 = vpack.c.b16 %v7749, %v7748
          %v7949 = vpack.c.b16 %v7751, %v7750
          %v7950 = vpack.c.b16 %v7753, %v7752
          %v7951 = vpack.c.b16 %v7755, %v7754
          %v7952 = vpack.c.b16 %v7757, %v7756
          %v7953 = vpack.c.b16 %v7759, %v7758
          %v7954 = vpack.c.b16 %v7761, %v7760
          %v7955 = vpack.c.b16 %v7763, %v7762
          %v7956 = vpack.c.b16 %v7765, %v7764
          %v7957 = vpack.c.b16 %v7767, %v7766
          %v7958 = vpack.c.b16 %v7769, %v7768
          %v7959 = vpack.c.b16 %v7771, %v7770
          %v7960 = vpack.c.b16 %v7773, %v7772
          %v7961 = vpack.c.b16 %v7775, %v7774
          %v7962 = vpack.c.b16 %v7777, %v7776
          %v7963 = vpack.c.b16 %v7779, %v7778
          %v7964 = vpack.c.b16 %v7781, %v7780
          %v7965 = vpack.c.b16 %v7783, %v7782
          %v7966 = vpack.c.b16 %v7785, %v7784
          %v7967 = vpack.c.b16 %v7787, %v7786
          %v7968 = vpack.c.b16 %v7789, %v7788
          %v7969 = vpack.c.b16 %v7791, %v7790
          %v7970 = vpack.c.b16 %v7793, %v7792
          %v7971 = vpack.c.b16 %v7795, %v7794
          %v7972 = vpack.c.b16 %v7797, %v7796
          %v7973 = vpack.c.b16 %v7799, %v7798
          %v7974 = vpack.c.b16 %v7801, %v7800
          %v7975 = vpack.c.b16 %v7803, %v7802
          %v7976 = vpack.c.b16 %v7805, %v7804
          %v7977 = vpack.c.b16 %v7807, %v7806
          %v7978 = vpack.c.b16 %v7809, %v7808
          %v7979 = vpack.c.b16 %v7811, %v7810
          %v7980 = vpack.c.b16 %v7813, %v7812
          %v7981 = vpack.c.b16 %v7815, %v7814
          %v7982 = vpack.c.b16 %v7817, %v7816
          %v7983 = vpack.c.b16 %v7819, %v7818
          %v7984 = vpack.c.b16 %v7821, %v7820
          %v7985 = vpack.c.b16 %v7823, %v7822
          %v7986 = vpack.c.b16 %v7825, %v7824
          %v7987 = vpack.c.b16 %v7827, %v7826
          %v7988 = vpack.c.b16 %v7829, %v7828
          %v7989 = vpack.c.b16 %v7831, %v7830
          %v7990 = vpack.c.b16 %v7833, %v7832
          %v7991 = vpack.c.b16 %v7835, %v7834
          %v7992 = vpack.c.b16 %v7837, %v7836
          %v7993 = vpack.c.b16 %v7839, %v7838
          %v7994 = vpack.c.b16 %v7841, %v7840
          %v7995 = vpack.c.b16 %v7843, %v7842
          %v7996 = vpack.c.b16 %v7845, %v7844
          %v7997 = vpack.c.b16 %v7847, %v7846
          %v7998 = vpack.c.b16 %v7849, %v7848
          %v7999 = vpack.c.b16 %v7851, %v7850
          %v8000 = vpack.c.b16 %v7853, %v7852
          %v8001 = vpack.c.b16 %v7855, %v7854
          %v8002 = vpack.c.b16 %v7857, %v7856
          %v8003 = vpack.c.b16 %v7859, %v7858
          %v8004 = vpack.c.b16 %v7861, %v7860
          %v8005 = vpack.c.b16 %v7863, %v7862
          %v8006 = vpack.c.b16 %v7865, %v7864
          %v8007 = vpack.c.b16 %v7867, %v7866
          %v8008 = vpack.c.b16 %v7869, %v7868
          %v8009 = vpack.c.b16 %v7871, %v7870
          %v8010 = vpack.c.b16 %v7873, %v7872
          %v8011 = vpack.c.b16 %v7875, %v7874
          %v8012 = vpack.c.b16 %v7877, %v7876
          %v8013 = vpack.c.b16 %v7879, %v7878
          %v8014 = vpack.c.b16 %v7881, %v7880
          %v8015 = vpack.c.b16 %v7883, %v7882
          %v8016 = vpack.c.b16 %v7885, %v7884
          %v8017 = vpack.c.b16 %v7887, %v7886
          %v8018 = vpack.c.b16 %v7889, %v7888
          %v8019 = vpack.c.b16 %v7891, %v7890
          %8148 = vmatprep.subr.bf16.mxu0 0
          %8149 = vmatpush1.bf16.msra.mxu0 %v7892
          %8150 = vmatprep.subr.bf16.mxu0 0
          %8151 = vmatpush1.bf16.msra.mxu0 %v7893
          %8152 = vmatprep.subr.bf16.mxu0 0
          %8153 = vmatpush1.bf16.msra.mxu0 %v7894
          %8154 = vmatprep.subr.bf16.mxu0 0
          %8155 = vmatpush1.bf16.msra.mxu0 %v7895
          %8156 = vmatprep.subr.bf16.mxu0 0
          %8157 = vmatpush1.bf16.msra.mxu0 %v7896
          %8158 = vmatprep.subr.bf16.mxu0 0
          %8159 = vmatpush1.bf16.msra.mxu0 %v7897
          %8160 = vmatprep.subr.bf16.mxu0 0
          %8161 = vmatpush1.bf16.msra.mxu0 %v7898
          %8162 = vmatprep.subr.bf16.mxu0 0
          %8163 = vmatpush1.bf16.msra.mxu0 %v7899
          %8164 = vmatprep.subr.bf16.mxu0 0
          %8165 = vmatpush1.bf16.msra.mxu0 %v7900
          %8166 = vmatprep.subr.bf16.mxu0 0
          %8167 = vmatpush1.bf16.msra.mxu0 %v7901
          %8168 = vmatprep.subr.bf16.mxu0 0
          %8169 = vmatpush1.bf16.msra.mxu0 %v7902
          %8170 = vmatprep.subr.bf16.mxu0 0
          %8171 = vmatpush1.bf16.msra.mxu0 %v7903
          %8172 = vmatprep.subr.bf16.mxu0 0
          %8173 = vmatpush1.bf16.msra.mxu0 %v7904
          %8174 = vmatprep.subr.bf16.mxu0 0
          %8175 = vmatpush1.bf16.msra.mxu0 %v7905
          %8176 = vmatprep.subr.bf16.mxu0 0
          %8177 = vmatpush1.bf16.msra.mxu0 %v7906
          %8178 = vmatprep.subr.bf16.mxu0 0
          %8179 = vmatpush1.bf16.msra.mxu0 %v7907
          %8180 = vmatprep.mubr.bf16.mxu0 %v7108
          %8181 = vmatmul.mubr.bf16.gmra.mrb[0].mxu0 %v7107
          %v8182 = vpop.f32.mrb[0].mxu0
          %v8183 = vadd.f32 %v7379, %v8182
          %v8184 = vpop.f32.mrb[0].mxu0
          %v8185 = vpop.f32.mrb[0].mxu0
          %v8186 = vpop.f32.mrb[0].mxu0
          %8187 = vdwg.mxu0
          %8188 = vmatprep.subr.bf16.mxu0 0
          %8189 = vmatpush1.bf16.msra.mxu0 %v7908
          %8190 = vmatprep.subr.bf16.mxu0 0
          %8191 = vmatpush1.bf16.msra.mxu0 %v7909
          %8192 = vmatprep.subr.bf16.mxu0 0
          %8193 = vmatpush1.bf16.msra.mxu0 %v7910
          %8194 = vmatprep.subr.bf16.mxu0 0
          %8195 = vmatpush1.bf16.msra.mxu0 %v7911
          %8196 = vmatprep.subr.bf16.mxu0 0
          %8197 = vmatpush1.bf16.msra.mxu0 %v7912
          %8198 = vmatprep.subr.bf16.mxu0 0
          %8199 = vmatpush1.bf16.msra.mxu0 %v7913
          %8200 = vmatprep.subr.bf16.mxu0 0
          %8201 = vmatpush1.bf16.msra.mxu0 %v7914
          %8202 = vmatprep.subr.bf16.mxu0 0
          %8203 = vmatpush1.bf16.msra.mxu0 %v7915
          %8204 = vmatprep.subr.bf16.mxu0 0
          %8205 = vmatpush1.bf16.msra.mxu0 %v7916
          %8206 = vmatprep.subr.bf16.mxu0 0
          %8207 = vmatpush1.bf16.msra.mxu0 %v7917
          %8208 = vmatprep.subr.bf16.mxu0 0
          %8209 = vmatpush1.bf16.msra.mxu0 %v7918
          %8210 = vmatprep.subr.bf16.mxu0 0
          %8211 = vmatpush1.bf16.msra.mxu0 %v7919
          %8212 = vmatprep.subr.bf16.mxu0 0
          %8213 = vmatpush1.bf16.msra.mxu0 %v7920
          %8214 = vmatprep.subr.bf16.mxu0 0
          %8215 = vmatpush1.bf16.msra.mxu0 %v7921
          %8216 = vmatprep.subr.bf16.mxu0 0
          %8217 = vmatpush1.bf16.msra.mxu0 %v7922
          %8218 = vmatprep.subr.bf16.mxu0 0
          %8219 = vmatpush1.bf16.msra.mxu0 %v7923
          %8220 = vmatprep.mubr.bf16.mxu0 %v7110
          %8221 = vmatmul.mubr.bf16.gmra.mrb[0].mxu0 %v7109
          %v8222 = vpop.f32.mrb[0].mxu0
          %v8223 = vadd.f32 %v8183, %v8222
          %v8224 = vpop.f32.mrb[0].mxu0
          %v8225 = vpop.f32.mrb[0].mxu0
          %v8226 = vpop.f32.mrb[0].mxu0
          %8227 = vdwg.mxu0
          %8228 = vmatprep.subr.bf16.mxu0 0
          %8229 = vmatpush1.bf16.msra.mxu0 %v7924
          %8230 = vmatprep.subr.bf16.mxu0 0
          %8231 = vmatpush1.bf16.msra.mxu0 %v7925
          %8232 = vmatprep.subr.bf16.mxu0 0
          %8233 = vmatpush1.bf16.msra.mxu0 %v7926
          %8234 = vmatprep.subr.bf16.mxu0 0
          %8235 = vmatpush1.bf16.msra.mxu0 %v7927
          %8236 = vmatprep.subr.bf16.mxu0 0
          %8237 = vmatpush1.bf16.msra.mxu0 %v7928
          %8238 = vmatprep.subr.bf16.mxu0 0
          %8239 = vmatpush1.bf16.msra.mxu0 %v7929
          %8240 = vmatprep.subr.bf16.mxu0 0
          %8241 = vmatpush1.bf16.msra.mxu0 %v7930
          %8242 = vmatprep.subr.bf16.mxu0 0
          %8243 = vmatpush1.bf16.msra.mxu0 %v7931
          %8244 = vmatprep.subr.bf16.mxu0 0
          %8245 = vmatpush1.bf16.msra.mxu0 %v7932
          %8246 = vmatprep.subr.bf16.mxu0 0
          %8247 = vmatpush1.bf16.msra.mxu0 %v7933
          %8248 = vmatprep.subr.bf16.mxu0 0
          %8249 = vmatpush1.bf16.msra.mxu0 %v7934
          %8250 = vmatprep.subr.bf16.mxu0 0
          %8251 = vmatpush1.bf16.msra.mxu0 %v7935
          %8252 = vmatprep.subr.bf16.mxu0 0
          %8253 = vmatpush1.bf16.msra.mxu0 %v7936
          %8254 = vmatprep.subr.bf16.mxu0 0
          %8255 = vmatpush1.bf16.msra.mxu0 %v7937
          %8256 = vmatprep.subr.bf16.mxu0 0
          %8257 = vmatpush1.bf16.msra.mxu0 %v7938
          %8258 = vmatprep.subr.bf16.mxu0 0
          %8259 = vmatpush1.bf16.msra.mxu0 %v7939
          %8260 = vmatprep.mubr.bf16.mxu0 %v7112
          %8261 = vmatmul.mubr.bf16.gmra.mrb[0].mxu0 %v7111
          %v8262 = vpop.f32.mrb[0].mxu0
          %v8263 = vadd.f32 %v8223, %v8262
          %v8264 = vpop.f32.mrb[0].mxu0
          %v8265 = vpop.f32.mrb[0].mxu0
          %v8266 = vpop.f32.mrb[0].mxu0
          %8267 = vdwg.mxu0
          %8268 = vmatprep.subr.bf16.mxu0 0
          %8269 = vmatpush1.bf16.msra.mxu0 %v7940
          %8270 = vmatprep.subr.bf16.mxu0 0
          %8271 = vmatpush1.bf16.msra.mxu0 %v7941
          %8272 = vmatprep.subr.bf16.mxu0 0
          %8273 = vmatpush1.bf16.msra.mxu0 %v7942
          %8274 = vmatprep.subr.bf16.mxu0 0
          %8275 = vmatpush1.bf16.msra.mxu0 %v7943
          %8276 = vmatprep.subr.bf16.mxu0 0
          %8277 = vmatpush1.bf16.msra.mxu0 %v7944
          %8278 = vmatprep.subr.bf16.mxu0 0
          %8279 = vmatpush1.bf16.msra.mxu0 %v7945
          %8280 = vmatprep.subr.bf16.mxu0 0
          %8281 = vmatpush1.bf16.msra.mxu0 %v7946
          %8282 = vmatprep.subr.bf16.mxu0 0
          %8283 = vmatpush1.bf16.msra.mxu0 %v7947
          %8284 = vmatprep.subr.bf16.mxu0 0
          %8285 = vmatpush1.bf16.msra.mxu0 %v7948
          %8286 = vmatprep.subr.bf16.mxu0 0
          %8287 = vmatpush1.bf16.msra.mxu0 %v7949
          %8288 = vmatprep.subr.bf16.mxu0 0
          %8289 = vmatpush1.bf16.msra.mxu0 %v7950
          %8290 = vmatprep.subr.bf16.mxu0 0
          %8291 = vmatpush1.bf16.msra.mxu0 %v7951
          %8292 = vmatprep.subr.bf16.mxu0 0
          %8293 = vmatpush1.bf16.msra.mxu0 %v7952
          %8294 = vmatprep.subr.bf16.mxu0 0
          %8295 = vmatpush1.bf16.msra.mxu0 %v7953
          %8296 = vmatprep.subr.bf16.mxu0 0
          %8297 = vmatpush1.bf16.msra.mxu0 %v7954
          %8298 = vmatprep.subr.bf16.mxu0 0
          %8299 = vmatpush1.bf16.msra.mxu0 %v7955
          %8300 = vmatprep.mubr.bf16.mxu0 %v7114
          %8301 = vmatmul.mubr.bf16.gmra.mrb[0].mxu0 %v7113
          %v8302 = vpop.f32.mrb[0].mxu0
          %v8303 = vadd.f32 %v8263, %v8302
          %v8304 = vpop.f32.mrb[0].mxu0
          %v8305 = vpop.f32.mrb[0].mxu0
          %v8306 = vpop.f32.mrb[0].mxu0
          %8307 = vdwg.mxu0
          %8308 = vmatprep.subr.bf16.mxu0 0
          %8309 = vmatpush1.bf16.msra.mxu0 %v7956
          %8310 = vmatprep.subr.bf16.mxu0 0
          %8311 = vmatpush1.bf16.msra.mxu0 %v7957
          %8312 = vmatprep.subr.bf16.mxu0 0
          %8313 = vmatpush1.bf16.msra.mxu0 %v7958
          %8314 = vmatprep.subr.bf16.mxu0 0
          %8315 = vmatpush1.bf16.msra.mxu0 %v7959
          %8316 = vmatprep.subr.bf16.mxu0 0
          %8317 = vmatpush1.bf16.msra.mxu0 %v7960
          %8318 = vmatprep.subr.bf16.mxu0 0
          %8319 = vmatpush1.bf16.msra.mxu0 %v7961
          %8320 = vmatprep.subr.bf16.mxu0 0
          %8321 = vmatpush1.bf16.msra.mxu0 %v7962
          %8322 = vmatprep.subr.bf16.mxu0 0
          %8323 = vmatpush1.bf16.msra.mxu0 %v7963
          %8324 = vmatprep.subr.bf16.mxu0 0
          %8325 = vmatpush1.bf16.msra.mxu0 %v7964
          %8326 = vmatprep.subr.bf16.mxu0 0
          %8327 = vmatpush1.bf16.msra.mxu0 %v7965
          %8328 = vmatprep.subr.bf16.mxu0 0
          %8329 = vmatpush1.bf16.msra.mxu0 %v7966
          %8330 = vmatprep.subr.bf16.mxu0 0
          %8331 = vmatpush1.bf16.msra.mxu0 %v7967
          %8332 = vmatprep.subr.bf16.mxu0 0
          %8333 = vmatpush1.bf16.msra.mxu0 %v7968
          %8334 = vmatprep.subr.bf16.mxu0 0
          %8335 = vmatpush1.bf16.msra.mxu0 %v7969
          %8336 = vmatprep.subr.bf16.mxu0 0
          %8337 = vmatpush1.bf16.msra.mxu0 %v7970
          %8338 = vmatprep.subr.bf16.mxu0 0
          %8339 = vmatpush1.bf16.msra.mxu0 %v7971
          %8340 = vmatprep.mubr.bf16.mxu0 %v7116
          %8341 = vmatmul.mubr.bf16.gmra.mrb[0].mxu0 %v7115
          %v8342 = vpop.f32.mrb[0].mxu0
          %v8343 = vadd.f32 %v8303, %v8342
          %v8344 = vpop.f32.mrb[0].mxu0
          %v8345 = vpop.f32.mrb[0].mxu0
          %v8346 = vpop.f32.mrb[0].mxu0
          %8347 = vdwg.mxu0
          %8348 = vmatprep.subr.bf16.mxu0 0
          %8349 = vmatpush1.bf16.msra.mxu0 %v7972
          %8350 = vmatprep.subr.bf16.mxu0 0
          %8351 = vmatpush1.bf16.msra.mxu0 %v7973
          %8352 = vmatprep.subr.bf16.mxu0 0
          %8353 = vmatpush1.bf16.msra.mxu0 %v7974
          %8354 = vmatprep.subr.bf16.mxu0 0
          %8355 = vmatpush1.bf16.msra.mxu0 %v7975
          %8356 = vmatprep.subr.bf16.mxu0 0
          %8357 = vmatpush1.bf16.msra.mxu0 %v7976
          %8358 = vmatprep.subr.bf16.mxu0 0
          %8359 = vmatpush1.bf16.msra.mxu0 %v7977
          %8360 = vmatprep.subr.bf16.mxu0 0
          %8361 = vmatpush1.bf16.msra.mxu0 %v7978
          %8362 = vmatprep.subr.bf16.mxu0 0
          %8363 = vmatpush1.bf16.msra.mxu0 %v7979
          %8364 = vmatprep.subr.bf16.mxu0 0
          %8365 = vmatpush1.bf16.msra.mxu0 %v7980
          %8366 = vmatprep.subr.bf16.mxu0 0
          %8367 = vmatpush1.bf16.msra.mxu0 %v7981
          %8368 = vmatprep.subr.bf16.mxu0 0
          %8369 = vmatpush1.bf16.msra.mxu0 %v7982
          %8370 = vmatprep.subr.bf16.mxu0 0
          %8371 = vmatpush1.bf16.msra.mxu0 %v7983
          %8372 = vmatprep.subr.bf16.mxu0 0
          %8373 = vmatpush1.bf16.msra.mxu0 %v7984
          %8374 = vmatprep.subr.bf16.mxu0 0
          %8375 = vmatpush1.bf16.msra.mxu0 %v7985
          %8376 = vmatprep.subr.bf16.mxu0 0
          %8377 = vmatpush1.bf16.msra.mxu0 %v7986
          %8378 = vmatprep.subr.bf16.mxu0 0
          %8379 = vmatpush1.bf16.msra.mxu0 %v7987
          %8380 = vmatprep.mubr.bf16.mxu0 %v7118
          %8381 = vmatmul.mubr.bf16.gmra.mrb[0].mxu0 %v7117
          %v8382 = vpop.f32.mrb[0].mxu0
          %v8383 = vadd.f32 %v8343, %v8382
          %v8384 = vpop.f32.mrb[0].mxu0
          %v8385 = vpop.f32.mrb[0].mxu0
          %v8386 = vpop.f32.mrb[0].mxu0
          %8387 = vdwg.mxu0
          %8388 = vmatprep.subr.bf16.mxu0 0
          %8389 = vmatpush1.bf16.msra.mxu0 %v7988
          %8390 = vmatprep.subr.bf16.mxu0 0
          %8391 = vmatpush1.bf16.msra.mxu0 %v7989
          %8392 = vmatprep.subr.bf16.mxu0 0
          %8393 = vmatpush1.bf16.msra.mxu0 %v7990
          %8394 = vmatprep.subr.bf16.mxu0 0
          %8395 = vmatpush1.bf16.msra.mxu0 %v7991
          %8396 = vmatprep.subr.bf16.mxu0 0
          %8397 = vmatpush1.bf16.msra.mxu0 %v7992
          %8398 = vmatprep.subr.bf16.mxu0 0
          %8399 = vmatpush1.bf16.msra.mxu0 %v7993
          %8400 = vmatprep.subr.bf16.mxu0 0
          %8401 = vmatpush1.bf16.msra.mxu0 %v7994
          %8402 = vmatprep.subr.bf16.mxu0 0
          %8403 = vmatpush1.bf16.msra.mxu0 %v7995
          %8404 = vmatprep.subr.bf16.mxu0 0
          %8405 = vmatpush1.bf16.msra.mxu0 %v7996
          %8406 = vmatprep.subr.bf16.mxu0 0
          %8407 = vmatpush1.bf16.msra.mxu0 %v7997
          %8408 = vmatprep.subr.bf16.mxu0 0
          %8409 = vmatpush1.bf16.msra.mxu0 %v7998
          %8410 = vmatprep.subr.bf16.mxu0 0
          %8411 = vmatpush1.bf16.msra.mxu0 %v7999
          %8412 = vmatprep.subr.bf16.mxu0 0
          %8413 = vmatpush1.bf16.msra.mxu0 %v8000
          %8414 = vmatprep.subr.bf16.mxu0 0
          %8415 = vmatpush1.bf16.msra.mxu0 %v8001
          %8416 = vmatprep.subr.bf16.mxu0 0
          %8417 = vmatpush1.bf16.msra.mxu0 %v8002
          %8418 = vmatprep.subr.bf16.mxu0 0
          %8419 = vmatpush1.bf16.msra.mxu0 %v8003
          %8420 = vmatprep.mubr.bf16.mxu0 %v7120
          %8421 = vmatmul.mubr.bf16.gmra.mrb[0].mxu0 %v7119
          %v8422 = vpop.f32.mrb[0].mxu0
          %v8423 = vadd.f32 %v8383, %v8422
          %v8424 = vpop.f32.mrb[0].mxu0
          %v8425 = vpop.f32.mrb[0].mxu0
          %v8426 = vpop.f32.mrb[0].mxu0
          %8427 = vdwg.mxu0
          %8428 = vmatprep.subr.bf16.mxu0 0
          %8429 = vmatpush1.bf16.msra.mxu0 %v8004
          %8430 = vmatprep.subr.bf16.mxu0 0
          %8431 = vmatpush1.bf16.msra.mxu0 %v8005
          %8432 = vmatprep.subr.bf16.mxu0 0
          %8433 = vmatpush1.bf16.msra.mxu0 %v8006
          %8434 = vmatprep.subr.bf16.mxu0 0
          %8435 = vmatpush1.bf16.msra.mxu0 %v8007
          %8436 = vmatprep.subr.bf16.mxu0 0
          %8437 = vmatpush1.bf16.msra.mxu0 %v8008
          %8438 = vmatprep.subr.bf16.mxu0 0
          %8439 = vmatpush1.bf16.msra.mxu0 %v8009
          %8440 = vmatprep.subr.bf16.mxu0 0
          %8441 = vmatpush1.bf16.msra.mxu0 %v8010
          %8442 = vmatprep.subr.bf16.mxu0 0
          %8443 = vmatpush1.bf16.msra.mxu0 %v8011
          %8444 = vmatprep.subr.bf16.mxu0 0
          %8445 = vmatpush1.bf16.msra.mxu0 %v8012
          %8446 = vmatprep.subr.bf16.mxu0 0
          %8447 = vmatpush1.bf16.msra.mxu0 %v8013
          %8448 = vmatprep.subr.bf16.mxu0 0
          %8449 = vmatpush1.bf16.msra.mxu0 %v8014
          %8450 = vmatprep.subr.bf16.mxu0 0
          %8451 = vmatpush1.bf16.msra.mxu0 %v8015
          %8452 = vmatprep.subr.bf16.mxu0 0
          %8453 = vmatpush1.bf16.msra.mxu0 %v8016
          %8454 = vmatprep.subr.bf16.mxu0 0
          %8455 = vmatpush1.bf16.msra.mxu0 %v8017
          %8456 = vmatprep.subr.bf16.mxu0 0
          %8457 = vmatpush1.bf16.msra.mxu0 %v8018
          %8458 = vmatprep.subr.bf16.mxu0 0
          %8459 = vmatpush1.bf16.msra.mxu0 %v8019
          %8460 = vmatprep.mubr.bf16.mxu0 %v7122
          %8461 = vmatmul.mubr.bf16.gmra.mrb[0].mxu0 %v7121
          %v8462 = vpop.f32.mrb[0].mxu0
          %v8463 = vadd.f32 %v8423, %v8462
          %v8464 = vpop.f32.mrb[0].mxu0
          %v8465 = vpop.f32.mrb[0].mxu0
          %v8466 = vpop.f32.mrb[0].mxu0
          %8467 = vdwg.mxu0
          %8468 = vst [vmem:[%s305] sm:$0x1] %v8463
        $region56: #{tpu_custom_call.1} parent=47 // pred_fallthru
          _
        %s8469 = sand.u32 %s195, 1
        %s8470 = scalar_lea.sflag [#allocation4], %s8469
        %s8471 = sand.u32 %s195, 1
        %s8472 = scalar_lea.vmem [#allocation3], %s8471
        // Predicated region
        $region57: #{tpu_custom_call.1} parent=47 // pred_check
          %p8473 = pneg %p205
        $region58: #{tpu_custom_call.1} parent=47 // pred_check_branch
          %8475 = sbr.rel (%p8473) target = $region60
        $region59: #{tpu_custom_call.1} parent=47 // pred_region
          %s8477 = ssub.s32 16, 16
          %8478 = vsyncadd %s8470, %s8477
          %s8479 = smul.addr %s25, 16
          %s8480 = scalar_lea.hbm %s7, %s8479
          %s8482 = sshll.u32 %s8472, 4
          %s8483 = int_to_ptr.vmem [resolvable:$true] %s8482
          %8485 = dma.vmem_to_hbm [thread:$0]  %s8483, 16, %s8480, %s8470
        $region60: #{tpu_custom_call.1} parent=47 // pred_fallthru
          _
      $region48: #{tpu_custom_call.1} parent=5 // pred_fallthru
        _
      %p8486 = scmp.le.s32.totalorder 2, %s16
      // Predicated region
      $region61: #{tpu_custom_call.1} parent=5 // pred_check
        %p8487 = pneg %p8486
      $region62: #{tpu_custom_call.1} parent=5 // pred_check_branch
        %8489 = sbr.rel (%p8487) target = $region64
      $region63: #{tpu_custom_call.1} parent=5 // pred_region
        %s8490 = ssub.s32 %s16, 2
        // Predicated region
        $region65: #{tpu_custom_call.1} parent=63 // pred_check
          %p8491 = pneg %p211
        $region66: #{tpu_custom_call.1} parent=63 // pred_check_branch
          %8493 = sbr.rel (%p8491) target = $region68
        $region67: #{tpu_custom_call.1} parent=63 // pred_region
          %s8494 = sand.u32 %s196, 1
          %s8495 = scalar_lea.sflag [#allocation4], %s8494
          %s8496 = sand.u32 %s196, 1
          %s8497 = scalar_lea.vmem [#allocation3], %s8496
          %8498 = dma.done %s8495, 16
        $region68: #{tpu_custom_call.1} parent=63 // pred_fallthru
          _
      $region64: #{tpu_custom_call.1} parent=5 // pred_fallthru
        _
    $region6: #{tpu_custom_call.1} parent=1 // loop_footer
      %s20 = sadd.s32 1, %s16
    $region7: #{tpu_custom_call.1} parent=1 // loop_footer_branch
      %15 = sbr.rel target = $region3
    $region8: #{tpu_custom_call.1} parent=1 // loop_exit
      _
    %8499 = vsyncpa [#allocation4], 1
    %s8500 = scalar_lea.sflag [#allocation4], 1
    %8501 = vsyncpa %s8500, 1

</llo_original>
